<compile_context>
chip_gen: v7x
topology: tpu7x:2x2x1
jax: 0.10.0
libtpu: 0.0.40
codegen_flags: <defaults>
</compile_context>

<pallas_src>
import functools

import jax
import jax.numpy as jnp
from jax.experimental import pallas as pl
from jax.experimental.pallas import tpu as pltpu

EPS = 1e-5          # nn.BatchNorm1d default eps
NEG_SLOPE = 0.01    # LeakyReLU negative_slope (module uses 0.01; the a=0.1 in
                    # kaiming init is only the init gain, not the activation)
MAX_DISP = 5        # Prototype default max_displacement

_FUSED_VMEM_BUDGET = 8 * 1024 * 1024  # stay under every gen's scoped default


def _round_up(x, m):
    return ((x + m - 1) // m) * m


# ---------------------------------------------------------------------------
# Conv1d (shifted matmuls) + BatchNorm1d (batch stats) + LeakyReLU
# ---------------------------------------------------------------------------
def _conv_z(x_ref, w_ref, b, n_shift, l_out):
    """f32 conv output for batch row `b`: sum of n_shift shifted matmuls."""
    acc = jnp.dot(x_ref[b, 0:l_out, :], w_ref[0],
                  preferred_element_type=jnp.float32)
    for s in range(1, n_shift):          # static unroll (n_shift <= 3)
        acc = acc + jnp.dot(x_ref[b, s:s + l_out, :], w_ref[s],
                            preferred_element_type=jnp.float32)
    return acc


def _conv_bn_lrelu_fused_kernel(x_ref, w_ref, g_ref, beta_ref, o_ref, z_ref,
                                *, n_shift, l_out):
    # Whole layer in one invocation: conv -> batch stats -> BN -> LeakyReLU.
    # x: (B, Lw, Cwp) bf16   w: (n_shift, Cwp, Coutp) bf16
    # g/beta: (1, Coutp) f32   o: (B, l_out, Coutp)   z scratch: f32
    nb = x_ref.shape[0]
    coutp = o_ref.shape[-1]
    ssum = jnp.zeros((1, coutp), jnp.float32)
    ssq = jnp.zeros((1, coutp), jnp.float32)
    for b in range(nb):                  # static unroll over small batch
        z = _conv_z(x_ref, w_ref, b, n_shift, l_out)
        z_ref[b] = z
        ssum = ssum + jnp.sum(z, axis=0, keepdims=True)
        ssq = ssq + jnp.sum(z * z, axis=0, keepdims=True)
    inv_n = 1.0 / float(nb * l_out)
    mean = ssum * inv_n
    var = jnp.maximum(ssq * inv_n - mean * mean, 0.0)   # biased variance
    scale = g_ref[...] * jax.lax.rsqrt(var + EPS)
    shift = beta_ref[...] - mean * scale
    for b in range(nb):
        y = z_ref[b] * scale + shift
        o_ref[b] = jnp.where(y >= 0.0, y, NEG_SLOPE * y).astype(o_ref.dtype)


def _conv_stats_kernel(x_ref, w_ref, stats_ref, *, n_shift, l_out):
    # Per-batch partial sums (fully parallel grid -> megacore-friendly).
    z = _conv_z(x_ref, w_ref, 0, n_shift, l_out)
    s0 = jnp.sum(z, axis=0, keepdims=True)
    s1 = jnp.sum(z * z, axis=0, keepdims=True)
    stats_ref[0] = jnp.concatenate([s0, s1], axis=0)


def _conv_bn_lrelu_kernel(x_ref, w_ref, scale_ref, shift_ref, o_ref,
                          *, n_shift, l_out):
    # Recompute the matmul (cheaper than a z round-trip through HBM since
    # the input width Cw is small vs. Coutp) then apply folded BN + LeakyReLU.
    z = _conv_z(x_ref, w_ref, 0, n_shift, l_out)
    y = z * scale_ref[...] + shift_ref[...]
    o_ref[0] = jnp.where(y >= 0.0, y, NEG_SLOPE * y).astype(o_ref.dtype)


def conv_bn_lrelu(x_nlc, w, gamma, beta, *, kernel_size, stride, padding,
                  out_dtype=jnp.bfloat16):
    """Conv1d (bias-free) + BatchNorm1d (batch statistics) + LeakyReLU.

    x_nlc: (B, L, Cin) channel-last.  w: (Cout, Cin, K) (PyTorch layout).
    The conv bias is intentionally omitted: with training-mode batch
    statistics it is exactly cancelled by the BN mean subtraction.
    Returns (B, Lout, Cout) in `out_dtype`.
    """
    B, L, Cin = x_nlc.shape
    Cout, _, K = w.shape
    assert K == kernel_size
    Lout = (L + 2 * padding - K) // stride + 1
    n_shift = -(-K // stride)                 # ceil(K / stride)
    Lw = Lout + n_shift - 1                   # rows of the grouped input view
    Cw = stride * Cin                         # channels of the grouped view
    Cwp = _round_up(Cw, 16)                   # bf16 sublane packing
    Coutp = _round_up(Cout, 128)              # lane-dense output channels

    # Input view: zero-pad L (conv padding + group alignment), then a *free*
    # row-major reshape groups `stride` consecutive rows into one row of
    # stride*Cin channels -> every conv tap is a contiguous sublane shift of
    # the same buffer (no im2col patch inflation in HBM).
    pad_r = stride * Lw - L - padding
    xw = jnp.pad(x_nlc.astype(jnp.bfloat16),
                 ((0, 0), (padding, pad_r), (0, 0)))
    xw = xw.reshape(B, Lw, Cw)
    if Cwp != Cw:
        xw = jnp.pad(xw, ((0, 0), (0, 0), (0, Cwp - Cw)))

    # Weights regrouped to match: ww[q] multiplies the view shifted by q rows.
    wt = jnp.transpose(w, (2, 1, 0))                          # (K, Cin, Cout)
    wt = jnp.pad(wt, ((0, n_shift * stride - K), (0, 0), (0, Coutp - Cout)))
    ww = wt.reshape(n_shift, Cw, Coutp)
    if Cwp != Cw:
        ww = jnp.pad(ww, ((0, 0), (0, Cwp - Cw), (0, 0)))
    ww = ww.astype(jnp.bfloat16)

    gp = jnp.pad(gamma.astype(jnp.float32), (0, Coutp - Cout),
                 constant_values=1.0).reshape(1, Coutp)
    bp = jnp.pad(beta.astype(jnp.float32),
                 (0, Coutp - Cout)).reshape(1, Coutp)

    out_shape = jax.ShapeDtypeStruct((B, Lout, Coutp), out_dtype)
    kern_kw = dict(n_shift=n_shift, l_out=Lout)

    fused_bytes = (xw.size * 2 + ww.size * 2
                   + B * Lout * Coutp * 4                     # f32 z scratch
                   + B * Lout * Coutp * jnp.dtype(out_dtype).itemsize)

    if fused_bytes <= _FUSED_VMEM_BUDGET:
        # Single pallas_call: everything VMEM-resident, no stats round-trip.
        out = pl.pallas_call(
            functools.partial(_conv_bn_lrelu_fused_kernel, **kern_kw),
            out_shape=out_shape,
            scratch_shapes=[pltpu.VMEM((B, Lout, Coutp), jnp.float32)],
        )(xw, ww, gp, bp)
    else:
        # Two pipelined passes, one batch row per grid step; weights stay
        # VMEM-resident via constant index maps.
        x_spec = pl.BlockSpec((1, Lw, Cwp), lambda b: (b, 0, 0))
        w_spec = pl.BlockSpec((n_shift, Cwp, Coutp), lambda b: (0, 0, 0))
        vec_spec = pl.BlockSpec((1, Coutp), lambda b: (0, 0))

        stats = pl.pallas_call(
            functools.partial(_conv_stats_kernel, **kern_kw),
            grid=(B,),
            in_specs=[x_spec, w_spec],
            out_specs=pl.BlockSpec((1, 2, Coutp), lambda b: (b, 0, 0)),
            out_shape=jax.ShapeDtypeStruct((B, 2, Coutp), jnp.float32),
            compiler_params=pltpu.CompilerParams(
                dimension_semantics=("parallel",)),
        )(xw, ww)

        # Fold BN into a per-channel scale/shift (tiny XLA glue).
        tot = jnp.sum(stats, axis=0)
        inv_n = 1.0 / float(B * Lout)
        mean = tot[0] * inv_n
        var = jnp.maximum(tot[1] * inv_n - mean * mean, 0.0)
        scale = (gp[0] * jax.lax.rsqrt(var + EPS)).reshape(1, Coutp)
        shift = (bp[0] - mean * scale[0]).reshape(1, Coutp)

        out = pl.pallas_call(
            functools.partial(_conv_bn_lrelu_kernel, **kern_kw),
            grid=(B,),
            in_specs=[x_spec, w_spec, vec_spec, vec_spec],
            out_specs=pl.BlockSpec((1, Lout, Coutp), lambda b: (b, 0, 0)),
            out_shape=out_shape,
            compiler_params=pltpu.CompilerParams(
                dimension_semantics=("parallel",)),
        )(xw, ww, scale, shift)
        # TODO(synk): halo-tiled Lout grid axis for scans long enough that a
        # single batch row (x + out blocks) no longer fits scoped VMEM.

    if Coutp != Cout:
        out = out[..., :Cout]
    return out


# ---------------------------------------------------------------------------
# Correlation "fusion": band-limited — 11 shifted multiply + lane reductions.
# ---------------------------------------------------------------------------
def _fusion_band_kernel(p1_ref, p2e_ref, o_ref):
    # p1: (1, N, CK)   p2e: (1, N + 2*MAX_DISP, CK) clamp-replicated patches
    # o : (1, N, 2*MAX_DISP + 1) f32.
    # Output stays channel-last on purpose: it is tiny (11 lanes) and is
    # consumed channel-last by the decoder concat, so a lane-dense (11, N)
    # layout would just move the transpose into XLA glue after the kernel.
    p1 = p1_ref[0].astype(jnp.float32)     # f32 multiply (v5e has no bf16 VALU)
    p2e = p2e_ref[0].astype(jnp.float32)
    n = p1.shape[0]
    cols = []
    for d in range(2 * MAX_DISP + 1):      # static unroll (11 displacements)
        sh = p2e[d:d + n, :]               # rows clamp(i + d - MAX_DISP)
        cols.append(jnp.sum(p1 * sh, axis=-1, keepdims=True))   # (n, 1)
    o_ref[0] = jnp.concatenate(cols, axis=-1).astype(o_ref.dtype)
    # NOTE: the reference's `a = feat_fused / feat_fused[0, 0]` is dead code.


def fusion(feat1_nlc, feat2_nlc, kernel_size=3):
    """Reference `_fusion` semantics (clamped 3-wide patches, clamped
    displacement indices), band-limited to the 2*MAX_DISP+1 needed shifts."""
    B, N, C = feat1_nlc.shape
    CK = C * kernel_size

    def patches(x):
        # clamp-padded 3-wide patches, flattened to (B, N, C*K)
        xe = jnp.concatenate([x[:, :1, :], x, x[:, -1:, :]], axis=1)
        cols = [xe[:, k:k + N, :] for k in range(kernel_size)]
        return jnp.stack(cols, axis=-1).reshape(B, N, CK).astype(jnp.bfloat16)

    p1 = patches(feat1_nlc)
    p2 = patches(feat2_nlc)
    # edge-replicate patch rows so every displacement is a static in-kernel slice
    p2e = jnp.concatenate(
        [jnp.repeat(p2[:, :1, :], MAX_DISP, axis=1), p2,
         jnp.repeat(p2[:, -1:, :], MAX_DISP, axis=1)], axis=1)

    ndisp = 2 * MAX_DISP + 1
    return pl.pallas_call(
        _fusion_band_kernel,
        grid=(B,),
        in_specs=[pl.BlockSpec((1, N, CK), lambda b: (b, 0, 0)),
                  pl.BlockSpec((1, N + 2 * MAX_DISP, CK), lambda b: (b, 0, 0))],
        out_specs=pl.BlockSpec((1, N, ndisp), lambda b: (b, 0, 0)),
        out_shape=jax.ShapeDtypeStruct((B, N, ndisp), jnp.float32),
        compiler_params=pltpu.CompilerParams(dimension_semantics=("parallel",)),
    )(p1, p2e)
    # TODO(synk): halo-tiled N grid axis so the per-batch CK-wide blocks stay
    # inside v5e's 16 MiB / v7x's 32 MiB scoped VMEM for very long scans.


# ---------------------------------------------------------------------------
# Glue: nearest-neighbour upsample (F.interpolate mode='nearest')
# ---------------------------------------------------------------------------
def upsample_nearest(x_nlc, size):
    L_in = x_nlc.shape[1]
    idx = (jnp.arange(size) * L_in) // size    # floor(dst * L_in / L_out)
    return x_nlc[:, idx, :]


# ---------------------------------------------------------------------------
# Parameter construction (deterministic, mirrors module __init__ shapes)
# ---------------------------------------------------------------------------
def _kaiming_normal(key, shape, fan_in, a=0.1):
    gain = (2.0 / (1.0 + a * a)) ** 0.5
    return jax.random.normal(key, shape, dtype=jnp.float32) * (gain / fan_in ** 0.5)


def make_conv_bn(key, cin, cout, k):
    kw, kb = jax.random.split(key)
    w = _kaiming_normal(kw, (cout, cin, k), cin * k)
    bound = 1.0 / (cin * k) ** 0.5
    # Conv bias kept only for parameter parity with the module; it is unused
    # because training-mode BN cancels it exactly.
    b = jax.random.uniform(kb, (cout,), minval=-bound, maxval=bound,
                           dtype=jnp.float32)
    gamma = jnp.ones((cout,), jnp.float32)    # BN weight init = 1
    beta = jnp.zeros((cout,), jnp.float32)    # BN bias init = 0
    return dict(w=w, b=b, gamma=gamma, beta=beta)


# ---------------------------------------------------------------------------
# Prototype.forward
# ---------------------------------------------------------------------------
def prototype_forward(params, scan1, scan2=None):
    """scan1/scan2: (B, n_pts, in_channel) — same calling convention as the
    PyTorch module (which permutes internally)."""
    same_input = scan2 is None                       # trace-time check
    if same_input:
        scan2 = scan1

    def enc(p, x, stride, k=3, pad=1, out_dtype=jnp.bfloat16):
        return conv_bn_lrelu(x, p["w"], p["gamma"], p["beta"],
                             kernel_size=k, stride=stride, padding=pad,
                             out_dtype=out_dtype)

    # Encoders.  When scan2 is scan1 the second tower is identical (same
    # weights, same per-call batch statistics), so reuse its activations.
    f1_d0 = enc(params["encoder_0"], scan1, 2)                 # (B, N/2, 64)
    f2_d0 = f1_d0 if same_input else enc(params["encoder_0"], scan2, 2)
    f1_d1 = enc(params["encoder_1"], f1_d0, 2)                 # (B, N/4, 128)
    f2_d1 = f1_d1 if same_input else enc(params["encoder_1"], f2_d0, 2)
    f1_d2 = enc(params["encoder_2"], f1_d1, 2)                 # (B, N/8, 256)
    f2_d2 = f1_d2 if same_input else enc(params["encoder_2"], f2_d1, 2)

    feat = fusion(f1_d2, f2_d2)                                # (B, N/8, 11)

    # Decoder path: all glue (upsample gather + concat) stays in bf16.
    up1 = upsample_nearest(feat.astype(jnp.bfloat16), f1_d1.shape[1])
    up1 = jnp.concatenate([f1_d1, up1], axis=-1)               # (B, N/4, 139)
    up1 = enc(params["decoder_1"], up1, 1)                     # (B, N/4, 128)

    up0 = upsample_nearest(up1, f1_d0.shape[1])
    up0 = jnp.concatenate([f1_d0, up0], axis=-1)               # (B, N/2, 192)
    up0 = enc(params["decoder_0"], up0, 1)                     # (B, N/2, 128)

    out = upsample_nearest(up0, scan1.shape[1])
    out = jnp.concatenate([scan1.astype(jnp.bfloat16), out], axis=-1)
    p = params["flow_reg"]
    out = conv_bn_lrelu(out, p["w"], p["gamma"], p["beta"],
                        kernel_size=1, stride=1, padding=0,
                        out_dtype=jnp.float32)                 # (B, N, 2)
    return out                                                 # (B, n_pts, 2)


if __name__ == "__main__":
    key = jax.random.PRNGKey(0)
    ks = jax.random.split(key, 7)
    in_channel = 1
    batch, n_pts = 2, 64

    params = {
        "encoder_0": make_conv_bn(ks[0], in_channel, 64, 3),
        "encoder_1": make_conv_bn(ks[1], 64, 128, 3),
        "encoder_2": make_conv_bn(ks[2], 128, 256, 3),
        "decoder_1": make_conv_bn(ks[3], 2 * MAX_DISP + 1 + 128, 128, 3),
        "decoder_0": make_conv_bn(ks[4], 128 + 64, 128, 3),
        "flow_reg":  make_conv_bn(ks[5], 128 + in_channel, 2, 1),
    }

    scan1 = jax.random.normal(ks[6], (batch, n_pts, in_channel),
                              dtype=jnp.float32)

    fwd = jax.jit(prototype_forward)
    out = jax.block_until_ready(fwd(params, scan1))
    assert out.shape == (batch, n_pts, 2), out.shape
    assert bool(jnp.all(jnp.isfinite(out)))
    print("KERNEL_OK")
</pallas_src>

<mosaic_0001>
module attributes {stable_mosaic.version = 11 : i64} {
  func.func @_conv_bn_lrelu_fused_kernel(%arg0: memref<2x33x16xbf16, #tpu.memory_space<vmem>>, %arg1: memref<2x16x128xbf16, #tpu.memory_space<vmem>>, %arg2: memref<1x128xf32, #tpu.memory_space<vmem>>, %arg3: memref<1x128xf32, #tpu.memory_space<vmem>>, %arg4: memref<2x32x128xbf16, #tpu.memory_space<vmem>>, %arg5: memref<2x32x128xf32, #tpu.memory_space<vmem>>) attributes {dimension_semantics = [], scalar_prefetch = 0 : i64, scratch_operands = 1 : i64, tpu.core_type = #tpu.core_type<tc>} {
    %cst = arith.constant 0.000000e+00 : f32
    %0 = vector.broadcast %cst : f32 to vector<1x128xf32>
    %cst_0 = arith.constant 0.000000e+00 : f32
    %1 = vector.broadcast %cst_0 : f32 to vector<1x128xf32>
    %c0 = arith.constant 0 : index
    %c0_1 = arith.constant 0 : index
    %c0_2 = arith.constant 0 : index
    %2 = vector.load %arg0[%c0, %c0_1, %c0_2] : memref<2x33x16xbf16, #tpu.memory_space<vmem>>, vector<1x32x16xbf16>
    %3 = vector.shape_cast %2 : vector<1x32x16xbf16> to vector<32x16xbf16>
    %c0_3 = arith.constant 0 : index
    %c0_4 = arith.constant 0 : index
    %c0_5 = arith.constant 0 : index
    %4 = vector.load %arg1[%c0_3, %c0_4, %c0_5] : memref<2x16x128xbf16, #tpu.memory_space<vmem>>, vector<1x16x128xbf16>
    %5 = vector.shape_cast %4 : vector<1x16x128xbf16> to vector<16x128xbf16>
    %cst_6 = arith.constant dense<0.000000e+00> : vector<32x128xf32>
    %6 = tpu.matmul %3, %5, %cst_6 {dimension_numbers = #tpu.dot_dimension_numbers<[1], [0], [0], [1], [0, 0, 1, 1], [], []>} : vector<32x16xbf16>, vector<16x128xbf16>, vector<32x128xf32> -> vector<32x128xf32>
    %c0_7 = arith.constant 0 : index
    %c1 = arith.constant 1 : index
    %c0_8 = arith.constant 0 : index
    %7 = vector.load %arg0[%c0_7, %c1, %c0_8] : memref<2x33x16xbf16, #tpu.memory_space<vmem>>, vector<1x32x16xbf16>
    %8 = vector.shape_cast %7 : vector<1x32x16xbf16> to vector<32x16xbf16>
    %c1_9 = arith.constant 1 : index
    %c0_10 = arith.constant 0 : index
    %c0_11 = arith.constant 0 : index
    %9 = vector.load %arg1[%c1_9, %c0_10, %c0_11] : memref<2x16x128xbf16, #tpu.memory_space<vmem>>, vector<1x16x128xbf16>
    %10 = vector.shape_cast %9 : vector<1x16x128xbf16> to vector<16x128xbf16>
    %cst_12 = arith.constant dense<0.000000e+00> : vector<32x128xf32>
    %11 = tpu.matmul %8, %10, %cst_12 {dimension_numbers = #tpu.dot_dimension_numbers<[1], [0], [0], [1], [0, 0, 1, 1], [], []>} : vector<32x16xbf16>, vector<16x128xbf16>, vector<32x128xf32> -> vector<32x128xf32>
    %12 = arith.addf %6, %11 : vector<32x128xf32>
    %c0_13 = arith.constant 0 : index
    %c0_14 = arith.constant 0 : index
    %c0_15 = arith.constant 0 : index
    %13 = vector.load %arg5[%c0_13, %c0_14, %c0_15] : memref<2x32x128xf32, #tpu.memory_space<vmem>>, vector<1x32x128xf32>
    %14 = vector.shape_cast %13 : vector<1x32x128xf32> to vector<32x128xf32>
    %15 = vector.shape_cast %12 : vector<32x128xf32> to vector<1x32x128xf32>
    tpu.vector_store %arg5[%c0_13, %c0_14, %c0_15], %15 {strides = array<i32>} : memref<2x32x128xf32, #tpu.memory_space<vmem>>, vector<1x32x128xf32>,
    %cst_16 = arith.constant dense<0.000000e+00> : vector<128xf32>
    %16 = vector.multi_reduction <add>, %12, %cst_16 [0] : vector<32x128xf32> to vector<128xf32>
    %17 = vector.shape_cast %16 : vector<128xf32> to vector<1x128xf32>
    %18 = arith.addf %0, %17 : vector<1x128xf32>
    %19 = arith.mulf %12, %12 : vector<32x128xf32>
    %cst_17 = arith.constant dense<0.000000e+00> : vector<128xf32>
    %20 = vector.multi_reduction <add>, %19, %cst_17 [0] : vector<32x128xf32> to vector<128xf32>
    %21 = vector.shape_cast %20 : vector<128xf32> to vector<1x128xf32>
    %22 = arith.addf %1, %21 : vector<1x128xf32>
    %c1_18 = arith.constant 1 : index
    %c0_19 = arith.constant 0 : index
    %c0_20 = arith.constant 0 : index
    %23 = vector.load %arg0[%c1_18, %c0_19, %c0_20] : memref<2x33x16xbf16, #tpu.memory_space<vmem>>, vector<1x32x16xbf16>
    %24 = vector.shape_cast %23 : vector<1x32x16xbf16> to vector<32x16xbf16>
    %c0_21 = arith.constant 0 : index
    %c0_22 = arith.constant 0 : index
    %c0_23 = arith.constant 0 : index
    %25 = vector.load %arg1[%c0_21, %c0_22, %c0_23] : memref<2x16x128xbf16, #tpu.memory_space<vmem>>, vector<1x16x128xbf16>
    %26 = vector.shape_cast %25 : vector<1x16x128xbf16> to vector<16x128xbf16>
    %cst_24 = arith.constant dense<0.000000e+00> : vector<32x128xf32>
    %27 = tpu.matmul %24, %26, %cst_24 {dimension_numbers = #tpu.dot_dimension_numbers<[1], [0], [0], [1], [0, 0, 1, 1], [], []>} : vector<32x16xbf16>, vector<16x128xbf16>, vector<32x128xf32> -> vector<32x128xf32>
    %c1_25 = arith.constant 1 : index
    %c1_26 = arith.constant 1 : index
    %c0_27 = arith.constant 0 : index
    %28 = vector.load %arg0[%c1_25, %c1_26, %c0_27] : memref<2x33x16xbf16, #tpu.memory_space<vmem>>, vector<1x32x16xbf16>
    %29 = vector.shape_cast %28 : vector<1x32x16xbf16> to vector<32x16xbf16>
    %c1_28 = arith.constant 1 : index
    %c0_29 = arith.constant 0 : index
    %c0_30 = arith.constant 0 : index
    %30 = vector.load %arg1[%c1_28, %c0_29, %c0_30] : memref<2x16x128xbf16, #tpu.memory_space<vmem>>, vector<1x16x128xbf16>
    %31 = vector.shape_cast %30 : vector<1x16x128xbf16> to vector<16x128xbf16>
    %cst_31 = arith.constant dense<0.000000e+00> : vector<32x128xf32>
    %32 = tpu.matmul %29, %31, %cst_31 {dimension_numbers = #tpu.dot_dimension_numbers<[1], [0], [0], [1], [0, 0, 1, 1], [], []>} : vector<32x16xbf16>, vector<16x128xbf16>, vector<32x128xf32> -> vector<32x128xf32>
    %33 = arith.addf %27, %32 : vector<32x128xf32>
    %c1_32 = arith.constant 1 : index
    %c0_33 = arith.constant 0 : index
    %c0_34 = arith.constant 0 : index
    %34 = vector.load %arg5[%c1_32, %c0_33, %c0_34] : memref<2x32x128xf32, #tpu.memory_space<vmem>>, vector<1x32x128xf32>
    %35 = vector.shape_cast %34 : vector<1x32x128xf32> to vector<32x128xf32>
    %36 = vector.shape_cast %33 : vector<32x128xf32> to vector<1x32x128xf32>
    tpu.vector_store %arg5[%c1_32, %c0_33, %c0_34], %36 {strides = array<i32>} : memref<2x32x128xf32, #tpu.memory_space<vmem>>, vector<1x32x128xf32>,
    %cst_35 = arith.constant dense<0.000000e+00> : vector<128xf32>
    %37 = vector.multi_reduction <add>, %33, %cst_35 [0] : vector<32x128xf32> to vector<128xf32>
    %38 = vector.shape_cast %37 : vector<128xf32> to vector<1x128xf32>
    %39 = arith.addf %18, %38 : vector<1x128xf32>
    %40 = arith.mulf %33, %33 : vector<32x128xf32>
    %cst_36 = arith.constant dense<0.000000e+00> : vector<128xf32>
    %41 = vector.multi_reduction <add>, %40, %cst_36 [0] : vector<32x128xf32> to vector<128xf32>
    %42 = vector.shape_cast %41 : vector<128xf32> to vector<1x128xf32>
    %43 = arith.addf %22, %42 : vector<1x128xf32>
    %cst_37 = arith.constant 1.562500e-02 : f32
    %44 = vector.broadcast %cst_37 : f32 to vector<1x128xf32>
    %45 = arith.mulf %39, %44 : vector<1x128xf32>
    %cst_38 = arith.constant 1.562500e-02 : f32
    %46 = vector.broadcast %cst_38 : f32 to vector<1x128xf32>
    %47 = arith.mulf %43, %46 : vector<1x128xf32>
    %48 = arith.mulf %45, %45 : vector<1x128xf32>
    %49 = arith.subf %47, %48 : vector<1x128xf32>
    %cst_39 = arith.constant 0.000000e+00 : f32
    %50 = vector.broadcast %cst_39 : f32 to vector<1x128xf32>
    %51 = arith.maximumf %49, %50 : vector<1x128xf32>
    %c0_40 = arith.constant 0 : index
    %c0_41 = arith.constant 0 : index
    %52 = vector.load %arg2[%c0_40, %c0_41] : memref<1x128xf32, #tpu.memory_space<vmem>>, vector<1x128xf32>
    %cst_42 = arith.constant 9.99999974E-6 : f32
    %53 = vector.broadcast %cst_42 : f32 to vector<1x128xf32>
    %54 = arith.addf %51, %53 : vector<1x128xf32>
    %55 = math.rsqrt %54 : vector<1x128xf32>
    %56 = arith.mulf %52, %55 : vector<1x128xf32>
    %c0_43 = arith.constant 0 : index
    %c0_44 = arith.constant 0 : index
    %57 = vector.load %arg3[%c0_43, %c0_44] : memref<1x128xf32, #tpu.memory_space<vmem>>, vector<1x128xf32>
    %58 = arith.mulf %45, %56 : vector<1x128xf32>
    %59 = arith.subf %57, %58 : vector<1x128xf32>
    %c0_45 = arith.constant 0 : index
    %c0_46 = arith.constant 0 : index
    %c0_47 = arith.constant 0 : index
    %60 = vector.load %arg5[%c0_45, %c0_46, %c0_47] : memref<2x32x128xf32, #tpu.memory_space<vmem>>, vector<1x32x128xf32>
    %61 = vector.shape_cast %60 : vector<1x32x128xf32> to vector<32x128xf32>
    %62 = vector.broadcast %56 : vector<1x128xf32> to vector<32x128xf32>
    %63 = arith.mulf %61, %62 : vector<32x128xf32>
    %64 = vector.broadcast %59 : vector<1x128xf32> to vector<32x128xf32>
    %65 = arith.addf %63, %64 : vector<32x128xf32>
    %cst_48 = arith.constant 0.000000e+00 : f32
    %66 = vector.broadcast %cst_48 : f32 to vector<32x128xf32>
    %67 = arith.cmpf oge, %65, %66 : vector<32x128xf32>
    %cst_49 = arith.constant 0.00999999977 : f32
    %68 = vector.broadcast %cst_49 : f32 to vector<32x128xf32>
    %69 = arith.mulf %68, %65 : vector<32x128xf32>
    %70 = arith.select %67, %65, %69 : vector<32x128xi1>, vector<32x128xf32>
    %71 = arith.truncf %70 : vector<32x128xf32> to vector<32x128xbf16>
    %c0_50 = arith.constant 0 : index
    %c0_51 = arith.constant 0 : index
    %c0_52 = arith.constant 0 : index
    %72 = vector.load %arg4[%c0_50, %c0_51, %c0_52] : memref<2x32x128xbf16, #tpu.memory_space<vmem>>, vector<1x32x128xbf16>
    %73 = vector.shape_cast %72 : vector<1x32x128xbf16> to vector<32x128xbf16>
    %74 = vector.shape_cast %71 : vector<32x128xbf16> to vector<1x32x128xbf16>
    tpu.vector_store %arg4[%c0_50, %c0_51, %c0_52], %74 {strides = array<i32>} : memref<2x32x128xbf16, #tpu.memory_space<vmem>>, vector<1x32x128xbf16>,
    %c1_53 = arith.constant 1 : index
    %c0_54 = arith.constant 0 : index
    %c0_55 = arith.constant 0 : index
    %75 = vector.load %arg5[%c1_53, %c0_54, %c0_55] : memref<2x32x128xf32, #tpu.memory_space<vmem>>, vector<1x32x128xf32>
    %76 = vector.shape_cast %75 : vector<1x32x128xf32> to vector<32x128xf32>
    %77 = vector.broadcast %56 : vector<1x128xf32> to vector<32x128xf32>
    %78 = arith.mulf %76, %77 : vector<32x128xf32>
    %79 = vector.broadcast %59 : vector<1x128xf32> to vector<32x128xf32>
    %80 = arith.addf %78, %79 : vector<32x128xf32>
    %cst_56 = arith.constant 0.000000e+00 : f32
    %81 = vector.broadcast %cst_56 : f32 to vector<32x128xf32>
    %82 = arith.cmpf oge, %80, %81 : vector<32x128xf32>
    %cst_57 = arith.constant 0.00999999977 : f32
    %83 = vector.broadcast %cst_57 : f32 to vector<32x128xf32>
    %84 = arith.mulf %83, %80 : vector<32x128xf32>
    %85 = arith.select %82, %80, %84 : vector<32x128xi1>, vector<32x128xf32>
    %86 = arith.truncf %85 : vector<32x128xf32> to vector<32x128xbf16>
    %c1_58 = arith.constant 1 : index
    %c0_59 = arith.constant 0 : index
    %c0_60 = arith.constant 0 : index
    %87 = vector.load %arg4[%c1_58, %c0_59, %c0_60] : memref<2x32x128xbf16, #tpu.memory_space<vmem>>, vector<1x32x128xbf16>
    %88 = vector.shape_cast %87 : vector<1x32x128xbf16> to vector<32x128xbf16>
    %89 = vector.shape_cast %86 : vector<32x128xbf16> to vector<1x32x128xbf16>
    tpu.vector_store %arg4[%c1_58, %c0_59, %c0_60], %89 {strides = array<i32>} : memref<2x32x128xbf16, #tpu.memory_space<vmem>>, vector<1x32x128xbf16>,
    return
  }
}

module attributes {stable_mosaic.version = 11 : i64} {
  func.func @_conv_bn_lrelu_fused_kernel(%arg0: memref<2x17x128xbf16, #tpu.memory_space<vmem>>, %arg1: memref<2x128x128xbf16, #tpu.memory_space<vmem>>, %arg2: memref<1x128xf32, #tpu.memory_space<vmem>>, %arg3: memref<1x128xf32, #tpu.memory_space<vmem>>, %arg4: memref<2x16x128xbf16, #tpu.memory_space<vmem>>, %arg5: memref<2x16x128xf32, #tpu.memory_space<vmem>>) attributes {dimension_semantics = [], scalar_prefetch = 0 : i64, scratch_operands = 1 : i64, tpu.core_type = #tpu.core_type<tc>} {
    %cst = arith.constant 0.000000e+00 : f32
    %0 = vector.broadcast %cst : f32 to vector<1x128xf32>
    %cst_0 = arith.constant 0.000000e+00 : f32
    %1 = vector.broadcast %cst_0 : f32 to vector<1x128xf32>
    %c0 = arith.constant 0 : index
    %c0_1 = arith.constant 0 : index
    %c0_2 = arith.constant 0 : index
    %2 = vector.load %arg0[%c0, %c0_1, %c0_2] : memref<2x17x128xbf16, #tpu.memory_space<vmem>>, vector<1x16x128xbf16>
    %3 = vector.shape_cast %2 : vector<1x16x128xbf16> to vector<16x128xbf16>
    %c0_3 = arith.constant 0 : index
    %c0_4 = arith.constant 0 : index
    %c0_5 = arith.constant 0 : index
    %4 = vector.load %arg1[%c0_3, %c0_4, %c0_5] : memref<2x128x128xbf16, #tpu.memory_space<vmem>>, vector<1x128x128xbf16>
    %5 = vector.shape_cast %4 : vector<1x128x128xbf16> to vector<128x128xbf16>
    %cst_6 = arith.constant dense<0.000000e+00> : vector<16x128xf32>
    %6 = tpu.matmul %3, %5, %cst_6 {dimension_numbers = #tpu.dot_dimension_numbers<[1], [0], [0], [1], [0, 0, 1, 1], [], []>} : vector<16x128xbf16>, vector<128x128xbf16>, vector<16x128xf32> -> vector<16x128xf32>
    %c0_7 = arith.constant 0 : index
    %c1 = arith.constant 1 : index
    %c0_8 = arith.constant 0 : index
    %7 = vector.load %arg0[%c0_7, %c1, %c0_8] : memref<2x17x128xbf16, #tpu.memory_space<vmem>>, vector<1x16x128xbf16>
    %8 = vector.shape_cast %7 : vector<1x16x128xbf16> to vector<16x128xbf16>
    %c1_9 = arith.constant 1 : index
    %c0_10 = arith.constant 0 : index
    %c0_11 = arith.constant 0 : index
    %9 = vector.load %arg1[%c1_9, %c0_10, %c0_11] : memref<2x128x128xbf16, #tpu.memory_space<vmem>>, vector<1x128x128xbf16>
    %10 = vector.shape_cast %9 : vector<1x128x128xbf16> to vector<128x128xbf16>
    %cst_12 = arith.constant dense<0.000000e+00> : vector<16x128xf32>
    %11 = tpu.matmul %8, %10, %cst_12 {dimension_numbers = #tpu.dot_dimension_numbers<[1], [0], [0], [1], [0, 0, 1, 1], [], []>} : vector<16x128xbf16>, vector<128x128xbf16>, vector<16x128xf32> -> vector<16x128xf32>
    %12 = arith.addf %6, %11 : vector<16x128xf32>
    %c0_13 = arith.constant 0 : index
    %c0_14 = arith.constant 0 : index
    %c0_15 = arith.constant 0 : index
    %13 = vector.load %arg5[%c0_13, %c0_14, %c0_15] : memref<2x16x128xf32, #tpu.memory_space<vmem>>, vector<1x16x128xf32>
    %14 = vector.shape_cast %13 : vector<1x16x128xf32> to vector<16x128xf32>
    %15 = vector.shape_cast %12 : vector<16x128xf32> to vector<1x16x128xf32>
    tpu.vector_store %arg5[%c0_13, %c0_14, %c0_15], %15 {strides = array<i32>} : memref<2x16x128xf32, #tpu.memory_space<vmem>>, vector<1x16x128xf32>,
    %cst_16 = arith.constant dense<0.000000e+00> : vector<128xf32>
    %16 = vector.multi_reduction <add>, %12, %cst_16 [0] : vector<16x128xf32> to vector<128xf32>
    %17 = vector.shape_cast %16 : vector<128xf32> to vector<1x128xf32>
    %18 = arith.addf %0, %17 : vector<1x128xf32>
    %19 = arith.mulf %12, %12 : vector<16x128xf32>
    %cst_17 = arith.constant dense<0.000000e+00> : vector<128xf32>
    %20 = vector.multi_reduction <add>, %19, %cst_17 [0] : vector<16x128xf32> to vector<128xf32>
    %21 = vector.shape_cast %20 : vector<128xf32> to vector<1x128xf32>
    %22 = arith.addf %1, %21 : vector<1x128xf32>
    %c1_18 = arith.constant 1 : index
    %c0_19 = arith.constant 0 : index
    %c0_20 = arith.constant 0 : index
    %23 = vector.load %arg0[%c1_18, %c0_19, %c0_20] : memref<2x17x128xbf16, #tpu.memory_space<vmem>>, vector<1x16x128xbf16>
    %24 = vector.shape_cast %23 : vector<1x16x128xbf16> to vector<16x128xbf16>
    %c0_21 = arith.constant 0 : index
    %c0_22 = arith.constant 0 : index
    %c0_23 = arith.constant 0 : index
    %25 = vector.load %arg1[%c0_21, %c0_22, %c0_23] : memref<2x128x128xbf16, #tpu.memory_space<vmem>>, vector<1x128x128xbf16>
    %26 = vector.shape_cast %25 : vector<1x128x128xbf16> to vector<128x128xbf16>
    %cst_24 = arith.constant dense<0.000000e+00> : vector<16x128xf32>
    %27 = tpu.matmul %24, %26, %cst_24 {dimension_numbers = #tpu.dot_dimension_numbers<[1], [0], [0], [1], [0, 0, 1, 1], [], []>} : vector<16x128xbf16>, vector<128x128xbf16>, vector<16x128xf32> -> vector<16x128xf32>
    %c1_25 = arith.constant 1 : index
    %c1_26 = arith.constant 1 : index
    %c0_27 = arith.constant 0 : index
    %28 = vector.load %arg0[%c1_25, %c1_26, %c0_27] : memref<2x17x128xbf16, #tpu.memory_space<vmem>>, vector<1x16x128xbf16>
    %29 = vector.shape_cast %28 : vector<1x16x128xbf16> to vector<16x128xbf16>
    %c1_28 = arith.constant 1 : index
    %c0_29 = arith.constant 0 : index
    %c0_30 = arith.constant 0 : index
    %30 = vector.load %arg1[%c1_28, %c0_29, %c0_30] : memref<2x128x128xbf16, #tpu.memory_space<vmem>>, vector<1x128x128xbf16>
    %31 = vector.shape_cast %30 : vector<1x128x128xbf16> to vector<128x128xbf16>
    %cst_31 = arith.constant dense<0.000000e+00> : vector<16x128xf32>
    %32 = tpu.matmul %29, %31, %cst_31 {dimension_numbers = #tpu.dot_dimension_numbers<[1], [0], [0], [1], [0, 0, 1, 1], [], []>} : vector<16x128xbf16>, vector<128x128xbf16>, vector<16x128xf32> -> vector<16x128xf32>
    %33 = arith.addf %27, %32 : vector<16x128xf32>
    %c1_32 = arith.constant 1 : index
    %c0_33 = arith.constant 0 : index
    %c0_34 = arith.constant 0 : index
    %34 = vector.load %arg5[%c1_32, %c0_33, %c0_34] : memref<2x16x128xf32, #tpu.memory_space<vmem>>, vector<1x16x128xf32>
    %35 = vector.shape_cast %34 : vector<1x16x128xf32> to vector<16x128xf32>
    %36 = vector.shape_cast %33 : vector<16x128xf32> to vector<1x16x128xf32>
    tpu.vector_store %arg5[%c1_32, %c0_33, %c0_34], %36 {strides = array<i32>} : memref<2x16x128xf32, #tpu.memory_space<vmem>>, vector<1x16x128xf32>,
    %cst_35 = arith.constant dense<0.000000e+00> : vector<128xf32>
    %37 = vector.multi_reduction <add>, %33, %cst_35 [0] : vector<16x128xf32> to vector<128xf32>
    %38 = vector.shape_cast %37 : vector<128xf32> to vector<1x128xf32>
    %39 = arith.addf %18, %38 : vector<1x128xf32>
    %40 = arith.mulf %33, %33 : vector<16x128xf32>
    %cst_36 = arith.constant dense<0.000000e+00> : vector<128xf32>
    %41 = vector.multi_reduction <add>, %40, %cst_36 [0] : vector<16x128xf32> to vector<128xf32>
    %42 = vector.shape_cast %41 : vector<128xf32> to vector<1x128xf32>
    %43 = arith.addf %22, %42 : vector<1x128xf32>
    %cst_37 = arith.constant 3.125000e-02 : f32
    %44 = vector.broadcast %cst_37 : f32 to vector<1x128xf32>
    %45 = arith.mulf %39, %44 : vector<1x128xf32>
    %cst_38 = arith.constant 3.125000e-02 : f32
    %46 = vector.broadcast %cst_38 : f32 to vector<1x128xf32>
    %47 = arith.mulf %43, %46 : vector<1x128xf32>
    %48 = arith.mulf %45, %45 : vector<1x128xf32>
    %49 = arith.subf %47, %48 : vector<1x128xf32>
    %cst_39 = arith.constant 0.000000e+00 : f32
    %50 = vector.broadcast %cst_39 : f32 to vector<1x128xf32>
    %51 = arith.maximumf %49, %50 : vector<1x128xf32>
    %c0_40 = arith.constant 0 : index
    %c0_41 = arith.constant 0 : index
    %52 = vector.load %arg2[%c0_40, %c0_41] : memref<1x128xf32, #tpu.memory_space<vmem>>, vector<1x128xf32>
    %cst_42 = arith.constant 9.99999974E-6 : f32
    %53 = vector.broadcast %cst_42 : f32 to vector<1x128xf32>
    %54 = arith.addf %51, %53 : vector<1x128xf32>
    %55 = math.rsqrt %54 : vector<1x128xf32>
    %56 = arith.mulf %52, %55 : vector<1x128xf32>
    %c0_43 = arith.constant 0 : index
    %c0_44 = arith.constant 0 : index
    %57 = vector.load %arg3[%c0_43, %c0_44] : memref<1x128xf32, #tpu.memory_space<vmem>>, vector<1x128xf32>
    %58 = arith.mulf %45, %56 : vector<1x128xf32>
    %59 = arith.subf %57, %58 : vector<1x128xf32>
    %c0_45 = arith.constant 0 : index
    %c0_46 = arith.constant 0 : index
    %c0_47 = arith.constant 0 : index
    %60 = vector.load %arg5[%c0_45, %c0_46, %c0_47] : memref<2x16x128xf32, #tpu.memory_space<vmem>>, vector<1x16x128xf32>
    %61 = vector.shape_cast %60 : vector<1x16x128xf32> to vector<16x128xf32>
    %62 = vector.broadcast %56 : vector<1x128xf32> to vector<16x128xf32>
    %63 = arith.mulf %61, %62 : vector<16x128xf32>
    %64 = vector.broadcast %59 : vector<1x128xf32> to vector<16x128xf32>
    %65 = arith.addf %63, %64 : vector<16x128xf32>
    %cst_48 = arith.constant 0.000000e+00 : f32
    %66 = vector.broadcast %cst_48 : f32 to vector<16x128xf32>
    %67 = arith.cmpf oge, %65, %66 : vector<16x128xf32>
    %cst_49 = arith.constant 0.00999999977 : f32
    %68 = vector.broadcast %cst_49 : f32 to vector<16x128xf32>
    %69 = arith.mulf %68, %65 : vector<16x128xf32>
    %70 = arith.select %67, %65, %69 : vector<16x128xi1>, vector<16x128xf32>
    %71 = arith.truncf %70 : vector<16x128xf32> to vector<16x128xbf16>
    %c0_50 = arith.constant 0 : index
    %c0_51 = arith.constant 0 : index
    %c0_52 = arith.constant 0 : index
    %72 = vector.load %arg4[%c0_50, %c0_51, %c0_52] : memref<2x16x128xbf16, #tpu.memory_space<vmem>>, vector<1x16x128xbf16>
    %73 = vector.shape_cast %72 : vector<1x16x128xbf16> to vector<16x128xbf16>
    %74 = vector.shape_cast %71 : vector<16x128xbf16> to vector<1x16x128xbf16>
    tpu.vector_store %arg4[%c0_50, %c0_51, %c0_52], %74 {strides = array<i32>} : memref<2x16x128xbf16, #tpu.memory_space<vmem>>, vector<1x16x128xbf16>,
    %c1_53 = arith.constant 1 : index
    %c0_54 = arith.constant 0 : index
    %c0_55 = arith.constant 0 : index
    %75 = vector.load %arg5[%c1_53, %c0_54, %c0_55] : memref<2x16x128xf32, #tpu.memory_space<vmem>>, vector<1x16x128xf32>
    %76 = vector.shape_cast %75 : vector<1x16x128xf32> to vector<16x128xf32>
    %77 = vector.broadcast %56 : vector<1x128xf32> to vector<16x128xf32>
    %78 = arith.mulf %76, %77 : vector<16x128xf32>
    %79 = vector.broadcast %59 : vector<1x128xf32> to vector<16x128xf32>
    %80 = arith.addf %78, %79 : vector<16x128xf32>
    %cst_56 = arith.constant 0.000000e+00 : f32
    %81 = vector.broadcast %cst_56 : f32 to vector<16x128xf32>
    %82 = arith.cmpf oge, %80, %81 : vector<16x128xf32>
    %cst_57 = arith.constant 0.00999999977 : f32
    %83 = vector.broadcast %cst_57 : f32 to vector<16x128xf32>
    %84 = arith.mulf %83, %80 : vector<16x128xf32>
    %85 = arith.select %82, %80, %84 : vector<16x128xi1>, vector<16x128xf32>
    %86 = arith.truncf %85 : vector<16x128xf32> to vector<16x128xbf16>
    %c1_58 = arith.constant 1 : index
    %c0_59 = arith.constant 0 : index
    %c0_60 = arith.constant 0 : index
    %87 = vector.load %arg4[%c1_58, %c0_59, %c0_60] : memref<2x16x128xbf16, #tpu.memory_space<vmem>>, vector<1x16x128xbf16>
    %88 = vector.shape_cast %87 : vector<1x16x128xbf16> to vector<16x128xbf16>
    %89 = vector.shape_cast %86 : vector<16x128xbf16> to vector<1x16x128xbf16>
    tpu.vector_store %arg4[%c1_58, %c0_59, %c0_60], %89 {strides = array<i32>} : memref<2x16x128xbf16, #tpu.memory_space<vmem>>, vector<1x16x128xbf16>,
    return
  }
}

module attributes {stable_mosaic.version = 11 : i64} {
  func.func @_conv_bn_lrelu_fused_kernel(%arg0: memref<2x9x256xbf16, #tpu.memory_space<vmem>>, %arg1: memref<2x256x256xbf16, #tpu.memory_space<vmem>>, %arg2: memref<1x256xf32, #tpu.memory_space<vmem>>, %arg3: memref<1x256xf32, #tpu.memory_space<vmem>>, %arg4: memref<2x8x256xbf16, #tpu.memory_space<vmem>>, %arg5: memref<2x8x256xf32, #tpu.memory_space<vmem>>) attributes {dimension_semantics = [], scalar_prefetch = 0 : i64, scratch_operands = 1 : i64, tpu.core_type = #tpu.core_type<tc>} {
    %cst = arith.constant 0.000000e+00 : f32
    %0 = vector.broadcast %cst : f32 to vector<1x256xf32>
    %cst_0 = arith.constant 0.000000e+00 : f32
    %1 = vector.broadcast %cst_0 : f32 to vector<1x256xf32>
    %c0 = arith.constant 0 : index
    %c0_1 = arith.constant 0 : index
    %c0_2 = arith.constant 0 : index
    %2 = vector.load %arg0[%c0, %c0_1, %c0_2] : memref<2x9x256xbf16, #tpu.memory_space<vmem>>, vector<1x8x256xbf16>
    %3 = vector.shape_cast %2 : vector<1x8x256xbf16> to vector<8x256xbf16>
    %c0_3 = arith.constant 0 : index
    %c0_4 = arith.constant 0 : index
    %c0_5 = arith.constant 0 : index
    %4 = vector.load %arg1[%c0_3, %c0_4, %c0_5] : memref<2x256x256xbf16, #tpu.memory_space<vmem>>, vector<1x256x256xbf16>
    %5 = vector.shape_cast %4 : vector<1x256x256xbf16> to vector<256x256xbf16>
    %cst_6 = arith.constant dense<0.000000e+00> : vector<8x256xf32>
    %6 = tpu.matmul %3, %5, %cst_6 {dimension_numbers = #tpu.dot_dimension_numbers<[1], [0], [0], [1], [0, 0, 1, 1], [], []>} : vector<8x256xbf16>, vector<256x256xbf16>, vector<8x256xf32> -> vector<8x256xf32>
    %c0_7 = arith.constant 0 : index
    %c1 = arith.constant 1 : index
    %c0_8 = arith.constant 0 : index
    %7 = vector.load %arg0[%c0_7, %c1, %c0_8] : memref<2x9x256xbf16, #tpu.memory_space<vmem>>, vector<1x8x256xbf16>
    %8 = vector.shape_cast %7 : vector<1x8x256xbf16> to vector<8x256xbf16>
    %c1_9 = arith.constant 1 : index
    %c0_10 = arith.constant 0 : index
    %c0_11 = arith.constant 0 : index
    %9 = vector.load %arg1[%c1_9, %c0_10, %c0_11] : memref<2x256x256xbf16, #tpu.memory_space<vmem>>, vector<1x256x256xbf16>
    %10 = vector.shape_cast %9 : vector<1x256x256xbf16> to vector<256x256xbf16>
    %cst_12 = arith.constant dense<0.000000e+00> : vector<8x256xf32>
    %11 = tpu.matmul %8, %10, %cst_12 {dimension_numbers = #tpu.dot_dimension_numbers<[1], [0], [0], [1], [0, 0, 1, 1], [], []>} : vector<8x256xbf16>, vector<256x256xbf16>, vector<8x256xf32> -> vector<8x256xf32>
    %12 = arith.addf %6, %11 : vector<8x256xf32>
    %c0_13 = arith.constant 0 : index
    %c0_14 = arith.constant 0 : index
    %c0_15 = arith.constant 0 : index
    %13 = vector.load %arg5[%c0_13, %c0_14, %c0_15] : memref<2x8x256xf32, #tpu.memory_space<vmem>>, vector<1x8x256xf32>
    %14 = vector.shape_cast %13 : vector<1x8x256xf32> to vector<8x256xf32>
    %15 = vector.shape_cast %12 : vector<8x256xf32> to vector<1x8x256xf32>
    tpu.vector_store %arg5[%c0_13, %c0_14, %c0_15], %15 {strides = array<i32>} : memref<2x8x256xf32, #tpu.memory_space<vmem>>, vector<1x8x256xf32>,
    %cst_16 = arith.constant dense<0.000000e+00> : vector<256xf32>
    %16 = vector.multi_reduction <add>, %12, %cst_16 [0] : vector<8x256xf32> to vector<256xf32>
    %17 = vector.shape_cast %16 : vector<256xf32> to vector<1x256xf32>
    %18 = arith.addf %0, %17 : vector<1x256xf32>
    %19 = arith.mulf %12, %12 : vector<8x256xf32>
    %cst_17 = arith.constant dense<0.000000e+00> : vector<256xf32>
    %20 = vector.multi_reduction <add>, %19, %cst_17 [0] : vector<8x256xf32> to vector<256xf32>
    %21 = vector.shape_cast %20 : vector<256xf32> to vector<1x256xf32>
    %22 = arith.addf %1, %21 : vector<1x256xf32>
    %c1_18 = arith.constant 1 : index
    %c0_19 = arith.constant 0 : index
    %c0_20 = arith.constant 0 : index
    %23 = vector.load %arg0[%c1_18, %c0_19, %c0_20] : memref<2x9x256xbf16, #tpu.memory_space<vmem>>, vector<1x8x256xbf16>
    %24 = vector.shape_cast %23 : vector<1x8x256xbf16> to vector<8x256xbf16>
    %c0_21 = arith.constant 0 : index
    %c0_22 = arith.constant 0 : index
    %c0_23 = arith.constant 0 : index
    %25 = vector.load %arg1[%c0_21, %c0_22, %c0_23] : memref<2x256x256xbf16, #tpu.memory_space<vmem>>, vector<1x256x256xbf16>
    %26 = vector.shape_cast %25 : vector<1x256x256xbf16> to vector<256x256xbf16>
    %cst_24 = arith.constant dense<0.000000e+00> : vector<8x256xf32>
    %27 = tpu.matmul %24, %26, %cst_24 {dimension_numbers = #tpu.dot_dimension_numbers<[1], [0], [0], [1], [0, 0, 1, 1], [], []>} : vector<8x256xbf16>, vector<256x256xbf16>, vector<8x256xf32> -> vector<8x256xf32>
    %c1_25 = arith.constant 1 : index
    %c1_26 = arith.constant 1 : index
    %c0_27 = arith.constant 0 : index
    %28 = vector.load %arg0[%c1_25, %c1_26, %c0_27] : memref<2x9x256xbf16, #tpu.memory_space<vmem>>, vector<1x8x256xbf16>
    %29 = vector.shape_cast %28 : vector<1x8x256xbf16> to vector<8x256xbf16>
    %c1_28 = arith.constant 1 : index
    %c0_29 = arith.constant 0 : index
    %c0_30 = arith.constant 0 : index
    %30 = vector.load %arg1[%c1_28, %c0_29, %c0_30] : memref<2x256x256xbf16, #tpu.memory_space<vmem>>, vector<1x256x256xbf16>
    %31 = vector.shape_cast %30 : vector<1x256x256xbf16> to vector<256x256xbf16>
    %cst_31 = arith.constant dense<0.000000e+00> : vector<8x256xf32>
    %32 = tpu.matmul %29, %31, %cst_31 {dimension_numbers = #tpu.dot_dimension_numbers<[1], [0], [0], [1], [0, 0, 1, 1], [], []>} : vector<8x256xbf16>, vector<256x256xbf16>, vector<8x256xf32> -> vector<8x256xf32>
    %33 = arith.addf %27, %32 : vector<8x256xf32>
    %c1_32 = arith.constant 1 : index
    %c0_33 = arith.constant 0 : index
    %c0_34 = arith.constant 0 : index
    %34 = vector.load %arg5[%c1_32, %c0_33, %c0_34] : memref<2x8x256xf32, #tpu.memory_space<vmem>>, vector<1x8x256xf32>
    %35 = vector.shape_cast %34 : vector<1x8x256xf32> to vector<8x256xf32>
    %36 = vector.shape_cast %33 : vector<8x256xf32> to vector<1x8x256xf32>
    tpu.vector_store %arg5[%c1_32, %c0_33, %c0_34], %36 {strides = array<i32>} : memref<2x8x256xf32, #tpu.memory_space<vmem>>, vector<1x8x256xf32>,
    %cst_35 = arith.constant dense<0.000000e+00> : vector<256xf32>
    %37 = vector.multi_reduction <add>, %33, %cst_35 [0] : vector<8x256xf32> to vector<256xf32>
    %38 = vector.shape_cast %37 : vector<256xf32> to vector<1x256xf32>
    %39 = arith.addf %18, %38 : vector<1x256xf32>
    %40 = arith.mulf %33, %33 : vector<8x256xf32>
    %cst_36 = arith.constant dense<0.000000e+00> : vector<256xf32>
    %41 = vector.multi_reduction <add>, %40, %cst_36 [0] : vector<8x256xf32> to vector<256xf32>
    %42 = vector.shape_cast %41 : vector<256xf32> to vector<1x256xf32>
    %43 = arith.addf %22, %42 : vector<1x256xf32>
    %cst_37 = arith.constant 6.250000e-02 : f32
    %44 = vector.broadcast %cst_37 : f32 to vector<1x256xf32>
    %45 = arith.mulf %39, %44 : vector<1x256xf32>
    %cst_38 = arith.constant 6.250000e-02 : f32
    %46 = vector.broadcast %cst_38 : f32 to vector<1x256xf32>
    %47 = arith.mulf %43, %46 : vector<1x256xf32>
    %48 = arith.mulf %45, %45 : vector<1x256xf32>
    %49 = arith.subf %47, %48 : vector<1x256xf32>
    %cst_39 = arith.constant 0.000000e+00 : f32
    %50 = vector.broadcast %cst_39 : f32 to vector<1x256xf32>
    %51 = arith.maximumf %49, %50 : vector<1x256xf32>
    %c0_40 = arith.constant 0 : index
    %c0_41 = arith.constant 0 : index
    %52 = vector.load %arg2[%c0_40, %c0_41] : memref<1x256xf32, #tpu.memory_space<vmem>>, vector<1x256xf32>
    %cst_42 = arith.constant 9.99999974E-6 : f32
    %53 = vector.broadcast %cst_42 : f32 to vector<1x256xf32>
    %54 = arith.addf %51, %53 : vector<1x256xf32>
    %55 = math.rsqrt %54 : vector<1x256xf32>
    %56 = arith.mulf %52, %55 : vector<1x256xf32>
    %c0_43 = arith.constant 0 : index
    %c0_44 = arith.constant 0 : index
    %57 = vector.load %arg3[%c0_43, %c0_44] : memref<1x256xf32, #tpu.memory_space<vmem>>, vector<1x256xf32>
    %58 = arith.mulf %45, %56 : vector<1x256xf32>
    %59 = arith.subf %57, %58 : vector<1x256xf32>
    %c0_45 = arith.constant 0 : index
    %c0_46 = arith.constant 0 : index
    %c0_47 = arith.constant 0 : index
    %60 = vector.load %arg5[%c0_45, %c0_46, %c0_47] : memref<2x8x256xf32, #tpu.memory_space<vmem>>, vector<1x8x256xf32>
    %61 = vector.shape_cast %60 : vector<1x8x256xf32> to vector<8x256xf32>
    %62 = vector.broadcast %56 : vector<1x256xf32> to vector<8x256xf32>
    %63 = arith.mulf %61, %62 : vector<8x256xf32>
    %64 = vector.broadcast %59 : vector<1x256xf32> to vector<8x256xf32>
    %65 = arith.addf %63, %64 : vector<8x256xf32>
    %cst_48 = arith.constant 0.000000e+00 : f32
    %66 = vector.broadcast %cst_48 : f32 to vector<8x256xf32>
    %67 = arith.cmpf oge, %65, %66 : vector<8x256xf32>
    %cst_49 = arith.constant 0.00999999977 : f32
    %68 = vector.broadcast %cst_49 : f32 to vector<8x256xf32>
    %69 = arith.mulf %68, %65 : vector<8x256xf32>
    %70 = arith.select %67, %65, %69 : vector<8x256xi1>, vector<8x256xf32>
    %71 = arith.truncf %70 : vector<8x256xf32> to vector<8x256xbf16>
    %c0_50 = arith.constant 0 : index
    %c0_51 = arith.constant 0 : index
    %c0_52 = arith.constant 0 : index
    %72 = vector.load %arg4[%c0_50, %c0_51, %c0_52] : memref<2x8x256xbf16, #tpu.memory_space<vmem>>, vector<1x8x256xbf16>
    %73 = vector.shape_cast %72 : vector<1x8x256xbf16> to vector<8x256xbf16>
    %74 = vector.shape_cast %71 : vector<8x256xbf16> to vector<1x8x256xbf16>
    tpu.vector_store %arg4[%c0_50, %c0_51, %c0_52], %74 {strides = array<i32>} : memref<2x8x256xbf16, #tpu.memory_space<vmem>>, vector<1x8x256xbf16>,
    %c1_53 = arith.constant 1 : index
    %c0_54 = arith.constant 0 : index
    %c0_55 = arith.constant 0 : index
    %75 = vector.load %arg5[%c1_53, %c0_54, %c0_55] : memref<2x8x256xf32, #tpu.memory_space<vmem>>, vector<1x8x256xf32>
    %76 = vector.shape_cast %75 : vector<1x8x256xf32> to vector<8x256xf32>
    %77 = vector.broadcast %56 : vector<1x256xf32> to vector<8x256xf32>
    %78 = arith.mulf %76, %77 : vector<8x256xf32>
    %79 = vector.broadcast %59 : vector<1x256xf32> to vector<8x256xf32>
    %80 = arith.addf %78, %79 : vector<8x256xf32>
    %cst_56 = arith.constant 0.000000e+00 : f32
    %81 = vector.broadcast %cst_56 : f32 to vector<8x256xf32>
    %82 = arith.cmpf oge, %80, %81 : vector<8x256xf32>
    %cst_57 = arith.constant 0.00999999977 : f32
    %83 = vector.broadcast %cst_57 : f32 to vector<8x256xf32>
    %84 = arith.mulf %83, %80 : vector<8x256xf32>
    %85 = arith.select %82, %80, %84 : vector<8x256xi1>, vector<8x256xf32>
    %86 = arith.truncf %85 : vector<8x256xf32> to vector<8x256xbf16>
    %c1_58 = arith.constant 1 : index
    %c0_59 = arith.constant 0 : index
    %c0_60 = arith.constant 0 : index
    %87 = vector.load %arg4[%c1_58, %c0_59, %c0_60] : memref<2x8x256xbf16, #tpu.memory_space<vmem>>, vector<1x8x256xbf16>
    %88 = vector.shape_cast %87 : vector<1x8x256xbf16> to vector<8x256xbf16>
    %89 = vector.shape_cast %86 : vector<8x256xbf16> to vector<1x8x256xbf16>
    tpu.vector_store %arg4[%c1_58, %c0_59, %c0_60], %89 {strides = array<i32>} : memref<2x8x256xbf16, #tpu.memory_space<vmem>>, vector<1x8x256xbf16>,
    return
  }
}

module attributes {stable_mosaic.version = 11 : i64} {
  func.func @_fusion_band_kernel(%arg0: i32, %arg1: memref<1x8x768xbf16, #tpu.memory_space<vmem>>, %arg2: memref<1x18x768xbf16, #tpu.memory_space<vmem>>, %arg3: memref<1x8x11xf32, #tpu.memory_space<vmem>>) attributes {dimension_semantics = [#tpu.dimension_semantics<parallel>], iteration_bounds = array<i64: 2>, scalar_prefetch = 0 : i64, scratch_operands = 0 : i64, tpu.core_type = #tpu.core_type<tc>, window_params = [{transform_indices = @transform_0, window_bounds = array<i64: 1, 8, 768>}, {transform_indices = @transform_1, window_bounds = array<i64: 1, 18, 768>}, {transform_indices = @transform_2, window_bounds = array<i64: 1, 8, 11>}]} {
    %c0 = arith.constant 0 : index
    %c0_0 = arith.constant 0 : index
    %c0_1 = arith.constant 0 : index
    %0 = vector.load %arg1[%c0, %c0_0, %c0_1] : memref<1x8x768xbf16, #tpu.memory_space<vmem>>, vector<1x8x768xbf16>
    %1 = vector.shape_cast %0 : vector<1x8x768xbf16> to vector<8x768xbf16>
    %2 = arith.extf %1 : vector<8x768xbf16> to vector<8x768xf32>
    %c0_2 = arith.constant 0 : index
    %c0_3 = arith.constant 0 : index
    %c0_4 = arith.constant 0 : index
    %3 = vector.load %arg2[%c0_2, %c0_3, %c0_4] : memref<1x18x768xbf16, #tpu.memory_space<vmem>>, vector<1x18x768xbf16>
    %4 = vector.shape_cast %3 : vector<1x18x768xbf16> to vector<18x768xbf16>
    %5 = arith.extf %4 : vector<18x768xbf16> to vector<18x768xf32>
    %6 = vector.extract_strided_slice %5 {offsets = [0, 0], sizes = [8, 768], strides = [1, 1]} : vector<18x768xf32> to vector<8x768xf32>
    %7 = arith.mulf %2, %6 : vector<8x768xf32>
    %cst = arith.constant dense<0.000000e+00> : vector<8xf32>
    %8 = vector.multi_reduction <add>, %7, %cst [1] : vector<8x768xf32> to vector<8xf32>
    %9 = vector.shape_cast %8 : vector<8xf32> to vector<8x1xf32>
    %10 = vector.extract_strided_slice %5 {offsets = [1, 0], sizes = [8, 768], strides = [1, 1]} : vector<18x768xf32> to vector<8x768xf32>
    %11 = arith.mulf %2, %10 : vector<8x768xf32>
    %cst_5 = arith.constant dense<0.000000e+00> : vector<8xf32>
    %12 = vector.multi_reduction <add>, %11, %cst_5 [1] : vector<8x768xf32> to vector<8xf32>
    %13 = vector.shape_cast %12 : vector<8xf32> to vector<8x1xf32>
    %14 = vector.extract_strided_slice %5 {offsets = [2, 0], sizes = [8, 768], strides = [1, 1]} : vector<18x768xf32> to vector<8x768xf32>
    %15 = arith.mulf %2, %14 : vector<8x768xf32>
    %cst_6 = arith.constant dense<0.000000e+00> : vector<8xf32>
    %16 = vector.multi_reduction <add>, %15, %cst_6 [1] : vector<8x768xf32> to vector<8xf32>
    %17 = vector.shape_cast %16 : vector<8xf32> to vector<8x1xf32>
    %18 = vector.extract_strided_slice %5 {offsets = [3, 0], sizes = [8, 768], strides = [1, 1]} : vector<18x768xf32> to vector<8x768xf32>
    %19 = arith.mulf %2, %18 : vector<8x768xf32>
    %cst_7 = arith.constant dense<0.000000e+00> : vector<8xf32>
    %20 = vector.multi_reduction <add>, %19, %cst_7 [1] : vector<8x768xf32> to vector<8xf32>
    %21 = vector.shape_cast %20 : vector<8xf32> to vector<8x1xf32>
    %22 = vector.extract_strided_slice %5 {offsets = [4, 0], sizes = [8, 768], strides = [1, 1]} : vector<18x768xf32> to vector<8x768xf32>
    %23 = arith.mulf %2, %22 : vector<8x768xf32>
    %cst_8 = arith.constant dense<0.000000e+00> : vector<8xf32>
    %24 = vector.multi_reduction <add>, %23, %cst_8 [1] : vector<8x768xf32> to vector<8xf32>
    %25 = vector.shape_cast %24 : vector<8xf32> to vector<8x1xf32>
    %26 = vector.extract_strided_slice %5 {offsets = [5, 0], sizes = [8, 768], strides = [1, 1]} : vector<18x768xf32> to vector<8x768xf32>
    %27 = arith.mulf %2, %26 : vector<8x768xf32>
    %cst_9 = arith.constant dense<0.000000e+00> : vector<8xf32>
    %28 = vector.multi_reduction <add>, %27, %cst_9 [1] : vector<8x768xf32> to vector<8xf32>
    %29 = vector.shape_cast %28 : vector<8xf32> to vector<8x1xf32>
    %30 = vector.extract_strided_slice %5 {offsets = [6, 0], sizes = [8, 768], strides = [1, 1]} : vector<18x768xf32> to vector<8x768xf32>
    %31 = arith.mulf %2, %30 : vector<8x768xf32>
    %cst_10 = arith.constant dense<0.000000e+00> : vector<8xf32>
    %32 = vector.multi_reduction <add>, %31, %cst_10 [1] : vector<8x768xf32> to vector<8xf32>
    %33 = vector.shape_cast %32 : vector<8xf32> to vector<8x1xf32>
    %34 = vector.extract_strided_slice %5 {offsets = [7, 0], sizes = [8, 768], strides = [1, 1]} : vector<18x768xf32> to vector<8x768xf32>
    %35 = arith.mulf %2, %34 : vector<8x768xf32>
    %cst_11 = arith.constant dense<0.000000e+00> : vector<8xf32>
    %36 = vector.multi_reduction <add>, %35, %cst_11 [1] : vector<8x768xf32> to vector<8xf32>
    %37 = vector.shape_cast %36 : vector<8xf32> to vector<8x1xf32>
    %38 = vector.extract_strided_slice %5 {offsets = [8, 0], sizes = [8, 768], strides = [1, 1]} : vector<18x768xf32> to vector<8x768xf32>
    %39 = arith.mulf %2, %38 : vector<8x768xf32>
    %cst_12 = arith.constant dense<0.000000e+00> : vector<8xf32>
    %40 = vector.multi_reduction <add>, %39, %cst_12 [1] : vector<8x768xf32> to vector<8xf32>
    %41 = vector.shape_cast %40 : vector<8xf32> to vector<8x1xf32>
    %42 = vector.extract_strided_slice %5 {offsets = [9, 0], sizes = [8, 768], strides = [1, 1]} : vector<18x768xf32> to vector<8x768xf32>
    %43 = arith.mulf %2, %42 : vector<8x768xf32>
    %cst_13 = arith.constant dense<0.000000e+00> : vector<8xf32>
    %44 = vector.multi_reduction <add>, %43, %cst_13 [1] : vector<8x768xf32> to vector<8xf32>
    %45 = vector.shape_cast %44 : vector<8xf32> to vector<8x1xf32>
    %46 = vector.extract_strided_slice %5 {offsets = [10, 0], sizes = [8, 768], strides = [1, 1]} : vector<18x768xf32> to vector<8x768xf32>
    %47 = arith.mulf %2, %46 : vector<8x768xf32>
    %cst_14 = arith.constant dense<0.000000e+00> : vector<8xf32>
    %48 = vector.multi_reduction <add>, %47, %cst_14 [1] : vector<8x768xf32> to vector<8xf32>
    %49 = vector.shape_cast %48 : vector<8xf32> to vector<8x1xf32>
    %50 = tpu.concatenate %9, %13, %17, %21, %25, %29, %33, %37, %41, %45, %49 in 1 : vector<8x1xf32>, vector<8x1xf32>, vector<8x1xf32>, vector<8x1xf32>, vector<8x1xf32>, vector<8x1xf32>, vector<8x1xf32>, vector<8x1xf32>, vector<8x1xf32>, vector<8x1xf32>, vector<8x1xf32> -> vector<8x11xf32>
    %c0_15 = arith.constant 0 : index
    %c0_16 = arith.constant 0 : index
    %c0_17 = arith.constant 0 : index
    %51 = vector.load %arg3[%c0_15, %c0_16, %c0_17] : memref<1x8x11xf32, #tpu.memory_space<vmem>>, vector<1x8x11xf32>
    %52 = vector.shape_cast %51 : vector<1x8x11xf32> to vector<8x11xf32>
    %53 = vector.shape_cast %50 : vector<8x11xf32> to vector<1x8x11xf32>
    tpu.vector_store %arg3[%c0_15, %c0_16, %c0_17], %53 {strides = array<i32>} : memref<1x8x11xf32, #tpu.memory_space<vmem>>, vector<1x8x11xf32>,
    return
  }
  func.func @transform_0(%arg0: i32) -> (i32, i32, i32) {
    %c0_i32 = arith.constant 0 : i32
    %c0_i32_0 = arith.constant 0 : i32
    %c0_i32_1 = arith.constant 0 : i32
    return %arg0, %c0_i32, %c0_i32_0 : i32, i32, i32
  }
  func.func @transform_1(%arg0: i32) -> (i32, i32, i32) {
    %c0_i32 = arith.constant 0 : i32
    %c0_i32_0 = arith.constant 0 : i32
    %c0_i32_1 = arith.constant 0 : i32
    return %arg0, %c0_i32, %c0_i32_0 : i32, i32, i32
  }
  func.func @transform_2(%arg0: i32) -> (i32, i32, i32) {
    %c0_i32 = arith.constant 0 : i32
    %c0_i32_0 = arith.constant 0 : i32
    %c0_i32_1 = arith.constant 0 : i32
    return %arg0, %c0_i32, %c0_i32_0 : i32, i32, i32
  }
}

module attributes {stable_mosaic.version = 11 : i64} {
  func.func @_conv_bn_lrelu_fused_kernel(%arg0: memref<2x18x144xbf16, #tpu.memory_space<vmem>>, %arg1: memref<3x144x128xbf16, #tpu.memory_space<vmem>>, %arg2: memref<1x128xf32, #tpu.memory_space<vmem>>, %arg3: memref<1x128xf32, #tpu.memory_space<vmem>>, %arg4: memref<2x16x128xbf16, #tpu.memory_space<vmem>>, %arg5: memref<2x16x128xf32, #tpu.memory_space<vmem>>) attributes {dimension_semantics = [], scalar_prefetch = 0 : i64, scratch_operands = 1 : i64, tpu.core_type = #tpu.core_type<tc>} {
    %cst = arith.constant 0.000000e+00 : f32
    %0 = vector.broadcast %cst : f32 to vector<1x128xf32>
    %cst_0 = arith.constant 0.000000e+00 : f32
    %1 = vector.broadcast %cst_0 : f32 to vector<1x128xf32>
    %c0 = arith.constant 0 : index
    %c0_1 = arith.constant 0 : index
    %c0_2 = arith.constant 0 : index
    %2 = vector.load %arg0[%c0, %c0_1, %c0_2] : memref<2x18x144xbf16, #tpu.memory_space<vmem>>, vector<1x16x144xbf16>
    %3 = vector.shape_cast %2 : vector<1x16x144xbf16> to vector<16x144xbf16>
    %c0_3 = arith.constant 0 : index
    %c0_4 = arith.constant 0 : index
    %c0_5 = arith.constant 0 : index
    %4 = vector.load %arg1[%c0_3, %c0_4, %c0_5] : memref<3x144x128xbf16, #tpu.memory_space<vmem>>, vector<1x144x128xbf16>
    %5 = vector.shape_cast %4 : vector<1x144x128xbf16> to vector<144x128xbf16>
    %cst_6 = arith.constant dense<0.000000e+00> : vector<16x128xf32>
    %6 = tpu.matmul %3, %5, %cst_6 {dimension_numbers = #tpu.dot_dimension_numbers<[1], [0], [0], [1], [0, 0, 1, 1], [], []>} : vector<16x144xbf16>, vector<144x128xbf16>, vector<16x128xf32> -> vector<16x128xf32>
    %c0_7 = arith.constant 0 : index
    %c1 = arith.constant 1 : index
    %c0_8 = arith.constant 0 : index
    %7 = vector.load %arg0[%c0_7, %c1, %c0_8] : memref<2x18x144xbf16, #tpu.memory_space<vmem>>, vector<1x16x144xbf16>
    %8 = vector.shape_cast %7 : vector<1x16x144xbf16> to vector<16x144xbf16>
    %c1_9 = arith.constant 1 : index
    %c0_10 = arith.constant 0 : index
    %c0_11 = arith.constant 0 : index
    %9 = vector.load %arg1[%c1_9, %c0_10, %c0_11] : memref<3x144x128xbf16, #tpu.memory_space<vmem>>, vector<1x144x128xbf16>
    %10 = vector.shape_cast %9 : vector<1x144x128xbf16> to vector<144x128xbf16>
    %cst_12 = arith.constant dense<0.000000e+00> : vector<16x128xf32>
    %11 = tpu.matmul %8, %10, %cst_12 {dimension_numbers = #tpu.dot_dimension_numbers<[1], [0], [0], [1], [0, 0, 1, 1], [], []>} : vector<16x144xbf16>, vector<144x128xbf16>, vector<16x128xf32> -> vector<16x128xf32>
    %12 = arith.addf %6, %11 : vector<16x128xf32>
    %c0_13 = arith.constant 0 : index
    %c2 = arith.constant 2 : index
    %c0_14 = arith.constant 0 : index
    %13 = vector.load %arg0[%c0_13, %c2, %c0_14] : memref<2x18x144xbf16, #tpu.memory_space<vmem>>, vector<1x16x144xbf16>
    %14 = vector.shape_cast %13 : vector<1x16x144xbf16> to vector<16x144xbf16>
    %c2_15 = arith.constant 2 : index
    %c0_16 = arith.constant 0 : index
    %c0_17 = arith.constant 0 : index
    %15 = vector.load %arg1[%c2_15, %c0_16, %c0_17] : memref<3x144x128xbf16, #tpu.memory_space<vmem>>, vector<1x144x128xbf16>
    %16 = vector.shape_cast %15 : vector<1x144x128xbf16> to vector<144x128xbf16>
    %cst_18 = arith.constant dense<0.000000e+00> : vector<16x128xf32>
    %17 = tpu.matmul %14, %16, %cst_18 {dimension_numbers = #tpu.dot_dimension_numbers<[1], [0], [0], [1], [0, 0, 1, 1], [], []>} : vector<16x144xbf16>, vector<144x128xbf16>, vector<16x128xf32> -> vector<16x128xf32>
    %18 = arith.addf %12, %17 : vector<16x128xf32>
    %c0_19 = arith.constant 0 : index
    %c0_20 = arith.constant 0 : index
    %c0_21 = arith.constant 0 : index
    %19 = vector.load %arg5[%c0_19, %c0_20, %c0_21] : memref<2x16x128xf32, #tpu.memory_space<vmem>>, vector<1x16x128xf32>
    %20 = vector.shape_cast %19 : vector<1x16x128xf32> to vector<16x128xf32>
    %21 = vector.shape_cast %18 : vector<16x128xf32> to vector<1x16x128xf32>
    tpu.vector_store %arg5[%c0_19, %c0_20, %c0_21], %21 {strides = array<i32>} : memref<2x16x128xf32, #tpu.memory_space<vmem>>, vector<1x16x128xf32>,
    %cst_22 = arith.constant dense<0.000000e+00> : vector<128xf32>
    %22 = vector.multi_reduction <add>, %18, %cst_22 [0] : vector<16x128xf32> to vector<128xf32>
    %23 = vector.shape_cast %22 : vector<128xf32> to vector<1x128xf32>
    %24 = arith.addf %0, %23 : vector<1x128xf32>
    %25 = arith.mulf %18, %18 : vector<16x128xf32>
    %cst_23 = arith.constant dense<0.000000e+00> : vector<128xf32>
    %26 = vector.multi_reduction <add>, %25, %cst_23 [0] : vector<16x128xf32> to vector<128xf32>
    %27 = vector.shape_cast %26 : vector<128xf32> to vector<1x128xf32>
    %28 = arith.addf %1, %27 : vector<1x128xf32>
    %c1_24 = arith.constant 1 : index
    %c0_25 = arith.constant 0 : index
    %c0_26 = arith.constant 0 : index
    %29 = vector.load %arg0[%c1_24, %c0_25, %c0_26] : memref<2x18x144xbf16, #tpu.memory_space<vmem>>, vector<1x16x144xbf16>
    %30 = vector.shape_cast %29 : vector<1x16x144xbf16> to vector<16x144xbf16>
    %c0_27 = arith.constant 0 : index
    %c0_28 = arith.constant 0 : index
    %c0_29 = arith.constant 0 : index
    %31 = vector.load %arg1[%c0_27, %c0_28, %c0_29] : memref<3x144x128xbf16, #tpu.memory_space<vmem>>, vector<1x144x128xbf16>
    %32 = vector.shape_cast %31 : vector<1x144x128xbf16> to vector<144x128xbf16>
    %cst_30 = arith.constant dense<0.000000e+00> : vector<16x128xf32>
    %33 = tpu.matmul %30, %32, %cst_30 {dimension_numbers = #tpu.dot_dimension_numbers<[1], [0], [0], [1], [0, 0, 1, 1], [], []>} : vector<16x144xbf16>, vector<144x128xbf16>, vector<16x128xf32> -> vector<16x128xf32>
    %c1_31 = arith.constant 1 : index
    %c1_32 = arith.constant 1 : index
    %c0_33 = arith.constant 0 : index
    %34 = vector.load %arg0[%c1_31, %c1_32, %c0_33] : memref<2x18x144xbf16, #tpu.memory_space<vmem>>, vector<1x16x144xbf16>
    %35 = vector.shape_cast %34 : vector<1x16x144xbf16> to vector<16x144xbf16>
    %c1_34 = arith.constant 1 : index
    %c0_35 = arith.constant 0 : index
    %c0_36 = arith.constant 0 : index
    %36 = vector.load %arg1[%c1_34, %c0_35, %c0_36] : memref<3x144x128xbf16, #tpu.memory_space<vmem>>, vector<1x144x128xbf16>
    %37 = vector.shape_cast %36 : vector<1x144x128xbf16> to vector<144x128xbf16>
    %cst_37 = arith.constant dense<0.000000e+00> : vector<16x128xf32>
    %38 = tpu.matmul %35, %37, %cst_37 {dimension_numbers = #tpu.dot_dimension_numbers<[1], [0], [0], [1], [0, 0, 1, 1], [], []>} : vector<16x144xbf16>, vector<144x128xbf16>, vector<16x128xf32> -> vector<16x128xf32>
    %39 = arith.addf %33, %38 : vector<16x128xf32>
    %c1_38 = arith.constant 1 : index
    %c2_39 = arith.constant 2 : index
    %c0_40 = arith.constant 0 : index
    %40 = vector.load %arg0[%c1_38, %c2_39, %c0_40] : memref<2x18x144xbf16, #tpu.memory_space<vmem>>, vector<1x16x144xbf16>
    %41 = vector.shape_cast %40 : vector<1x16x144xbf16> to vector<16x144xbf16>
    %c2_41 = arith.constant 2 : index
    %c0_42 = arith.constant 0 : index
    %c0_43 = arith.constant 0 : index
    %42 = vector.load %arg1[%c2_41, %c0_42, %c0_43] : memref<3x144x128xbf16, #tpu.memory_space<vmem>>, vector<1x144x128xbf16>
    %43 = vector.shape_cast %42 : vector<1x144x128xbf16> to vector<144x128xbf16>
    %cst_44 = arith.constant dense<0.000000e+00> : vector<16x128xf32>
    %44 = tpu.matmul %41, %43, %cst_44 {dimension_numbers = #tpu.dot_dimension_numbers<[1], [0], [0], [1], [0, 0, 1, 1], [], []>} : vector<16x144xbf16>, vector<144x128xbf16>, vector<16x128xf32> -> vector<16x128xf32>
    %45 = arith.addf %39, %44 : vector<16x128xf32>
    %c1_45 = arith.constant 1 : index
    %c0_46 = arith.constant 0 : index
    %c0_47 = arith.constant 0 : index
    %46 = vector.load %arg5[%c1_45, %c0_46, %c0_47] : memref<2x16x128xf32, #tpu.memory_space<vmem>>, vector<1x16x128xf32>
    %47 = vector.shape_cast %46 : vector<1x16x128xf32> to vector<16x128xf32>
    %48 = vector.shape_cast %45 : vector<16x128xf32> to vector<1x16x128xf32>
    tpu.vector_store %arg5[%c1_45, %c0_46, %c0_47], %48 {strides = array<i32>} : memref<2x16x128xf32, #tpu.memory_space<vmem>>, vector<1x16x128xf32>,
    %cst_48 = arith.constant dense<0.000000e+00> : vector<128xf32>
    %49 = vector.multi_reduction <add>, %45, %cst_48 [0] : vector<16x128xf32> to vector<128xf32>
    %50 = vector.shape_cast %49 : vector<128xf32> to vector<1x128xf32>
    %51 = arith.addf %24, %50 : vector<1x128xf32>
    %52 = arith.mulf %45, %45 : vector<16x128xf32>
    %cst_49 = arith.constant dense<0.000000e+00> : vector<128xf32>
    %53 = vector.multi_reduction <add>, %52, %cst_49 [0] : vector<16x128xf32> to vector<128xf32>
    %54 = vector.shape_cast %53 : vector<128xf32> to vector<1x128xf32>
    %55 = arith.addf %28, %54 : vector<1x128xf32>
    %cst_50 = arith.constant 3.125000e-02 : f32
    %56 = vector.broadcast %cst_50 : f32 to vector<1x128xf32>
    %57 = arith.mulf %51, %56 : vector<1x128xf32>
    %cst_51 = arith.constant 3.125000e-02 : f32
    %58 = vector.broadcast %cst_51 : f32 to vector<1x128xf32>
    %59 = arith.mulf %55, %58 : vector<1x128xf32>
    %60 = arith.mulf %57, %57 : vector<1x128xf32>
    %61 = arith.subf %59, %60 : vector<1x128xf32>
    %cst_52 = arith.constant 0.000000e+00 : f32
    %62 = vector.broadcast %cst_52 : f32 to vector<1x128xf32>
    %63 = arith.maximumf %61, %62 : vector<1x128xf32>
    %c0_53 = arith.constant 0 : index
    %c0_54 = arith.constant 0 : index
    %64 = vector.load %arg2[%c0_53, %c0_54] : memref<1x128xf32, #tpu.memory_space<vmem>>, vector<1x128xf32>
    %cst_55 = arith.constant 9.99999974E-6 : f32
    %65 = vector.broadcast %cst_55 : f32 to vector<1x128xf32>
    %66 = arith.addf %63, %65 : vector<1x128xf32>
    %67 = math.rsqrt %66 : vector<1x128xf32>
    %68 = arith.mulf %64, %67 : vector<1x128xf32>
    %c0_56 = arith.constant 0 : index
    %c0_57 = arith.constant 0 : index
    %69 = vector.load %arg3[%c0_56, %c0_57] : memref<1x128xf32, #tpu.memory_space<vmem>>, vector<1x128xf32>
    %70 = arith.mulf %57, %68 : vector<1x128xf32>
    %71 = arith.subf %69, %70 : vector<1x128xf32>
    %c0_58 = arith.constant 0 : index
    %c0_59 = arith.constant 0 : index
    %c0_60 = arith.constant 0 : index
    %72 = vector.load %arg5[%c0_58, %c0_59, %c0_60] : memref<2x16x128xf32, #tpu.memory_space<vmem>>, vector<1x16x128xf32>
    %73 = vector.shape_cast %72 : vector<1x16x128xf32> to vector<16x128xf32>
    %74 = vector.broadcast %68 : vector<1x128xf32> to vector<16x128xf32>
    %75 = arith.mulf %73, %74 : vector<16x128xf32>
    %76 = vector.broadcast %71 : vector<1x128xf32> to vector<16x128xf32>
    %77 = arith.addf %75, %76 : vector<16x128xf32>
    %cst_61 = arith.constant 0.000000e+00 : f32
    %78 = vector.broadcast %cst_61 : f32 to vector<16x128xf32>
    %79 = arith.cmpf oge, %77, %78 : vector<16x128xf32>
    %cst_62 = arith.constant 0.00999999977 : f32
    %80 = vector.broadcast %cst_62 : f32 to vector<16x128xf32>
    %81 = arith.mulf %80, %77 : vector<16x128xf32>
    %82 = arith.select %79, %77, %81 : vector<16x128xi1>, vector<16x128xf32>
    %83 = arith.truncf %82 : vector<16x128xf32> to vector<16x128xbf16>
    %c0_63 = arith.constant 0 : index
    %c0_64 = arith.constant 0 : index
    %c0_65 = arith.constant 0 : index
    %84 = vector.load %arg4[%c0_63, %c0_64, %c0_65] : memref<2x16x128xbf16, #tpu.memory_space<vmem>>, vector<1x16x128xbf16>
    %85 = vector.shape_cast %84 : vector<1x16x128xbf16> to vector<16x128xbf16>
    %86 = vector.shape_cast %83 : vector<16x128xbf16> to vector<1x16x128xbf16>
    tpu.vector_store %arg4[%c0_63, %c0_64, %c0_65], %86 {strides = array<i32>} : memref<2x16x128xbf16, #tpu.memory_space<vmem>>, vector<1x16x128xbf16>,
    %c1_66 = arith.constant 1 : index
    %c0_67 = arith.constant 0 : index
    %c0_68 = arith.constant 0 : index
    %87 = vector.load %arg5[%c1_66, %c0_67, %c0_68] : memref<2x16x128xf32, #tpu.memory_space<vmem>>, vector<1x16x128xf32>
    %88 = vector.shape_cast %87 : vector<1x16x128xf32> to vector<16x128xf32>
    %89 = vector.broadcast %68 : vector<1x128xf32> to vector<16x128xf32>
    %90 = arith.mulf %88, %89 : vector<16x128xf32>
    %91 = vector.broadcast %71 : vector<1x128xf32> to vector<16x128xf32>
    %92 = arith.addf %90, %91 : vector<16x128xf32>
    %cst_69 = arith.constant 0.000000e+00 : f32
    %93 = vector.broadcast %cst_69 : f32 to vector<16x128xf32>
    %94 = arith.cmpf oge, %92, %93 : vector<16x128xf32>
    %cst_70 = arith.constant 0.00999999977 : f32
    %95 = vector.broadcast %cst_70 : f32 to vector<16x128xf32>
    %96 = arith.mulf %95, %92 : vector<16x128xf32>
    %97 = arith.select %94, %92, %96 : vector<16x128xi1>, vector<16x128xf32>
    %98 = arith.truncf %97 : vector<16x128xf32> to vector<16x128xbf16>
    %c1_71 = arith.constant 1 : index
    %c0_72 = arith.constant 0 : index
    %c0_73 = arith.constant 0 : index
    %99 = vector.load %arg4[%c1_71, %c0_72, %c0_73] : memref<2x16x128xbf16, #tpu.memory_space<vmem>>, vector<1x16x128xbf16>
    %100 = vector.shape_cast %99 : vector<1x16x128xbf16> to vector<16x128xbf16>
    %101 = vector.shape_cast %98 : vector<16x128xbf16> to vector<1x16x128xbf16>
    tpu.vector_store %arg4[%c1_71, %c0_72, %c0_73], %101 {strides = array<i32>} : memref<2x16x128xbf16, #tpu.memory_space<vmem>>, vector<1x16x128xbf16>,
    return
  }
}

module attributes {stable_mosaic.version = 11 : i64} {
  func.func @_conv_bn_lrelu_fused_kernel(%arg0: memref<2x34x192xbf16, #tpu.memory_space<vmem>>, %arg1: memref<3x192x128xbf16, #tpu.memory_space<vmem>>, %arg2: memref<1x128xf32, #tpu.memory_space<vmem>>, %arg3: memref<1x128xf32, #tpu.memory_space<vmem>>, %arg4: memref<2x32x128xbf16, #tpu.memory_space<vmem>>, %arg5: memref<2x32x128xf32, #tpu.memory_space<vmem>>) attributes {dimension_semantics = [], scalar_prefetch = 0 : i64, scratch_operands = 1 : i64, tpu.core_type = #tpu.core_type<tc>} {
    %cst = arith.constant 0.000000e+00 : f32
    %0 = vector.broadcast %cst : f32 to vector<1x128xf32>
    %cst_0 = arith.constant 0.000000e+00 : f32
    %1 = vector.broadcast %cst_0 : f32 to vector<1x128xf32>
    %c0 = arith.constant 0 : index
    %c0_1 = arith.constant 0 : index
    %c0_2 = arith.constant 0 : index
    %2 = vector.load %arg0[%c0, %c0_1, %c0_2] : memref<2x34x192xbf16, #tpu.memory_space<vmem>>, vector<1x32x192xbf16>
    %3 = vector.shape_cast %2 : vector<1x32x192xbf16> to vector<32x192xbf16>
    %c0_3 = arith.constant 0 : index
    %c0_4 = arith.constant 0 : index
    %c0_5 = arith.constant 0 : index
    %4 = vector.load %arg1[%c0_3, %c0_4, %c0_5] : memref<3x192x128xbf16, #tpu.memory_space<vmem>>, vector<1x192x128xbf16>
    %5 = vector.shape_cast %4 : vector<1x192x128xbf16> to vector<192x128xbf16>
    %cst_6 = arith.constant dense<0.000000e+00> : vector<32x128xf32>
    %6 = tpu.matmul %3, %5, %cst_6 {dimension_numbers = #tpu.dot_dimension_numbers<[1], [0], [0], [1], [0, 0, 1, 1], [], []>} : vector<32x192xbf16>, vector<192x128xbf16>, vector<32x128xf32> -> vector<32x128xf32>
    %c0_7 = arith.constant 0 : index
    %c1 = arith.constant 1 : index
    %c0_8 = arith.constant 0 : index
    %7 = vector.load %arg0[%c0_7, %c1, %c0_8] : memref<2x34x192xbf16, #tpu.memory_space<vmem>>, vector<1x32x192xbf16>
    %8 = vector.shape_cast %7 : vector<1x32x192xbf16> to vector<32x192xbf16>
    %c1_9 = arith.constant 1 : index
    %c0_10 = arith.constant 0 : index
    %c0_11 = arith.constant 0 : index
    %9 = vector.load %arg1[%c1_9, %c0_10, %c0_11] : memref<3x192x128xbf16, #tpu.memory_space<vmem>>, vector<1x192x128xbf16>
    %10 = vector.shape_cast %9 : vector<1x192x128xbf16> to vector<192x128xbf16>
    %cst_12 = arith.constant dense<0.000000e+00> : vector<32x128xf32>
    %11 = tpu.matmul %8, %10, %cst_12 {dimension_numbers = #tpu.dot_dimension_numbers<[1], [0], [0], [1], [0, 0, 1, 1], [], []>} : vector<32x192xbf16>, vector<192x128xbf16>, vector<32x128xf32> -> vector<32x128xf32>
    %12 = arith.addf %6, %11 : vector<32x128xf32>
    %c0_13 = arith.constant 0 : index
    %c2 = arith.constant 2 : index
    %c0_14 = arith.constant 0 : index
    %13 = vector.load %arg0[%c0_13, %c2, %c0_14] : memref<2x34x192xbf16, #tpu.memory_space<vmem>>, vector<1x32x192xbf16>
    %14 = vector.shape_cast %13 : vector<1x32x192xbf16> to vector<32x192xbf16>
    %c2_15 = arith.constant 2 : index
    %c0_16 = arith.constant 0 : index
    %c0_17 = arith.constant 0 : index
    %15 = vector.load %arg1[%c2_15, %c0_16, %c0_17] : memref<3x192x128xbf16, #tpu.memory_space<vmem>>, vector<1x192x128xbf16>
    %16 = vector.shape_cast %15 : vector<1x192x128xbf16> to vector<192x128xbf16>
    %cst_18 = arith.constant dense<0.000000e+00> : vector<32x128xf32>
    %17 = tpu.matmul %14, %16, %cst_18 {dimension_numbers = #tpu.dot_dimension_numbers<[1], [0], [0], [1], [0, 0, 1, 1], [], []>} : vector<32x192xbf16>, vector<192x128xbf16>, vector<32x128xf32> -> vector<32x128xf32>
    %18 = arith.addf %12, %17 : vector<32x128xf32>
    %c0_19 = arith.constant 0 : index
    %c0_20 = arith.constant 0 : index
    %c0_21 = arith.constant 0 : index
    %19 = vector.load %arg5[%c0_19, %c0_20, %c0_21] : memref<2x32x128xf32, #tpu.memory_space<vmem>>, vector<1x32x128xf32>
    %20 = vector.shape_cast %19 : vector<1x32x128xf32> to vector<32x128xf32>
    %21 = vector.shape_cast %18 : vector<32x128xf32> to vector<1x32x128xf32>
    tpu.vector_store %arg5[%c0_19, %c0_20, %c0_21], %21 {strides = array<i32>} : memref<2x32x128xf32, #tpu.memory_space<vmem>>, vector<1x32x128xf32>,
    %cst_22 = arith.constant dense<0.000000e+00> : vector<128xf32>
    %22 = vector.multi_reduction <add>, %18, %cst_22 [0] : vector<32x128xf32> to vector<128xf32>
    %23 = vector.shape_cast %22 : vector<128xf32> to vector<1x128xf32>
    %24 = arith.addf %0, %23 : vector<1x128xf32>
    %25 = arith.mulf %18, %18 : vector<32x128xf32>
    %cst_23 = arith.constant dense<0.000000e+00> : vector<128xf32>
    %26 = vector.multi_reduction <add>, %25, %cst_23 [0] : vector<32x128xf32> to vector<128xf32>
    %27 = vector.shape_cast %26 : vector<128xf32> to vector<1x128xf32>
    %28 = arith.addf %1, %27 : vector<1x128xf32>
    %c1_24 = arith.constant 1 : index
    %c0_25 = arith.constant 0 : index
    %c0_26 = arith.constant 0 : index
    %29 = vector.load %arg0[%c1_24, %c0_25, %c0_26] : memref<2x34x192xbf16, #tpu.memory_space<vmem>>, vector<1x32x192xbf16>
    %30 = vector.shape_cast %29 : vector<1x32x192xbf16> to vector<32x192xbf16>
    %c0_27 = arith.constant 0 : index
    %c0_28 = arith.constant 0 : index
    %c0_29 = arith.constant 0 : index
    %31 = vector.load %arg1[%c0_27, %c0_28, %c0_29] : memref<3x192x128xbf16, #tpu.memory_space<vmem>>, vector<1x192x128xbf16>
    %32 = vector.shape_cast %31 : vector<1x192x128xbf16> to vector<192x128xbf16>
    %cst_30 = arith.constant dense<0.000000e+00> : vector<32x128xf32>
    %33 = tpu.matmul %30, %32, %cst_30 {dimension_numbers = #tpu.dot_dimension_numbers<[1], [0], [0], [1], [0, 0, 1, 1], [], []>} : vector<32x192xbf16>, vector<192x128xbf16>, vector<32x128xf32> -> vector<32x128xf32>
    %c1_31 = arith.constant 1 : index
    %c1_32 = arith.constant 1 : index
    %c0_33 = arith.constant 0 : index
    %34 = vector.load %arg0[%c1_31, %c1_32, %c0_33] : memref<2x34x192xbf16, #tpu.memory_space<vmem>>, vector<1x32x192xbf16>
    %35 = vector.shape_cast %34 : vector<1x32x192xbf16> to vector<32x192xbf16>
    %c1_34 = arith.constant 1 : index
    %c0_35 = arith.constant 0 : index
    %c0_36 = arith.constant 0 : index
    %36 = vector.load %arg1[%c1_34, %c0_35, %c0_36] : memref<3x192x128xbf16, #tpu.memory_space<vmem>>, vector<1x192x128xbf16>
    %37 = vector.shape_cast %36 : vector<1x192x128xbf16> to vector<192x128xbf16>
    %cst_37 = arith.constant dense<0.000000e+00> : vector<32x128xf32>
    %38 = tpu.matmul %35, %37, %cst_37 {dimension_numbers = #tpu.dot_dimension_numbers<[1], [0], [0], [1], [0, 0, 1, 1], [], []>} : vector<32x192xbf16>, vector<192x128xbf16>, vector<32x128xf32> -> vector<32x128xf32>
    %39 = arith.addf %33, %38 : vector<32x128xf32>
    %c1_38 = arith.constant 1 : index
    %c2_39 = arith.constant 2 : index
    %c0_40 = arith.constant 0 : index
    %40 = vector.load %arg0[%c1_38, %c2_39, %c0_40] : memref<2x34x192xbf16, #tpu.memory_space<vmem>>, vector<1x32x192xbf16>
    %41 = vector.shape_cast %40 : vector<1x32x192xbf16> to vector<32x192xbf16>
    %c2_41 = arith.constant 2 : index
    %c0_42 = arith.constant 0 : index
    %c0_43 = arith.constant 0 : index
    %42 = vector.load %arg1[%c2_41, %c0_42, %c0_43] : memref<3x192x128xbf16, #tpu.memory_space<vmem>>, vector<1x192x128xbf16>
    %43 = vector.shape_cast %42 : vector<1x192x128xbf16> to vector<192x128xbf16>
    %cst_44 = arith.constant dense<0.000000e+00> : vector<32x128xf32>
    %44 = tpu.matmul %41, %43, %cst_44 {dimension_numbers = #tpu.dot_dimension_numbers<[1], [0], [0], [1], [0, 0, 1, 1], [], []>} : vector<32x192xbf16>, vector<192x128xbf16>, vector<32x128xf32> -> vector<32x128xf32>
    %45 = arith.addf %39, %44 : vector<32x128xf32>
    %c1_45 = arith.constant 1 : index
    %c0_46 = arith.constant 0 : index
    %c0_47 = arith.constant 0 : index
    %46 = vector.load %arg5[%c1_45, %c0_46, %c0_47] : memref<2x32x128xf32, #tpu.memory_space<vmem>>, vector<1x32x128xf32>
    %47 = vector.shape_cast %46 : vector<1x32x128xf32> to vector<32x128xf32>
    %48 = vector.shape_cast %45 : vector<32x128xf32> to vector<1x32x128xf32>
    tpu.vector_store %arg5[%c1_45, %c0_46, %c0_47], %48 {strides = array<i32>} : memref<2x32x128xf32, #tpu.memory_space<vmem>>, vector<1x32x128xf32>,
    %cst_48 = arith.constant dense<0.000000e+00> : vector<128xf32>
    %49 = vector.multi_reduction <add>, %45, %cst_48 [0] : vector<32x128xf32> to vector<128xf32>
    %50 = vector.shape_cast %49 : vector<128xf32> to vector<1x128xf32>
    %51 = arith.addf %24, %50 : vector<1x128xf32>
    %52 = arith.mulf %45, %45 : vector<32x128xf32>
    %cst_49 = arith.constant dense<0.000000e+00> : vector<128xf32>
    %53 = vector.multi_reduction <add>, %52, %cst_49 [0] : vector<32x128xf32> to vector<128xf32>
    %54 = vector.shape_cast %53 : vector<128xf32> to vector<1x128xf32>
    %55 = arith.addf %28, %54 : vector<1x128xf32>
    %cst_50 = arith.constant 1.562500e-02 : f32
    %56 = vector.broadcast %cst_50 : f32 to vector<1x128xf32>
    %57 = arith.mulf %51, %56 : vector<1x128xf32>
    %cst_51 = arith.constant 1.562500e-02 : f32
    %58 = vector.broadcast %cst_51 : f32 to vector<1x128xf32>
    %59 = arith.mulf %55, %58 : vector<1x128xf32>
    %60 = arith.mulf %57, %57 : vector<1x128xf32>
    %61 = arith.subf %59, %60 : vector<1x128xf32>
    %cst_52 = arith.constant 0.000000e+00 : f32
    %62 = vector.broadcast %cst_52 : f32 to vector<1x128xf32>
    %63 = arith.maximumf %61, %62 : vector<1x128xf32>
    %c0_53 = arith.constant 0 : index
    %c0_54 = arith.constant 0 : index
    %64 = vector.load %arg2[%c0_53, %c0_54] : memref<1x128xf32, #tpu.memory_space<vmem>>, vector<1x128xf32>
    %cst_55 = arith.constant 9.99999974E-6 : f32
    %65 = vector.broadcast %cst_55 : f32 to vector<1x128xf32>
    %66 = arith.addf %63, %65 : vector<1x128xf32>
    %67 = math.rsqrt %66 : vector<1x128xf32>
    %68 = arith.mulf %64, %67 : vector<1x128xf32>
    %c0_56 = arith.constant 0 : index
    %c0_57 = arith.constant 0 : index
    %69 = vector.load %arg3[%c0_56, %c0_57] : memref<1x128xf32, #tpu.memory_space<vmem>>, vector<1x128xf32>
    %70 = arith.mulf %57, %68 : vector<1x128xf32>
    %71 = arith.subf %69, %70 : vector<1x128xf32>
    %c0_58 = arith.constant 0 : index
    %c0_59 = arith.constant 0 : index
    %c0_60 = arith.constant 0 : index
    %72 = vector.load %arg5[%c0_58, %c0_59, %c0_60] : memref<2x32x128xf32, #tpu.memory_space<vmem>>, vector<1x32x128xf32>
    %73 = vector.shape_cast %72 : vector<1x32x128xf32> to vector<32x128xf32>
    %74 = vector.broadcast %68 : vector<1x128xf32> to vector<32x128xf32>
    %75 = arith.mulf %73, %74 : vector<32x128xf32>
    %76 = vector.broadcast %71 : vector<1x128xf32> to vector<32x128xf32>
    %77 = arith.addf %75, %76 : vector<32x128xf32>
    %cst_61 = arith.constant 0.000000e+00 : f32
    %78 = vector.broadcast %cst_61 : f32 to vector<32x128xf32>
    %79 = arith.cmpf oge, %77, %78 : vector<32x128xf32>
    %cst_62 = arith.constant 0.00999999977 : f32
    %80 = vector.broadcast %cst_62 : f32 to vector<32x128xf32>
    %81 = arith.mulf %80, %77 : vector<32x128xf32>
    %82 = arith.select %79, %77, %81 : vector<32x128xi1>, vector<32x128xf32>
    %83 = arith.truncf %82 : vector<32x128xf32> to vector<32x128xbf16>
    %c0_63 = arith.constant 0 : index
    %c0_64 = arith.constant 0 : index
    %c0_65 = arith.constant 0 : index
    %84 = vector.load %arg4[%c0_63, %c0_64, %c0_65] : memref<2x32x128xbf16, #tpu.memory_space<vmem>>, vector<1x32x128xbf16>
    %85 = vector.shape_cast %84 : vector<1x32x128xbf16> to vector<32x128xbf16>
    %86 = vector.shape_cast %83 : vector<32x128xbf16> to vector<1x32x128xbf16>
    tpu.vector_store %arg4[%c0_63, %c0_64, %c0_65], %86 {strides = array<i32>} : memref<2x32x128xbf16, #tpu.memory_space<vmem>>, vector<1x32x128xbf16>,
    %c1_66 = arith.constant 1 : index
    %c0_67 = arith.constant 0 : index
    %c0_68 = arith.constant 0 : index
    %87 = vector.load %arg5[%c1_66, %c0_67, %c0_68] : memref<2x32x128xf32, #tpu.memory_space<vmem>>, vector<1x32x128xf32>
    %88 = vector.shape_cast %87 : vector<1x32x128xf32> to vector<32x128xf32>
    %89 = vector.broadcast %68 : vector<1x128xf32> to vector<32x128xf32>
    %90 = arith.mulf %88, %89 : vector<32x128xf32>
    %91 = vector.broadcast %71 : vector<1x128xf32> to vector<32x128xf32>
    %92 = arith.addf %90, %91 : vector<32x128xf32>
    %cst_69 = arith.constant 0.000000e+00 : f32
    %93 = vector.broadcast %cst_69 : f32 to vector<32x128xf32>
    %94 = arith.cmpf oge, %92, %93 : vector<32x128xf32>
    %cst_70 = arith.constant 0.00999999977 : f32
    %95 = vector.broadcast %cst_70 : f32 to vector<32x128xf32>
    %96 = arith.mulf %95, %92 : vector<32x128xf32>
    %97 = arith.select %94, %92, %96 : vector<32x128xi1>, vector<32x128xf32>
    %98 = arith.truncf %97 : vector<32x128xf32> to vector<32x128xbf16>
    %c1_71 = arith.constant 1 : index
    %c0_72 = arith.constant 0 : index
    %c0_73 = arith.constant 0 : index
    %99 = vector.load %arg4[%c1_71, %c0_72, %c0_73] : memref<2x32x128xbf16, #tpu.memory_space<vmem>>, vector<1x32x128xbf16>
    %100 = vector.shape_cast %99 : vector<1x32x128xbf16> to vector<32x128xbf16>
    %101 = vector.shape_cast %98 : vector<32x128xbf16> to vector<1x32x128xbf16>
    tpu.vector_store %arg4[%c1_71, %c0_72, %c0_73], %101 {strides = array<i32>} : memref<2x32x128xbf16, #tpu.memory_space<vmem>>, vector<1x32x128xbf16>,
    return
  }
}

module attributes {stable_mosaic.version = 11 : i64} {
  func.func @_conv_bn_lrelu_fused_kernel(%arg0: memref<2x64x144xbf16, #tpu.memory_space<vmem>>, %arg1: memref<1x144x128xbf16, #tpu.memory_space<vmem>>, %arg2: memref<1x128xf32, #tpu.memory_space<vmem>>, %arg3: memref<1x128xf32, #tpu.memory_space<vmem>>, %arg4: memref<2x64x128xf32, #tpu.memory_space<vmem>>, %arg5: memref<2x64x128xf32, #tpu.memory_space<vmem>>) attributes {dimension_semantics = [], scalar_prefetch = 0 : i64, scratch_operands = 1 : i64, tpu.core_type = #tpu.core_type<tc>} {
    %cst = arith.constant 0.000000e+00 : f32
    %0 = vector.broadcast %cst : f32 to vector<1x128xf32>
    %cst_0 = arith.constant 0.000000e+00 : f32
    %1 = vector.broadcast %cst_0 : f32 to vector<1x128xf32>
    %c0 = arith.constant 0 : index
    %c0_1 = arith.constant 0 : index
    %c0_2 = arith.constant 0 : index
    %2 = vector.load %arg0[%c0, %c0_1, %c0_2] : memref<2x64x144xbf16, #tpu.memory_space<vmem>>, vector<1x64x144xbf16>
    %3 = vector.shape_cast %2 : vector<1x64x144xbf16> to vector<64x144xbf16>
    %c0_3 = arith.constant 0 : index
    %c0_4 = arith.constant 0 : index
    %c0_5 = arith.constant 0 : index
    %4 = vector.load %arg1[%c0_3, %c0_4, %c0_5] : memref<1x144x128xbf16, #tpu.memory_space<vmem>>, vector<1x144x128xbf16>
    %5 = vector.shape_cast %4 : vector<1x144x128xbf16> to vector<144x128xbf16>
    %cst_6 = arith.constant dense<0.000000e+00> : vector<64x128xf32>
    %6 = tpu.matmul %3, %5, %cst_6 {dimension_numbers = #tpu.dot_dimension_numbers<[1], [0], [0], [1], [0, 0, 1, 1], [], []>} : vector<64x144xbf16>, vector<144x128xbf16>, vector<64x128xf32> -> vector<64x128xf32>
    %c0_7 = arith.constant 0 : index
    %c0_8 = arith.constant 0 : index
    %c0_9 = arith.constant 0 : index
    %7 = vector.load %arg5[%c0_7, %c0_8, %c0_9] : memref<2x64x128xf32, #tpu.memory_space<vmem>>, vector<1x64x128xf32>
    %8 = vector.shape_cast %7 : vector<1x64x128xf32> to vector<64x128xf32>
    %9 = vector.shape_cast %6 : vector<64x128xf32> to vector<1x64x128xf32>
    tpu.vector_store %arg5[%c0_7, %c0_8, %c0_9], %9 {strides = array<i32>} : memref<2x64x128xf32, #tpu.memory_space<vmem>>, vector<1x64x128xf32>,
    %cst_10 = arith.constant dense<0.000000e+00> : vector<128xf32>
    %10 = vector.multi_reduction <add>, %6, %cst_10 [0] : vector<64x128xf32> to vector<128xf32>
    %11 = vector.shape_cast %10 : vector<128xf32> to vector<1x128xf32>
    %12 = arith.addf %0, %11 : vector<1x128xf32>
    %13 = arith.mulf %6, %6 : vector<64x128xf32>
    %cst_11 = arith.constant dense<0.000000e+00> : vector<128xf32>
    %14 = vector.multi_reduction <add>, %13, %cst_11 [0] : vector<64x128xf32> to vector<128xf32>
    %15 = vector.shape_cast %14 : vector<128xf32> to vector<1x128xf32>
    %16 = arith.addf %1, %15 : vector<1x128xf32>
    %c1 = arith.constant 1 : index
    %c0_12 = arith.constant 0 : index
    %c0_13 = arith.constant 0 : index
    %17 = vector.load %arg0[%c1, %c0_12, %c0_13] : memref<2x64x144xbf16, #tpu.memory_space<vmem>>, vector<1x64x144xbf16>
    %18 = vector.shape_cast %17 : vector<1x64x144xbf16> to vector<64x144xbf16>
    %c0_14 = arith.constant 0 : index
    %c0_15 = arith.constant 0 : index
    %c0_16 = arith.constant 0 : index
    %19 = vector.load %arg1[%c0_14, %c0_15, %c0_16] : memref<1x144x128xbf16, #tpu.memory_space<vmem>>, vector<1x144x128xbf16>
    %20 = vector.shape_cast %19 : vector<1x144x128xbf16> to vector<144x128xbf16>
    %cst_17 = arith.constant dense<0.000000e+00> : vector<64x128xf32>
    %21 = tpu.matmul %18, %20, %cst_17 {dimension_numbers = #tpu.dot_dimension_numbers<[1], [0], [0], [1], [0, 0, 1, 1], [], []>} : vector<64x144xbf16>, vector<144x128xbf16>, vector<64x128xf32> -> vector<64x128xf32>
    %c1_18 = arith.constant 1 : index
    %c0_19 = arith.constant 0 : index
    %c0_20 = arith.constant 0 : index
    %22 = vector.load %arg5[%c1_18, %c0_19, %c0_20] : memref<2x64x128xf32, #tpu.memory_space<vmem>>, vector<1x64x128xf32>
    %23 = vector.shape_cast %22 : vector<1x64x128xf32> to vector<64x128xf32>
    %24 = vector.shape_cast %21 : vector<64x128xf32> to vector<1x64x128xf32>
    tpu.vector_store %arg5[%c1_18, %c0_19, %c0_20], %24 {strides = array<i32>} : memref<2x64x128xf32, #tpu.memory_space<vmem>>, vector<1x64x128xf32>,
    %cst_21 = arith.constant dense<0.000000e+00> : vector<128xf32>
    %25 = vector.multi_reduction <add>, %21, %cst_21 [0] : vector<64x128xf32> to vector<128xf32>
    %26 = vector.shape_cast %25 : vector<128xf32> to vector<1x128xf32>
    %27 = arith.addf %12, %26 : vector<1x128xf32>
    %28 = arith.mulf %21, %21 : vector<64x128xf32>
    %cst_22 = arith.constant dense<0.000000e+00> : vector<128xf32>
    %29 = vector.multi_reduction <add>, %28, %cst_22 [0] : vector<64x128xf32> to vector<128xf32>
    %30 = vector.shape_cast %29 : vector<128xf32> to vector<1x128xf32>
    %31 = arith.addf %16, %30 : vector<1x128xf32>
    %cst_23 = arith.constant 7.812500e-03 : f32
    %32 = vector.broadcast %cst_23 : f32 to vector<1x128xf32>
    %33 = arith.mulf %27, %32 : vector<1x128xf32>
    %cst_24 = arith.constant 7.812500e-03 : f32
    %34 = vector.broadcast %cst_24 : f32 to vector<1x128xf32>
    %35 = arith.mulf %31, %34 : vector<1x128xf32>
    %36 = arith.mulf %33, %33 : vector<1x128xf32>
    %37 = arith.subf %35, %36 : vector<1x128xf32>
    %cst_25 = arith.constant 0.000000e+00 : f32
    %38 = vector.broadcast %cst_25 : f32 to vector<1x128xf32>
    %39 = arith.maximumf %37, %38 : vector<1x128xf32>
    %c0_26 = arith.constant 0 : index
    %c0_27 = arith.constant 0 : index
    %40 = vector.load %arg2[%c0_26, %c0_27] : memref<1x128xf32, #tpu.memory_space<vmem>>, vector<1x128xf32>
    %cst_28 = arith.constant 9.99999974E-6 : f32
    %41 = vector.broadcast %cst_28 : f32 to vector<1x128xf32>
    %42 = arith.addf %39, %41 : vector<1x128xf32>
    %43 = math.rsqrt %42 : vector<1x128xf32>
    %44 = arith.mulf %40, %43 : vector<1x128xf32>
    %c0_29 = arith.constant 0 : index
    %c0_30 = arith.constant 0 : index
    %45 = vector.load %arg3[%c0_29, %c0_30] : memref<1x128xf32, #tpu.memory_space<vmem>>, vector<1x128xf32>
    %46 = arith.mulf %33, %44 : vector<1x128xf32>
    %47 = arith.subf %45, %46 : vector<1x128xf32>
    %c0_31 = arith.constant 0 : index
    %c0_32 = arith.constant 0 : index
    %c0_33 = arith.constant 0 : index
    %48 = vector.load %arg5[%c0_31, %c0_32, %c0_33] : memref<2x64x128xf32, #tpu.memory_space<vmem>>, vector<1x64x128xf32>
    %49 = vector.shape_cast %48 : vector<1x64x128xf32> to vector<64x128xf32>
    %50 = vector.broadcast %44 : vector<1x128xf32> to vector<64x128xf32>
    %51 = arith.mulf %49, %50 : vector<64x128xf32>
    %52 = vector.broadcast %47 : vector<1x128xf32> to vector<64x128xf32>
    %53 = arith.addf %51, %52 : vector<64x128xf32>
    %cst_34 = arith.constant 0.000000e+00 : f32
    %54 = vector.broadcast %cst_34 : f32 to vector<64x128xf32>
    %55 = arith.cmpf oge, %53, %54 : vector<64x128xf32>
    %cst_35 = arith.constant 0.00999999977 : f32
    %56 = vector.broadcast %cst_35 : f32 to vector<64x128xf32>
    %57 = arith.mulf %56, %53 : vector<64x128xf32>
    %58 = arith.select %55, %53, %57 : vector<64x128xi1>, vector<64x128xf32>
    %c0_36 = arith.constant 0 : index
    %c0_37 = arith.constant 0 : index
    %c0_38 = arith.constant 0 : index
    %59 = vector.load %arg4[%c0_36, %c0_37, %c0_38] : memref<2x64x128xf32, #tpu.memory_space<vmem>>, vector<1x64x128xf32>
    %60 = vector.shape_cast %59 : vector<1x64x128xf32> to vector<64x128xf32>
    %61 = vector.shape_cast %58 : vector<64x128xf32> to vector<1x64x128xf32>
    tpu.vector_store %arg4[%c0_36, %c0_37, %c0_38], %61 {strides = array<i32>} : memref<2x64x128xf32, #tpu.memory_space<vmem>>, vector<1x64x128xf32>,
    %c1_39 = arith.constant 1 : index
    %c0_40 = arith.constant 0 : index
    %c0_41 = arith.constant 0 : index
    %62 = vector.load %arg5[%c1_39, %c0_40, %c0_41] : memref<2x64x128xf32, #tpu.memory_space<vmem>>, vector<1x64x128xf32>
    %63 = vector.shape_cast %62 : vector<1x64x128xf32> to vector<64x128xf32>
    %64 = vector.broadcast %44 : vector<1x128xf32> to vector<64x128xf32>
    %65 = arith.mulf %63, %64 : vector<64x128xf32>
    %66 = vector.broadcast %47 : vector<1x128xf32> to vector<64x128xf32>
    %67 = arith.addf %65, %66 : vector<64x128xf32>
    %cst_42 = arith.constant 0.000000e+00 : f32
    %68 = vector.broadcast %cst_42 : f32 to vector<64x128xf32>
    %69 = arith.cmpf oge, %67, %68 : vector<64x128xf32>
    %cst_43 = arith.constant 0.00999999977 : f32
    %70 = vector.broadcast %cst_43 : f32 to vector<64x128xf32>
    %71 = arith.mulf %70, %67 : vector<64x128xf32>
    %72 = arith.select %69, %67, %71 : vector<64x128xi1>, vector<64x128xf32>
    %c1_44 = arith.constant 1 : index
    %c0_45 = arith.constant 0 : index
    %c0_46 = arith.constant 0 : index
    %73 = vector.load %arg4[%c1_44, %c0_45, %c0_46] : memref<2x64x128xf32, #tpu.memory_space<vmem>>, vector<1x64x128xf32>
    %74 = vector.shape_cast %73 : vector<1x64x128xf32> to vector<64x128xf32>
    %75 = vector.shape_cast %72 : vector<64x128xf32> to vector<1x64x128xf32>
    tpu.vector_store %arg4[%c1_44, %c0_45, %c0_46], %75 {strides = array<i32>} : memref<2x64x128xf32, #tpu.memory_space<vmem>>, vector<1x64x128xf32>,
    return
  }
}

</mosaic_0001>

<llo_original>
// kernel: prototype_forward.7
$region0: #{prototype_forward.7}
  #allocation0 [shape = 'u32[]', space=smem, size = 0x4, offset = 0x4, fixed_abs, tag = 'smem constant byte address 0x4 - core index']
  #allocation1 [shape = 'u32[144,128]{1,0:T(1,128)}', space=vmem, size = 0x12000, scoped, tag = 'internal scratch']
  #allocation2 [shape = 'f32[2,32,128]{2,1,0:T(8,128)}', space=vmem, size = 0x8000, scoped, tag = 'scratch operand']
  %s0 = inlined_call_operand.vmem [shape: bf16[2,33,16], index: 0, kind: input, shape index: {}]
  %s1 = inlined_call_operand.vmem [shape: bf16[2,16,128], index: 1, kind: input, shape index: {}]
  %s2 = inlined_call_operand.vmem [shape: f32[1,128], index: 2, kind: input, shape index: {}]
  %s3 = inlined_call_operand.vmem [shape: f32[1,128], index: 3, kind: input, shape index: {}]
  %s4 = inlined_call_operand.vmem [shape: bf16[2,32,128], index: 4, kind: output, shape index: {}]
  %s5 = sld [smem:[#allocation0]]
  $region26: #{prototype_forward.7} parent=0
    _
  %s7 = ssub.s32 1, %s5
  %s8 = scalar_select 0, %s7, %s5
  // Predicated region
  $region2: #{prototype_forward.7} parent=0 // pred_check
    _
  $region3: #{prototype_forward.7} parent=0 // pred_check_branch
    %10 = sbr.rel (0) target = $region5
  $region4: #{prototype_forward.7} parent=0 // pred_region
    _
  $region5: #{prototype_forward.7} parent=0 // pred_fallthru
    _
  // Predicated region
  $region6: #{prototype_forward.7} parent=0 // pred_check
    _
  $region7: #{prototype_forward.7} parent=0 // pred_check_branch
    %12 = sbr.rel (0) target = $region9
  $region8: #{prototype_forward.7} parent=0 // pred_region
    _
  $region9: #{prototype_forward.7} parent=0 // pred_fallthru
    _
  // Predicated region
  $region10: #{prototype_forward.7} parent=0 // pred_check
    _
  $region11: #{prototype_forward.7} parent=0 // pred_check_branch
    %14 = sbr.rel (0) target = $region13
  $region12: #{prototype_forward.7} parent=0 // pred_region
    _
  $region13: #{prototype_forward.7} parent=0 // pred_fallthru
    _
  // Predicated region
  $region14: #{prototype_forward.7} parent=0 // pred_check
    _
  $region15: #{prototype_forward.7} parent=0 // pred_check_branch
    %16 = sbr.rel (0) target = $region17
  $region16: #{prototype_forward.7} parent=0 // pred_region
    _
  $region17: #{prototype_forward.7} parent=0 // pred_fallthru
    _
  %v18 = vld [vmem:[%s0] sm:$0xf]
  %v19 = vld [vmem:[%s0 + $0x4] sm:$0xf]
  %v20 = vld [vmem:[%s0 + $0x8] sm:$0xf]
  %v21 = vld [vmem:[%s0 + $0xc] sm:$0xf]
  %v22 = vld [vmem:[%s1] sm:$0xf]
  %v23 = vld [vmem:[%s1 + $0x4] sm:$0xf]
  %v24 = vld [vmem:[%s0 + $0x10] sm:$0x1]
  %s25 = scalar_lea.vmem %s1, 8
  %v26 = vld [vmem:[%s25] sm:$0xf]
  %v27 = vld [vmem:[%s25 + $0x4] sm:$0xf]
  %v33 = vunpack.c.l.b16 %v18
  %v34 = vunpack.c.l.b16 %v19
  %v35 = vunpack.c.l.b16 %v20
  %v36 = vunpack.c.l.b16 %v21
  %v37 = vunpack.c.l.b16 %v24
  %v38 = vpack.c.b16 %v34, %v33
  %v39 = vpack.c.b16 %v36, %v35
  %v40 = vpack.c.b16 %v37, %v37
  %vm41 = vsmask.f32 7424
  %v43 = vshrl.u32 %v38, 16
  %v45 = vshll.u32 %v38, 16
  %v47 = vrot.slane %v45, 1
  %v48 = vor.u32 %v43, %v47
  %v50 = vshll.u32 %v39, 16
  %v52 = vrot.slane %v50, 1
  %v53 = vsel %vm41, %v48, %v52
  %v54 = vshrl.u32 %v39, 16
  %v56 = vor.u32 %v54, %v52
  %v58 = vshll.u32 %v40, 16
  %v60 = vrot.slane %v58, 1
  %v61 = vsel %vm41, %v56, %v60
  %v64 = vunpack.c.l.b16 %v26
  %v65 = vunpack.c.l.b16 %v27
  %v66 = vpack.c.b16 %v65, %v64
  %vm68 = vcmask 130048
  %v70 = vsel %vm68, %v53, 0
  %v73 = vsel %vm68, %v61, 0
  %75 = vmatprep.subr.bf16.mxu0 0
  %76 = vmatpush1.bf16.msra.mxu0 %v66
  %77 = vmatprep.subr.bf16.mxu0 0
  %78 = vmatpush1.bf16.msra.mxu0 0
  %79 = vmatprep.subr.bf16.mxu0 0
  %80 = vmatpush1.bf16.msra.mxu0 0
  %81 = vmatprep.subr.bf16.mxu0 0
  %82 = vmatpush1.bf16.msra.mxu0 0
  %83 = vmatprep.subr.bf16.mxu0 0
  %84 = vmatpush1.bf16.msra.mxu0 0
  %85 = vmatprep.subr.bf16.mxu0 0
  %86 = vmatpush1.bf16.msra.mxu0 0
  %87 = vmatprep.subr.bf16.mxu0 0
  %88 = vmatpush1.bf16.msra.mxu0 0
  %89 = vmatprep.subr.bf16.mxu0 0
  %90 = vmatpush1.bf16.msra.mxu0 0
  %91 = vmatprep.subr.bf16.mxu0 0
  %92 = vmatpush1.bf16.msra.mxu0 0
  %93 = vmatprep.subr.bf16.mxu0 0
  %94 = vmatpush1.bf16.msra.mxu0 0
  %95 = vmatprep.subr.bf16.mxu0 0
  %96 = vmatpush1.bf16.msra.mxu0 0
  %97 = vmatprep.subr.bf16.mxu0 0
  %98 = vmatpush1.bf16.msra.mxu0 0
  %99 = vmatprep.subr.bf16.mxu0 0
  %100 = vmatpush1.bf16.msra.mxu0 0
  %101 = vmatprep.subr.bf16.mxu0 0
  %102 = vmatpush1.bf16.msra.mxu0 0
  %103 = vmatprep.subr.bf16.mxu0 0
  %104 = vmatpush1.bf16.msra.mxu0 0
  %105 = vmatprep.subr.bf16.mxu0 0
  %106 = vmatpush1.bf16.msra.mxu0 0
  %107 = vmatprep.mubr.bf16.mxu0 0
  %108 = vmatmul.mubr.bf16.gmra.mrb[0].mxu0 %v70
  %v109 = vpop.f32.mrb[0].mxu0
  %v110 = vadd.f32 0.0, %v109
  %v111 = vpop.f32.mrb[0].mxu0
  %v112 = vpop.f32.mrb[0].mxu0
  %v113 = vadd.f32 0.0, %v112
  %v114 = vpop.f32.mrb[0].mxu0
  %115 = vmatprep.mubr.bf16.mxu0 0
  %116 = vmatmul.mubr.bf16.gmra.mrb[0].mxu0 %v73
  %v117 = vpop.f32.mrb[0].mxu0
  %v118 = vadd.f32 0.0, %v117
  %v119 = vpop.f32.mrb[0].mxu0
  %v120 = vpop.f32.mrb[0].mxu0
  %v121 = vadd.f32 0.0, %v120
  %v122 = vpop.f32.mrb[0].mxu0
  %123 = vdwg.mxu0
  %v126 = vunpack.c.l.b16 %v22
  %v127 = vunpack.c.l.b16 %v23
  %v128 = vpack.c.b16 %v127, %v126
  %v130 = vsel %vm68, %v38, 0
  %v132 = vsel %vm68, %v39, 0
  %134 = vmatprep.subr.bf16.mxu0 0
  %135 = vmatpush1.bf16.msra.mxu0 %v128
  %136 = vmatprep.subr.bf16.mxu0 0
  %137 = vmatpush1.bf16.msra.mxu0 0
  %138 = vmatprep.subr.bf16.mxu0 0
  %139 = vmatpush1.bf16.msra.mxu0 0
  %140 = vmatprep.subr.bf16.mxu0 0
  %141 = vmatpush1.bf16.msra.mxu0 0
  %142 = vmatprep.subr.bf16.mxu0 0
  %143 = vmatpush1.bf16.msra.mxu0 0
  %144 = vmatprep.subr.bf16.mxu0 0
  %145 = vmatpush1.bf16.msra.mxu0 0
  %146 = vmatprep.subr.bf16.mxu0 0
  %147 = vmatpush1.bf16.msra.mxu0 0
  %148 = vmatprep.subr.bf16.mxu0 0
  %149 = vmatpush1.bf16.msra.mxu0 0
  %150 = vmatprep.subr.bf16.mxu0 0
  %151 = vmatpush1.bf16.msra.mxu0 0
  %152 = vmatprep.subr.bf16.mxu0 0
  %153 = vmatpush1.bf16.msra.mxu0 0
  %154 = vmatprep.subr.bf16.mxu0 0
  %155 = vmatpush1.bf16.msra.mxu0 0
  %156 = vmatprep.subr.bf16.mxu0 0
  %157 = vmatpush1.bf16.msra.mxu0 0
  %158 = vmatprep.subr.bf16.mxu0 0
  %159 = vmatpush1.bf16.msra.mxu0 0
  %160 = vmatprep.subr.bf16.mxu0 0
  %161 = vmatpush1.bf16.msra.mxu0 0
  %162 = vmatprep.subr.bf16.mxu0 0
  %163 = vmatpush1.bf16.msra.mxu0 0
  %164 = vmatprep.subr.bf16.mxu0 0
  %165 = vmatpush1.bf16.msra.mxu0 0
  %166 = vmatprep.mubr.bf16.mxu0 0
  %167 = vmatmul.mubr.bf16.gmra.mrb[0].mxu0 %v130
  %v168 = vpop.f32.mrb[0].mxu0
  %v169 = vadd.f32 %v110, %v168
  %v170 = vpop.f32.mrb[0].mxu0
  %v171 = vpop.f32.mrb[0].mxu0
  %v172 = vadd.f32 %v113, %v171
  %v173 = vpop.f32.mrb[0].mxu0
  %174 = vmatprep.mubr.bf16.mxu0 0
  %175 = vmatmul.mubr.bf16.gmra.mrb[0].mxu0 %v132
  %v176 = vpop.f32.mrb[0].mxu0
  %v177 = vadd.f32 %v118, %v176
  %v178 = vpop.f32.mrb[0].mxu0
  %v179 = vpop.f32.mrb[0].mxu0
  %v180 = vadd.f32 %v121, %v179
  %v181 = vpop.f32.mrb[0].mxu0
  %182 = vdwg.mxu0
  %183 = vst [vmem:[#allocation2] sm:$0xff] %v169
  %184 = vst [vmem:[#allocation2 + $0x8] sm:$0xff] %v172
  %185 = vst [vmem:[#allocation2 + $0x10] sm:$0xff] %v177
  %186 = vst [vmem:[#allocation2 + $0x18] sm:$0xff] %v180
  %v187 = vadd.f32 %v169, %v172
  %v188 = vadd.f32 %v187, %v177
  %v189 = vadd.f32 %v188, %v180
  %v190 = vrot.slane %v189, 4
  %v191 = vadd.f32 %v189, %v190
  %v192 = vrot.slane %v191, 2
  %v193 = vadd.f32 %v191, %v192
  %v194 = vrot.slane %v193, 1
  %v195 = vadd.f32 %v193, %v194
  %v196 = vadd.f32 %v195, 0.0
  %v197 = vmul.f32 %v169, %v169
  %v198 = vmul.f32 %v172, %v172
  %v199 = vmul.f32 %v177, %v177
  %v200 = vmul.f32 %v180, %v180
  %v201 = vadd.f32 %v197, %v198
  %v202 = vadd.f32 %v201, %v199
  %v203 = vadd.f32 %v202, %v200
  %v204 = vrot.slane %v203, 4
  %v205 = vadd.f32 %v203, %v204
  %v206 = vrot.slane %v205, 2
  %v207 = vadd.f32 %v205, %v206
  %v208 = vrot.slane %v207, 1
  %v209 = vadd.f32 %v207, %v208
  %v210 = vadd.f32 %v209, 0.0
  %s211 = scalar_lea.vmem %s0, 20
  %v212 = vld [vmem:[%s211] sm:$0xf]
  %v213 = vld [vmem:[%s211 + $0x4] sm:$0xf]
  %v214 = vld [vmem:[%s211 + $0x8] sm:$0xf]
  %v215 = vld [vmem:[%s211 + $0xc] sm:$0xf]
  %v216 = vld [vmem:[%s1] sm:$0xf]
  %v217 = vld [vmem:[%s1 + $0x4] sm:$0xf]
  %v218 = vld [vmem:[%s211 + $0x10] sm:$0x1]
  %v219 = vld [vmem:[%s25] sm:$0xf]
  %v220 = vld [vmem:[%s25 + $0x4] sm:$0xf]
  %v226 = vunpack.c.l.b16 %v212
  %v227 = vunpack.c.l.b16 %v213
  %v228 = vunpack.c.l.b16 %v214
  %v229 = vunpack.c.l.b16 %v215
  %v230 = vunpack.c.l.b16 %v218
  %v231 = vpack.c.b16 %v227, %v226
  %v232 = vpack.c.b16 %v229, %v228
  %v233 = vpack.c.b16 %v230, %v230
  %v235 = vshrl.u32 %v231, 16
  %v237 = vshll.u32 %v231, 16
  %v239 = vrot.slane %v237, 1
  %v240 = vor.u32 %v235, %v239
  %v242 = vshll.u32 %v232, 16
  %v244 = vrot.slane %v242, 1
  %v245 = vsel %vm41, %v240, %v244
  %v246 = vshrl.u32 %v232, 16
  %v248 = vor.u32 %v246, %v244
  %v250 = vshll.u32 %v233, 16
  %v252 = vrot.slane %v250, 1
  %v253 = vsel %vm41, %v248, %v252
  %v256 = vunpack.c.l.b16 %v219
  %v257 = vunpack.c.l.b16 %v220
  %v258 = vpack.c.b16 %v257, %v256
  %v261 = vsel %vm68, %v245, 0
  %v264 = vsel %vm68, %v253, 0
  %266 = vmatprep.subr.bf16.mxu0 0
  %267 = vmatpush1.bf16.msra.mxu0 %v258
  %268 = vmatprep.subr.bf16.mxu0 0
  %269 = vmatpush1.bf16.msra.mxu0 0
  %270 = vmatprep.subr.bf16.mxu0 0
  %271 = vmatpush1.bf16.msra.mxu0 0
  %272 = vmatprep.subr.bf16.mxu0 0
  %273 = vmatpush1.bf16.msra.mxu0 0
  %274 = vmatprep.subr.bf16.mxu0 0
  %275 = vmatpush1.bf16.msra.mxu0 0
  %276 = vmatprep.subr.bf16.mxu0 0
  %277 = vmatpush1.bf16.msra.mxu0 0
  %278 = vmatprep.subr.bf16.mxu0 0
  %279 = vmatpush1.bf16.msra.mxu0 0
  %280 = vmatprep.subr.bf16.mxu0 0
  %281 = vmatpush1.bf16.msra.mxu0 0
  %282 = vmatprep.subr.bf16.mxu0 0
  %283 = vmatpush1.bf16.msra.mxu0 0
  %284 = vmatprep.subr.bf16.mxu0 0
  %285 = vmatpush1.bf16.msra.mxu0 0
  %286 = vmatprep.subr.bf16.mxu0 0
  %287 = vmatpush1.bf16.msra.mxu0 0
  %288 = vmatprep.subr.bf16.mxu0 0
  %289 = vmatpush1.bf16.msra.mxu0 0
  %290 = vmatprep.subr.bf16.mxu0 0
  %291 = vmatpush1.bf16.msra.mxu0 0
  %292 = vmatprep.subr.bf16.mxu0 0
  %293 = vmatpush1.bf16.msra.mxu0 0
  %294 = vmatprep.subr.bf16.mxu0 0
  %295 = vmatpush1.bf16.msra.mxu0 0
  %296 = vmatprep.subr.bf16.mxu0 0
  %297 = vmatpush1.bf16.msra.mxu0 0
  %298 = vmatprep.mubr.bf16.mxu0 0
  %299 = vmatmul.mubr.bf16.gmra.mrb[0].mxu0 %v261
  %v300 = vpop.f32.mrb[0].mxu0
  %v301 = vadd.f32 0.0, %v300
  %v302 = vpop.f32.mrb[0].mxu0
  %v303 = vpop.f32.mrb[0].mxu0
  %v304 = vadd.f32 0.0, %v303
  %v305 = vpop.f32.mrb[0].mxu0
  %306 = vmatprep.mubr.bf16.mxu0 0
  %307 = vmatmul.mubr.bf16.gmra.mrb[0].mxu0 %v264
  %v308 = vpop.f32.mrb[0].mxu0
  %v309 = vadd.f32 0.0, %v308
  %v310 = vpop.f32.mrb[0].mxu0
  %v311 = vpop.f32.mrb[0].mxu0
  %v312 = vadd.f32 0.0, %v311
  %v313 = vpop.f32.mrb[0].mxu0
  %314 = vdwg.mxu0
  %v317 = vunpack.c.l.b16 %v216
  %v318 = vunpack.c.l.b16 %v217
  %v319 = vpack.c.b16 %v318, %v317
  %v321 = vsel %vm68, %v231, 0
  %v323 = vsel %vm68, %v232, 0
  %325 = vmatprep.subr.bf16.mxu0 0
  %326 = vmatpush1.bf16.msra.mxu0 %v319
  %327 = vmatprep.subr.bf16.mxu0 0
  %328 = vmatpush1.bf16.msra.mxu0 0
  %329 = vmatprep.subr.bf16.mxu0 0
  %330 = vmatpush1.bf16.msra.mxu0 0
  %331 = vmatprep.subr.bf16.mxu0 0
  %332 = vmatpush1.bf16.msra.mxu0 0
  %333 = vmatprep.subr.bf16.mxu0 0
  %334 = vmatpush1.bf16.msra.mxu0 0
  %335 = vmatprep.subr.bf16.mxu0 0
  %336 = vmatpush1.bf16.msra.mxu0 0
  %337 = vmatprep.subr.bf16.mxu0 0
  %338 = vmatpush1.bf16.msra.mxu0 0
  %339 = vmatprep.subr.bf16.mxu0 0
  %340 = vmatpush1.bf16.msra.mxu0 0
  %341 = vmatprep.subr.bf16.mxu0 0
  %342 = vmatpush1.bf16.msra.mxu0 0
  %343 = vmatprep.subr.bf16.mxu0 0
  %344 = vmatpush1.bf16.msra.mxu0 0
  %345 = vmatprep.subr.bf16.mxu0 0
  %346 = vmatpush1.bf16.msra.mxu0 0
  %347 = vmatprep.subr.bf16.mxu0 0
  %348 = vmatpush1.bf16.msra.mxu0 0
  %349 = vmatprep.subr.bf16.mxu0 0
  %350 = vmatpush1.bf16.msra.mxu0 0
  %351 = vmatprep.subr.bf16.mxu0 0
  %352 = vmatpush1.bf16.msra.mxu0 0
  %353 = vmatprep.subr.bf16.mxu0 0
  %354 = vmatpush1.bf16.msra.mxu0 0
  %355 = vmatprep.subr.bf16.mxu0 0
  %356 = vmatpush1.bf16.msra.mxu0 0
  %357 = vmatprep.mubr.bf16.mxu0 0
  %358 = vmatmul.mubr.bf16.gmra.mrb[0].mxu0 %v321
  %v359 = vpop.f32.mrb[0].mxu0
  %v360 = vadd.f32 %v301, %v359
  %v361 = vpop.f32.mrb[0].mxu0
  %v362 = vpop.f32.mrb[0].mxu0
  %v363 = vadd.f32 %v304, %v362
  %v364 = vpop.f32.mrb[0].mxu0
  %365 = vmatprep.mubr.bf16.mxu0 0
  %366 = vmatmul.mubr.bf16.gmra.mrb[0].mxu0 %v323
  %v367 = vpop.f32.mrb[0].mxu0
  %v368 = vadd.f32 %v309, %v367
  %v369 = vpop.f32.mrb[0].mxu0
  %v370 = vpop.f32.mrb[0].mxu0
  %v371 = vadd.f32 %v312, %v370
  %v372 = vpop.f32.mrb[0].mxu0
  %373 = vdwg.mxu0
  %s374 = scalar_lea.vmem [#allocation2], 32
  %375 = vst [vmem:[%s374] sm:$0xff] %v360
  %376 = vst [vmem:[%s374 + $0x8] sm:$0xff] %v363
  %377 = vst [vmem:[%s374 + $0x10] sm:$0xff] %v368
  %378 = vst [vmem:[%s374 + $0x18] sm:$0xff] %v371
  %v379 = vadd.f32 %v360, %v363
  %v380 = vadd.f32 %v379, %v368
  %v381 = vadd.f32 %v380, %v371
  %v382 = vrot.slane %v381, 4
  %v383 = vadd.f32 %v381, %v382
  %v384 = vrot.slane %v383, 2
  %v385 = vadd.f32 %v383, %v384
  %v386 = vrot.slane %v385, 1
  %v387 = vadd.f32 %v385, %v386
  %v388 = vadd.f32 %v196, %v387
  %v389 = vmul.f32 %v360, %v360
  %v390 = vmul.f32 %v363, %v363
  %v391 = vmul.f32 %v368, %v368
  %v392 = vmul.f32 %v371, %v371
  %v393 = vadd.f32 %v389, %v390
  %v394 = vadd.f32 %v393, %v391
  %v395 = vadd.f32 %v394, %v392
  %v396 = vrot.slane %v395, 4
  %v397 = vadd.f32 %v395, %v396
  %v398 = vrot.slane %v397, 2
  %v399 = vadd.f32 %v397, %v398
  %v400 = vrot.slane %v399, 1
  %v401 = vadd.f32 %v399, %v400
  %v402 = vadd.f32 %v210, %v401
  %v403 = vmul.f32 %v388, 0.015625
  %v404 = vmul.f32 %v402, 0.015625
  %v405 = vmul.f32 %v403, %v403
  %v406 = vsub.f32 %v404, %v405
  %v407 = vmax.f32 %v406, 0.0
  %v408 = vld [vmem:[%s2] sm:$0x1]
  %v409 = vadd.f32 %v407, 1e-05
  %v410 = vrsqrt.pop %v409
  %v411 = vmul.f32 %v408, %v410
  %v412 = vld [vmem:[%s3] sm:$0x1]
  %v413 = vmul.f32 %v403, %v411
  %v414 = vsub.f32 %v412, %v413
  %v415 = vld [vmem:[#allocation2] sm:$0xff]
  %v416 = vld [vmem:[#allocation2 + $0x8] sm:$0xff]
  %v417 = vld [vmem:[#allocation2 + $0x10] sm:$0xff]
  %v418 = vld [vmem:[#allocation2 + $0x18] sm:$0xff]
  %v420 = vlaneseq
  %v421 = vshrl.u32 %v420, 7
  %v422 = vsub.s32 0, %v421
  %v423 = vrot.slane %v411, %v422
  %v425 = vmul.f32 %v415, %v423
  %v426 = vmul.f32 %v416, %v423
  %v427 = vmul.f32 %v417, %v423
  %v428 = vmul.f32 %v418, %v423
  %v430 = vlaneseq
  %v431 = vshrl.u32 %v430, 7
  %v432 = vsub.s32 0, %v431
  %v433 = vrot.slane %v414, %v432
  %v435 = vadd.f32 %v425, %v433
  %v436 = vadd.f32 %v426, %v433
  %v437 = vadd.f32 %v427, %v433
  %v438 = vadd.f32 %v428, %v433
  %vm439 = vcmp.ge.f32.partialorder %v435, 0.0
  %vm440 = vcmp.ge.f32.partialorder %v436, 0.0
  %vm441 = vcmp.ge.f32.partialorder %v437, 0.0
  %vm442 = vcmp.ge.f32.partialorder %v438, 0.0
  %v443 = vmul.f32 %v435, 0.01
  %v444 = vmul.f32 %v436, 0.01
  %v445 = vmul.f32 %v437, 0.01
  %v446 = vmul.f32 %v438, 0.01
  %v447 = vsel %vm439, %v435, %v443
  %v448 = vsel %vm440, %v436, %v444
  %v449 = vsel %vm441, %v437, %v445
  %v450 = vsel %vm442, %v438, %v446
  %v451 = vpack.c.bf16 %v448, %v447
  %v452 = vpack.c.bf16 %v450, %v449
  %v455 = vunpack.c.l.b16 %v451
  %v456 = vunpack.c.h.b16 %v451
  %v457 = vunpack.c.l.b16 %v452
  %v458 = vunpack.c.h.b16 %v452
  %v459 = vpack.c.b16 %v455, %v455
  %v460 = vpack.c.b16 %v456, %v456
  %v461 = vpack.c.b16 %v457, %v457
  %v462 = vpack.c.b16 %v458, %v458
  %467 = vst [vmem:[%s4] sm:$0xf] %v459
  %468 = vst [vmem:[%s4 + $0x4] sm:$0xf] %v460
  %469 = vst [vmem:[%s4 + $0x8] sm:$0xf] %v461
  %470 = vst [vmem:[%s4 + $0xc] sm:$0xf] %v462
  %v471 = vld [vmem:[%s374] sm:$0xff]
  %v472 = vld [vmem:[%s374 + $0x8] sm:$0xff]
  %v473 = vld [vmem:[%s374 + $0x10] sm:$0xff]
  %v474 = vld [vmem:[%s374 + $0x18] sm:$0xff]
  %v475 = vmul.f32 %v471, %v423
  %v476 = vmul.f32 %v472, %v423
  %v477 = vmul.f32 %v473, %v423
  %v478 = vmul.f32 %v474, %v423
  %v479 = vadd.f32 %v475, %v433
  %v480 = vadd.f32 %v476, %v433
  %v481 = vadd.f32 %v477, %v433
  %v482 = vadd.f32 %v478, %v433
  %vm483 = vcmp.ge.f32.partialorder %v479, 0.0
  %vm484 = vcmp.ge.f32.partialorder %v480, 0.0
  %vm485 = vcmp.ge.f32.partialorder %v481, 0.0
  %vm486 = vcmp.ge.f32.partialorder %v482, 0.0
  %v487 = vmul.f32 %v479, 0.01
  %v488 = vmul.f32 %v480, 0.01
  %v489 = vmul.f32 %v481, 0.01
  %v490 = vmul.f32 %v482, 0.01
  %v491 = vsel %vm483, %v479, %v487
  %v492 = vsel %vm484, %v480, %v488
  %v493 = vsel %vm485, %v481, %v489
  %v494 = vsel %vm486, %v482, %v490
  %v495 = vpack.c.bf16 %v492, %v491
  %v496 = vpack.c.bf16 %v494, %v493
  %v499 = vunpack.c.l.b16 %v495
  %v500 = vunpack.c.h.b16 %v495
  %v501 = vunpack.c.l.b16 %v496
  %v502 = vunpack.c.h.b16 %v496
  %v503 = vpack.c.b16 %v499, %v499
  %v504 = vpack.c.b16 %v500, %v500
  %v505 = vpack.c.b16 %v501, %v501
  %v506 = vpack.c.b16 %v502, %v502
  %s511 = scalar_lea.vmem %s4, 16
  %512 = vst [vmem:[%s511] sm:$0xf] %v503
  %513 = vst [vmem:[%s511 + $0x4] sm:$0xf] %v504
  %514 = vst [vmem:[%s511 + $0x8] sm:$0xf] %v505
  %515 = vst [vmem:[%s511 + $0xc] sm:$0xf] %v506
  // Predicated region
  $region18: #{prototype_forward.7} parent=0 // pred_check
    _
  $region19: #{prototype_forward.7} parent=0 // pred_check_branch
    %517 = sbr.rel (0) target = $region21
  $region20: #{prototype_forward.7} parent=0 // pred_region
    _
  $region21: #{prototype_forward.7} parent=0 // pred_fallthru
    _
  // Predicated region
  $region22: #{prototype_forward.7} parent=0 // pred_check
    _
  $region23: #{prototype_forward.7} parent=0 // pred_check_branch
    %519 = sbr.rel (0) target = $region25
  $region24: #{prototype_forward.7} parent=0 // pred_region
    _
  $region25: #{prototype_forward.7} parent=0 // pred_fallthru
    _

// kernel: prototype_forward.8
$region0: #{prototype_forward.8}
  #allocation0 [shape = 'u32[]', space=smem, size = 0x4, offset = 0x4, fixed_abs, tag = 'smem constant byte address 0x4 - core index']
  #allocation1 [shape = 'u32[144,128]{1,0:T(1,128)}', space=vmem, size = 0x12000, scoped, tag = 'internal scratch']
  #allocation2 [shape = 'f32[2,16,128]{2,1,0:T(8,128)}', space=vmem, size = 0x4000, scoped, tag = 'scratch operand']
  %s0 = inlined_call_operand.vmem [shape: bf16[2,17,128], index: 0, kind: input, shape index: {}]
  %s1 = inlined_call_operand.vmem [shape: bf16[2,128,128], index: 1, kind: input, shape index: {}]
  %s2 = inlined_call_operand.vmem [shape: f32[1,128], index: 2, kind: input, shape index: {}]
  %s3 = inlined_call_operand.vmem [shape: f32[1,128], index: 3, kind: input, shape index: {}]
  %s4 = inlined_call_operand.vmem [shape: bf16[2,16,128], index: 4, kind: output, shape index: {}]
  %s5 = sld [smem:[#allocation0]]
  $region26: #{prototype_forward.8} parent=0
    _
  %s7 = ssub.s32 1, %s5
  %s8 = scalar_select 0, %s7, %s5
  // Predicated region
  $region2: #{prototype_forward.8} parent=0 // pred_check
    _
  $region3: #{prototype_forward.8} parent=0 // pred_check_branch
    %10 = sbr.rel (0) target = $region5
  $region4: #{prototype_forward.8} parent=0 // pred_region
    _
  $region5: #{prototype_forward.8} parent=0 // pred_fallthru
    _
  // Predicated region
  $region6: #{prototype_forward.8} parent=0 // pred_check
    _
  $region7: #{prototype_forward.8} parent=0 // pred_check_branch
    %12 = sbr.rel (0) target = $region9
  $region8: #{prototype_forward.8} parent=0 // pred_region
    _
  $region9: #{prototype_forward.8} parent=0 // pred_fallthru
    _
  // Predicated region
  $region10: #{prototype_forward.8} parent=0 // pred_check
    _
  $region11: #{prototype_forward.8} parent=0 // pred_check_branch
    %14 = sbr.rel (0) target = $region13
  $region12: #{prototype_forward.8} parent=0 // pred_region
    _
  $region13: #{prototype_forward.8} parent=0 // pred_fallthru
    _
  // Predicated region
  $region14: #{prototype_forward.8} parent=0 // pred_check
    _
  $region15: #{prototype_forward.8} parent=0 // pred_check_branch
    %16 = sbr.rel (0) target = $region17
  $region16: #{prototype_forward.8} parent=0 // pred_region
    _
  $region17: #{prototype_forward.8} parent=0 // pred_fallthru
    _
  %v18 = vld [vmem:[%s0] sm:$0xf]
  %v19 = vld [vmem:[%s0 + $0x4] sm:$0xf]
  %v20 = vld [vmem:[%s1] sm:$0xf]
  %v21 = vld [vmem:[%s1 + $0x4] sm:$0xf]
  %v22 = vld [vmem:[%s1 + $0x8] sm:$0xf]
  %v23 = vld [vmem:[%s1 + $0xc] sm:$0xf]
  %v24 = vld [vmem:[%s1 + $0x10] sm:$0xf]
  %v25 = vld [vmem:[%s1 + $0x14] sm:$0xf]
  %v26 = vld [vmem:[%s1 + $0x18] sm:$0xf]
  %v27 = vld [vmem:[%s1 + $0x1c] sm:$0xf]
  %v28 = vld [vmem:[%s1 + $0x20] sm:$0xf]
  %v29 = vld [vmem:[%s1 + $0x24] sm:$0xf]
  %v30 = vld [vmem:[%s1 + $0x28] sm:$0xf]
  %v31 = vld [vmem:[%s1 + $0x2c] sm:$0xf]
  %v32 = vld [vmem:[%s1 + $0x30] sm:$0xf]
  %v33 = vld [vmem:[%s1 + $0x34] sm:$0xf]
  %v34 = vld [vmem:[%s1 + $0x38] sm:$0xf]
  %v35 = vld [vmem:[%s1 + $0x3c] sm:$0xf]
  %v36 = vld [vmem:[%s0 + $0x8] sm:$0x1]
  %s37 = scalar_lea.vmem %s1, 64
  %v38 = vld [vmem:[%s37] sm:$0xf]
  %v39 = vld [vmem:[%s37 + $0x4] sm:$0xf]
  %v40 = vld [vmem:[%s37 + $0x8] sm:$0xf]
  %v41 = vld [vmem:[%s37 + $0xc] sm:$0xf]
  %v42 = vld [vmem:[%s37 + $0x10] sm:$0xf]
  %v43 = vld [vmem:[%s37 + $0x14] sm:$0xf]
  %v44 = vld [vmem:[%s37 + $0x18] sm:$0xf]
  %v45 = vld [vmem:[%s37 + $0x1c] sm:$0xf]
  %v46 = vld [vmem:[%s37 + $0x20] sm:$0xf]
  %v47 = vld [vmem:[%s37 + $0x24] sm:$0xf]
  %v48 = vld [vmem:[%s37 + $0x28] sm:$0xf]
  %v49 = vld [vmem:[%s37 + $0x2c] sm:$0xf]
  %v50 = vld [vmem:[%s37 + $0x30] sm:$0xf]
  %v51 = vld [vmem:[%s37 + $0x34] sm:$0xf]
  %v52 = vld [vmem:[%s37 + $0x38] sm:$0xf]
  %v53 = vld [vmem:[%s37 + $0x3c] sm:$0xf]
  %v57 = vunpack.c.l.b16 %v18
  %v58 = vunpack.c.l.b16 %v19
  %v59 = vunpack.c.l.b16 %v36
  %v60 = vpack.c.b16 %v58, %v57
  %v61 = vpack.c.b16 %v59, %v59
  %vm62 = vsmask.f32 7424
  %v64 = vshrl.u32 %v60, 16
  %v66 = vshll.u32 %v60, 16
  %v68 = vrot.slane %v66, 1
  %v69 = vor.u32 %v64, %v68
  %v71 = vshll.u32 %v61, 16
  %v73 = vrot.slane %v71, 1
  %v74 = vsel %vm62, %v69, %v73
  %v92 = vunpack.c.l.b16 %v38
  %v93 = vunpack.c.l.b16 %v39
  %v94 = vunpack.c.l.b16 %v40
  %v95 = vunpack.c.l.b16 %v41
  %v96 = vunpack.c.l.b16 %v42
  %v97 = vunpack.c.l.b16 %v43
  %v98 = vunpack.c.l.b16 %v44
  %v99 = vunpack.c.l.b16 %v45
  %v100 = vunpack.c.l.b16 %v46
  %v101 = vunpack.c.l.b16 %v47
  %v102 = vunpack.c.l.b16 %v48
  %v103 = vunpack.c.l.b16 %v49
  %v104 = vunpack.c.l.b16 %v50
  %v105 = vunpack.c.l.b16 %v51
  %v106 = vunpack.c.l.b16 %v52
  %v107 = vunpack.c.l.b16 %v53
  %v108 = vpack.c.b16 %v93, %v92
  %v109 = vpack.c.b16 %v95, %v94
  %v110 = vpack.c.b16 %v97, %v96
  %v111 = vpack.c.b16 %v99, %v98
  %v112 = vpack.c.b16 %v101, %v100
  %v113 = vpack.c.b16 %v103, %v102
  %v114 = vpack.c.b16 %v105, %v104
  %v115 = vpack.c.b16 %v107, %v106
  %124 = vmatprep.subr.bf16.mxu0 0
  %125 = vmatpush1.bf16.msra.mxu0 %v108
  %126 = vmatprep.subr.bf16.mxu0 0
  %127 = vmatpush1.bf16.msra.mxu0 %v109
  %128 = vmatprep.subr.bf16.mxu0 0
  %129 = vmatpush1.bf16.msra.mxu0 %v110
  %130 = vmatprep.subr.bf16.mxu0 0
  %131 = vmatpush1.bf16.msra.mxu0 %v111
  %132 = vmatprep.subr.bf16.mxu0 0
  %133 = vmatpush1.bf16.msra.mxu0 %v112
  %134 = vmatprep.subr.bf16.mxu0 0
  %135 = vmatpush1.bf16.msra.mxu0 %v113
  %136 = vmatprep.subr.bf16.mxu0 0
  %137 = vmatpush1.bf16.msra.mxu0 %v114
  %138 = vmatprep.subr.bf16.mxu0 0
  %139 = vmatpush1.bf16.msra.mxu0 %v115
  %140 = vmatprep.subr.bf16.mxu0 0
  %141 = vmatpush1.bf16.msra.mxu0 0
  %142 = vmatprep.subr.bf16.mxu0 0
  %143 = vmatpush1.bf16.msra.mxu0 0
  %144 = vmatprep.subr.bf16.mxu0 0
  %145 = vmatpush1.bf16.msra.mxu0 0
  %146 = vmatprep.subr.bf16.mxu0 0
  %147 = vmatpush1.bf16.msra.mxu0 0
  %148 = vmatprep.subr.bf16.mxu0 0
  %149 = vmatpush1.bf16.msra.mxu0 0
  %150 = vmatprep.subr.bf16.mxu0 0
  %151 = vmatpush1.bf16.msra.mxu0 0
  %152 = vmatprep.subr.bf16.mxu0 0
  %153 = vmatpush1.bf16.msra.mxu0 0
  %154 = vmatprep.subr.bf16.mxu0 0
  %155 = vmatpush1.bf16.msra.mxu0 0
  %156 = vmatprep.mubr.bf16.mxu0 0
  %157 = vmatmul.mubr.bf16.gmra.mrb[0].mxu0 %v74
  %v158 = vpop.f32.mrb[0].mxu0
  %v159 = vadd.f32 0.0, %v158
  %v160 = vpop.f32.mrb[0].mxu0
  %v161 = vpop.f32.mrb[0].mxu0
  %v162 = vadd.f32 0.0, %v161
  %v163 = vpop.f32.mrb[0].mxu0
  %164 = vdwg.mxu0
  %v182 = vunpack.c.l.b16 %v20
  %v183 = vunpack.c.l.b16 %v21
  %v184 = vunpack.c.l.b16 %v22
  %v185 = vunpack.c.l.b16 %v23
  %v186 = vunpack.c.l.b16 %v24
  %v187 = vunpack.c.l.b16 %v25
  %v188 = vunpack.c.l.b16 %v26
  %v189 = vunpack.c.l.b16 %v27
  %v190 = vunpack.c.l.b16 %v28
  %v191 = vunpack.c.l.b16 %v29
  %v192 = vunpack.c.l.b16 %v30
  %v193 = vunpack.c.l.b16 %v31
  %v194 = vunpack.c.l.b16 %v32
  %v195 = vunpack.c.l.b16 %v33
  %v196 = vunpack.c.l.b16 %v34
  %v197 = vunpack.c.l.b16 %v35
  %v198 = vpack.c.b16 %v183, %v182
  %v199 = vpack.c.b16 %v185, %v184
  %v200 = vpack.c.b16 %v187, %v186
  %v201 = vpack.c.b16 %v189, %v188
  %v202 = vpack.c.b16 %v191, %v190
  %v203 = vpack.c.b16 %v193, %v192
  %v204 = vpack.c.b16 %v195, %v194
  %v205 = vpack.c.b16 %v197, %v196
  %214 = vmatprep.subr.bf16.mxu0 0
  %215 = vmatpush1.bf16.msra.mxu0 %v198
  %216 = vmatprep.subr.bf16.mxu0 0
  %217 = vmatpush1.bf16.msra.mxu0 %v199
  %218 = vmatprep.subr.bf16.mxu0 0
  %219 = vmatpush1.bf16.msra.mxu0 %v200
  %220 = vmatprep.subr.bf16.mxu0 0
  %221 = vmatpush1.bf16.msra.mxu0 %v201
  %222 = vmatprep.subr.bf16.mxu0 0
  %223 = vmatpush1.bf16.msra.mxu0 %v202
  %224 = vmatprep.subr.bf16.mxu0 0
  %225 = vmatpush1.bf16.msra.mxu0 %v203
  %226 = vmatprep.subr.bf16.mxu0 0
  %227 = vmatpush1.bf16.msra.mxu0 %v204
  %228 = vmatprep.subr.bf16.mxu0 0
  %229 = vmatpush1.bf16.msra.mxu0 %v205
  %230 = vmatprep.subr.bf16.mxu0 0
  %231 = vmatpush1.bf16.msra.mxu0 0
  %232 = vmatprep.subr.bf16.mxu0 0
  %233 = vmatpush1.bf16.msra.mxu0 0
  %234 = vmatprep.subr.bf16.mxu0 0
  %235 = vmatpush1.bf16.msra.mxu0 0
  %236 = vmatprep.subr.bf16.mxu0 0
  %237 = vmatpush1.bf16.msra.mxu0 0
  %238 = vmatprep.subr.bf16.mxu0 0
  %239 = vmatpush1.bf16.msra.mxu0 0
  %240 = vmatprep.subr.bf16.mxu0 0
  %241 = vmatpush1.bf16.msra.mxu0 0
  %242 = vmatprep.subr.bf16.mxu0 0
  %243 = vmatpush1.bf16.msra.mxu0 0
  %244 = vmatprep.subr.bf16.mxu0 0
  %245 = vmatpush1.bf16.msra.mxu0 0
  %246 = vmatprep.mubr.bf16.mxu0 0
  %247 = vmatmul.mubr.bf16.gmra.mrb[0].mxu0 %v60
  %v248 = vpop.f32.mrb[0].mxu0
  %v249 = vadd.f32 %v159, %v248
  %v250 = vpop.f32.mrb[0].mxu0
  %v251 = vpop.f32.mrb[0].mxu0
  %v252 = vadd.f32 %v162, %v251
  %v253 = vpop.f32.mrb[0].mxu0
  %254 = vdwg.mxu0
  %255 = vst [vmem:[#allocation2] sm:$0xff] %v249
  %256 = vst [vmem:[#allocation2 + $0x8] sm:$0xff] %v252
  %v257 = vadd.f32 %v249, %v252
  %v258 = vrot.slane %v257, 4
  %v259 = vadd.f32 %v257, %v258
  %v260 = vrot.slane %v259, 2
  %v261 = vadd.f32 %v259, %v260
  %v262 = vrot.slane %v261, 1
  %v263 = vadd.f32 %v261, %v262
  %v264 = vadd.f32 %v263, 0.0
  %v265 = vmul.f32 %v249, %v249
  %v266 = vmul.f32 %v252, %v252
  %v267 = vadd.f32 %v265, %v266
  %v268 = vrot.slane %v267, 4
  %v269 = vadd.f32 %v267, %v268
  %v270 = vrot.slane %v269, 2
  %v271 = vadd.f32 %v269, %v270
  %v272 = vrot.slane %v271, 1
  %v273 = vadd.f32 %v271, %v272
  %v274 = vadd.f32 %v273, 0.0
  %s275 = scalar_lea.vmem %s0, 12
  %v276 = vld [vmem:[%s275] sm:$0xf]
  %v277 = vld [vmem:[%s275 + $0x4] sm:$0xf]
  %v278 = vld [vmem:[%s1] sm:$0xf]
  %v279 = vld [vmem:[%s1 + $0x4] sm:$0xf]
  %v280 = vld [vmem:[%s1 + $0x8] sm:$0xf]
  %v281 = vld [vmem:[%s1 + $0xc] sm:$0xf]
  %v282 = vld [vmem:[%s1 + $0x10] sm:$0xf]
  %v283 = vld [vmem:[%s1 + $0x14] sm:$0xf]
  %v284 = vld [vmem:[%s1 + $0x18] sm:$0xf]
  %v285 = vld [vmem:[%s1 + $0x1c] sm:$0xf]
  %v286 = vld [vmem:[%s1 + $0x20] sm:$0xf]
  %v287 = vld [vmem:[%s1 + $0x24] sm:$0xf]
  %v288 = vld [vmem:[%s1 + $0x28] sm:$0xf]
  %v289 = vld [vmem:[%s1 + $0x2c] sm:$0xf]
  %v290 = vld [vmem:[%s1 + $0x30] sm:$0xf]
  %v291 = vld [vmem:[%s1 + $0x34] sm:$0xf]
  %v292 = vld [vmem:[%s1 + $0x38] sm:$0xf]
  %v293 = vld [vmem:[%s1 + $0x3c] sm:$0xf]
  %v294 = vld [vmem:[%s275 + $0x8] sm:$0x1]
  %v295 = vld [vmem:[%s37] sm:$0xf]
  %v296 = vld [vmem:[%s37 + $0x4] sm:$0xf]
  %v297 = vld [vmem:[%s37 + $0x8] sm:$0xf]
  %v298 = vld [vmem:[%s37 + $0xc] sm:$0xf]
  %v299 = vld [vmem:[%s37 + $0x10] sm:$0xf]
  %v300 = vld [vmem:[%s37 + $0x14] sm:$0xf]
  %v301 = vld [vmem:[%s37 + $0x18] sm:$0xf]
  %v302 = vld [vmem:[%s37 + $0x1c] sm:$0xf]
  %v303 = vld [vmem:[%s37 + $0x20] sm:$0xf]
  %v304 = vld [vmem:[%s37 + $0x24] sm:$0xf]
  %v305 = vld [vmem:[%s37 + $0x28] sm:$0xf]
  %v306 = vld [vmem:[%s37 + $0x2c] sm:$0xf]
  %v307 = vld [vmem:[%s37 + $0x30] sm:$0xf]
  %v308 = vld [vmem:[%s37 + $0x34] sm:$0xf]
  %v309 = vld [vmem:[%s37 + $0x38] sm:$0xf]
  %v310 = vld [vmem:[%s37 + $0x3c] sm:$0xf]
  %v314 = vunpack.c.l.b16 %v276
  %v315 = vunpack.c.l.b16 %v277
  %v316 = vunpack.c.l.b16 %v294
  %v317 = vpack.c.b16 %v315, %v314
  %v318 = vpack.c.b16 %v316, %v316
  %v320 = vshrl.u32 %v317, 16
  %v322 = vshll.u32 %v317, 16
  %v324 = vrot.slane %v322, 1
  %v325 = vor.u32 %v320, %v324
  %v327 = vshll.u32 %v318, 16
  %v329 = vrot.slane %v327, 1
  %v330 = vsel %vm62, %v325, %v329
  %v348 = vunpack.c.l.b16 %v295
  %v349 = vunpack.c.l.b16 %v296
  %v350 = vunpack.c.l.b16 %v297
  %v351 = vunpack.c.l.b16 %v298
  %v352 = vunpack.c.l.b16 %v299
  %v353 = vunpack.c.l.b16 %v300
  %v354 = vunpack.c.l.b16 %v301
  %v355 = vunpack.c.l.b16 %v302
  %v356 = vunpack.c.l.b16 %v303
  %v357 = vunpack.c.l.b16 %v304
  %v358 = vunpack.c.l.b16 %v305
  %v359 = vunpack.c.l.b16 %v306
  %v360 = vunpack.c.l.b16 %v307
  %v361 = vunpack.c.l.b16 %v308
  %v362 = vunpack.c.l.b16 %v309
  %v363 = vunpack.c.l.b16 %v310
  %v364 = vpack.c.b16 %v349, %v348
  %v365 = vpack.c.b16 %v351, %v350
  %v366 = vpack.c.b16 %v353, %v352
  %v367 = vpack.c.b16 %v355, %v354
  %v368 = vpack.c.b16 %v357, %v356
  %v369 = vpack.c.b16 %v359, %v358
  %v370 = vpack.c.b16 %v361, %v360
  %v371 = vpack.c.b16 %v363, %v362
  %380 = vmatprep.subr.bf16.mxu0 0
  %381 = vmatpush1.bf16.msra.mxu0 %v364
  %382 = vmatprep.subr.bf16.mxu0 0
  %383 = vmatpush1.bf16.msra.mxu0 %v365
  %384 = vmatprep.subr.bf16.mxu0 0
  %385 = vmatpush1.bf16.msra.mxu0 %v366
  %386 = vmatprep.subr.bf16.mxu0 0
  %387 = vmatpush1.bf16.msra.mxu0 %v367
  %388 = vmatprep.subr.bf16.mxu0 0
  %389 = vmatpush1.bf16.msra.mxu0 %v368
  %390 = vmatprep.subr.bf16.mxu0 0
  %391 = vmatpush1.bf16.msra.mxu0 %v369
  %392 = vmatprep.subr.bf16.mxu0 0
  %393 = vmatpush1.bf16.msra.mxu0 %v370
  %394 = vmatprep.subr.bf16.mxu0 0
  %395 = vmatpush1.bf16.msra.mxu0 %v371
  %396 = vmatprep.subr.bf16.mxu0 0
  %397 = vmatpush1.bf16.msra.mxu0 0
  %398 = vmatprep.subr.bf16.mxu0 0
  %399 = vmatpush1.bf16.msra.mxu0 0
  %400 = vmatprep.subr.bf16.mxu0 0
  %401 = vmatpush1.bf16.msra.mxu0 0
  %402 = vmatprep.subr.bf16.mxu0 0
  %403 = vmatpush1.bf16.msra.mxu0 0
  %404 = vmatprep.subr.bf16.mxu0 0
  %405 = vmatpush1.bf16.msra.mxu0 0
  %406 = vmatprep.subr.bf16.mxu0 0
  %407 = vmatpush1.bf16.msra.mxu0 0
  %408 = vmatprep.subr.bf16.mxu0 0
  %409 = vmatpush1.bf16.msra.mxu0 0
  %410 = vmatprep.subr.bf16.mxu0 0
  %411 = vmatpush1.bf16.msra.mxu0 0
  %412 = vmatprep.mubr.bf16.mxu0 0
  %413 = vmatmul.mubr.bf16.gmra.mrb[0].mxu0 %v330
  %v414 = vpop.f32.mrb[0].mxu0
  %v415 = vadd.f32 0.0, %v414
  %v416 = vpop.f32.mrb[0].mxu0
  %v417 = vpop.f32.mrb[0].mxu0
  %v418 = vadd.f32 0.0, %v417
  %v419 = vpop.f32.mrb[0].mxu0
  %420 = vdwg.mxu0
  %v438 = vunpack.c.l.b16 %v278
  %v439 = vunpack.c.l.b16 %v279
  %v440 = vunpack.c.l.b16 %v280
  %v441 = vunpack.c.l.b16 %v281
  %v442 = vunpack.c.l.b16 %v282
  %v443 = vunpack.c.l.b16 %v283
  %v444 = vunpack.c.l.b16 %v284
  %v445 = vunpack.c.l.b16 %v285
  %v446 = vunpack.c.l.b16 %v286
  %v447 = vunpack.c.l.b16 %v287
  %v448 = vunpack.c.l.b16 %v288
  %v449 = vunpack.c.l.b16 %v289
  %v450 = vunpack.c.l.b16 %v290
  %v451 = vunpack.c.l.b16 %v291
  %v452 = vunpack.c.l.b16 %v292
  %v453 = vunpack.c.l.b16 %v293
  %v454 = vpack.c.b16 %v439, %v438
  %v455 = vpack.c.b16 %v441, %v440
  %v456 = vpack.c.b16 %v443, %v442
  %v457 = vpack.c.b16 %v445, %v444
  %v458 = vpack.c.b16 %v447, %v446
  %v459 = vpack.c.b16 %v449, %v448
  %v460 = vpack.c.b16 %v451, %v450
  %v461 = vpack.c.b16 %v453, %v452
  %470 = vmatprep.subr.bf16.mxu0 0
  %471 = vmatpush1.bf16.msra.mxu0 %v454
  %472 = vmatprep.subr.bf16.mxu0 0
  %473 = vmatpush1.bf16.msra.mxu0 %v455
  %474 = vmatprep.subr.bf16.mxu0 0
  %475 = vmatpush1.bf16.msra.mxu0 %v456
  %476 = vmatprep.subr.bf16.mxu0 0
  %477 = vmatpush1.bf16.msra.mxu0 %v457
  %478 = vmatprep.subr.bf16.mxu0 0
  %479 = vmatpush1.bf16.msra.mxu0 %v458
  %480 = vmatprep.subr.bf16.mxu0 0
  %481 = vmatpush1.bf16.msra.mxu0 %v459
  %482 = vmatprep.subr.bf16.mxu0 0
  %483 = vmatpush1.bf16.msra.mxu0 %v460
  %484 = vmatprep.subr.bf16.mxu0 0
  %485 = vmatpush1.bf16.msra.mxu0 %v461
  %486 = vmatprep.subr.bf16.mxu0 0
  %487 = vmatpush1.bf16.msra.mxu0 0
  %488 = vmatprep.subr.bf16.mxu0 0
  %489 = vmatpush1.bf16.msra.mxu0 0
  %490 = vmatprep.subr.bf16.mxu0 0
  %491 = vmatpush1.bf16.msra.mxu0 0
  %492 = vmatprep.subr.bf16.mxu0 0
  %493 = vmatpush1.bf16.msra.mxu0 0
  %494 = vmatprep.subr.bf16.mxu0 0
  %495 = vmatpush1.bf16.msra.mxu0 0
  %496 = vmatprep.subr.bf16.mxu0 0
  %497 = vmatpush1.bf16.msra.mxu0 0
  %498 = vmatprep.subr.bf16.mxu0 0
  %499 = vmatpush1.bf16.msra.mxu0 0
  %500 = vmatprep.subr.bf16.mxu0 0
  %501 = vmatpush1.bf16.msra.mxu0 0
  %502 = vmatprep.mubr.bf16.mxu0 0
  %503 = vmatmul.mubr.bf16.gmra.mrb[0].mxu0 %v317
  %v504 = vpop.f32.mrb[0].mxu0
  %v505 = vadd.f32 %v415, %v504
  %v506 = vpop.f32.mrb[0].mxu0
  %v507 = vpop.f32.mrb[0].mxu0
  %v508 = vadd.f32 %v418, %v507
  %v509 = vpop.f32.mrb[0].mxu0
  %510 = vdwg.mxu0
  %s511 = scalar_lea.vmem [#allocation2], 16
  %512 = vst [vmem:[%s511] sm:$0xff] %v505
  %513 = vst [vmem:[%s511 + $0x8] sm:$0xff] %v508
  %v514 = vadd.f32 %v505, %v508
  %v515 = vrot.slane %v514, 4
  %v516 = vadd.f32 %v514, %v515
  %v517 = vrot.slane %v516, 2
  %v518 = vadd.f32 %v516, %v517
  %v519 = vrot.slane %v518, 1
  %v520 = vadd.f32 %v518, %v519
  %v521 = vadd.f32 %v264, %v520
  %v522 = vmul.f32 %v505, %v505
  %v523 = vmul.f32 %v508, %v508
  %v524 = vadd.f32 %v522, %v523
  %v525 = vrot.slane %v524, 4
  %v526 = vadd.f32 %v524, %v525
  %v527 = vrot.slane %v526, 2
  %v528 = vadd.f32 %v526, %v527
  %v529 = vrot.slane %v528, 1
  %v530 = vadd.f32 %v528, %v529
  %v531 = vadd.f32 %v274, %v530
  %v532 = vmul.f32 %v521, 0.03125
  %v533 = vmul.f32 %v531, 0.03125
  %v534 = vmul.f32 %v532, %v532
  %v535 = vsub.f32 %v533, %v534
  %v536 = vmax.f32 %v535, 0.0
  %v537 = vld [vmem:[%s2] sm:$0x1]
  %v538 = vadd.f32 %v536, 1e-05
  %v539 = vrsqrt.pop %v538
  %v540 = vmul.f32 %v537, %v539
  %v541 = vld [vmem:[%s3] sm:$0x1]
  %v542 = vmul.f32 %v532, %v540
  %v543 = vsub.f32 %v541, %v542
  %v544 = vld [vmem:[#allocation2] sm:$0xff]
  %v545 = vld [vmem:[#allocation2 + $0x8] sm:$0xff]
  %v547 = vlaneseq
  %v548 = vshrl.u32 %v547, 7
  %v549 = vsub.s32 0, %v548
  %v550 = vrot.slane %v540, %v549
  %v552 = vmul.f32 %v544, %v550
  %v553 = vmul.f32 %v545, %v550
  %v555 = vlaneseq
  %v556 = vshrl.u32 %v555, 7
  %v557 = vsub.s32 0, %v556
  %v558 = vrot.slane %v543, %v557
  %v560 = vadd.f32 %v552, %v558
  %v561 = vadd.f32 %v553, %v558
  %vm562 = vcmp.ge.f32.partialorder %v560, 0.0
  %vm563 = vcmp.ge.f32.partialorder %v561, 0.0
  %v564 = vmul.f32 %v560, 0.01
  %v565 = vmul.f32 %v561, 0.01
  %v566 = vsel %vm562, %v560, %v564
  %v567 = vsel %vm563, %v561, %v565
  %v568 = vpack.c.bf16 %v567, %v566
  %v570 = vunpack.c.l.b16 %v568
  %v571 = vunpack.c.h.b16 %v568
  %v572 = vpack.c.b16 %v570, %v570
  %v573 = vpack.c.b16 %v571, %v571
  %576 = vst [vmem:[%s4] sm:$0xf] %v572
  %577 = vst [vmem:[%s4 + $0x4] sm:$0xf] %v573
  %v578 = vld [vmem:[%s511] sm:$0xff]
  %v579 = vld [vmem:[%s511 + $0x8] sm:$0xff]
  %v580 = vmul.f32 %v578, %v550
  %v581 = vmul.f32 %v579, %v550
  %v582 = vadd.f32 %v580, %v558
  %v583 = vadd.f32 %v581, %v558
  %vm584 = vcmp.ge.f32.partialorder %v582, 0.0
  %vm585 = vcmp.ge.f32.partialorder %v583, 0.0
  %v586 = vmul.f32 %v582, 0.01
  %v587 = vmul.f32 %v583, 0.01
  %v588 = vsel %vm584, %v582, %v586
  %v589 = vsel %vm585, %v583, %v587
  %v590 = vpack.c.bf16 %v589, %v588
  %v592 = vunpack.c.l.b16 %v590
  %v593 = vunpack.c.h.b16 %v590
  %v594 = vpack.c.b16 %v592, %v592
  %v595 = vpack.c.b16 %v593, %v593
  %s598 = scalar_lea.vmem %s4, 8
  %599 = vst [vmem:[%s598] sm:$0xf] %v594
  %600 = vst [vmem:[%s598 + $0x4] sm:$0xf] %v595
  // Predicated region
  $region18: #{prototype_forward.8} parent=0 // pred_check
    _
  $region19: #{prototype_forward.8} parent=0 // pred_check_branch
    %602 = sbr.rel (0) target = $region21
  $region20: #{prototype_forward.8} parent=0 // pred_region
    _
  $region21: #{prototype_forward.8} parent=0 // pred_fallthru
    _
  // Predicated region
  $region22: #{prototype_forward.8} parent=0 // pred_check
    _
  $region23: #{prototype_forward.8} parent=0 // pred_check_branch
    %604 = sbr.rel (0) target = $region25
  $region24: #{prototype_forward.8} parent=0 // pred_region
    _
  $region25: #{prototype_forward.8} parent=0 // pred_fallthru
    _

// kernel: prototype_forward.9
$region0: #{prototype_forward.9}
  #allocation0 [shape = 'u32[]', space=smem, size = 0x4, offset = 0x4, fixed_abs, tag = 'smem constant byte address 0x4 - core index']
  #allocation1 [shape = 'u32[144,128]{1,0:T(1,128)}', space=vmem, size = 0x12000, scoped, tag = 'internal scratch']
  #allocation2 [shape = 'f32[2,8,256]{2,1,0:T(8,128)}', space=vmem, size = 0x4000, scoped, tag = 'scratch operand']
  %s0 = inlined_call_operand.vmem [shape: bf16[2,9,256], index: 0, kind: input, shape index: {}]
  %s1 = inlined_call_operand.vmem [shape: bf16[2,256,256], index: 1, kind: input, shape index: {}]
  %s2 = inlined_call_operand.vmem [shape: f32[1,256], index: 2, kind: input, shape index: {}]
  %s3 = inlined_call_operand.vmem [shape: f32[1,256], index: 3, kind: input, shape index: {}]
  %s4 = inlined_call_operand.vmem [shape: bf16[2,8,256], index: 4, kind: output, shape index: {}]
  %s5 = sld [smem:[#allocation0]]
  $region26: #{prototype_forward.9} parent=0
    _
  %s7 = ssub.s32 1, %s5
  %s8 = scalar_select 0, %s7, %s5
  // Predicated region
  $region2: #{prototype_forward.9} parent=0 // pred_check
    _
  $region3: #{prototype_forward.9} parent=0 // pred_check_branch
    %10 = sbr.rel (0) target = $region5
  $region4: #{prototype_forward.9} parent=0 // pred_region
    _
  $region5: #{prototype_forward.9} parent=0 // pred_fallthru
    _
  // Predicated region
  $region6: #{prototype_forward.9} parent=0 // pred_check
    _
  $region7: #{prototype_forward.9} parent=0 // pred_check_branch
    %12 = sbr.rel (0) target = $region9
  $region8: #{prototype_forward.9} parent=0 // pred_region
    _
  $region9: #{prototype_forward.9} parent=0 // pred_fallthru
    _
  // Predicated region
  $region10: #{prototype_forward.9} parent=0 // pred_check
    _
  $region11: #{prototype_forward.9} parent=0 // pred_check_branch
    %14 = sbr.rel (0) target = $region13
  $region12: #{prototype_forward.9} parent=0 // pred_region
    _
  $region13: #{prototype_forward.9} parent=0 // pred_fallthru
    _
  // Predicated region
  $region14: #{prototype_forward.9} parent=0 // pred_check
    _
  $region15: #{prototype_forward.9} parent=0 // pred_check_branch
    %16 = sbr.rel (0) target = $region17
  $region16: #{prototype_forward.9} parent=0 // pred_region
    _
  $region17: #{prototype_forward.9} parent=0 // pred_fallthru
    _
  %v17 = vld [vmem:[%s0] sm:$0xff]
  %v18 = vld [vmem:[%s1] sm:$0xff]
  %v19 = vld [vmem:[%s1 + $0x8] sm:$0xff]
  %v20 = vld [vmem:[%s1 + $0x10] sm:$0xff]
  %v21 = vld [vmem:[%s1 + $0x18] sm:$0xff]
  %v22 = vld [vmem:[%s1 + $0x20] sm:$0xff]
  %v23 = vld [vmem:[%s1 + $0x28] sm:$0xff]
  %v24 = vld [vmem:[%s1 + $0x30] sm:$0xff]
  %v25 = vld [vmem:[%s1 + $0x38] sm:$0xff]
  %v26 = vld [vmem:[%s1 + $0x40] sm:$0xff]
  %v27 = vld [vmem:[%s1 + $0x48] sm:$0xff]
  %v28 = vld [vmem:[%s1 + $0x50] sm:$0xff]
  %v29 = vld [vmem:[%s1 + $0x58] sm:$0xff]
  %v30 = vld [vmem:[%s1 + $0x60] sm:$0xff]
  %v31 = vld [vmem:[%s1 + $0x68] sm:$0xff]
  %v32 = vld [vmem:[%s1 + $0x70] sm:$0xff]
  %v33 = vld [vmem:[%s1 + $0x78] sm:$0xff]
  %v34 = vld [vmem:[%s1 + $0x80] sm:$0xff]
  %v35 = vld [vmem:[%s1 + $0x88] sm:$0xff]
  %v36 = vld [vmem:[%s1 + $0x90] sm:$0xff]
  %v37 = vld [vmem:[%s1 + $0x98] sm:$0xff]
  %v38 = vld [vmem:[%s1 + $0xa0] sm:$0xff]
  %v39 = vld [vmem:[%s1 + $0xa8] sm:$0xff]
  %v40 = vld [vmem:[%s1 + $0xb0] sm:$0xff]
  %v41 = vld [vmem:[%s1 + $0xb8] sm:$0xff]
  %v42 = vld [vmem:[%s1 + $0xc0] sm:$0xff]
  %v43 = vld [vmem:[%s1 + $0xc8] sm:$0xff]
  %v44 = vld [vmem:[%s1 + $0xd0] sm:$0xff]
  %v45 = vld [vmem:[%s1 + $0xd8] sm:$0xff]
  %v46 = vld [vmem:[%s1 + $0xe0] sm:$0xff]
  %v47 = vld [vmem:[%s1 + $0xe8] sm:$0xff]
  %v48 = vld [vmem:[%s1 + $0xf0] sm:$0xff]
  %v49 = vld [vmem:[%s1 + $0xf8] sm:$0xff]
  %v50 = vld [vmem:[%s0 + $0x8] sm:$0x11]
  %s51 = scalar_lea.vmem %s1, 256
  %v52 = vld [vmem:[%s51] sm:$0xff]
  %v53 = vld [vmem:[%s51 + $0x8] sm:$0xff]
  %v54 = vld [vmem:[%s51 + $0x10] sm:$0xff]
  %v55 = vld [vmem:[%s51 + $0x18] sm:$0xff]
  %v56 = vld [vmem:[%s51 + $0x20] sm:$0xff]
  %v57 = vld [vmem:[%s51 + $0x28] sm:$0xff]
  %v58 = vld [vmem:[%s51 + $0x30] sm:$0xff]
  %v59 = vld [vmem:[%s51 + $0x38] sm:$0xff]
  %v60 = vld [vmem:[%s51 + $0x40] sm:$0xff]
  %v61 = vld [vmem:[%s51 + $0x48] sm:$0xff]
  %v62 = vld [vmem:[%s51 + $0x50] sm:$0xff]
  %v63 = vld [vmem:[%s51 + $0x58] sm:$0xff]
  %v64 = vld [vmem:[%s51 + $0x60] sm:$0xff]
  %v65 = vld [vmem:[%s51 + $0x68] sm:$0xff]
  %v66 = vld [vmem:[%s51 + $0x70] sm:$0xff]
  %v67 = vld [vmem:[%s51 + $0x78] sm:$0xff]
  %v68 = vld [vmem:[%s51 + $0x80] sm:$0xff]
  %v69 = vld [vmem:[%s51 + $0x88] sm:$0xff]
  %v70 = vld [vmem:[%s51 + $0x90] sm:$0xff]
  %v71 = vld [vmem:[%s51 + $0x98] sm:$0xff]
  %v72 = vld [vmem:[%s51 + $0xa0] sm:$0xff]
  %v73 = vld [vmem:[%s51 + $0xa8] sm:$0xff]
  %v74 = vld [vmem:[%s51 + $0xb0] sm:$0xff]
  %v75 = vld [vmem:[%s51 + $0xb8] sm:$0xff]
  %v76 = vld [vmem:[%s51 + $0xc0] sm:$0xff]
  %v77 = vld [vmem:[%s51 + $0xc8] sm:$0xff]
  %v78 = vld [vmem:[%s51 + $0xd0] sm:$0xff]
  %v79 = vld [vmem:[%s51 + $0xd8] sm:$0xff]
  %v80 = vld [vmem:[%s51 + $0xe0] sm:$0xff]
  %v81 = vld [vmem:[%s51 + $0xe8] sm:$0xff]
  %v82 = vld [vmem:[%s51 + $0xf0] sm:$0xff]
  %v83 = vld [vmem:[%s51 + $0xf8] sm:$0xff]
  %v86 = vunpack.c.l.b16 %v17
  %v87 = vunpack.c.h.b16 %v17
  %v88 = vunpack.c.l.b16 %v50
  %v89 = vunpack.c.h.b16 %v50
  %v90 = vpack.c.b16 %v88, %v86
  %v91 = vpack.c.b16 %v89, %v87
  %v93 = vshrl.u32 %v90, 16
  %v95 = vshll.u32 %v90, 16
  %v97 = vrot.slane %v95, 1
  %v98 = vor.u32 %v93, %v97
  %v100 = vshrl.u32 %v91, 16
  %v102 = vshll.u32 %v91, 16
  %v104 = vrot.slane %v102, 1
  %v105 = vor.u32 %v100, %v104
  %v140 = vunpack.c.l.b16 %v52
  %v141 = vunpack.c.h.b16 %v52
  %v142 = vunpack.c.l.b16 %v53
  %v143 = vunpack.c.h.b16 %v53
  %v144 = vunpack.c.l.b16 %v54
  %v145 = vunpack.c.h.b16 %v54
  %v146 = vunpack.c.l.b16 %v55
  %v147 = vunpack.c.h.b16 %v55
  %v148 = vunpack.c.l.b16 %v56
  %v149 = vunpack.c.h.b16 %v56
  %v150 = vunpack.c.l.b16 %v57
  %v151 = vunpack.c.h.b16 %v57
  %v152 = vunpack.c.l.b16 %v58
  %v153 = vunpack.c.h.b16 %v58
  %v154 = vunpack.c.l.b16 %v59
  %v155 = vunpack.c.h.b16 %v59
  %v156 = vunpack.c.l.b16 %v60
  %v157 = vunpack.c.h.b16 %v60
  %v158 = vunpack.c.l.b16 %v61
  %v159 = vunpack.c.h.b16 %v61
  %v160 = vunpack.c.l.b16 %v62
  %v161 = vunpack.c.h.b16 %v62
  %v162 = vunpack.c.l.b16 %v63
  %v163 = vunpack.c.h.b16 %v63
  %v164 = vunpack.c.l.b16 %v64
  %v165 = vunpack.c.h.b16 %v64
  %v166 = vunpack.c.l.b16 %v65
  %v167 = vunpack.c.h.b16 %v65
  %v168 = vunpack.c.l.b16 %v66
  %v169 = vunpack.c.h.b16 %v66
  %v170 = vunpack.c.l.b16 %v67
  %v171 = vunpack.c.h.b16 %v67
  %v172 = vunpack.c.l.b16 %v68
  %v173 = vunpack.c.h.b16 %v68
  %v174 = vunpack.c.l.b16 %v69
  %v175 = vunpack.c.h.b16 %v69
  %v176 = vunpack.c.l.b16 %v70
  %v177 = vunpack.c.h.b16 %v70
  %v178 = vunpack.c.l.b16 %v71
  %v179 = vunpack.c.h.b16 %v71
  %v180 = vunpack.c.l.b16 %v72
  %v181 = vunpack.c.h.b16 %v72
  %v182 = vunpack.c.l.b16 %v73
  %v183 = vunpack.c.h.b16 %v73
  %v184 = vunpack.c.l.b16 %v74
  %v185 = vunpack.c.h.b16 %v74
  %v186 = vunpack.c.l.b16 %v75
  %v187 = vunpack.c.h.b16 %v75
  %v188 = vunpack.c.l.b16 %v76
  %v189 = vunpack.c.h.b16 %v76
  %v190 = vunpack.c.l.b16 %v77
  %v191 = vunpack.c.h.b16 %v77
  %v192 = vunpack.c.l.b16 %v78
  %v193 = vunpack.c.h.b16 %v78
  %v194 = vunpack.c.l.b16 %v79
  %v195 = vunpack.c.h.b16 %v79
  %v196 = vunpack.c.l.b16 %v80
  %v197 = vunpack.c.h.b16 %v80
  %v198 = vunpack.c.l.b16 %v81
  %v199 = vunpack.c.h.b16 %v81
  %v200 = vunpack.c.l.b16 %v82
  %v201 = vunpack.c.h.b16 %v82
  %v202 = vunpack.c.l.b16 %v83
  %v203 = vunpack.c.h.b16 %v83
  %v204 = vpack.c.b16 %v142, %v140
  %v205 = vpack.c.b16 %v143, %v141
  %v206 = vpack.c.b16 %v146, %v144
  %v207 = vpack.c.b16 %v147, %v145
  %v208 = vpack.c.b16 %v150, %v148
  %v209 = vpack.c.b16 %v151, %v149
  %v210 = vpack.c.b16 %v154, %v152
  %v211 = vpack.c.b16 %v155, %v153
  %v212 = vpack.c.b16 %v158, %v156
  %v213 = vpack.c.b16 %v159, %v157
  %v214 = vpack.c.b16 %v162, %v160
  %v215 = vpack.c.b16 %v163, %v161
  %v216 = vpack.c.b16 %v166, %v164
  %v217 = vpack.c.b16 %v167, %v165
  %v218 = vpack.c.b16 %v170, %v168
  %v219 = vpack.c.b16 %v171, %v169
  %v220 = vpack.c.b16 %v174, %v172
  %v221 = vpack.c.b16 %v175, %v173
  %v222 = vpack.c.b16 %v178, %v176
  %v223 = vpack.c.b16 %v179, %v177
  %v224 = vpack.c.b16 %v182, %v180
  %v225 = vpack.c.b16 %v183, %v181
  %v226 = vpack.c.b16 %v186, %v184
  %v227 = vpack.c.b16 %v187, %v185
  %v228 = vpack.c.b16 %v190, %v188
  %v229 = vpack.c.b16 %v191, %v189
  %v230 = vpack.c.b16 %v194, %v192
  %v231 = vpack.c.b16 %v195, %v193
  %v232 = vpack.c.b16 %v198, %v196
  %v233 = vpack.c.b16 %v199, %v197
  %v234 = vpack.c.b16 %v202, %v200
  %v235 = vpack.c.b16 %v203, %v201
  %268 = vmatprep.subr.bf16.mxu0 %v205
  %269 = vmatpush1.bf16.msra.mxu0 %v204
  %270 = vmatprep.subr.bf16.mxu0 %v207
  %271 = vmatpush1.bf16.msra.mxu0 %v206
  %272 = vmatprep.subr.bf16.mxu0 %v209
  %273 = vmatpush1.bf16.msra.mxu0 %v208
  %274 = vmatprep.subr.bf16.mxu0 %v211
  %275 = vmatpush1.bf16.msra.mxu0 %v210
  %276 = vmatprep.subr.bf16.mxu0 %v213
  %277 = vmatpush1.bf16.msra.mxu0 %v212
  %278 = vmatprep.subr.bf16.mxu0 %v215
  %279 = vmatpush1.bf16.msra.mxu0 %v214
  %280 = vmatprep.subr.bf16.mxu0 %v217
  %281 = vmatpush1.bf16.msra.mxu0 %v216
  %282 = vmatprep.subr.bf16.mxu0 %v219
  %283 = vmatpush1.bf16.msra.mxu0 %v218
  %284 = vmatprep.subr.bf16.mxu0 %v221
  %285 = vmatpush1.bf16.msra.mxu0 %v220
  %286 = vmatprep.subr.bf16.mxu0 %v223
  %287 = vmatpush1.bf16.msra.mxu0 %v222
  %288 = vmatprep.subr.bf16.mxu0 %v225
  %289 = vmatpush1.bf16.msra.mxu0 %v224
  %290 = vmatprep.subr.bf16.mxu0 %v227
  %291 = vmatpush1.bf16.msra.mxu0 %v226
  %292 = vmatprep.subr.bf16.mxu0 %v229
  %293 = vmatpush1.bf16.msra.mxu0 %v228
  %294 = vmatprep.subr.bf16.mxu0 %v231
  %295 = vmatpush1.bf16.msra.mxu0 %v230
  %296 = vmatprep.subr.bf16.mxu0 %v233
  %297 = vmatpush1.bf16.msra.mxu0 %v232
  %298 = vmatprep.subr.bf16.mxu0 %v235
  %299 = vmatpush1.bf16.msra.mxu0 %v234
  %300 = vmatprep.mubr.bf16.mxu0 %v105
  %301 = vmatmul.mubr.bf16.gmra.mrb[0].mxu0 %v98
  %v302 = vpop.f32.mrb[0].mxu0
  %v303 = vadd.f32 0.0, %v302
  %v304 = vpop.f32.mrb[0].mxu0
  %v305 = vadd.f32 0.0, %v304
  %v306 = vpop.f32.mrb[0].mxu0
  %v307 = vpop.f32.mrb[0].mxu0
  %308 = vdwg.mxu0
  %v309 = vpack.c.b16 %v86, %v86
  %v310 = vpack.c.b16 %v87, %v87
  %v345 = vunpack.c.l.b16 %v18
  %v346 = vunpack.c.h.b16 %v18
  %v347 = vunpack.c.l.b16 %v19
  %v348 = vunpack.c.h.b16 %v19
  %v349 = vunpack.c.l.b16 %v20
  %v350 = vunpack.c.h.b16 %v20
  %v351 = vunpack.c.l.b16 %v21
  %v352 = vunpack.c.h.b16 %v21
  %v353 = vunpack.c.l.b16 %v22
  %v354 = vunpack.c.h.b16 %v22
  %v355 = vunpack.c.l.b16 %v23
  %v356 = vunpack.c.h.b16 %v23
  %v357 = vunpack.c.l.b16 %v24
  %v358 = vunpack.c.h.b16 %v24
  %v359 = vunpack.c.l.b16 %v25
  %v360 = vunpack.c.h.b16 %v25
  %v361 = vunpack.c.l.b16 %v26
  %v362 = vunpack.c.h.b16 %v26
  %v363 = vunpack.c.l.b16 %v27
  %v364 = vunpack.c.h.b16 %v27
  %v365 = vunpack.c.l.b16 %v28
  %v366 = vunpack.c.h.b16 %v28
  %v367 = vunpack.c.l.b16 %v29
  %v368 = vunpack.c.h.b16 %v29
  %v369 = vunpack.c.l.b16 %v30
  %v370 = vunpack.c.h.b16 %v30
  %v371 = vunpack.c.l.b16 %v31
  %v372 = vunpack.c.h.b16 %v31
  %v373 = vunpack.c.l.b16 %v32
  %v374 = vunpack.c.h.b16 %v32
  %v375 = vunpack.c.l.b16 %v33
  %v376 = vunpack.c.h.b16 %v33
  %v377 = vunpack.c.l.b16 %v34
  %v378 = vunpack.c.h.b16 %v34
  %v379 = vunpack.c.l.b16 %v35
  %v380 = vunpack.c.h.b16 %v35
  %v381 = vunpack.c.l.b16 %v36
  %v382 = vunpack.c.h.b16 %v36
  %v383 = vunpack.c.l.b16 %v37
  %v384 = vunpack.c.h.b16 %v37
  %v385 = vunpack.c.l.b16 %v38
  %v386 = vunpack.c.h.b16 %v38
  %v387 = vunpack.c.l.b16 %v39
  %v388 = vunpack.c.h.b16 %v39
  %v389 = vunpack.c.l.b16 %v40
  %v390 = vunpack.c.h.b16 %v40
  %v391 = vunpack.c.l.b16 %v41
  %v392 = vunpack.c.h.b16 %v41
  %v393 = vunpack.c.l.b16 %v42
  %v394 = vunpack.c.h.b16 %v42
  %v395 = vunpack.c.l.b16 %v43
  %v396 = vunpack.c.h.b16 %v43
  %v397 = vunpack.c.l.b16 %v44
  %v398 = vunpack.c.h.b16 %v44
  %v399 = vunpack.c.l.b16 %v45
  %v400 = vunpack.c.h.b16 %v45
  %v401 = vunpack.c.l.b16 %v46
  %v402 = vunpack.c.h.b16 %v46
  %v403 = vunpack.c.l.b16 %v47
  %v404 = vunpack.c.h.b16 %v47
  %v405 = vunpack.c.l.b16 %v48
  %v406 = vunpack.c.h.b16 %v48
  %v407 = vunpack.c.l.b16 %v49
  %v408 = vunpack.c.h.b16 %v49
  %v409 = vpack.c.b16 %v347, %v345
  %v410 = vpack.c.b16 %v348, %v346
  %v411 = vpack.c.b16 %v351, %v349
  %v412 = vpack.c.b16 %v352, %v350
  %v413 = vpack.c.b16 %v355, %v353
  %v414 = vpack.c.b16 %v356, %v354
  %v415 = vpack.c.b16 %v359, %v357
  %v416 = vpack.c.b16 %v360, %v358
  %v417 = vpack.c.b16 %v363, %v361
  %v418 = vpack.c.b16 %v364, %v362
  %v419 = vpack.c.b16 %v367, %v365
  %v420 = vpack.c.b16 %v368, %v366
  %v421 = vpack.c.b16 %v371, %v369
  %v422 = vpack.c.b16 %v372, %v370
  %v423 = vpack.c.b16 %v375, %v373
  %v424 = vpack.c.b16 %v376, %v374
  %v425 = vpack.c.b16 %v379, %v377
  %v426 = vpack.c.b16 %v380, %v378
  %v427 = vpack.c.b16 %v383, %v381
  %v428 = vpack.c.b16 %v384, %v382
  %v429 = vpack.c.b16 %v387, %v385
  %v430 = vpack.c.b16 %v388, %v386
  %v431 = vpack.c.b16 %v391, %v389
  %v432 = vpack.c.b16 %v392, %v390
  %v433 = vpack.c.b16 %v395, %v393
  %v434 = vpack.c.b16 %v396, %v394
  %v435 = vpack.c.b16 %v399, %v397
  %v436 = vpack.c.b16 %v400, %v398
  %v437 = vpack.c.b16 %v403, %v401
  %v438 = vpack.c.b16 %v404, %v402
  %v439 = vpack.c.b16 %v407, %v405
  %v440 = vpack.c.b16 %v408, %v406
  %473 = vmatprep.subr.bf16.mxu0 %v410
  %474 = vmatpush1.bf16.msra.mxu0 %v409
  %475 = vmatprep.subr.bf16.mxu0 %v412
  %476 = vmatpush1.bf16.msra.mxu0 %v411
  %477 = vmatprep.subr.bf16.mxu0 %v414
  %478 = vmatpush1.bf16.msra.mxu0 %v413
  %479 = vmatprep.subr.bf16.mxu0 %v416
  %480 = vmatpush1.bf16.msra.mxu0 %v415
  %481 = vmatprep.subr.bf16.mxu0 %v418
  %482 = vmatpush1.bf16.msra.mxu0 %v417
  %483 = vmatprep.subr.bf16.mxu0 %v420
  %484 = vmatpush1.bf16.msra.mxu0 %v419
  %485 = vmatprep.subr.bf16.mxu0 %v422
  %486 = vmatpush1.bf16.msra.mxu0 %v421
  %487 = vmatprep.subr.bf16.mxu0 %v424
  %488 = vmatpush1.bf16.msra.mxu0 %v423
  %489 = vmatprep.subr.bf16.mxu0 %v426
  %490 = vmatpush1.bf16.msra.mxu0 %v425
  %491 = vmatprep.subr.bf16.mxu0 %v428
  %492 = vmatpush1.bf16.msra.mxu0 %v427
  %493 = vmatprep.subr.bf16.mxu0 %v430
  %494 = vmatpush1.bf16.msra.mxu0 %v429
  %495 = vmatprep.subr.bf16.mxu0 %v432
  %496 = vmatpush1.bf16.msra.mxu0 %v431
  %497 = vmatprep.subr.bf16.mxu0 %v434
  %498 = vmatpush1.bf16.msra.mxu0 %v433
  %499 = vmatprep.subr.bf16.mxu0 %v436
  %500 = vmatpush1.bf16.msra.mxu0 %v435
  %501 = vmatprep.subr.bf16.mxu0 %v438
  %502 = vmatpush1.bf16.msra.mxu0 %v437
  %503 = vmatprep.subr.bf16.mxu0 %v440
  %504 = vmatpush1.bf16.msra.mxu0 %v439
  %505 = vmatprep.mubr.bf16.mxu0 %v310
  %506 = vmatmul.mubr.bf16.gmra.mrb[0].mxu0 %v309
  %v507 = vpop.f32.mrb[0].mxu0
  %v508 = vadd.f32 %v303, %v507
  %v509 = vpop.f32.mrb[0].mxu0
  %v510 = vadd.f32 %v305, %v509
  %v511 = vpop.f32.mrb[0].mxu0
  %v512 = vpop.f32.mrb[0].mxu0
  %513 = vdwg.mxu0
  %514 = vst [vmem:[#allocation2] sm:$0xff] %v508
  %515 = vst [vmem:[#allocation2 + $0x8] sm:$0xff] %v510
  %v516 = vrot.slane %v508, 4
  %v517 = vadd.f32 %v508, %v516
  %v518 = vrot.slane %v517, 2
  %v519 = vadd.f32 %v517, %v518
  %v520 = vrot.slane %v519, 1
  %v521 = vadd.f32 %v519, %v520
  %v522 = vrot.slane %v510, 4
  %v523 = vadd.f32 %v510, %v522
  %v524 = vrot.slane %v523, 2
  %v525 = vadd.f32 %v523, %v524
  %v526 = vrot.slane %v525, 1
  %v527 = vadd.f32 %v525, %v526
  %v528 = vadd.f32 %v521, 0.0
  %v529 = vadd.f32 %v527, 0.0
  %v530 = vmul.f32 %v508, %v508
  %v531 = vmul.f32 %v510, %v510
  %v532 = vrot.slane %v530, 4
  %v533 = vadd.f32 %v530, %v532
  %v534 = vrot.slane %v533, 2
  %v535 = vadd.f32 %v533, %v534
  %v536 = vrot.slane %v535, 1
  %v537 = vadd.f32 %v535, %v536
  %v538 = vrot.slane %v531, 4
  %v539 = vadd.f32 %v531, %v538
  %v540 = vrot.slane %v539, 2
  %v541 = vadd.f32 %v539, %v540
  %v542 = vrot.slane %v541, 1
  %v543 = vadd.f32 %v541, %v542
  %v544 = vadd.f32 %v537, 0.0
  %v545 = vadd.f32 %v543, 0.0
  %s546 = scalar_lea.vmem %s0, 16
  %v547 = vld [vmem:[%s546] sm:$0xff]
  %v548 = vld [vmem:[%s1] sm:$0xff]
  %v549 = vld [vmem:[%s1 + $0x8] sm:$0xff]
  %v550 = vld [vmem:[%s1 + $0x10] sm:$0xff]
  %v551 = vld [vmem:[%s1 + $0x18] sm:$0xff]
  %v552 = vld [vmem:[%s1 + $0x20] sm:$0xff]
  %v553 = vld [vmem:[%s1 + $0x28] sm:$0xff]
  %v554 = vld [vmem:[%s1 + $0x30] sm:$0xff]
  %v555 = vld [vmem:[%s1 + $0x38] sm:$0xff]
  %v556 = vld [vmem:[%s1 + $0x40] sm:$0xff]
  %v557 = vld [vmem:[%s1 + $0x48] sm:$0xff]
  %v558 = vld [vmem:[%s1 + $0x50] sm:$0xff]
  %v559 = vld [vmem:[%s1 + $0x58] sm:$0xff]
  %v560 = vld [vmem:[%s1 + $0x60] sm:$0xff]
  %v561 = vld [vmem:[%s1 + $0x68] sm:$0xff]
  %v562 = vld [vmem:[%s1 + $0x70] sm:$0xff]
  %v563 = vld [vmem:[%s1 + $0x78] sm:$0xff]
  %v564 = vld [vmem:[%s1 + $0x80] sm:$0xff]
  %v565 = vld [vmem:[%s1 + $0x88] sm:$0xff]
  %v566 = vld [vmem:[%s1 + $0x90] sm:$0xff]
  %v567 = vld [vmem:[%s1 + $0x98] sm:$0xff]
  %v568 = vld [vmem:[%s1 + $0xa0] sm:$0xff]
  %v569 = vld [vmem:[%s1 + $0xa8] sm:$0xff]
  %v570 = vld [vmem:[%s1 + $0xb0] sm:$0xff]
  %v571 = vld [vmem:[%s1 + $0xb8] sm:$0xff]
  %v572 = vld [vmem:[%s1 + $0xc0] sm:$0xff]
  %v573 = vld [vmem:[%s1 + $0xc8] sm:$0xff]
  %v574 = vld [vmem:[%s1 + $0xd0] sm:$0xff]
  %v575 = vld [vmem:[%s1 + $0xd8] sm:$0xff]
  %v576 = vld [vmem:[%s1 + $0xe0] sm:$0xff]
  %v577 = vld [vmem:[%s1 + $0xe8] sm:$0xff]
  %v578 = vld [vmem:[%s1 + $0xf0] sm:$0xff]
  %v579 = vld [vmem:[%s1 + $0xf8] sm:$0xff]
  %v580 = vld [vmem:[%s546 + $0x8] sm:$0x11]
  %v581 = vld [vmem:[%s51] sm:$0xff]
  %v582 = vld [vmem:[%s51 + $0x8] sm:$0xff]
  %v583 = vld [vmem:[%s51 + $0x10] sm:$0xff]
  %v584 = vld [vmem:[%s51 + $0x18] sm:$0xff]
  %v585 = vld [vmem:[%s51 + $0x20] sm:$0xff]
  %v586 = vld [vmem:[%s51 + $0x28] sm:$0xff]
  %v587 = vld [vmem:[%s51 + $0x30] sm:$0xff]
  %v588 = vld [vmem:[%s51 + $0x38] sm:$0xff]
  %v589 = vld [vmem:[%s51 + $0x40] sm:$0xff]
  %v590 = vld [vmem:[%s51 + $0x48] sm:$0xff]
  %v591 = vld [vmem:[%s51 + $0x50] sm:$0xff]
  %v592 = vld [vmem:[%s51 + $0x58] sm:$0xff]
  %v593 = vld [vmem:[%s51 + $0x60] sm:$0xff]
  %v594 = vld [vmem:[%s51 + $0x68] sm:$0xff]
  %v595 = vld [vmem:[%s51 + $0x70] sm:$0xff]
  %v596 = vld [vmem:[%s51 + $0x78] sm:$0xff]
  %v597 = vld [vmem:[%s51 + $0x80] sm:$0xff]
  %v598 = vld [vmem:[%s51 + $0x88] sm:$0xff]
  %v599 = vld [vmem:[%s51 + $0x90] sm:$0xff]
  %v600 = vld [vmem:[%s51 + $0x98] sm:$0xff]
  %v601 = vld [vmem:[%s51 + $0xa0] sm:$0xff]
  %v602 = vld [vmem:[%s51 + $0xa8] sm:$0xff]
  %v603 = vld [vmem:[%s51 + $0xb0] sm:$0xff]
  %v604 = vld [vmem:[%s51 + $0xb8] sm:$0xff]
  %v605 = vld [vmem:[%s51 + $0xc0] sm:$0xff]
  %v606 = vld [vmem:[%s51 + $0xc8] sm:$0xff]
  %v607 = vld [vmem:[%s51 + $0xd0] sm:$0xff]
  %v608 = vld [vmem:[%s51 + $0xd8] sm:$0xff]
  %v609 = vld [vmem:[%s51 + $0xe0] sm:$0xff]
  %v610 = vld [vmem:[%s51 + $0xe8] sm:$0xff]
  %v611 = vld [vmem:[%s51 + $0xf0] sm:$0xff]
  %v612 = vld [vmem:[%s51 + $0xf8] sm:$0xff]
  %v615 = vunpack.c.l.b16 %v547
  %v616 = vunpack.c.h.b16 %v547
  %v617 = vunpack.c.l.b16 %v580
  %v618 = vunpack.c.h.b16 %v580
  %v619 = vpack.c.b16 %v617, %v615
  %v620 = vpack.c.b16 %v618, %v616
  %v622 = vshrl.u32 %v619, 16
  %v624 = vshll.u32 %v619, 16
  %v626 = vrot.slane %v624, 1
  %v627 = vor.u32 %v622, %v626
  %v629 = vshrl.u32 %v620, 16
  %v631 = vshll.u32 %v620, 16
  %v633 = vrot.slane %v631, 1
  %v634 = vor.u32 %v629, %v633
  %v669 = vunpack.c.l.b16 %v581
  %v670 = vunpack.c.h.b16 %v581
  %v671 = vunpack.c.l.b16 %v582
  %v672 = vunpack.c.h.b16 %v582
  %v673 = vunpack.c.l.b16 %v583
  %v674 = vunpack.c.h.b16 %v583
  %v675 = vunpack.c.l.b16 %v584
  %v676 = vunpack.c.h.b16 %v584
  %v677 = vunpack.c.l.b16 %v585
  %v678 = vunpack.c.h.b16 %v585
  %v679 = vunpack.c.l.b16 %v586
  %v680 = vunpack.c.h.b16 %v586
  %v681 = vunpack.c.l.b16 %v587
  %v682 = vunpack.c.h.b16 %v587
  %v683 = vunpack.c.l.b16 %v588
  %v684 = vunpack.c.h.b16 %v588
  %v685 = vunpack.c.l.b16 %v589
  %v686 = vunpack.c.h.b16 %v589
  %v687 = vunpack.c.l.b16 %v590
  %v688 = vunpack.c.h.b16 %v590
  %v689 = vunpack.c.l.b16 %v591
  %v690 = vunpack.c.h.b16 %v591
  %v691 = vunpack.c.l.b16 %v592
  %v692 = vunpack.c.h.b16 %v592
  %v693 = vunpack.c.l.b16 %v593
  %v694 = vunpack.c.h.b16 %v593
  %v695 = vunpack.c.l.b16 %v594
  %v696 = vunpack.c.h.b16 %v594
  %v697 = vunpack.c.l.b16 %v595
  %v698 = vunpack.c.h.b16 %v595
  %v699 = vunpack.c.l.b16 %v596
  %v700 = vunpack.c.h.b16 %v596
  %v701 = vunpack.c.l.b16 %v597
  %v702 = vunpack.c.h.b16 %v597
  %v703 = vunpack.c.l.b16 %v598
  %v704 = vunpack.c.h.b16 %v598
  %v705 = vunpack.c.l.b16 %v599
  %v706 = vunpack.c.h.b16 %v599
  %v707 = vunpack.c.l.b16 %v600
  %v708 = vunpack.c.h.b16 %v600
  %v709 = vunpack.c.l.b16 %v601
  %v710 = vunpack.c.h.b16 %v601
  %v711 = vunpack.c.l.b16 %v602
  %v712 = vunpack.c.h.b16 %v602
  %v713 = vunpack.c.l.b16 %v603
  %v714 = vunpack.c.h.b16 %v603
  %v715 = vunpack.c.l.b16 %v604
  %v716 = vunpack.c.h.b16 %v604
  %v717 = vunpack.c.l.b16 %v605
  %v718 = vunpack.c.h.b16 %v605
  %v719 = vunpack.c.l.b16 %v606
  %v720 = vunpack.c.h.b16 %v606
  %v721 = vunpack.c.l.b16 %v607
  %v722 = vunpack.c.h.b16 %v607
  %v723 = vunpack.c.l.b16 %v608
  %v724 = vunpack.c.h.b16 %v608
  %v725 = vunpack.c.l.b16 %v609
  %v726 = vunpack.c.h.b16 %v609
  %v727 = vunpack.c.l.b16 %v610
  %v728 = vunpack.c.h.b16 %v610
  %v729 = vunpack.c.l.b16 %v611
  %v730 = vunpack.c.h.b16 %v611
  %v731 = vunpack.c.l.b16 %v612
  %v732 = vunpack.c.h.b16 %v612
  %v733 = vpack.c.b16 %v671, %v669
  %v734 = vpack.c.b16 %v672, %v670
  %v735 = vpack.c.b16 %v675, %v673
  %v736 = vpack.c.b16 %v676, %v674
  %v737 = vpack.c.b16 %v679, %v677
  %v738 = vpack.c.b16 %v680, %v678
  %v739 = vpack.c.b16 %v683, %v681
  %v740 = vpack.c.b16 %v684, %v682
  %v741 = vpack.c.b16 %v687, %v685
  %v742 = vpack.c.b16 %v688, %v686
  %v743 = vpack.c.b16 %v691, %v689
  %v744 = vpack.c.b16 %v692, %v690
  %v745 = vpack.c.b16 %v695, %v693
  %v746 = vpack.c.b16 %v696, %v694
  %v747 = vpack.c.b16 %v699, %v697
  %v748 = vpack.c.b16 %v700, %v698
  %v749 = vpack.c.b16 %v703, %v701
  %v750 = vpack.c.b16 %v704, %v702
  %v751 = vpack.c.b16 %v707, %v705
  %v752 = vpack.c.b16 %v708, %v706
  %v753 = vpack.c.b16 %v711, %v709
  %v754 = vpack.c.b16 %v712, %v710
  %v755 = vpack.c.b16 %v715, %v713
  %v756 = vpack.c.b16 %v716, %v714
  %v757 = vpack.c.b16 %v719, %v717
  %v758 = vpack.c.b16 %v720, %v718
  %v759 = vpack.c.b16 %v723, %v721
  %v760 = vpack.c.b16 %v724, %v722
  %v761 = vpack.c.b16 %v727, %v725
  %v762 = vpack.c.b16 %v728, %v726
  %v763 = vpack.c.b16 %v731, %v729
  %v764 = vpack.c.b16 %v732, %v730
  %797 = vmatprep.subr.bf16.mxu0 %v734
  %798 = vmatpush1.bf16.msra.mxu0 %v733
  %799 = vmatprep.subr.bf16.mxu0 %v736
  %800 = vmatpush1.bf16.msra.mxu0 %v735
  %801 = vmatprep.subr.bf16.mxu0 %v738
  %802 = vmatpush1.bf16.msra.mxu0 %v737
  %803 = vmatprep.subr.bf16.mxu0 %v740
  %804 = vmatpush1.bf16.msra.mxu0 %v739
  %805 = vmatprep.subr.bf16.mxu0 %v742
  %806 = vmatpush1.bf16.msra.mxu0 %v741
  %807 = vmatprep.subr.bf16.mxu0 %v744
  %808 = vmatpush1.bf16.msra.mxu0 %v743
  %809 = vmatprep.subr.bf16.mxu0 %v746
  %810 = vmatpush1.bf16.msra.mxu0 %v745
  %811 = vmatprep.subr.bf16.mxu0 %v748
  %812 = vmatpush1.bf16.msra.mxu0 %v747
  %813 = vmatprep.subr.bf16.mxu0 %v750
  %814 = vmatpush1.bf16.msra.mxu0 %v749
  %815 = vmatprep.subr.bf16.mxu0 %v752
  %816 = vmatpush1.bf16.msra.mxu0 %v751
  %817 = vmatprep.subr.bf16.mxu0 %v754
  %818 = vmatpush1.bf16.msra.mxu0 %v753
  %819 = vmatprep.subr.bf16.mxu0 %v756
  %820 = vmatpush1.bf16.msra.mxu0 %v755
  %821 = vmatprep.subr.bf16.mxu0 %v758
  %822 = vmatpush1.bf16.msra.mxu0 %v757
  %823 = vmatprep.subr.bf16.mxu0 %v760
  %824 = vmatpush1.bf16.msra.mxu0 %v759
  %825 = vmatprep.subr.bf16.mxu0 %v762
  %826 = vmatpush1.bf16.msra.mxu0 %v761
  %827 = vmatprep.subr.bf16.mxu0 %v764
  %828 = vmatpush1.bf16.msra.mxu0 %v763
  %829 = vmatprep.mubr.bf16.mxu0 %v634
  %830 = vmatmul.mubr.bf16.gmra.mrb[0].mxu0 %v627
  %v831 = vpop.f32.mrb[0].mxu0
  %v832 = vadd.f32 0.0, %v831
  %v833 = vpop.f32.mrb[0].mxu0
  %v834 = vadd.f32 0.0, %v833
  %v835 = vpop.f32.mrb[0].mxu0
  %v836 = vpop.f32.mrb[0].mxu0
  %837 = vdwg.mxu0
  %v838 = vpack.c.b16 %v615, %v615
  %v839 = vpack.c.b16 %v616, %v616
  %v874 = vunpack.c.l.b16 %v548
  %v875 = vunpack.c.h.b16 %v548
  %v876 = vunpack.c.l.b16 %v549
  %v877 = vunpack.c.h.b16 %v549
  %v878 = vunpack.c.l.b16 %v550
  %v879 = vunpack.c.h.b16 %v550
  %v880 = vunpack.c.l.b16 %v551
  %v881 = vunpack.c.h.b16 %v551
  %v882 = vunpack.c.l.b16 %v552
  %v883 = vunpack.c.h.b16 %v552
  %v884 = vunpack.c.l.b16 %v553
  %v885 = vunpack.c.h.b16 %v553
  %v886 = vunpack.c.l.b16 %v554
  %v887 = vunpack.c.h.b16 %v554
  %v888 = vunpack.c.l.b16 %v555
  %v889 = vunpack.c.h.b16 %v555
  %v890 = vunpack.c.l.b16 %v556
  %v891 = vunpack.c.h.b16 %v556
  %v892 = vunpack.c.l.b16 %v557
  %v893 = vunpack.c.h.b16 %v557
  %v894 = vunpack.c.l.b16 %v558
  %v895 = vunpack.c.h.b16 %v558
  %v896 = vunpack.c.l.b16 %v559
  %v897 = vunpack.c.h.b16 %v559
  %v898 = vunpack.c.l.b16 %v560
  %v899 = vunpack.c.h.b16 %v560
  %v900 = vunpack.c.l.b16 %v561
  %v901 = vunpack.c.h.b16 %v561
  %v902 = vunpack.c.l.b16 %v562
  %v903 = vunpack.c.h.b16 %v562
  %v904 = vunpack.c.l.b16 %v563
  %v905 = vunpack.c.h.b16 %v563
  %v906 = vunpack.c.l.b16 %v564
  %v907 = vunpack.c.h.b16 %v564
  %v908 = vunpack.c.l.b16 %v565
  %v909 = vunpack.c.h.b16 %v565
  %v910 = vunpack.c.l.b16 %v566
  %v911 = vunpack.c.h.b16 %v566
  %v912 = vunpack.c.l.b16 %v567
  %v913 = vunpack.c.h.b16 %v567
  %v914 = vunpack.c.l.b16 %v568
  %v915 = vunpack.c.h.b16 %v568
  %v916 = vunpack.c.l.b16 %v569
  %v917 = vunpack.c.h.b16 %v569
  %v918 = vunpack.c.l.b16 %v570
  %v919 = vunpack.c.h.b16 %v570
  %v920 = vunpack.c.l.b16 %v571
  %v921 = vunpack.c.h.b16 %v571
  %v922 = vunpack.c.l.b16 %v572
  %v923 = vunpack.c.h.b16 %v572
  %v924 = vunpack.c.l.b16 %v573
  %v925 = vunpack.c.h.b16 %v573
  %v926 = vunpack.c.l.b16 %v574
  %v927 = vunpack.c.h.b16 %v574
  %v928 = vunpack.c.l.b16 %v575
  %v929 = vunpack.c.h.b16 %v575
  %v930 = vunpack.c.l.b16 %v576
  %v931 = vunpack.c.h.b16 %v576
  %v932 = vunpack.c.l.b16 %v577
  %v933 = vunpack.c.h.b16 %v577
  %v934 = vunpack.c.l.b16 %v578
  %v935 = vunpack.c.h.b16 %v578
  %v936 = vunpack.c.l.b16 %v579
  %v937 = vunpack.c.h.b16 %v579
  %v938 = vpack.c.b16 %v876, %v874
  %v939 = vpack.c.b16 %v877, %v875
  %v940 = vpack.c.b16 %v880, %v878
  %v941 = vpack.c.b16 %v881, %v879
  %v942 = vpack.c.b16 %v884, %v882
  %v943 = vpack.c.b16 %v885, %v883
  %v944 = vpack.c.b16 %v888, %v886
  %v945 = vpack.c.b16 %v889, %v887
  %v946 = vpack.c.b16 %v892, %v890
  %v947 = vpack.c.b16 %v893, %v891
  %v948 = vpack.c.b16 %v896, %v894
  %v949 = vpack.c.b16 %v897, %v895
  %v950 = vpack.c.b16 %v900, %v898
  %v951 = vpack.c.b16 %v901, %v899
  %v952 = vpack.c.b16 %v904, %v902
  %v953 = vpack.c.b16 %v905, %v903
  %v954 = vpack.c.b16 %v908, %v906
  %v955 = vpack.c.b16 %v909, %v907
  %v956 = vpack.c.b16 %v912, %v910
  %v957 = vpack.c.b16 %v913, %v911
  %v958 = vpack.c.b16 %v916, %v914
  %v959 = vpack.c.b16 %v917, %v915
  %v960 = vpack.c.b16 %v920, %v918
  %v961 = vpack.c.b16 %v921, %v919
  %v962 = vpack.c.b16 %v924, %v922
  %v963 = vpack.c.b16 %v925, %v923
  %v964 = vpack.c.b16 %v928, %v926
  %v965 = vpack.c.b16 %v929, %v927
  %v966 = vpack.c.b16 %v932, %v930
  %v967 = vpack.c.b16 %v933, %v931
  %v968 = vpack.c.b16 %v936, %v934
  %v969 = vpack.c.b16 %v937, %v935
  %1002 = vmatprep.subr.bf16.mxu0 %v939
  %1003 = vmatpush1.bf16.msra.mxu0 %v938
  %1004 = vmatprep.subr.bf16.mxu0 %v941
  %1005 = vmatpush1.bf16.msra.mxu0 %v940
  %1006 = vmatprep.subr.bf16.mxu0 %v943
  %1007 = vmatpush1.bf16.msra.mxu0 %v942
  %1008 = vmatprep.subr.bf16.mxu0 %v945
  %1009 = vmatpush1.bf16.msra.mxu0 %v944
  %1010 = vmatprep.subr.bf16.mxu0 %v947
  %1011 = vmatpush1.bf16.msra.mxu0 %v946
  %1012 = vmatprep.subr.bf16.mxu0 %v949
  %1013 = vmatpush1.bf16.msra.mxu0 %v948
  %1014 = vmatprep.subr.bf16.mxu0 %v951
  %1015 = vmatpush1.bf16.msra.mxu0 %v950
  %1016 = vmatprep.subr.bf16.mxu0 %v953
  %1017 = vmatpush1.bf16.msra.mxu0 %v952
  %1018 = vmatprep.subr.bf16.mxu0 %v955
  %1019 = vmatpush1.bf16.msra.mxu0 %v954
  %1020 = vmatprep.subr.bf16.mxu0 %v957
  %1021 = vmatpush1.bf16.msra.mxu0 %v956
  %1022 = vmatprep.subr.bf16.mxu0 %v959
  %1023 = vmatpush1.bf16.msra.mxu0 %v958
  %1024 = vmatprep.subr.bf16.mxu0 %v961
  %1025 = vmatpush1.bf16.msra.mxu0 %v960
  %1026 = vmatprep.subr.bf16.mxu0 %v963
  %1027 = vmatpush1.bf16.msra.mxu0 %v962
  %1028 = vmatprep.subr.bf16.mxu0 %v965
  %1029 = vmatpush1.bf16.msra.mxu0 %v964
  %1030 = vmatprep.subr.bf16.mxu0 %v967
  %1031 = vmatpush1.bf16.msra.mxu0 %v966
  %1032 = vmatprep.subr.bf16.mxu0 %v969
  %1033 = vmatpush1.bf16.msra.mxu0 %v968
  %1034 = vmatprep.mubr.bf16.mxu0 %v839
  %1035 = vmatmul.mubr.bf16.gmra.mrb[0].mxu0 %v838
  %v1036 = vpop.f32.mrb[0].mxu0
  %v1037 = vadd.f32 %v832, %v1036
  %v1038 = vpop.f32.mrb[0].mxu0
  %v1039 = vadd.f32 %v834, %v1038
  %v1040 = vpop.f32.mrb[0].mxu0
  %v1041 = vpop.f32.mrb[0].mxu0
  %1042 = vdwg.mxu0
  %s1043 = scalar_lea.vmem [#allocation2], 16
  %1044 = vst [vmem:[%s1043] sm:$0xff] %v1037
  %1045 = vst [vmem:[%s1043 + $0x8] sm:$0xff] %v1039
  %v1046 = vrot.slane %v1037, 4
  %v1047 = vadd.f32 %v1037, %v1046
  %v1048 = vrot.slane %v1047, 2
  %v1049 = vadd.f32 %v1047, %v1048
  %v1050 = vrot.slane %v1049, 1
  %v1051 = vadd.f32 %v1049, %v1050
  %v1052 = vrot.slane %v1039, 4
  %v1053 = vadd.f32 %v1039, %v1052
  %v1054 = vrot.slane %v1053, 2
  %v1055 = vadd.f32 %v1053, %v1054
  %v1056 = vrot.slane %v1055, 1
  %v1057 = vadd.f32 %v1055, %v1056
  %v1058 = vadd.f32 %v528, %v1051
  %v1059 = vadd.f32 %v529, %v1057
  %v1060 = vmul.f32 %v1037, %v1037
  %v1061 = vmul.f32 %v1039, %v1039
  %v1062 = vrot.slane %v1060, 4
  %v1063 = vadd.f32 %v1060, %v1062
  %v1064 = vrot.slane %v1063, 2
  %v1065 = vadd.f32 %v1063, %v1064
  %v1066 = vrot.slane %v1065, 1
  %v1067 = vadd.f32 %v1065, %v1066
  %v1068 = vrot.slane %v1061, 4
  %v1069 = vadd.f32 %v1061, %v1068
  %v1070 = vrot.slane %v1069, 2
  %v1071 = vadd.f32 %v1069, %v1070
  %v1072 = vrot.slane %v1071, 1
  %v1073 = vadd.f32 %v1071, %v1072
  %v1074 = vadd.f32 %v544, %v1067
  %v1075 = vadd.f32 %v545, %v1073
  %v1076 = vmul.f32 %v1058, 0.0625
  %v1077 = vmul.f32 %v1059, 0.0625
  %v1078 = vmul.f32 %v1074, 0.0625
  %v1079 = vmul.f32 %v1075, 0.0625
  %v1080 = vmul.f32 %v1076, %v1076
  %v1081 = vmul.f32 %v1077, %v1077
  %v1082 = vsub.f32 %v1078, %v1080
  %v1083 = vsub.f32 %v1079, %v1081
  %v1084 = vmax.f32 %v1082, 0.0
  %v1085 = vmax.f32 %v1083, 0.0
  %v1086 = vld [vmem:[%s2] sm:$0x3]
  %v1087 = vadd.f32 %v1084, 1e-05
  %v1088 = vadd.f32 %v1085, 1e-05
  %v1089 = vrsqrt.pop %v1087
  %v1090 = vrsqrt.pop %v1088
  %v1093 = vcombine.low %v1089, %v1090
  %v1095 = vunpack.c.l.s4 1966171168
  %v1096 = vunpack.c.0.s8 %v1095
  %v1097 = vlaneseq
  %v1098 = vshrl.u32 %v1097, 7
  %v1099 = vsub.s32 %v1096, %v1098
  %v1100 = vrot.slane %v1093, %v1099
  %v1102 = vunpack.c.l.s4 1966171168
  %v1103 = vunpack.c.0.s8 %v1102
  %v1104 = vlaneseq
  %v1105 = vshrl.u32 %v1104, 7
  %v1106 = vsub.s32 %v1103, %v1105
  %v1107 = vrot.slane %v1100, %v1106
  %v1109 = vmul.f32 %v1086, %v1107
  %v1110 = vld [vmem:[%s3] sm:$0x3]
  %v1112 = vlaneseq
  %v1113 = vshrl.u32 %v1112, 7
  %v1114 = vsub.s32 0, %v1113
  %v1115 = vrot.slane %v1109, %v1114
  %v1116 = vlaneseq
  %v1117 = vshrl.u32 %v1116, 7
  %v1118 = vsub.s32 1, %v1117
  %v1119 = vrot.slane %v1109, %v1118
  %v1122 = vmul.f32 %v1076, %v1115
  %v1123 = vmul.f32 %v1077, %v1119
  %v1126 = vcombine.low %v1122, %v1123
  %v1128 = vunpack.c.l.s4 1966171168
  %v1129 = vunpack.c.0.s8 %v1128
  %v1130 = vlaneseq
  %v1131 = vshrl.u32 %v1130, 7
  %v1132 = vsub.s32 %v1129, %v1131
  %v1133 = vrot.slane %v1126, %v1132
  %v1135 = vunpack.c.l.s4 1966171168
  %v1136 = vunpack.c.0.s8 %v1135
  %v1137 = vlaneseq
  %v1138 = vshrl.u32 %v1137, 7
  %v1139 = vsub.s32 %v1136, %v1138
  %v1140 = vrot.slane %v1133, %v1139
  %v1142 = vsub.f32 %v1110, %v1140
  %v1143 = vld [vmem:[#allocation2] sm:$0xff]
  %v1144 = vld [vmem:[#allocation2 + $0x8] sm:$0xff]
  %v1145 = vmul.f32 %v1143, %v1115
  %v1146 = vmul.f32 %v1144, %v1119
  %v1148 = vlaneseq
  %v1149 = vshrl.u32 %v1148, 7
  %v1150 = vsub.s32 0, %v1149
  %v1151 = vrot.slane %v1142, %v1150
  %v1152 = vlaneseq
  %v1153 = vshrl.u32 %v1152, 7
  %v1154 = vsub.s32 1, %v1153
  %v1155 = vrot.slane %v1142, %v1154
  %v1158 = vadd.f32 %v1145, %v1151
  %v1159 = vadd.f32 %v1146, %v1155
  %vm1160 = vcmp.ge.f32.partialorder %v1158, 0.0
  %vm1161 = vcmp.ge.f32.partialorder %v1159, 0.0
  %v1162 = vmul.f32 %v1158, 0.01
  %v1163 = vmul.f32 %v1159, 0.01
  %v1164 = vsel %vm1160, %v1158, %v1162
  %v1165 = vsel %vm1161, %v1159, %v1163
  %v1166 = vpack.c.bf16 %v1164, %v1164
  %v1167 = vpack.c.bf16 %v1165, %v1165
  %v1170 = vunpack.c.l.b16 %v1166
  %v1171 = vunpack.c.l.b16 %v1167
  %v1172 = vpack.c.b16 %v1171, %v1170
  %1174 = vst [vmem:[%s4] sm:$0xff] %v1172
  %v1175 = vld [vmem:[%s1043] sm:$0xff]
  %v1176 = vld [vmem:[%s1043 + $0x8] sm:$0xff]
  %v1177 = vmul.f32 %v1175, %v1115
  %v1178 = vmul.f32 %v1176, %v1119
  %v1179 = vadd.f32 %v1177, %v1151
  %v1180 = vadd.f32 %v1178, %v1155
  %vm1181 = vcmp.ge.f32.partialorder %v1179, 0.0
  %vm1182 = vcmp.ge.f32.partialorder %v1180, 0.0
  %v1183 = vmul.f32 %v1179, 0.01
  %v1184 = vmul.f32 %v1180, 0.01
  %v1185 = vsel %vm1181, %v1179, %v1183
  %v1186 = vsel %vm1182, %v1180, %v1184
  %v1187 = vpack.c.bf16 %v1185, %v1185
  %v1188 = vpack.c.bf16 %v1186, %v1186
  %v1191 = vunpack.c.l.b16 %v1187
  %v1192 = vunpack.c.l.b16 %v1188
  %v1193 = vpack.c.b16 %v1192, %v1191
  %s1195 = scalar_lea.vmem %s4, 8
  %1196 = vst [vmem:[%s1195] sm:$0xff] %v1193
  // Predicated region
  $region18: #{prototype_forward.9} parent=0 // pred_check
    _
  $region19: #{prototype_forward.9} parent=0 // pred_check_branch
    %1198 = sbr.rel (0) target = $region21
  $region20: #{prototype_forward.9} parent=0 // pred_region
    _
  $region21: #{prototype_forward.9} parent=0 // pred_fallthru
    _
  // Predicated region
  $region22: #{prototype_forward.9} parent=0 // pred_check
    _
  $region23: #{prototype_forward.9} parent=0 // pred_check_branch
    %1200 = sbr.rel (0) target = $region25
  $region24: #{prototype_forward.9} parent=0 // pred_region
    _
  $region25: #{prototype_forward.9} parent=0 // pred_fallthru
    _

// kernel: prototype_forward.10
$region0: #{prototype_forward.10}
  #allocation0 [shape = 'u32[]', space=smem, size = 0x4, offset = 0x4, fixed_abs, tag = 'smem constant byte address 0x4 - core index']
  #allocation1 [shape = 'u32[144,128]{1,0:T(1,128)}', space=vmem, size = 0x12000, scoped, tag = 'internal scratch']
  %s0 = inlined_call_operand.vmem [shape: bf16[2,8,768], index: 0, kind: input, shape index: {}]
  %s1 = inlined_call_operand.vmem [shape: bf16[2,18,768], index: 1, kind: input, shape index: {}]
  %s2 = inlined_call_operand.vmem [shape: f32[2,8,11], index: 2, kind: output, shape index: {}]
  %s3 = sld [smem:[#allocation0]]
  $region41: #{prototype_forward.10} parent=0
    _
  %s5 = ssub.s32 1, %s3
  %s6 = scalar_select 0, %s5, %s3
  loop: start=0, step=1, limit=4
  $region2: #{prototype_forward.10} parent=0 // loop_pre_header
    _
  $region3: #{prototype_forward.10} parent=0 // loop_header
    %s8 = sphi 0, %s12
    %p9 = scmp.ge.s32.totalorder %s8, 4
    %s18 = sphi 0, %s20
    %s21 = sphi 0, %s18
    %s22 = sphi 0, %s21
    %s38 = sphi 0, %s22
    %s44 = sphi 0, %s46
    %s47 = sphi 0, %s44
    %s48 = sphi 0, %s47
    %s64 = sphi 0, %s48
    %s70 = sphi 0, %s72
    %s73 = sphi 0, %s70
    %s74 = sphi 0, %s73
    %s90 = sphi 0, %s74
  $region4: #{prototype_forward.10} parent=0 // loop_header_branch
    %11 = sbr.rel (%p9) target = $region8
  $region5: #{prototype_forward.10} parent=0 // loop_body
    %s13 = ssub.s32 %s8, 1
    %s14 = ssub.s32 %s8, 2
    %s15 = sadd.s32 %s8, 1
    %s16 = ssub.s32 %s8, %s15
    %p17 = scmp.eq.s32.totalorder %s16, 0
    %s19 = sadd.s32 %s18, 1
    %s20 = scalar_select %p17, %s18, %s19
    %p23 = pneg %p17
    %p24 = scmp.eq.s32.totalorder %s8, 1
    %p25 = por %p23, %p24
    %p26 = scmp.ne.s32.totalorder %s18, %s21
    %p27 = scmp.eq.s32.totalorder %s8, 0
    %p28 = por %p26, %p27
    %p29 = scmp.ne.s32.totalorder %s18, %s21
    %p30 = scmp.eq.s32.totalorder %s13, 1
    %p31 = por %p29, %p30
    %p32 = scmp.ne.s32.totalorder %s21, %s22
    %p33 = scmp.eq.s32.totalorder %s13, 0
    %p34 = por %p32, %p33
    %p35 = scmp.ne.s32.totalorder %s21, %s22
    %p36 = scmp.eq.s32.totalorder %s14, 1
    %p37 = por %p35, %p36
    %p39 = scmp.ne.s32.totalorder %s22, %s38
    %p40 = scmp.eq.s32.totalorder %s14, 0
    %p41 = por %p39, %p40
    %s42 = ssub.s32 %s8, %s15
    %p43 = scmp.eq.s32.totalorder %s42, 0
    %s45 = sadd.s32 %s44, 1
    %s46 = scalar_select %p43, %s44, %s45
    %p49 = pneg %p43
    %p50 = scmp.eq.s32.totalorder %s8, 1
    %p51 = por %p49, %p50
    %p52 = scmp.ne.s32.totalorder %s44, %s47
    %p53 = scmp.eq.s32.totalorder %s8, 0
    %p54 = por %p52, %p53
    %p55 = scmp.ne.s32.totalorder %s44, %s47
    %p56 = scmp.eq.s32.totalorder %s13, 1
    %p57 = por %p55, %p56
    %p58 = scmp.ne.s32.totalorder %s47, %s48
    %p59 = scmp.eq.s32.totalorder %s13, 0
    %p60 = por %p58, %p59
    %p61 = scmp.ne.s32.totalorder %s47, %s48
    %p62 = scmp.eq.s32.totalorder %s14, 1
    %p63 = por %p61, %p62
    %p65 = scmp.ne.s32.totalorder %s48, %s64
    %p66 = scmp.eq.s32.totalorder %s14, 0
    %p67 = por %p65, %p66
    %s68 = ssub.s32 %s8, %s15
    %p69 = scmp.eq.s32.totalorder %s68, 0
    %s71 = sadd.s32 %s70, 1
    %s72 = scalar_select %p69, %s70, %s71
    %p75 = pneg %p69
    %p76 = scmp.eq.s32.totalorder %s8, 1
    %p77 = por %p75, %p76
    %p78 = scmp.ne.s32.totalorder %s70, %s73
    %p79 = scmp.eq.s32.totalorder %s8, 0
    %p80 = por %p78, %p79
    %p81 = scmp.ne.s32.totalorder %s70, %s73
    %p82 = scmp.eq.s32.totalorder %s13, 1
    %p83 = por %p81, %p82
    %p84 = scmp.ne.s32.totalorder %s73, %s74
    %p85 = scmp.eq.s32.totalorder %s13, 0
    %p86 = por %p84, %p85
    %p87 = scmp.ne.s32.totalorder %s73, %s74
    %p88 = scmp.eq.s32.totalorder %s14, 1
    %p89 = por %p87, %p88
    %p91 = scmp.ne.s32.totalorder %s74, %s90
    %p92 = scmp.eq.s32.totalorder %s14, 0
    %p93 = por %p91, %p92
    %p94 = scmp.le.s32.totalorder 1, %s8
    %p95 = scmp.lt.s32.totalorder %s8, 3
    %p96 = pnand %p94, %p95
    %p97 = pneg %p96
    // Predicated region
    $region9: #{prototype_forward.10} parent=5 // pred_check
      _
    $region10: #{prototype_forward.10} parent=5 // pred_check_branch
      %99 = sbr.rel (%p96) target = $region12
    $region11: #{prototype_forward.10} parent=5 // pred_region
      %s100 = ssub.s32 %s8, 1
    $region12: #{prototype_forward.10} parent=5 // pred_fallthru
      _
    %p101 = scmp.lt.s32.totalorder %s8, 2
    // Predicated region
    $region13: #{prototype_forward.10} parent=5 // pred_check
      %p102 = pneg %p101
    $region14: #{prototype_forward.10} parent=5 // pred_check_branch
      %104 = sbr.rel (%p102) target = $region16
    $region15: #{prototype_forward.10} parent=5 // pred_region
      // Predicated region
      $region17: #{prototype_forward.10} parent=15 // pred_check
        %p105 = pneg %p28
      $region18: #{prototype_forward.10} parent=15 // pred_check_branch
        %107 = sbr.rel (%p105) target = $region20
      $region19: #{prototype_forward.10} parent=15 // pred_region
        %p108 = scmp.lt.s32.totalorder %s8, 1
        %s109 = scalar_select %p108, %s8, 1
        %s110 = smul.addr %s109, 6
        %s111 = smul.addr %s110, 4
        %s112 = scalar_lea.vmem %s0, %s111
      $region20: #{prototype_forward.10} parent=15 // pred_fallthru
        _
      // Predicated region
      $region21: #{prototype_forward.10} parent=15 // pred_check
        %p113 = pneg %p54
      $region22: #{prototype_forward.10} parent=15 // pred_check_branch
        %115 = sbr.rel (%p113) target = $region24
      $region23: #{prototype_forward.10} parent=15 // pred_region
        %p116 = scmp.lt.s32.totalorder %s8, 1
        %s117 = scalar_select %p116, %s8, 1
        %s118 = smul.addr %s117, 18
        %s119 = smul.addr %s118, 4
        %s120 = scalar_lea.vmem %s1, %s119
      $region24: #{prototype_forward.10} parent=15 // pred_fallthru
        _
    $region16: #{prototype_forward.10} parent=5 // pred_fallthru
      _
    %p121 = scmp.le.s32.totalorder 1, %s8
    %p122 = scmp.lt.s32.totalorder %s8, 3
    %p123 = pnand %p121, %p122
    %p124 = pneg %p123
    // Predicated region
    $region25: #{prototype_forward.10} parent=5 // pred_check
      _
    $region26: #{prototype_forward.10} parent=5 // pred_check_branch
      %126 = sbr.rel (%p123) target = $region28
    $region27: #{prototype_forward.10} parent=5 // pred_region
      %s127 = ssub.s32 %s8, 1
      %p128 = scmp.lt.s32.totalorder %s13, 1
      %s129 = scalar_select %p128, %s13, 1
      %s130 = smul.addr %s129, 6
      %s131 = smul.addr %s130, 4
      %s132 = scalar_lea.vmem %s0, %s131
      %p133 = pneg %p34
      %p134 = pneg %p31
      %p135 = scmp.lt.s32.totalorder %s13, 1
      %s136 = scalar_select %p135, %s13, 1
      %s137 = smul.addr %s136, 18
      %s138 = smul.addr %s137, 4
      %s139 = scalar_lea.vmem %s1, %s138
      %p140 = pneg %p60
      %p141 = pneg %p57
      %p142 = pneg %p86
      %p143 = pneg %p83
      %p144 = scmp.lt.s32.totalorder %s13, 1
      %s145 = scalar_select %p144, %s13, 1
      %s146 = smul.addr %s145, 8
      %s147 = scalar_lea.vmem %s2, %s146
      %p148 = scmp.lt.s32.totalorder %s13, 1
      %s149 = scalar_select %p148, %s13, 1
      %s150 = smul.addr %s149, 6
      %s151 = smul.addr %s150, 4
      %s152 = scalar_lea.vmem %s0, %s151
      %p153 = scmp.lt.s32.totalorder %s13, 1
      %s154 = scalar_select %p153, %s13, 1
      %s155 = smul.addr %s154, 18
      %s156 = smul.addr %s155, 4
      %s157 = scalar_lea.vmem %s1, %s156
      %p158 = scmp.lt.s32.totalorder %s13, 1
      %s159 = scalar_select %p158, %s13, 1
      %s160 = smul.addr %s159, 8
      %s161 = scalar_lea.vmem %s2, %s160
      %v162 = vld [vmem:[%s152] sm:$0xff]
      %v163 = vld [vmem:[%s152 + $0x8] sm:$0xff]
      %v164 = vld [vmem:[%s152 + $0x10] sm:$0xff]
      %v165 = vunpack.c.l.bf16 %v162
      %v166 = vunpack.c.h.bf16 %v162
      %v167 = vunpack.c.l.bf16 %v163
      %v168 = vunpack.c.h.bf16 %v163
      %v169 = vunpack.c.l.bf16 %v164
      %v170 = vunpack.c.h.bf16 %v164
      %v171 = vld [vmem:[%s157] sm:$0xff]
      %v172 = vld [vmem:[%s157 + $0x8] sm:$0xff]
      %v173 = vld [vmem:[%s157 + $0x10] sm:$0xff]
      %v174 = vld [vmem:[%s157 + $0x18] sm:$0xff]
      %v175 = vld [vmem:[%s157 + $0x20] sm:$0xff]
      %v176 = vld [vmem:[%s157 + $0x28] sm:$0xff]
      %v177 = vld [vmem:[%s157 + $0x30] sm:$0x11]
      %v178 = vld [vmem:[%s157 + $0x38] sm:$0x11]
      %v179 = vld [vmem:[%s157 + $0x40] sm:$0x11]
      %v180 = vunpack.c.l.bf16 %v171
      %v181 = vunpack.c.h.bf16 %v171
      %v182 = vunpack.c.l.bf16 %v172
      %v183 = vunpack.c.h.bf16 %v172
      %v184 = vunpack.c.l.bf16 %v173
      %v185 = vunpack.c.h.bf16 %v173
      %v186 = vunpack.c.l.bf16 %v174
      %v187 = vunpack.c.h.bf16 %v174
      %v188 = vunpack.c.l.bf16 %v175
      %v189 = vunpack.c.h.bf16 %v175
      %v190 = vunpack.c.l.bf16 %v176
      %v191 = vunpack.c.h.bf16 %v176
      %v192 = vunpack.c.l.bf16 %v177
      %v193 = vunpack.c.h.bf16 %v177
      %v194 = vunpack.c.l.bf16 %v178
      %v195 = vunpack.c.h.bf16 %v178
      %v196 = vunpack.c.l.bf16 %v179
      %v197 = vunpack.c.h.bf16 %v179
      %v198 = vmul.f32 %v165, %v180
      %v199 = vmul.f32 %v166, %v181
      %v200 = vmul.f32 %v167, %v182
      %v201 = vmul.f32 %v168, %v183
      %v202 = vmul.f32 %v169, %v184
      %v203 = vmul.f32 %v170, %v185
      %v204 = vadd.f32 %v198, %v199
      %v205 = vadd.f32 %v204, %v200
      %v206 = vadd.f32 %v205, %v201
      %v207 = vadd.f32 %v206, %v202
      %v208 = vadd.f32 %v207, %v203
      %209 = vadd.xlane.f32.xlu0 %v208
      %v210 = vpop.xlane.xlu0 %209
      %vm223 = vcmask 1046528
      %v224 = vrot.slane %v180, 1
      %v225 = vrot.slane %v186, 1
      %v226 = vsel %vm223, %v224, %v225
      %v227 = vrot.slane %v181, 1
      %v228 = vrot.slane %v187, 1
      %v229 = vsel %vm223, %v227, %v228
      %v230 = vrot.slane %v182, 1
      %v231 = vrot.slane %v188, 1
      %v232 = vsel %vm223, %v230, %v231
      %v233 = vrot.slane %v183, 1
      %v234 = vrot.slane %v189, 1
      %v235 = vsel %vm223, %v233, %v234
      %v236 = vrot.slane %v184, 1
      %v237 = vrot.slane %v190, 1
      %v238 = vsel %vm223, %v236, %v237
      %v239 = vrot.slane %v185, 1
      %v240 = vrot.slane %v191, 1
      %v241 = vsel %vm223, %v239, %v240
      %v248 = vmul.f32 %v165, %v226
      %v249 = vmul.f32 %v166, %v229
      %v250 = vmul.f32 %v167, %v232
      %v251 = vmul.f32 %v168, %v235
      %v252 = vmul.f32 %v169, %v238
      %v253 = vmul.f32 %v170, %v241
      %v254 = vadd.f32 %v248, %v249
      %v255 = vadd.f32 %v254, %v250
      %v256 = vadd.f32 %v255, %v251
      %v257 = vadd.f32 %v256, %v252
      %v258 = vadd.f32 %v257, %v253
      %259 = vadd.xlane.f32.xlu0 %v258
      %v260 = vpop.xlane.xlu0 %259
      %vm261 = vcmask 1045504
      %v262 = vrot.slane %v180, 2
      %v263 = vrot.slane %v186, 2
      %v264 = vsel %vm261, %v262, %v263
      %v265 = vrot.slane %v181, 2
      %v266 = vrot.slane %v187, 2
      %v267 = vsel %vm261, %v265, %v266
      %v268 = vrot.slane %v182, 2
      %v269 = vrot.slane %v188, 2
      %v270 = vsel %vm261, %v268, %v269
      %v271 = vrot.slane %v183, 2
      %v272 = vrot.slane %v189, 2
      %v273 = vsel %vm261, %v271, %v272
      %v274 = vrot.slane %v184, 2
      %v275 = vrot.slane %v190, 2
      %v276 = vsel %vm261, %v274, %v275
      %v277 = vrot.slane %v185, 2
      %v278 = vrot.slane %v191, 2
      %v279 = vsel %vm261, %v277, %v278
      %v286 = vmul.f32 %v165, %v264
      %v287 = vmul.f32 %v166, %v267
      %v288 = vmul.f32 %v167, %v270
      %v289 = vmul.f32 %v168, %v273
      %v290 = vmul.f32 %v169, %v276
      %v291 = vmul.f32 %v170, %v279
      %v292 = vadd.f32 %v286, %v287
      %v293 = vadd.f32 %v292, %v288
      %v294 = vadd.f32 %v293, %v289
      %v295 = vadd.f32 %v294, %v290
      %v296 = vadd.f32 %v295, %v291
      %297 = vadd.xlane.f32.xlu0 %v296
      %v298 = vpop.xlane.xlu0 %297
      %vm299 = vcmask 1044480
      %v300 = vrot.slane %v180, 3
      %v301 = vrot.slane %v186, 3
      %v302 = vsel %vm299, %v300, %v301
      %v303 = vrot.slane %v181, 3
      %v304 = vrot.slane %v187, 3
      %v305 = vsel %vm299, %v303, %v304
      %v306 = vrot.slane %v182, 3
      %v307 = vrot.slane %v188, 3
      %v308 = vsel %vm299, %v306, %v307
      %v309 = vrot.slane %v183, 3
      %v310 = vrot.slane %v189, 3
      %v311 = vsel %vm299, %v309, %v310
      %v312 = vrot.slane %v184, 3
      %v313 = vrot.slane %v190, 3
      %v314 = vsel %vm299, %v312, %v313
      %v315 = vrot.slane %v185, 3
      %v316 = vrot.slane %v191, 3
      %v317 = vsel %vm299, %v315, %v316
      %v324 = vmul.f32 %v165, %v302
      %v325 = vmul.f32 %v166, %v305
      %v326 = vmul.f32 %v167, %v308
      %v327 = vmul.f32 %v168, %v311
      %v328 = vmul.f32 %v169, %v314
      %v329 = vmul.f32 %v170, %v317
      %v330 = vadd.f32 %v324, %v325
      %v331 = vadd.f32 %v330, %v326
      %v332 = vadd.f32 %v331, %v327
      %v333 = vadd.f32 %v332, %v328
      %v334 = vadd.f32 %v333, %v329
      %335 = vadd.xlane.f32.xlu0 %v334
      %v336 = vpop.xlane.xlu0 %335
      %vm337 = vcmask 1043456
      %v338 = vrot.slane %v180, 4
      %v339 = vrot.slane %v186, 4
      %v340 = vsel %vm337, %v338, %v339
      %v341 = vrot.slane %v181, 4
      %v342 = vrot.slane %v187, 4
      %v343 = vsel %vm337, %v341, %v342
      %v344 = vrot.slane %v182, 4
      %v345 = vrot.slane %v188, 4
      %v346 = vsel %vm337, %v344, %v345
      %v347 = vrot.slane %v183, 4
      %v348 = vrot.slane %v189, 4
      %v349 = vsel %vm337, %v347, %v348
      %v350 = vrot.slane %v184, 4
      %v351 = vrot.slane %v190, 4
      %v352 = vsel %vm337, %v350, %v351
      %v353 = vrot.slane %v185, 4
      %v354 = vrot.slane %v191, 4
      %v355 = vsel %vm337, %v353, %v354
      %v362 = vmul.f32 %v165, %v340
      %v363 = vmul.f32 %v166, %v343
      %v364 = vmul.f32 %v167, %v346
      %v365 = vmul.f32 %v168, %v349
      %v366 = vmul.f32 %v169, %v352
      %v367 = vmul.f32 %v170, %v355
      %v368 = vadd.f32 %v362, %v363
      %v369 = vadd.f32 %v368, %v364
      %v370 = vadd.f32 %v369, %v365
      %v371 = vadd.f32 %v370, %v366
      %v372 = vadd.f32 %v371, %v367
      %373 = vadd.xlane.f32.xlu0 %v372
      %v374 = vpop.xlane.xlu0 %373
      %vm375 = vcmask 1042432
      %v376 = vrot.slane %v180, 5
      %v377 = vrot.slane %v186, 5
      %v378 = vsel %vm375, %v376, %v377
      %v379 = vrot.slane %v181, 5
      %v380 = vrot.slane %v187, 5
      %v381 = vsel %vm375, %v379, %v380
      %v382 = vrot.slane %v182, 5
      %v383 = vrot.slane %v188, 5
      %v384 = vsel %vm375, %v382, %v383
      %v385 = vrot.slane %v183, 5
      %v386 = vrot.slane %v189, 5
      %v387 = vsel %vm375, %v385, %v386
      %v388 = vrot.slane %v184, 5
      %v389 = vrot.slane %v190, 5
      %v390 = vsel %vm375, %v388, %v389
      %v391 = vrot.slane %v185, 5
      %v392 = vrot.slane %v191, 5
      %v393 = vsel %vm375, %v391, %v392
      %v400 = vmul.f32 %v165, %v378
      %v401 = vmul.f32 %v166, %v381
      %v402 = vmul.f32 %v167, %v384
      %v403 = vmul.f32 %v168, %v387
      %v404 = vmul.f32 %v169, %v390
      %v405 = vmul.f32 %v170, %v393
      %v406 = vadd.f32 %v400, %v401
      %v407 = vadd.f32 %v406, %v402
      %v408 = vadd.f32 %v407, %v403
      %v409 = vadd.f32 %v408, %v404
      %v410 = vadd.f32 %v409, %v405
      %411 = vadd.xlane.f32.xlu0 %v410
      %v412 = vpop.xlane.xlu0 %411
      %vm413 = vcmask 1041408
      %v414 = vrot.slane %v180, 6
      %v415 = vrot.slane %v186, 6
      %v416 = vsel %vm413, %v414, %v415
      %v417 = vrot.slane %v181, 6
      %v418 = vrot.slane %v187, 6
      %v419 = vsel %vm413, %v417, %v418
      %v420 = vrot.slane %v182, 6
      %v421 = vrot.slane %v188, 6
      %v422 = vsel %vm413, %v420, %v421
      %v423 = vrot.slane %v183, 6
      %v424 = vrot.slane %v189, 6
      %v425 = vsel %vm413, %v423, %v424
      %v426 = vrot.slane %v184, 6
      %v427 = vrot.slane %v190, 6
      %v428 = vsel %vm413, %v426, %v427
      %v429 = vrot.slane %v185, 6
      %v430 = vrot.slane %v191, 6
      %v431 = vsel %vm413, %v429, %v430
      %v438 = vmul.f32 %v165, %v416
      %v439 = vmul.f32 %v166, %v419
      %v440 = vmul.f32 %v167, %v422
      %v441 = vmul.f32 %v168, %v425
      %v442 = vmul.f32 %v169, %v428
      %v443 = vmul.f32 %v170, %v431
      %v444 = vadd.f32 %v438, %v439
      %v445 = vadd.f32 %v444, %v440
      %v446 = vadd.f32 %v445, %v441
      %v447 = vadd.f32 %v446, %v442
      %v448 = vadd.f32 %v447, %v443
      %449 = vadd.xlane.f32.xlu0 %v448
      %v450 = vpop.xlane.xlu0 %449
      %vm451 = vcmask 1040384
      %v452 = vrot.slane %v180, 7
      %v453 = vrot.slane %v186, 7
      %v454 = vsel %vm451, %v452, %v453
      %v455 = vrot.slane %v181, 7
      %v456 = vrot.slane %v187, 7
      %v457 = vsel %vm451, %v455, %v456
      %v458 = vrot.slane %v182, 7
      %v459 = vrot.slane %v188, 7
      %v460 = vsel %vm451, %v458, %v459
      %v461 = vrot.slane %v183, 7
      %v462 = vrot.slane %v189, 7
      %v463 = vsel %vm451, %v461, %v462
      %v464 = vrot.slane %v184, 7
      %v465 = vrot.slane %v190, 7
      %v466 = vsel %vm451, %v464, %v465
      %v467 = vrot.slane %v185, 7
      %v468 = vrot.slane %v191, 7
      %v469 = vsel %vm451, %v467, %v468
      %v476 = vmul.f32 %v165, %v454
      %v477 = vmul.f32 %v166, %v457
      %v478 = vmul.f32 %v167, %v460
      %v479 = vmul.f32 %v168, %v463
      %v480 = vmul.f32 %v169, %v466
      %v481 = vmul.f32 %v170, %v469
      %v482 = vadd.f32 %v476, %v477
      %v483 = vadd.f32 %v482, %v478
      %v484 = vadd.f32 %v483, %v479
      %v485 = vadd.f32 %v484, %v480
      %v486 = vadd.f32 %v485, %v481
      %487 = vadd.xlane.f32.xlu0 %v486
      %v488 = vpop.xlane.xlu0 %487
      %v489 = vmul.f32 %v165, %v186
      %v490 = vmul.f32 %v166, %v187
      %v491 = vmul.f32 %v167, %v188
      %v492 = vmul.f32 %v168, %v189
      %v493 = vmul.f32 %v169, %v190
      %v494 = vmul.f32 %v170, %v191
      %v495 = vadd.f32 %v489, %v490
      %v496 = vadd.f32 %v495, %v491
      %v497 = vadd.f32 %v496, %v492
      %v498 = vadd.f32 %v497, %v493
      %v499 = vadd.f32 %v498, %v494
      %500 = vadd.xlane.f32.xlu0 %v499
      %v501 = vpop.xlane.xlu0 %500
      %v508 = vrot.slane %v192, 1
      %v509 = vsel %vm223, %v225, %v508
      %v510 = vrot.slane %v193, 1
      %v511 = vsel %vm223, %v228, %v510
      %v512 = vrot.slane %v194, 1
      %v513 = vsel %vm223, %v231, %v512
      %v514 = vrot.slane %v195, 1
      %v515 = vsel %vm223, %v234, %v514
      %v516 = vrot.slane %v196, 1
      %v517 = vsel %vm223, %v237, %v516
      %v518 = vrot.slane %v197, 1
      %v519 = vsel %vm223, %v240, %v518
      %v526 = vmul.f32 %v165, %v509
      %v527 = vmul.f32 %v166, %v511
      %v528 = vmul.f32 %v167, %v513
      %v529 = vmul.f32 %v168, %v515
      %v530 = vmul.f32 %v169, %v517
      %v531 = vmul.f32 %v170, %v519
      %v532 = vadd.f32 %v526, %v527
      %v533 = vadd.f32 %v532, %v528
      %v534 = vadd.f32 %v533, %v529
      %v535 = vadd.f32 %v534, %v530
      %v536 = vadd.f32 %v535, %v531
      %537 = vadd.xlane.f32.xlu0 %v536
      %v538 = vpop.xlane.xlu0 %537
      %v539 = vrot.slane %v192, 2
      %v540 = vsel %vm261, %v263, %v539
      %v541 = vrot.slane %v193, 2
      %v542 = vsel %vm261, %v266, %v541
      %v543 = vrot.slane %v194, 2
      %v544 = vsel %vm261, %v269, %v543
      %v545 = vrot.slane %v195, 2
      %v546 = vsel %vm261, %v272, %v545
      %v547 = vrot.slane %v196, 2
      %v548 = vsel %vm261, %v275, %v547
      %v549 = vrot.slane %v197, 2
      %v550 = vsel %vm261, %v278, %v549
      %v557 = vmul.f32 %v165, %v540
      %v558 = vmul.f32 %v166, %v542
      %v559 = vmul.f32 %v167, %v544
      %v560 = vmul.f32 %v168, %v546
      %v561 = vmul.f32 %v169, %v548
      %v562 = vmul.f32 %v170, %v550
      %v563 = vadd.f32 %v557, %v558
      %v564 = vadd.f32 %v563, %v559
      %v565 = vadd.f32 %v564, %v560
      %v566 = vadd.f32 %v565, %v561
      %v567 = vadd.f32 %v566, %v562
      %568 = vadd.xlane.f32.xlu0 %v567
      %v569 = vpop.xlane.xlu0 %568
      %vm570 = vcmask 7168
      %v571 = vsel %vm570, %v210, %v260
      %vm572 = vcmask 15360
      %v573 = vsel %vm572, %v571, %v298
      %vm574 = vcmask 23552
      %v575 = vsel %vm574, %v573, %v336
      %vm576 = vcmask 31744
      %v577 = vsel %vm576, %v575, %v374
      %vm578 = vcmask 39936
      %v579 = vsel %vm578, %v577, %v412
      %vm580 = vcmask 48128
      %v581 = vsel %vm580, %v579, %v450
      %vm582 = vcmask 56320
      %v583 = vsel %vm582, %v581, %v488
      %vm584 = vcmask 64512
      %v585 = vsel %vm584, %v583, %v501
      %vm586 = vcmask 72704
      %v587 = vsel %vm586, %v585, %v538
      %vm588 = vcmask 80896
      %v589 = vsel %vm588, %v587, %v569
      %vm590 = vcmask 89088
      %591 = vst.msk [vmem:[%s161] sm:$0xff] %vm590, %v589
      %p592 = scmp.lt.s32.totalorder %s13, 1
      %s593 = scalar_select %p592, %s13, 1
      %s594 = smul.addr %s593, 8
      %s595 = scalar_lea.vmem %s2, %s594
      // Predicated region
      $region29: #{prototype_forward.10} parent=27 // pred_check
        %p596 = pneg %p83
      $region30: #{prototype_forward.10} parent=27 // pred_check_branch
        %598 = sbr.rel (%p596) target = $region32
      $region31: #{prototype_forward.10} parent=27 // pred_region
        _
      $region32: #{prototype_forward.10} parent=27 // pred_fallthru
        _
    $region28: #{prototype_forward.10} parent=5 // pred_fallthru
      _
    %p599 = scmp.le.s32.totalorder 2, %s8
    // Predicated region
    $region33: #{prototype_forward.10} parent=5 // pred_check
      %p600 = pneg %p599
    $region34: #{prototype_forward.10} parent=5 // pred_check_branch
      %602 = sbr.rel (%p600) target = $region36
    $region35: #{prototype_forward.10} parent=5 // pred_region
      %s603 = ssub.s32 %s8, 2
      // Predicated region
      $region37: #{prototype_forward.10} parent=35 // pred_check
        %p604 = pneg %p89
      $region38: #{prototype_forward.10} parent=35 // pred_check_branch
        %606 = sbr.rel (%p604) target = $region40
      $region39: #{prototype_forward.10} parent=35 // pred_region
        %p607 = scmp.lt.s32.totalorder %s14, 1
        %s608 = scalar_select %p607, %s14, 1
        %s609 = smul.addr %s608, 8
        %s610 = scalar_lea.vmem %s2, %s609
      $region40: #{prototype_forward.10} parent=35 // pred_fallthru
        _
    $region36: #{prototype_forward.10} parent=5 // pred_fallthru
      _
  $region6: #{prototype_forward.10} parent=0 // loop_footer
    %s12 = sadd.s32 1, %s8
  $region7: #{prototype_forward.10} parent=0 // loop_footer_branch
    %7 = sbr.rel target = $region3
  $region8: #{prototype_forward.10} parent=0 // loop_exit
    _

// kernel: prototype_forward.11
$region0: #{prototype_forward.11}
  #allocation0 [shape = 'u32[]', space=smem, size = 0x4, offset = 0x4, fixed_abs, tag = 'smem constant byte address 0x4 - core index']
  #allocation1 [shape = 'u32[144,128]{1,0:T(1,128)}', space=vmem, size = 0x12000, scoped, tag = 'internal scratch']
  #allocation2 [shape = 'f32[2,16,128]{2,1,0:T(8,128)}', space=vmem, size = 0x4000, scoped, tag = 'scratch operand']
  %s0 = inlined_call_operand.vmem [shape: bf16[2,18,144], index: 0, kind: input, shape index: {}]
  %s1 = inlined_call_operand.vmem [shape: bf16[3,144,128], index: 1, kind: input, shape index: {}]
  %s2 = inlined_call_operand.vmem [shape: f32[1,128], index: 2, kind: input, shape index: {}]
  %s3 = inlined_call_operand.vmem [shape: f32[1,128], index: 3, kind: input, shape index: {}]
  %s4 = inlined_call_operand.vmem [shape: bf16[2,16,128], index: 4, kind: output, shape index: {}]
  %s5 = sld [smem:[#allocation0]]
  $region26: #{prototype_forward.11} parent=0
    _
  %s7 = ssub.s32 1, %s5
  %s8 = scalar_select 0, %s7, %s5
  // Predicated region
  $region2: #{prototype_forward.11} parent=0 // pred_check
    _
  $region3: #{prototype_forward.11} parent=0 // pred_check_branch
    %10 = sbr.rel (0) target = $region5
  $region4: #{prototype_forward.11} parent=0 // pred_region
    _
  $region5: #{prototype_forward.11} parent=0 // pred_fallthru
    _
  // Predicated region
  $region6: #{prototype_forward.11} parent=0 // pred_check
    _
  $region7: #{prototype_forward.11} parent=0 // pred_check_branch
    %12 = sbr.rel (0) target = $region9
  $region8: #{prototype_forward.11} parent=0 // pred_region
    _
  $region9: #{prototype_forward.11} parent=0 // pred_fallthru
    _
  // Predicated region
  $region10: #{prototype_forward.11} parent=0 // pred_check
    _
  $region11: #{prototype_forward.11} parent=0 // pred_check_branch
    %14 = sbr.rel (0) target = $region13
  $region12: #{prototype_forward.11} parent=0 // pred_region
    _
  $region13: #{prototype_forward.11} parent=0 // pred_fallthru
    _
  // Predicated region
  $region14: #{prototype_forward.11} parent=0 // pred_check
    _
  $region15: #{prototype_forward.11} parent=0 // pred_check_branch
    %16 = sbr.rel (0) target = $region17
  $region16: #{prototype_forward.11} parent=0 // pred_region
    _
  $region17: #{prototype_forward.11} parent=0 // pred_fallthru
    _
  %v18 = vld [vmem:[%s0] sm:$0xff]
  %v19 = vld [vmem:[%s0 + $0x8] sm:$0xff]
  %v20 = vld [vmem:[%s1] sm:$0xf]
  %v21 = vld [vmem:[%s1 + $0x4] sm:$0xf]
  %v22 = vld [vmem:[%s1 + $0x8] sm:$0xf]
  %v23 = vld [vmem:[%s1 + $0xc] sm:$0xf]
  %v24 = vld [vmem:[%s1 + $0x10] sm:$0xf]
  %v25 = vld [vmem:[%s1 + $0x14] sm:$0xf]
  %v26 = vld [vmem:[%s1 + $0x18] sm:$0xf]
  %v27 = vld [vmem:[%s1 + $0x1c] sm:$0xf]
  %v28 = vld [vmem:[%s1 + $0x20] sm:$0xf]
  %v29 = vld [vmem:[%s1 + $0x24] sm:$0xf]
  %v30 = vld [vmem:[%s1 + $0x28] sm:$0xf]
  %v31 = vld [vmem:[%s1 + $0x2c] sm:$0xf]
  %v32 = vld [vmem:[%s1 + $0x30] sm:$0xf]
  %v33 = vld [vmem:[%s1 + $0x34] sm:$0xf]
  %v34 = vld [vmem:[%s1 + $0x38] sm:$0xf]
  %v35 = vld [vmem:[%s1 + $0x3c] sm:$0xf]
  %v36 = vld [vmem:[%s1 + $0x40] sm:$0xf]
  %v37 = vld [vmem:[%s1 + $0x44] sm:$0xf]
  %v38 = vld [vmem:[%s0 + $0x10] sm:$0x11]
  %s39 = scalar_lea.vmem %s1, 72
  %v40 = vld [vmem:[%s39] sm:$0xf]
  %v41 = vld [vmem:[%s39 + $0x4] sm:$0xf]
  %v42 = vld [vmem:[%s39 + $0x8] sm:$0xf]
  %v43 = vld [vmem:[%s39 + $0xc] sm:$0xf]
  %v44 = vld [vmem:[%s39 + $0x10] sm:$0xf]
  %v45 = vld [vmem:[%s39 + $0x14] sm:$0xf]
  %v46 = vld [vmem:[%s39 + $0x18] sm:$0xf]
  %v47 = vld [vmem:[%s39 + $0x1c] sm:$0xf]
  %v48 = vld [vmem:[%s39 + $0x20] sm:$0xf]
  %v49 = vld [vmem:[%s39 + $0x24] sm:$0xf]
  %v50 = vld [vmem:[%s39 + $0x28] sm:$0xf]
  %v51 = vld [vmem:[%s39 + $0x2c] sm:$0xf]
  %v52 = vld [vmem:[%s39 + $0x30] sm:$0xf]
  %v53 = vld [vmem:[%s39 + $0x34] sm:$0xf]
  %v54 = vld [vmem:[%s39 + $0x38] sm:$0xf]
  %v55 = vld [vmem:[%s39 + $0x3c] sm:$0xf]
  %v56 = vld [vmem:[%s39 + $0x40] sm:$0xf]
  %v57 = vld [vmem:[%s39 + $0x44] sm:$0xf]
  %v61 = vunpack.c.l.b16 %v18
  %v62 = vunpack.c.h.b16 %v18
  %v63 = vunpack.c.l.b16 %v19
  %v64 = vunpack.c.h.b16 %v19
  %v65 = vunpack.c.l.b16 %v38
  %v66 = vunpack.c.h.b16 %v38
  %v67 = vpack.c.b16 %v63, %v61
  %v68 = vpack.c.b16 %v64, %v62
  %v69 = vpack.c.b16 %v65, %v65
  %v70 = vpack.c.b16 %v66, %v66
  %vm71 = vsmask.f32 7424
  %v73 = vshrl.u32 %v67, 16
  %v75 = vshll.u32 %v67, 16
  %v77 = vrot.slane %v75, 1
  %v78 = vor.u32 %v73, %v77
  %v80 = vshll.u32 %v69, 16
  %v82 = vrot.slane %v80, 1
  %v83 = vsel %vm71, %v78, %v82
  %v85 = vshrl.u32 %v68, 16
  %v87 = vshll.u32 %v68, 16
  %v89 = vrot.slane %v87, 1
  %v90 = vor.u32 %v85, %v89
  %v92 = vshll.u32 %v70, 16
  %v94 = vrot.slane %v92, 1
  %v95 = vsel %vm71, %v90, %v94
  %v115 = vunpack.c.l.b16 %v40
  %v116 = vunpack.c.l.b16 %v41
  %v117 = vunpack.c.l.b16 %v42
  %v118 = vunpack.c.l.b16 %v43
  %v119 = vunpack.c.l.b16 %v44
  %v120 = vunpack.c.l.b16 %v45
  %v121 = vunpack.c.l.b16 %v46
  %v122 = vunpack.c.l.b16 %v47
  %v123 = vunpack.c.l.b16 %v48
  %v124 = vunpack.c.l.b16 %v49
  %v125 = vunpack.c.l.b16 %v50
  %v126 = vunpack.c.l.b16 %v51
  %v127 = vunpack.c.l.b16 %v52
  %v128 = vunpack.c.l.b16 %v53
  %v129 = vunpack.c.l.b16 %v54
  %v130 = vunpack.c.l.b16 %v55
  %v131 = vunpack.c.l.b16 %v56
  %v132 = vunpack.c.l.b16 %v57
  %v133 = vpack.c.b16 %v116, %v115
  %v134 = vpack.c.b16 %v118, %v117
  %v135 = vpack.c.b16 %v120, %v119
  %v136 = vpack.c.b16 %v122, %v121
  %v137 = vpack.c.b16 %v124, %v123
  %v138 = vpack.c.b16 %v126, %v125
  %v139 = vpack.c.b16 %v128, %v127
  %v140 = vpack.c.b16 %v130, %v129
  %v141 = vpack.c.b16 %v132, %v131
  %vm151 = vcmask 130048
  %v153 = vsel %vm151, %v95, 0
  %155 = vmatprep.subr.bf16.mxu0 0
  %156 = vmatpush1.bf16.msra.mxu0 %v133
  %157 = vmatprep.subr.bf16.mxu0 0
  %158 = vmatpush1.bf16.msra.mxu0 %v134
  %159 = vmatprep.subr.bf16.mxu0 0
  %160 = vmatpush1.bf16.msra.mxu0 %v135
  %161 = vmatprep.subr.bf16.mxu0 0
  %162 = vmatpush1.bf16.msra.mxu0 %v136
  %163 = vmatprep.subr.bf16.mxu0 0
  %164 = vmatpush1.bf16.msra.mxu0 %v137
  %165 = vmatprep.subr.bf16.mxu0 0
  %166 = vmatpush1.bf16.msra.mxu0 %v138
  %167 = vmatprep.subr.bf16.mxu0 0
  %168 = vmatpush1.bf16.msra.mxu0 %v139
  %169 = vmatprep.subr.bf16.mxu0 0
  %170 = vmatpush1.bf16.msra.mxu0 %v140
  %171 = vmatprep.subr.bf16.mxu0 0
  %172 = vmatpush1.bf16.msra.mxu0 %v141
  %173 = vmatprep.subr.bf16.mxu0 0
  %174 = vmatpush1.bf16.msra.mxu0 0
  %175 = vmatprep.subr.bf16.mxu0 0
  %176 = vmatpush1.bf16.msra.mxu0 0
  %177 = vmatprep.subr.bf16.mxu0 0
  %178 = vmatpush1.bf16.msra.mxu0 0
  %179 = vmatprep.subr.bf16.mxu0 0
  %180 = vmatpush1.bf16.msra.mxu0 0
  %181 = vmatprep.subr.bf16.mxu0 0
  %182 = vmatpush1.bf16.msra.mxu0 0
  %183 = vmatprep.subr.bf16.mxu0 0
  %184 = vmatpush1.bf16.msra.mxu0 0
  %185 = vmatprep.subr.bf16.mxu0 0
  %186 = vmatpush1.bf16.msra.mxu0 0
  %187 = vmatprep.mubr.bf16.mxu0 %v153
  %188 = vmatmul.mubr.bf16.gmra.mrb[0].mxu0 %v83
  %v189 = vpop.f32.mrb[0].mxu0
  %v190 = vadd.f32 0.0, %v189
  %v191 = vpop.f32.mrb[0].mxu0
  %v192 = vpop.f32.mrb[0].mxu0
  %v193 = vadd.f32 0.0, %v192
  %v194 = vpop.f32.mrb[0].mxu0
  %195 = vdwg.mxu0
  %v215 = vunpack.c.l.b16 %v20
  %v216 = vunpack.c.l.b16 %v21
  %v217 = vunpack.c.l.b16 %v22
  %v218 = vunpack.c.l.b16 %v23
  %v219 = vunpack.c.l.b16 %v24
  %v220 = vunpack.c.l.b16 %v25
  %v221 = vunpack.c.l.b16 %v26
  %v222 = vunpack.c.l.b16 %v27
  %v223 = vunpack.c.l.b16 %v28
  %v224 = vunpack.c.l.b16 %v29
  %v225 = vunpack.c.l.b16 %v30
  %v226 = vunpack.c.l.b16 %v31
  %v227 = vunpack.c.l.b16 %v32
  %v228 = vunpack.c.l.b16 %v33
  %v229 = vunpack.c.l.b16 %v34
  %v230 = vunpack.c.l.b16 %v35
  %v231 = vunpack.c.l.b16 %v36
  %v232 = vunpack.c.l.b16 %v37
  %v233 = vpack.c.b16 %v216, %v215
  %v234 = vpack.c.b16 %v218, %v217
  %v235 = vpack.c.b16 %v220, %v219
  %v236 = vpack.c.b16 %v222, %v221
  %v237 = vpack.c.b16 %v224, %v223
  %v238 = vpack.c.b16 %v226, %v225
  %v239 = vpack.c.b16 %v228, %v227
  %v240 = vpack.c.b16 %v230, %v229
  %v241 = vpack.c.b16 %v232, %v231
  %v251 = vsel %vm151, %v68, 0
  %253 = vmatprep.subr.bf16.mxu0 0
  %254 = vmatpush1.bf16.msra.mxu0 %v233
  %255 = vmatprep.subr.bf16.mxu0 0
  %256 = vmatpush1.bf16.msra.mxu0 %v234
  %257 = vmatprep.subr.bf16.mxu0 0
  %258 = vmatpush1.bf16.msra.mxu0 %v235
  %259 = vmatprep.subr.bf16.mxu0 0
  %260 = vmatpush1.bf16.msra.mxu0 %v236
  %261 = vmatprep.subr.bf16.mxu0 0
  %262 = vmatpush1.bf16.msra.mxu0 %v237
  %263 = vmatprep.subr.bf16.mxu0 0
  %264 = vmatpush1.bf16.msra.mxu0 %v238
  %265 = vmatprep.subr.bf16.mxu0 0
  %266 = vmatpush1.bf16.msra.mxu0 %v239
  %267 = vmatprep.subr.bf16.mxu0 0
  %268 = vmatpush1.bf16.msra.mxu0 %v240
  %269 = vmatprep.subr.bf16.mxu0 0
  %270 = vmatpush1.bf16.msra.mxu0 %v241
  %271 = vmatprep.subr.bf16.mxu0 0
  %272 = vmatpush1.bf16.msra.mxu0 0
  %273 = vmatprep.subr.bf16.mxu0 0
  %274 = vmatpush1.bf16.msra.mxu0 0
  %275 = vmatprep.subr.bf16.mxu0 0
  %276 = vmatpush1.bf16.msra.mxu0 0
  %277 = vmatprep.subr.bf16.mxu0 0
  %278 = vmatpush1.bf16.msra.mxu0 0
  %279 = vmatprep.subr.bf16.mxu0 0
  %280 = vmatpush1.bf16.msra.mxu0 0
  %281 = vmatprep.subr.bf16.mxu0 0
  %282 = vmatpush1.bf16.msra.mxu0 0
  %283 = vmatprep.subr.bf16.mxu0 0
  %284 = vmatpush1.bf16.msra.mxu0 0
  %285 = vmatprep.mubr.bf16.mxu0 %v251
  %286 = vmatmul.mubr.bf16.gmra.mrb[0].mxu0 %v67
  %v287 = vpop.f32.mrb[0].mxu0
  %v288 = vadd.f32 %v190, %v287
  %v289 = vpop.f32.mrb[0].mxu0
  %v290 = vpop.f32.mrb[0].mxu0
  %v291 = vadd.f32 %v193, %v290
  %v292 = vpop.f32.mrb[0].mxu0
  %293 = vdwg.mxu0
  %v294 = vld [vmem:[%s0] sm:$0xee]
  %s295 = scalar_lea.vmem %s1, 144
  %v296 = vld [vmem:[%s295] sm:$0xf]
  %v297 = vld [vmem:[%s295 + $0x4] sm:$0xf]
  %v298 = vld [vmem:[%s295 + $0x8] sm:$0xf]
  %v299 = vld [vmem:[%s295 + $0xc] sm:$0xf]
  %v300 = vld [vmem:[%s295 + $0x10] sm:$0xf]
  %v301 = vld [vmem:[%s295 + $0x14] sm:$0xf]
  %v302 = vld [vmem:[%s295 + $0x18] sm:$0xf]
  %v303 = vld [vmem:[%s295 + $0x1c] sm:$0xf]
  %v304 = vld [vmem:[%s295 + $0x20] sm:$0xf]
  %v305 = vld [vmem:[%s295 + $0x24] sm:$0xf]
  %v306 = vld [vmem:[%s295 + $0x28] sm:$0xf]
  %v307 = vld [vmem:[%s295 + $0x2c] sm:$0xf]
  %v308 = vld [vmem:[%s295 + $0x30] sm:$0xf]
  %v309 = vld [vmem:[%s295 + $0x34] sm:$0xf]
  %v310 = vld [vmem:[%s295 + $0x38] sm:$0xf]
  %v311 = vld [vmem:[%s295 + $0x3c] sm:$0xf]
  %v312 = vld [vmem:[%s295 + $0x40] sm:$0xf]
  %v313 = vld [vmem:[%s295 + $0x44] sm:$0xf]
  %v315 = vunpack.c.l.b16 %v294
  %v316 = vunpack.c.h.b16 %v294
  %v317 = vpack.c.b16 %v63, %v315
  %v318 = vpack.c.b16 %v64, %v316
  %vm319 = vcmask 1046528
  %v320 = vrot.slane %v317, 1
  %v321 = vrot.slane %v69, 1
  %v322 = vsel %vm319, %v320, %v321
  %v323 = vrot.slane %v318, 1
  %v324 = vrot.slane %v70, 1
  %v325 = vsel %vm319, %v323, %v324
  %v345 = vunpack.c.l.b16 %v296
  %v346 = vunpack.c.l.b16 %v297
  %v347 = vunpack.c.l.b16 %v298
  %v348 = vunpack.c.l.b16 %v299
  %v349 = vunpack.c.l.b16 %v300
  %v350 = vunpack.c.l.b16 %v301
  %v351 = vunpack.c.l.b16 %v302
  %v352 = vunpack.c.l.b16 %v303
  %v353 = vunpack.c.l.b16 %v304
  %v354 = vunpack.c.l.b16 %v305
  %v355 = vunpack.c.l.b16 %v306
  %v356 = vunpack.c.l.b16 %v307
  %v357 = vunpack.c.l.b16 %v308
  %v358 = vunpack.c.l.b16 %v309
  %v359 = vunpack.c.l.b16 %v310
  %v360 = vunpack.c.l.b16 %v311
  %v361 = vunpack.c.l.b16 %v312
  %v362 = vunpack.c.l.b16 %v313
  %v363 = vpack.c.b16 %v346, %v345
  %v364 = vpack.c.b16 %v348, %v347
  %v365 = vpack.c.b16 %v350, %v349
  %v366 = vpack.c.b16 %v352, %v351
  %v367 = vpack.c.b16 %v354, %v353
  %v368 = vpack.c.b16 %v356, %v355
  %v369 = vpack.c.b16 %v358, %v357
  %v370 = vpack.c.b16 %v360, %v359
  %v371 = vpack.c.b16 %v362, %v361
  %v382 = vsel %vm151, %v325, 0
  %384 = vmatprep.subr.bf16.mxu0 0
  %385 = vmatpush1.bf16.msra.mxu0 %v363
  %386 = vmatprep.subr.bf16.mxu0 0
  %387 = vmatpush1.bf16.msra.mxu0 %v364
  %388 = vmatprep.subr.bf16.mxu0 0
  %389 = vmatpush1.bf16.msra.mxu0 %v365
  %390 = vmatprep.subr.bf16.mxu0 0
  %391 = vmatpush1.bf16.msra.mxu0 %v366
  %392 = vmatprep.subr.bf16.mxu0 0
  %393 = vmatpush1.bf16.msra.mxu0 %v367
  %394 = vmatprep.subr.bf16.mxu0 0
  %395 = vmatpush1.bf16.msra.mxu0 %v368
  %396 = vmatprep.subr.bf16.mxu0 0
  %397 = vmatpush1.bf16.msra.mxu0 %v369
  %398 = vmatprep.subr.bf16.mxu0 0
  %399 = vmatpush1.bf16.msra.mxu0 %v370
  %400 = vmatprep.subr.bf16.mxu0 0
  %401 = vmatpush1.bf16.msra.mxu0 %v371
  %402 = vmatprep.subr.bf16.mxu0 0
  %403 = vmatpush1.bf16.msra.mxu0 0
  %404 = vmatprep.subr.bf16.mxu0 0
  %405 = vmatpush1.bf16.msra.mxu0 0
  %406 = vmatprep.subr.bf16.mxu0 0
  %407 = vmatpush1.bf16.msra.mxu0 0
  %408 = vmatprep.subr.bf16.mxu0 0
  %409 = vmatpush1.bf16.msra.mxu0 0
  %410 = vmatprep.subr.bf16.mxu0 0
  %411 = vmatpush1.bf16.msra.mxu0 0
  %412 = vmatprep.subr.bf16.mxu0 0
  %413 = vmatpush1.bf16.msra.mxu0 0
  %414 = vmatprep.subr.bf16.mxu0 0
  %415 = vmatpush1.bf16.msra.mxu0 0
  %416 = vmatprep.mubr.bf16.mxu0 %v382
  %417 = vmatmul.mubr.bf16.gmra.mrb[0].mxu0 %v322
  %v418 = vpop.f32.mrb[0].mxu0
  %v419 = vadd.f32 0.0, %v418
  %v420 = vpop.f32.mrb[0].mxu0
  %v421 = vpop.f32.mrb[0].mxu0
  %v422 = vadd.f32 0.0, %v421
  %v423 = vpop.f32.mrb[0].mxu0
  %424 = vdwg.mxu0
  %v425 = vadd.f32 %v288, %v419
  %v426 = vadd.f32 %v291, %v422
  %427 = vst [vmem:[#allocation2] sm:$0xff] %v425
  %428 = vst [vmem:[#allocation2 + $0x8] sm:$0xff] %v426
  %v429 = vadd.f32 %v425, %v426
  %v430 = vrot.slane %v429, 4
  %v431 = vadd.f32 %v429, %v430
  %v432 = vrot.slane %v431, 2
  %v433 = vadd.f32 %v431, %v432
  %v434 = vrot.slane %v433, 1
  %v435 = vadd.f32 %v433, %v434
  %v436 = vadd.f32 %v435, 0.0
  %v437 = vmul.f32 %v425, %v425
  %v438 = vmul.f32 %v426, %v426
  %v439 = vadd.f32 %v437, %v438
  %v440 = vrot.slane %v439, 4
  %v441 = vadd.f32 %v439, %v440
  %v442 = vrot.slane %v441, 2
  %v443 = vadd.f32 %v441, %v442
  %v444 = vrot.slane %v443, 1
  %v445 = vadd.f32 %v443, %v444
  %v446 = vadd.f32 %v445, 0.0
  %s447 = scalar_lea.vmem %s0, 24
  %v448 = vld [vmem:[%s447] sm:$0xff]
  %v449 = vld [vmem:[%s447 + $0x8] sm:$0xff]
  %v450 = vld [vmem:[%s1] sm:$0xf]
  %v451 = vld [vmem:[%s1 + $0x4] sm:$0xf]
  %v452 = vld [vmem:[%s1 + $0x8] sm:$0xf]
  %v453 = vld [vmem:[%s1 + $0xc] sm:$0xf]
  %v454 = vld [vmem:[%s1 + $0x10] sm:$0xf]
  %v455 = vld [vmem:[%s1 + $0x14] sm:$0xf]
  %v456 = vld [vmem:[%s1 + $0x18] sm:$0xf]
  %v457 = vld [vmem:[%s1 + $0x1c] sm:$0xf]
  %v458 = vld [vmem:[%s1 + $0x20] sm:$0xf]
  %v459 = vld [vmem:[%s1 + $0x24] sm:$0xf]
  %v460 = vld [vmem:[%s1 + $0x28] sm:$0xf]
  %v461 = vld [vmem:[%s1 + $0x2c] sm:$0xf]
  %v462 = vld [vmem:[%s1 + $0x30] sm:$0xf]
  %v463 = vld [vmem:[%s1 + $0x34] sm:$0xf]
  %v464 = vld [vmem:[%s1 + $0x38] sm:$0xf]
  %v465 = vld [vmem:[%s1 + $0x3c] sm:$0xf]
  %v466 = vld [vmem:[%s1 + $0x40] sm:$0xf]
  %v467 = vld [vmem:[%s1 + $0x44] sm:$0xf]
  %v468 = vld [vmem:[%s447 + $0x10] sm:$0x11]
  %v469 = vld [vmem:[%s39] sm:$0xf]
  %v470 = vld [vmem:[%s39 + $0x4] sm:$0xf]
  %v471 = vld [vmem:[%s39 + $0x8] sm:$0xf]
  %v472 = vld [vmem:[%s39 + $0xc] sm:$0xf]
  %v473 = vld [vmem:[%s39 + $0x10] sm:$0xf]
  %v474 = vld [vmem:[%s39 + $0x14] sm:$0xf]
  %v475 = vld [vmem:[%s39 + $0x18] sm:$0xf]
  %v476 = vld [vmem:[%s39 + $0x1c] sm:$0xf]
  %v477 = vld [vmem:[%s39 + $0x20] sm:$0xf]
  %v478 = vld [vmem:[%s39 + $0x24] sm:$0xf]
  %v479 = vld [vmem:[%s39 + $0x28] sm:$0xf]
  %v480 = vld [vmem:[%s39 + $0x2c] sm:$0xf]
  %v481 = vld [vmem:[%s39 + $0x30] sm:$0xf]
  %v482 = vld [vmem:[%s39 + $0x34] sm:$0xf]
  %v483 = vld [vmem:[%s39 + $0x38] sm:$0xf]
  %v484 = vld [vmem:[%s39 + $0x3c] sm:$0xf]
  %v485 = vld [vmem:[%s39 + $0x40] sm:$0xf]
  %v486 = vld [vmem:[%s39 + $0x44] sm:$0xf]
  %v490 = vunpack.c.l.b16 %v448
  %v491 = vunpack.c.h.b16 %v448
  %v492 = vunpack.c.l.b16 %v449
  %v493 = vunpack.c.h.b16 %v449
  %v494 = vunpack.c.l.b16 %v468
  %v495 = vunpack.c.h.b16 %v468
  %v496 = vpack.c.b16 %v492, %v490
  %v497 = vpack.c.b16 %v493, %v491
  %v498 = vpack.c.b16 %v494, %v494
  %v499 = vpack.c.b16 %v495, %v495
  %v501 = vshrl.u32 %v496, 16
  %v503 = vshll.u32 %v496, 16
  %v505 = vrot.slane %v503, 1
  %v506 = vor.u32 %v501, %v505
  %v508 = vshll.u32 %v498, 16
  %v510 = vrot.slane %v508, 1
  %v511 = vsel %vm71, %v506, %v510
  %v513 = vshrl.u32 %v497, 16
  %v515 = vshll.u32 %v497, 16
  %v517 = vrot.slane %v515, 1
  %v518 = vor.u32 %v513, %v517
  %v520 = vshll.u32 %v499, 16
  %v522 = vrot.slane %v520, 1
  %v523 = vsel %vm71, %v518, %v522
  %v543 = vunpack.c.l.b16 %v469
  %v544 = vunpack.c.l.b16 %v470
  %v545 = vunpack.c.l.b16 %v471
  %v546 = vunpack.c.l.b16 %v472
  %v547 = vunpack.c.l.b16 %v473
  %v548 = vunpack.c.l.b16 %v474
  %v549 = vunpack.c.l.b16 %v475
  %v550 = vunpack.c.l.b16 %v476
  %v551 = vunpack.c.l.b16 %v477
  %v552 = vunpack.c.l.b16 %v478
  %v553 = vunpack.c.l.b16 %v479
  %v554 = vunpack.c.l.b16 %v480
  %v555 = vunpack.c.l.b16 %v481
  %v556 = vunpack.c.l.b16 %v482
  %v557 = vunpack.c.l.b16 %v483
  %v558 = vunpack.c.l.b16 %v484
  %v559 = vunpack.c.l.b16 %v485
  %v560 = vunpack.c.l.b16 %v486
  %v561 = vpack.c.b16 %v544, %v543
  %v562 = vpack.c.b16 %v546, %v545
  %v563 = vpack.c.b16 %v548, %v547
  %v564 = vpack.c.b16 %v550, %v549
  %v565 = vpack.c.b16 %v552, %v551
  %v566 = vpack.c.b16 %v554, %v553
  %v567 = vpack.c.b16 %v556, %v555
  %v568 = vpack.c.b16 %v558, %v557
  %v569 = vpack.c.b16 %v560, %v559
  %v580 = vsel %vm151, %v523, 0
  %582 = vmatprep.subr.bf16.mxu0 0
  %583 = vmatpush1.bf16.msra.mxu0 %v561
  %584 = vmatprep.subr.bf16.mxu0 0
  %585 = vmatpush1.bf16.msra.mxu0 %v562
  %586 = vmatprep.subr.bf16.mxu0 0
  %587 = vmatpush1.bf16.msra.mxu0 %v563
  %588 = vmatprep.subr.bf16.mxu0 0
  %589 = vmatpush1.bf16.msra.mxu0 %v564
  %590 = vmatprep.subr.bf16.mxu0 0
  %591 = vmatpush1.bf16.msra.mxu0 %v565
  %592 = vmatprep.subr.bf16.mxu0 0
  %593 = vmatpush1.bf16.msra.mxu0 %v566
  %594 = vmatprep.subr.bf16.mxu0 0
  %595 = vmatpush1.bf16.msra.mxu0 %v567
  %596 = vmatprep.subr.bf16.mxu0 0
  %597 = vmatpush1.bf16.msra.mxu0 %v568
  %598 = vmatprep.subr.bf16.mxu0 0
  %599 = vmatpush1.bf16.msra.mxu0 %v569
  %600 = vmatprep.subr.bf16.mxu0 0
  %601 = vmatpush1.bf16.msra.mxu0 0
  %602 = vmatprep.subr.bf16.mxu0 0
  %603 = vmatpush1.bf16.msra.mxu0 0
  %604 = vmatprep.subr.bf16.mxu0 0
  %605 = vmatpush1.bf16.msra.mxu0 0
  %606 = vmatprep.subr.bf16.mxu0 0
  %607 = vmatpush1.bf16.msra.mxu0 0
  %608 = vmatprep.subr.bf16.mxu0 0
  %609 = vmatpush1.bf16.msra.mxu0 0
  %610 = vmatprep.subr.bf16.mxu0 0
  %611 = vmatpush1.bf16.msra.mxu0 0
  %612 = vmatprep.subr.bf16.mxu0 0
  %613 = vmatpush1.bf16.msra.mxu0 0
  %614 = vmatprep.mubr.bf16.mxu0 %v580
  %615 = vmatmul.mubr.bf16.gmra.mrb[0].mxu0 %v511
  %v616 = vpop.f32.mrb[0].mxu0
  %v617 = vadd.f32 0.0, %v616
  %v618 = vpop.f32.mrb[0].mxu0
  %v619 = vpop.f32.mrb[0].mxu0
  %v620 = vadd.f32 0.0, %v619
  %v621 = vpop.f32.mrb[0].mxu0
  %622 = vdwg.mxu0
  %v642 = vunpack.c.l.b16 %v450
  %v643 = vunpack.c.l.b16 %v451
  %v644 = vunpack.c.l.b16 %v452
  %v645 = vunpack.c.l.b16 %v453
  %v646 = vunpack.c.l.b16 %v454
  %v647 = vunpack.c.l.b16 %v455
  %v648 = vunpack.c.l.b16 %v456
  %v649 = vunpack.c.l.b16 %v457
  %v650 = vunpack.c.l.b16 %v458
  %v651 = vunpack.c.l.b16 %v459
  %v652 = vunpack.c.l.b16 %v460
  %v653 = vunpack.c.l.b16 %v461
  %v654 = vunpack.c.l.b16 %v462
  %v655 = vunpack.c.l.b16 %v463
  %v656 = vunpack.c.l.b16 %v464
  %v657 = vunpack.c.l.b16 %v465
  %v658 = vunpack.c.l.b16 %v466
  %v659 = vunpack.c.l.b16 %v467
  %v660 = vpack.c.b16 %v643, %v642
  %v661 = vpack.c.b16 %v645, %v644
  %v662 = vpack.c.b16 %v647, %v646
  %v663 = vpack.c.b16 %v649, %v648
  %v664 = vpack.c.b16 %v651, %v650
  %v665 = vpack.c.b16 %v653, %v652
  %v666 = vpack.c.b16 %v655, %v654
  %v667 = vpack.c.b16 %v657, %v656
  %v668 = vpack.c.b16 %v659, %v658
  %v678 = vsel %vm151, %v497, 0
  %680 = vmatprep.subr.bf16.mxu0 0
  %681 = vmatpush1.bf16.msra.mxu0 %v660
  %682 = vmatprep.subr.bf16.mxu0 0
  %683 = vmatpush1.bf16.msra.mxu0 %v661
  %684 = vmatprep.subr.bf16.mxu0 0
  %685 = vmatpush1.bf16.msra.mxu0 %v662
  %686 = vmatprep.subr.bf16.mxu0 0
  %687 = vmatpush1.bf16.msra.mxu0 %v663
  %688 = vmatprep.subr.bf16.mxu0 0
  %689 = vmatpush1.bf16.msra.mxu0 %v664
  %690 = vmatprep.subr.bf16.mxu0 0
  %691 = vmatpush1.bf16.msra.mxu0 %v665
  %692 = vmatprep.subr.bf16.mxu0 0
  %693 = vmatpush1.bf16.msra.mxu0 %v666
  %694 = vmatprep.subr.bf16.mxu0 0
  %695 = vmatpush1.bf16.msra.mxu0 %v667
  %696 = vmatprep.subr.bf16.mxu0 0
  %697 = vmatpush1.bf16.msra.mxu0 %v668
  %698 = vmatprep.subr.bf16.mxu0 0
  %699 = vmatpush1.bf16.msra.mxu0 0
  %700 = vmatprep.subr.bf16.mxu0 0
  %701 = vmatpush1.bf16.msra.mxu0 0
  %702 = vmatprep.subr.bf16.mxu0 0
  %703 = vmatpush1.bf16.msra.mxu0 0
  %704 = vmatprep.subr.bf16.mxu0 0
  %705 = vmatpush1.bf16.msra.mxu0 0
  %706 = vmatprep.subr.bf16.mxu0 0
  %707 = vmatpush1.bf16.msra.mxu0 0
  %708 = vmatprep.subr.bf16.mxu0 0
  %709 = vmatpush1.bf16.msra.mxu0 0
  %710 = vmatprep.subr.bf16.mxu0 0
  %711 = vmatpush1.bf16.msra.mxu0 0
  %712 = vmatprep.mubr.bf16.mxu0 %v678
  %713 = vmatmul.mubr.bf16.gmra.mrb[0].mxu0 %v496
  %v714 = vpop.f32.mrb[0].mxu0
  %v715 = vadd.f32 %v617, %v714
  %v716 = vpop.f32.mrb[0].mxu0
  %v717 = vpop.f32.mrb[0].mxu0
  %v718 = vadd.f32 %v620, %v717
  %v719 = vpop.f32.mrb[0].mxu0
  %720 = vdwg.mxu0
  %v721 = vld [vmem:[%s447] sm:$0xee]
  %v722 = vld [vmem:[%s295] sm:$0xf]
  %v723 = vld [vmem:[%s295 + $0x4] sm:$0xf]
  %v724 = vld [vmem:[%s295 + $0x8] sm:$0xf]
  %v725 = vld [vmem:[%s295 + $0xc] sm:$0xf]
  %v726 = vld [vmem:[%s295 + $0x10] sm:$0xf]
  %v727 = vld [vmem:[%s295 + $0x14] sm:$0xf]
  %v728 = vld [vmem:[%s295 + $0x18] sm:$0xf]
  %v729 = vld [vmem:[%s295 + $0x1c] sm:$0xf]
  %v730 = vld [vmem:[%s295 + $0x20] sm:$0xf]
  %v731 = vld [vmem:[%s295 + $0x24] sm:$0xf]
  %v732 = vld [vmem:[%s295 + $0x28] sm:$0xf]
  %v733 = vld [vmem:[%s295 + $0x2c] sm:$0xf]
  %v734 = vld [vmem:[%s295 + $0x30] sm:$0xf]
  %v735 = vld [vmem:[%s295 + $0x34] sm:$0xf]
  %v736 = vld [vmem:[%s295 + $0x38] sm:$0xf]
  %v737 = vld [vmem:[%s295 + $0x3c] sm:$0xf]
  %v738 = vld [vmem:[%s295 + $0x40] sm:$0xf]
  %v739 = vld [vmem:[%s295 + $0x44] sm:$0xf]
  %v741 = vunpack.c.l.b16 %v721
  %v742 = vunpack.c.h.b16 %v721
  %v743 = vpack.c.b16 %v492, %v741
  %v744 = vpack.c.b16 %v493, %v742
  %v745 = vrot.slane %v743, 1
  %v746 = vrot.slane %v498, 1
  %v747 = vsel %vm319, %v745, %v746
  %v748 = vrot.slane %v744, 1
  %v749 = vrot.slane %v499, 1
  %v750 = vsel %vm319, %v748, %v749
  %v770 = vunpack.c.l.b16 %v722
  %v771 = vunpack.c.l.b16 %v723
  %v772 = vunpack.c.l.b16 %v724
  %v773 = vunpack.c.l.b16 %v725
  %v774 = vunpack.c.l.b16 %v726
  %v775 = vunpack.c.l.b16 %v727
  %v776 = vunpack.c.l.b16 %v728
  %v777 = vunpack.c.l.b16 %v729
  %v778 = vunpack.c.l.b16 %v730
  %v779 = vunpack.c.l.b16 %v731
  %v780 = vunpack.c.l.b16 %v732
  %v781 = vunpack.c.l.b16 %v733
  %v782 = vunpack.c.l.b16 %v734
  %v783 = vunpack.c.l.b16 %v735
  %v784 = vunpack.c.l.b16 %v736
  %v785 = vunpack.c.l.b16 %v737
  %v786 = vunpack.c.l.b16 %v738
  %v787 = vunpack.c.l.b16 %v739
  %v788 = vpack.c.b16 %v771, %v770
  %v789 = vpack.c.b16 %v773, %v772
  %v790 = vpack.c.b16 %v775, %v774
  %v791 = vpack.c.b16 %v777, %v776
  %v792 = vpack.c.b16 %v779, %v778
  %v793 = vpack.c.b16 %v781, %v780
  %v794 = vpack.c.b16 %v783, %v782
  %v795 = vpack.c.b16 %v785, %v784
  %v796 = vpack.c.b16 %v787, %v786
  %v807 = vsel %vm151, %v750, 0
  %809 = vmatprep.subr.bf16.mxu0 0
  %810 = vmatpush1.bf16.msra.mxu0 %v788
  %811 = vmatprep.subr.bf16.mxu0 0
  %812 = vmatpush1.bf16.msra.mxu0 %v789
  %813 = vmatprep.subr.bf16.mxu0 0
  %814 = vmatpush1.bf16.msra.mxu0 %v790
  %815 = vmatprep.subr.bf16.mxu0 0
  %816 = vmatpush1.bf16.msra.mxu0 %v791
  %817 = vmatprep.subr.bf16.mxu0 0
  %818 = vmatpush1.bf16.msra.mxu0 %v792
  %819 = vmatprep.subr.bf16.mxu0 0
  %820 = vmatpush1.bf16.msra.mxu0 %v793
  %821 = vmatprep.subr.bf16.mxu0 0
  %822 = vmatpush1.bf16.msra.mxu0 %v794
  %823 = vmatprep.subr.bf16.mxu0 0
  %824 = vmatpush1.bf16.msra.mxu0 %v795
  %825 = vmatprep.subr.bf16.mxu0 0
  %826 = vmatpush1.bf16.msra.mxu0 %v796
  %827 = vmatprep.subr.bf16.mxu0 0
  %828 = vmatpush1.bf16.msra.mxu0 0
  %829 = vmatprep.subr.bf16.mxu0 0
  %830 = vmatpush1.bf16.msra.mxu0 0
  %831 = vmatprep.subr.bf16.mxu0 0
  %832 = vmatpush1.bf16.msra.mxu0 0
  %833 = vmatprep.subr.bf16.mxu0 0
  %834 = vmatpush1.bf16.msra.mxu0 0
  %835 = vmatprep.subr.bf16.mxu0 0
  %836 = vmatpush1.bf16.msra.mxu0 0
  %837 = vmatprep.subr.bf16.mxu0 0
  %838 = vmatpush1.bf16.msra.mxu0 0
  %839 = vmatprep.subr.bf16.mxu0 0
  %840 = vmatpush1.bf16.msra.mxu0 0
  %841 = vmatprep.mubr.bf16.mxu0 %v807
  %842 = vmatmul.mubr.bf16.gmra.mrb[0].mxu0 %v747
  %v843 = vpop.f32.mrb[0].mxu0
  %v844 = vadd.f32 0.0, %v843
  %v845 = vpop.f32.mrb[0].mxu0
  %v846 = vpop.f32.mrb[0].mxu0
  %v847 = vadd.f32 0.0, %v846
  %v848 = vpop.f32.mrb[0].mxu0
  %849 = vdwg.mxu0
  %v850 = vadd.f32 %v715, %v844
  %v851 = vadd.f32 %v718, %v847
  %s852 = scalar_lea.vmem [#allocation2], 16
  %853 = vst [vmem:[%s852] sm:$0xff] %v850
  %854 = vst [vmem:[%s852 + $0x8] sm:$0xff] %v851
  %v855 = vadd.f32 %v850, %v851
  %v856 = vrot.slane %v855, 4
  %v857 = vadd.f32 %v855, %v856
  %v858 = vrot.slane %v857, 2
  %v859 = vadd.f32 %v857, %v858
  %v860 = vrot.slane %v859, 1
  %v861 = vadd.f32 %v859, %v860
  %v862 = vadd.f32 %v436, %v861
  %v863 = vmul.f32 %v850, %v850
  %v864 = vmul.f32 %v851, %v851
  %v865 = vadd.f32 %v863, %v864
  %v866 = vrot.slane %v865, 4
  %v867 = vadd.f32 %v865, %v866
  %v868 = vrot.slane %v867, 2
  %v869 = vadd.f32 %v867, %v868
  %v870 = vrot.slane %v869, 1
  %v871 = vadd.f32 %v869, %v870
  %v872 = vadd.f32 %v446, %v871
  %v873 = vmul.f32 %v862, 0.03125
  %v874 = vmul.f32 %v872, 0.03125
  %v875 = vmul.f32 %v873, %v873
  %v876 = vsub.f32 %v874, %v875
  %v877 = vmax.f32 %v876, 0.0
  %v878 = vld [vmem:[%s2] sm:$0x1]
  %v879 = vadd.f32 %v877, 1e-05
  %v880 = vrsqrt.pop %v879
  %v881 = vmul.f32 %v878, %v880
  %v882 = vld [vmem:[%s3] sm:$0x1]
  %v883 = vmul.f32 %v873, %v881
  %v884 = vsub.f32 %v882, %v883
  %v885 = vld [vmem:[#allocation2] sm:$0xff]
  %v886 = vld [vmem:[#allocation2 + $0x8] sm:$0xff]
  %v888 = vlaneseq
  %v889 = vshrl.u32 %v888, 7
  %v890 = vsub.s32 0, %v889
  %v891 = vrot.slane %v881, %v890
  %v893 = vmul.f32 %v885, %v891
  %v894 = vmul.f32 %v886, %v891
  %v896 = vlaneseq
  %v897 = vshrl.u32 %v896, 7
  %v898 = vsub.s32 0, %v897
  %v899 = vrot.slane %v884, %v898
  %v901 = vadd.f32 %v893, %v899
  %v902 = vadd.f32 %v894, %v899
  %vm903 = vcmp.ge.f32.partialorder %v901, 0.0
  %vm904 = vcmp.ge.f32.partialorder %v902, 0.0
  %v905 = vmul.f32 %v901, 0.01
  %v906 = vmul.f32 %v902, 0.01
  %v907 = vsel %vm903, %v901, %v905
  %v908 = vsel %vm904, %v902, %v906
  %v909 = vpack.c.bf16 %v908, %v907
  %v911 = vunpack.c.l.b16 %v909
  %v912 = vunpack.c.h.b16 %v909
  %v913 = vpack.c.b16 %v911, %v911
  %v914 = vpack.c.b16 %v912, %v912
  %917 = vst [vmem:[%s4] sm:$0xf] %v913
  %918 = vst [vmem:[%s4 + $0x4] sm:$0xf] %v914
  %v919 = vld [vmem:[%s852] sm:$0xff]
  %v920 = vld [vmem:[%s852 + $0x8] sm:$0xff]
  %v921 = vmul.f32 %v919, %v891
  %v922 = vmul.f32 %v920, %v891
  %v923 = vadd.f32 %v921, %v899
  %v924 = vadd.f32 %v922, %v899
  %vm925 = vcmp.ge.f32.partialorder %v923, 0.0
  %vm926 = vcmp.ge.f32.partialorder %v924, 0.0
  %v927 = vmul.f32 %v923, 0.01
  %v928 = vmul.f32 %v924, 0.01
  %v929 = vsel %vm925, %v923, %v927
  %v930 = vsel %vm926, %v924, %v928
  %v931 = vpack.c.bf16 %v930, %v929
  %v933 = vunpack.c.l.b16 %v931
  %v934 = vunpack.c.h.b16 %v931
  %v935 = vpack.c.b16 %v933, %v933
  %v936 = vpack.c.b16 %v934, %v934
  %s939 = scalar_lea.vmem %s4, 8
  %940 = vst [vmem:[%s939] sm:$0xf] %v935
  %941 = vst [vmem:[%s939 + $0x4] sm:$0xf] %v936
  // Predicated region
  $region18: #{prototype_forward.11} parent=0 // pred_check
    _
  $region19: #{prototype_forward.11} parent=0 // pred_check_branch
    %943 = sbr.rel (0) target = $region21
  $region20: #{prototype_forward.11} parent=0 // pred_region
    _
  $region21: #{prototype_forward.11} parent=0 // pred_fallthru
    _
  // Predicated region
  $region22: #{prototype_forward.11} parent=0 // pred_check
    _
  $region23: #{prototype_forward.11} parent=0 // pred_check_branch
    %945 = sbr.rel (0) target = $region25
  $region24: #{prototype_forward.11} parent=0 // pred_region
    _
  $region25: #{prototype_forward.11} parent=0 // pred_fallthru
    _

// kernel: prototype_forward.12
$region0: #{prototype_forward.12}
  #allocation0 [shape = 'u32[]', space=smem, size = 0x4, offset = 0x4, fixed_abs, tag = 'smem constant byte address 0x4 - core index']
  #allocation1 [shape = 'u32[144,128]{1,0:T(1,128)}', space=vmem, size = 0x12000, scoped, tag = 'internal scratch']
  #allocation2 [shape = 'f32[2,32,128]{2,1,0:T(8,128)}', space=vmem, size = 0x8000, scoped, tag = 'scratch operand']
  %s0 = inlined_call_operand.vmem [shape: bf16[2,34,192], index: 0, kind: input, shape index: {}]
  %s1 = inlined_call_operand.vmem [shape: bf16[3,192,128], index: 1, kind: input, shape index: {}]
  %s2 = inlined_call_operand.vmem [shape: f32[1,128], index: 2, kind: input, shape index: {}]
  %s3 = inlined_call_operand.vmem [shape: f32[1,128], index: 3, kind: input, shape index: {}]
  %s4 = inlined_call_operand.vmem [shape: bf16[2,32,128], index: 4, kind: output, shape index: {}]
  %s5 = sld [smem:[#allocation0]]
  $region26: #{prototype_forward.12} parent=0
    _
  %s7 = ssub.s32 1, %s5
  %s8 = scalar_select 0, %s7, %s5
  // Predicated region
  $region2: #{prototype_forward.12} parent=0 // pred_check
    _
  $region3: #{prototype_forward.12} parent=0 // pred_check_branch
    %10 = sbr.rel (0) target = $region5
  $region4: #{prototype_forward.12} parent=0 // pred_region
    _
  $region5: #{prototype_forward.12} parent=0 // pred_fallthru
    _
  // Predicated region
  $region6: #{prototype_forward.12} parent=0 // pred_check
    _
  $region7: #{prototype_forward.12} parent=0 // pred_check_branch
    %12 = sbr.rel (0) target = $region9
  $region8: #{prototype_forward.12} parent=0 // pred_region
    _
  $region9: #{prototype_forward.12} parent=0 // pred_fallthru
    _
  // Predicated region
  $region10: #{prototype_forward.12} parent=0 // pred_check
    _
  $region11: #{prototype_forward.12} parent=0 // pred_check_branch
    %14 = sbr.rel (0) target = $region13
  $region12: #{prototype_forward.12} parent=0 // pred_region
    _
  $region13: #{prototype_forward.12} parent=0 // pred_fallthru
    _
  // Predicated region
  $region14: #{prototype_forward.12} parent=0 // pred_check
    _
  $region15: #{prototype_forward.12} parent=0 // pred_check_branch
    %16 = sbr.rel (0) target = $region17
  $region16: #{prototype_forward.12} parent=0 // pred_region
    _
  $region17: #{prototype_forward.12} parent=0 // pred_fallthru
    _
  %v18 = vld [vmem:[%s0] sm:$0xff]
  %v19 = vld [vmem:[%s0 + $0x8] sm:$0xff]
  %v20 = vld [vmem:[%s0 + $0x10] sm:$0xff]
  %v21 = vld [vmem:[%s0 + $0x18] sm:$0xff]
  %v22 = vld [vmem:[%s1] sm:$0xf]
  %v23 = vld [vmem:[%s1 + $0x4] sm:$0xf]
  %v24 = vld [vmem:[%s1 + $0x8] sm:$0xf]
  %v25 = vld [vmem:[%s1 + $0xc] sm:$0xf]
  %v26 = vld [vmem:[%s1 + $0x10] sm:$0xf]
  %v27 = vld [vmem:[%s1 + $0x14] sm:$0xf]
  %v28 = vld [vmem:[%s1 + $0x18] sm:$0xf]
  %v29 = vld [vmem:[%s1 + $0x1c] sm:$0xf]
  %v30 = vld [vmem:[%s1 + $0x20] sm:$0xf]
  %v31 = vld [vmem:[%s1 + $0x24] sm:$0xf]
  %v32 = vld [vmem:[%s1 + $0x28] sm:$0xf]
  %v33 = vld [vmem:[%s1 + $0x2c] sm:$0xf]
  %v34 = vld [vmem:[%s1 + $0x30] sm:$0xf]
  %v35 = vld [vmem:[%s1 + $0x34] sm:$0xf]
  %v36 = vld [vmem:[%s1 + $0x38] sm:$0xf]
  %v37 = vld [vmem:[%s1 + $0x3c] sm:$0xf]
  %v38 = vld [vmem:[%s1 + $0x40] sm:$0xf]
  %v39 = vld [vmem:[%s1 + $0x44] sm:$0xf]
  %v40 = vld [vmem:[%s1 + $0x48] sm:$0xf]
  %v41 = vld [vmem:[%s1 + $0x4c] sm:$0xf]
  %v42 = vld [vmem:[%s1 + $0x50] sm:$0xf]
  %v43 = vld [vmem:[%s1 + $0x54] sm:$0xf]
  %v44 = vld [vmem:[%s1 + $0x58] sm:$0xf]
  %v45 = vld [vmem:[%s1 + $0x5c] sm:$0xf]
  %v46 = vld [vmem:[%s0 + $0x20] sm:$0x11]
  %s47 = scalar_lea.vmem %s1, 96
  %v48 = vld [vmem:[%s47] sm:$0xf]
  %v49 = vld [vmem:[%s47 + $0x4] sm:$0xf]
  %v50 = vld [vmem:[%s47 + $0x8] sm:$0xf]
  %v51 = vld [vmem:[%s47 + $0xc] sm:$0xf]
  %v52 = vld [vmem:[%s47 + $0x10] sm:$0xf]
  %v53 = vld [vmem:[%s47 + $0x14] sm:$0xf]
  %v54 = vld [vmem:[%s47 + $0x18] sm:$0xf]
  %v55 = vld [vmem:[%s47 + $0x1c] sm:$0xf]
  %v56 = vld [vmem:[%s47 + $0x20] sm:$0xf]
  %v57 = vld [vmem:[%s47 + $0x24] sm:$0xf]
  %v58 = vld [vmem:[%s47 + $0x28] sm:$0xf]
  %v59 = vld [vmem:[%s47 + $0x2c] sm:$0xf]
  %v60 = vld [vmem:[%s47 + $0x30] sm:$0xf]
  %v61 = vld [vmem:[%s47 + $0x34] sm:$0xf]
  %v62 = vld [vmem:[%s47 + $0x38] sm:$0xf]
  %v63 = vld [vmem:[%s47 + $0x3c] sm:$0xf]
  %v64 = vld [vmem:[%s47 + $0x40] sm:$0xf]
  %v65 = vld [vmem:[%s47 + $0x44] sm:$0xf]
  %v66 = vld [vmem:[%s47 + $0x48] sm:$0xf]
  %v67 = vld [vmem:[%s47 + $0x4c] sm:$0xf]
  %v68 = vld [vmem:[%s47 + $0x50] sm:$0xf]
  %v69 = vld [vmem:[%s47 + $0x54] sm:$0xf]
  %v70 = vld [vmem:[%s47 + $0x58] sm:$0xf]
  %v71 = vld [vmem:[%s47 + $0x5c] sm:$0xf]
  %v77 = vunpack.c.l.b16 %v18
  %v78 = vunpack.c.h.b16 %v18
  %v79 = vunpack.c.l.b16 %v19
  %v80 = vunpack.c.h.b16 %v19
  %v81 = vunpack.c.l.b16 %v20
  %v82 = vunpack.c.h.b16 %v20
  %v83 = vunpack.c.l.b16 %v21
  %v84 = vunpack.c.h.b16 %v21
  %v85 = vunpack.c.l.b16 %v46
  %v86 = vunpack.c.h.b16 %v46
  %v87 = vpack.c.b16 %v79, %v77
  %v88 = vpack.c.b16 %v80, %v78
  %v89 = vpack.c.b16 %v83, %v81
  %v90 = vpack.c.b16 %v84, %v82
  %v91 = vpack.c.b16 %v85, %v85
  %v92 = vpack.c.b16 %v86, %v86
  %vm93 = vsmask.f32 7424
  %v95 = vshrl.u32 %v87, 16
  %v97 = vshll.u32 %v87, 16
  %v99 = vrot.slane %v97, 1
  %v100 = vor.u32 %v95, %v99
  %v102 = vshll.u32 %v89, 16
  %v104 = vrot.slane %v102, 1
  %v105 = vsel %vm93, %v100, %v104
  %v107 = vshrl.u32 %v88, 16
  %v109 = vshll.u32 %v88, 16
  %v111 = vrot.slane %v109, 1
  %v112 = vor.u32 %v107, %v111
  %v114 = vshll.u32 %v90, 16
  %v116 = vrot.slane %v114, 1
  %v117 = vsel %vm93, %v112, %v116
  %v118 = vshrl.u32 %v89, 16
  %v120 = vor.u32 %v118, %v104
  %v122 = vshll.u32 %v91, 16
  %v124 = vrot.slane %v122, 1
  %v125 = vsel %vm93, %v120, %v124
  %v126 = vshrl.u32 %v90, 16
  %v128 = vor.u32 %v126, %v116
  %v130 = vshll.u32 %v92, 16
  %v132 = vrot.slane %v130, 1
  %v133 = vsel %vm93, %v128, %v132
  %v160 = vunpack.c.l.b16 %v48
  %v161 = vunpack.c.l.b16 %v49
  %v162 = vunpack.c.l.b16 %v50
  %v163 = vunpack.c.l.b16 %v51
  %v164 = vunpack.c.l.b16 %v52
  %v165 = vunpack.c.l.b16 %v53
  %v166 = vunpack.c.l.b16 %v54
  %v167 = vunpack.c.l.b16 %v55
  %v168 = vunpack.c.l.b16 %v56
  %v169 = vunpack.c.l.b16 %v57
  %v170 = vunpack.c.l.b16 %v58
  %v171 = vunpack.c.l.b16 %v59
  %v172 = vunpack.c.l.b16 %v60
  %v173 = vunpack.c.l.b16 %v61
  %v174 = vunpack.c.l.b16 %v62
  %v175 = vunpack.c.l.b16 %v63
  %v176 = vunpack.c.l.b16 %v64
  %v177 = vunpack.c.l.b16 %v65
  %v178 = vunpack.c.l.b16 %v66
  %v179 = vunpack.c.l.b16 %v67
  %v180 = vunpack.c.l.b16 %v68
  %v181 = vunpack.c.l.b16 %v69
  %v182 = vunpack.c.l.b16 %v70
  %v183 = vunpack.c.l.b16 %v71
  %v184 = vpack.c.b16 %v161, %v160
  %v185 = vpack.c.b16 %v163, %v162
  %v186 = vpack.c.b16 %v165, %v164
  %v187 = vpack.c.b16 %v167, %v166
  %v188 = vpack.c.b16 %v169, %v168
  %v189 = vpack.c.b16 %v171, %v170
  %v190 = vpack.c.b16 %v173, %v172
  %v191 = vpack.c.b16 %v175, %v174
  %v192 = vpack.c.b16 %v177, %v176
  %v193 = vpack.c.b16 %v179, %v178
  %v194 = vpack.c.b16 %v181, %v180
  %v195 = vpack.c.b16 %v183, %v182
  %vm208 = vcmask 523264
  %v210 = vsel %vm208, %v117, 0
  %v213 = vsel %vm208, %v133, 0
  %215 = vmatprep.subr.bf16.mxu0 0
  %216 = vmatpush1.bf16.msra.mxu0 %v184
  %217 = vmatprep.subr.bf16.mxu0 0
  %218 = vmatpush1.bf16.msra.mxu0 %v185
  %219 = vmatprep.subr.bf16.mxu0 0
  %220 = vmatpush1.bf16.msra.mxu0 %v186
  %221 = vmatprep.subr.bf16.mxu0 0
  %222 = vmatpush1.bf16.msra.mxu0 %v187
  %223 = vmatprep.subr.bf16.mxu0 0
  %224 = vmatpush1.bf16.msra.mxu0 %v188
  %225 = vmatprep.subr.bf16.mxu0 0
  %226 = vmatpush1.bf16.msra.mxu0 %v189
  %227 = vmatprep.subr.bf16.mxu0 0
  %228 = vmatpush1.bf16.msra.mxu0 %v190
  %229 = vmatprep.subr.bf16.mxu0 0
  %230 = vmatpush1.bf16.msra.mxu0 %v191
  %231 = vmatprep.subr.bf16.mxu0 0
  %232 = vmatpush1.bf16.msra.mxu0 %v192
  %233 = vmatprep.subr.bf16.mxu0 0
  %234 = vmatpush1.bf16.msra.mxu0 %v193
  %235 = vmatprep.subr.bf16.mxu0 0
  %236 = vmatpush1.bf16.msra.mxu0 %v194
  %237 = vmatprep.subr.bf16.mxu0 0
  %238 = vmatpush1.bf16.msra.mxu0 %v195
  %239 = vmatprep.subr.bf16.mxu0 0
  %240 = vmatpush1.bf16.msra.mxu0 0
  %241 = vmatprep.subr.bf16.mxu0 0
  %242 = vmatpush1.bf16.msra.mxu0 0
  %243 = vmatprep.subr.bf16.mxu0 0
  %244 = vmatpush1.bf16.msra.mxu0 0
  %245 = vmatprep.subr.bf16.mxu0 0
  %246 = vmatpush1.bf16.msra.mxu0 0
  %247 = vmatprep.mubr.bf16.mxu0 %v210
  %248 = vmatmul.mubr.bf16.gmra.mrb[0].mxu0 %v105
  %v249 = vpop.f32.mrb[0].mxu0
  %v250 = vadd.f32 0.0, %v249
  %v251 = vpop.f32.mrb[0].mxu0
  %v252 = vpop.f32.mrb[0].mxu0
  %v253 = vadd.f32 0.0, %v252
  %v254 = vpop.f32.mrb[0].mxu0
  %255 = vmatprep.mubr.bf16.mxu0 %v213
  %256 = vmatmul.mubr.bf16.gmra.mrb[0].mxu0 %v125
  %v257 = vpop.f32.mrb[0].mxu0
  %v258 = vadd.f32 0.0, %v257
  %v259 = vpop.f32.mrb[0].mxu0
  %v260 = vpop.f32.mrb[0].mxu0
  %v261 = vadd.f32 0.0, %v260
  %v262 = vpop.f32.mrb[0].mxu0
  %263 = vdwg.mxu0
  %v290 = vunpack.c.l.b16 %v22
  %v291 = vunpack.c.l.b16 %v23
  %v292 = vunpack.c.l.b16 %v24
  %v293 = vunpack.c.l.b16 %v25
  %v294 = vunpack.c.l.b16 %v26
  %v295 = vunpack.c.l.b16 %v27
  %v296 = vunpack.c.l.b16 %v28
  %v297 = vunpack.c.l.b16 %v29
  %v298 = vunpack.c.l.b16 %v30
  %v299 = vunpack.c.l.b16 %v31
  %v300 = vunpack.c.l.b16 %v32
  %v301 = vunpack.c.l.b16 %v33
  %v302 = vunpack.c.l.b16 %v34
  %v303 = vunpack.c.l.b16 %v35
  %v304 = vunpack.c.l.b16 %v36
  %v305 = vunpack.c.l.b16 %v37
  %v306 = vunpack.c.l.b16 %v38
  %v307 = vunpack.c.l.b16 %v39
  %v308 = vunpack.c.l.b16 %v40
  %v309 = vunpack.c.l.b16 %v41
  %v310 = vunpack.c.l.b16 %v42
  %v311 = vunpack.c.l.b16 %v43
  %v312 = vunpack.c.l.b16 %v44
  %v313 = vunpack.c.l.b16 %v45
  %v314 = vpack.c.b16 %v291, %v290
  %v315 = vpack.c.b16 %v293, %v292
  %v316 = vpack.c.b16 %v295, %v294
  %v317 = vpack.c.b16 %v297, %v296
  %v318 = vpack.c.b16 %v299, %v298
  %v319 = vpack.c.b16 %v301, %v300
  %v320 = vpack.c.b16 %v303, %v302
  %v321 = vpack.c.b16 %v305, %v304
  %v322 = vpack.c.b16 %v307, %v306
  %v323 = vpack.c.b16 %v309, %v308
  %v324 = vpack.c.b16 %v311, %v310
  %v325 = vpack.c.b16 %v313, %v312
  %v338 = vsel %vm208, %v88, 0
  %v340 = vsel %vm208, %v90, 0
  %342 = vmatprep.subr.bf16.mxu0 0
  %343 = vmatpush1.bf16.msra.mxu0 %v314
  %344 = vmatprep.subr.bf16.mxu0 0
  %345 = vmatpush1.bf16.msra.mxu0 %v315
  %346 = vmatprep.subr.bf16.mxu0 0
  %347 = vmatpush1.bf16.msra.mxu0 %v316
  %348 = vmatprep.subr.bf16.mxu0 0
  %349 = vmatpush1.bf16.msra.mxu0 %v317
  %350 = vmatprep.subr.bf16.mxu0 0
  %351 = vmatpush1.bf16.msra.mxu0 %v318
  %352 = vmatprep.subr.bf16.mxu0 0
  %353 = vmatpush1.bf16.msra.mxu0 %v319
  %354 = vmatprep.subr.bf16.mxu0 0
  %355 = vmatpush1.bf16.msra.mxu0 %v320
  %356 = vmatprep.subr.bf16.mxu0 0
  %357 = vmatpush1.bf16.msra.mxu0 %v321
  %358 = vmatprep.subr.bf16.mxu0 0
  %359 = vmatpush1.bf16.msra.mxu0 %v322
  %360 = vmatprep.subr.bf16.mxu0 0
  %361 = vmatpush1.bf16.msra.mxu0 %v323
  %362 = vmatprep.subr.bf16.mxu0 0
  %363 = vmatpush1.bf16.msra.mxu0 %v324
  %364 = vmatprep.subr.bf16.mxu0 0
  %365 = vmatpush1.bf16.msra.mxu0 %v325
  %366 = vmatprep.subr.bf16.mxu0 0
  %367 = vmatpush1.bf16.msra.mxu0 0
  %368 = vmatprep.subr.bf16.mxu0 0
  %369 = vmatpush1.bf16.msra.mxu0 0
  %370 = vmatprep.subr.bf16.mxu0 0
  %371 = vmatpush1.bf16.msra.mxu0 0
  %372 = vmatprep.subr.bf16.mxu0 0
  %373 = vmatpush1.bf16.msra.mxu0 0
  %374 = vmatprep.mubr.bf16.mxu0 %v338
  %375 = vmatmul.mubr.bf16.gmra.mrb[0].mxu0 %v87
  %v376 = vpop.f32.mrb[0].mxu0
  %v377 = vadd.f32 %v250, %v376
  %v378 = vpop.f32.mrb[0].mxu0
  %v379 = vpop.f32.mrb[0].mxu0
  %v380 = vadd.f32 %v253, %v379
  %v381 = vpop.f32.mrb[0].mxu0
  %382 = vmatprep.mubr.bf16.mxu0 %v340
  %383 = vmatmul.mubr.bf16.gmra.mrb[0].mxu0 %v89
  %v384 = vpop.f32.mrb[0].mxu0
  %v385 = vadd.f32 %v258, %v384
  %v386 = vpop.f32.mrb[0].mxu0
  %v387 = vpop.f32.mrb[0].mxu0
  %v388 = vadd.f32 %v261, %v387
  %v389 = vpop.f32.mrb[0].mxu0
  %390 = vdwg.mxu0
  %v391 = vld [vmem:[%s0] sm:$0xee]
  %s392 = scalar_lea.vmem %s1, 192
  %v393 = vld [vmem:[%s392] sm:$0xf]
  %v394 = vld [vmem:[%s392 + $0x4] sm:$0xf]
  %v395 = vld [vmem:[%s392 + $0x8] sm:$0xf]
  %v396 = vld [vmem:[%s392 + $0xc] sm:$0xf]
  %v397 = vld [vmem:[%s392 + $0x10] sm:$0xf]
  %v398 = vld [vmem:[%s392 + $0x14] sm:$0xf]
  %v399 = vld [vmem:[%s392 + $0x18] sm:$0xf]
  %v400 = vld [vmem:[%s392 + $0x1c] sm:$0xf]
  %v401 = vld [vmem:[%s392 + $0x20] sm:$0xf]
  %v402 = vld [vmem:[%s392 + $0x24] sm:$0xf]
  %v403 = vld [vmem:[%s392 + $0x28] sm:$0xf]
  %v404 = vld [vmem:[%s392 + $0x2c] sm:$0xf]
  %v405 = vld [vmem:[%s392 + $0x30] sm:$0xf]
  %v406 = vld [vmem:[%s392 + $0x34] sm:$0xf]
  %v407 = vld [vmem:[%s392 + $0x38] sm:$0xf]
  %v408 = vld [vmem:[%s392 + $0x3c] sm:$0xf]
  %v409 = vld [vmem:[%s392 + $0x40] sm:$0xf]
  %v410 = vld [vmem:[%s392 + $0x44] sm:$0xf]
  %v411 = vld [vmem:[%s392 + $0x48] sm:$0xf]
  %v412 = vld [vmem:[%s392 + $0x4c] sm:$0xf]
  %v413 = vld [vmem:[%s392 + $0x50] sm:$0xf]
  %v414 = vld [vmem:[%s392 + $0x54] sm:$0xf]
  %v415 = vld [vmem:[%s392 + $0x58] sm:$0xf]
  %v416 = vld [vmem:[%s392 + $0x5c] sm:$0xf]
  %v418 = vunpack.c.l.b16 %v391
  %v419 = vunpack.c.h.b16 %v391
  %v420 = vpack.c.b16 %v79, %v418
  %v421 = vpack.c.b16 %v80, %v419
  %vm422 = vcmask 1046528
  %v423 = vrot.slane %v420, 1
  %v424 = vrot.slane %v89, 1
  %v425 = vsel %vm422, %v423, %v424
  %v426 = vrot.slane %v421, 1
  %v427 = vrot.slane %v90, 1
  %v428 = vsel %vm422, %v426, %v427
  %v429 = vrot.slane %v91, 1
  %v430 = vsel %vm422, %v424, %v429
  %v431 = vrot.slane %v92, 1
  %v432 = vsel %vm422, %v427, %v431
  %v459 = vunpack.c.l.b16 %v393
  %v460 = vunpack.c.l.b16 %v394
  %v461 = vunpack.c.l.b16 %v395
  %v462 = vunpack.c.l.b16 %v396
  %v463 = vunpack.c.l.b16 %v397
  %v464 = vunpack.c.l.b16 %v398
  %v465 = vunpack.c.l.b16 %v399
  %v466 = vunpack.c.l.b16 %v400
  %v467 = vunpack.c.l.b16 %v401
  %v468 = vunpack.c.l.b16 %v402
  %v469 = vunpack.c.l.b16 %v403
  %v470 = vunpack.c.l.b16 %v404
  %v471 = vunpack.c.l.b16 %v405
  %v472 = vunpack.c.l.b16 %v406
  %v473 = vunpack.c.l.b16 %v407
  %v474 = vunpack.c.l.b16 %v408
  %v475 = vunpack.c.l.b16 %v409
  %v476 = vunpack.c.l.b16 %v410
  %v477 = vunpack.c.l.b16 %v411
  %v478 = vunpack.c.l.b16 %v412
  %v479 = vunpack.c.l.b16 %v413
  %v480 = vunpack.c.l.b16 %v414
  %v481 = vunpack.c.l.b16 %v415
  %v482 = vunpack.c.l.b16 %v416
  %v483 = vpack.c.b16 %v460, %v459
  %v484 = vpack.c.b16 %v462, %v461
  %v485 = vpack.c.b16 %v464, %v463
  %v486 = vpack.c.b16 %v466, %v465
  %v487 = vpack.c.b16 %v468, %v467
  %v488 = vpack.c.b16 %v470, %v469
  %v489 = vpack.c.b16 %v472, %v471
  %v490 = vpack.c.b16 %v474, %v473
  %v491 = vpack.c.b16 %v476, %v475
  %v492 = vpack.c.b16 %v478, %v477
  %v493 = vpack.c.b16 %v480, %v479
  %v494 = vpack.c.b16 %v482, %v481
  %v508 = vsel %vm208, %v428, 0
  %v511 = vsel %vm208, %v432, 0
  %513 = vmatprep.subr.bf16.mxu0 0
  %514 = vmatpush1.bf16.msra.mxu0 %v483
  %515 = vmatprep.subr.bf16.mxu0 0
  %516 = vmatpush1.bf16.msra.mxu0 %v484
  %517 = vmatprep.subr.bf16.mxu0 0
  %518 = vmatpush1.bf16.msra.mxu0 %v485
  %519 = vmatprep.subr.bf16.mxu0 0
  %520 = vmatpush1.bf16.msra.mxu0 %v486
  %521 = vmatprep.subr.bf16.mxu0 0
  %522 = vmatpush1.bf16.msra.mxu0 %v487
  %523 = vmatprep.subr.bf16.mxu0 0
  %524 = vmatpush1.bf16.msra.mxu0 %v488
  %525 = vmatprep.subr.bf16.mxu0 0
  %526 = vmatpush1.bf16.msra.mxu0 %v489
  %527 = vmatprep.subr.bf16.mxu0 0
  %528 = vmatpush1.bf16.msra.mxu0 %v490
  %529 = vmatprep.subr.bf16.mxu0 0
  %530 = vmatpush1.bf16.msra.mxu0 %v491
  %531 = vmatprep.subr.bf16.mxu0 0
  %532 = vmatpush1.bf16.msra.mxu0 %v492
  %533 = vmatprep.subr.bf16.mxu0 0
  %534 = vmatpush1.bf16.msra.mxu0 %v493
  %535 = vmatprep.subr.bf16.mxu0 0
  %536 = vmatpush1.bf16.msra.mxu0 %v494
  %537 = vmatprep.subr.bf16.mxu0 0
  %538 = vmatpush1.bf16.msra.mxu0 0
  %539 = vmatprep.subr.bf16.mxu0 0
  %540 = vmatpush1.bf16.msra.mxu0 0
  %541 = vmatprep.subr.bf16.mxu0 0
  %542 = vmatpush1.bf16.msra.mxu0 0
  %543 = vmatprep.subr.bf16.mxu0 0
  %544 = vmatpush1.bf16.msra.mxu0 0
  %545 = vmatprep.mubr.bf16.mxu0 %v508
  %546 = vmatmul.mubr.bf16.gmra.mrb[0].mxu0 %v425
  %v547 = vpop.f32.mrb[0].mxu0
  %v548 = vadd.f32 0.0, %v547
  %v549 = vpop.f32.mrb[0].mxu0
  %v550 = vpop.f32.mrb[0].mxu0
  %v551 = vadd.f32 0.0, %v550
  %v552 = vpop.f32.mrb[0].mxu0
  %553 = vmatprep.mubr.bf16.mxu0 %v511
  %554 = vmatmul.mubr.bf16.gmra.mrb[0].mxu0 %v430
  %v555 = vpop.f32.mrb[0].mxu0
  %v556 = vadd.f32 0.0, %v555
  %v557 = vpop.f32.mrb[0].mxu0
  %v558 = vpop.f32.mrb[0].mxu0
  %v559 = vadd.f32 0.0, %v558
  %v560 = vpop.f32.mrb[0].mxu0
  %561 = vdwg.mxu0
  %v562 = vadd.f32 %v377, %v548
  %v563 = vadd.f32 %v380, %v551
  %v564 = vadd.f32 %v385, %v556
  %v565 = vadd.f32 %v388, %v559
  %566 = vst [vmem:[#allocation2] sm:$0xff] %v562
  %567 = vst [vmem:[#allocation2 + $0x8] sm:$0xff] %v563
  %568 = vst [vmem:[#allocation2 + $0x10] sm:$0xff] %v564
  %569 = vst [vmem:[#allocation2 + $0x18] sm:$0xff] %v565
  %v570 = vadd.f32 %v562, %v563
  %v571 = vadd.f32 %v570, %v564
  %v572 = vadd.f32 %v571, %v565
  %v573 = vrot.slane %v572, 4
  %v574 = vadd.f32 %v572, %v573
  %v575 = vrot.slane %v574, 2
  %v576 = vadd.f32 %v574, %v575
  %v577 = vrot.slane %v576, 1
  %v578 = vadd.f32 %v576, %v577
  %v579 = vadd.f32 %v578, 0.0
  %v580 = vmul.f32 %v562, %v562
  %v581 = vmul.f32 %v563, %v563
  %v582 = vmul.f32 %v564, %v564
  %v583 = vmul.f32 %v565, %v565
  %v584 = vadd.f32 %v580, %v581
  %v585 = vadd.f32 %v584, %v582
  %v586 = vadd.f32 %v585, %v583
  %v587 = vrot.slane %v586, 4
  %v588 = vadd.f32 %v586, %v587
  %v589 = vrot.slane %v588, 2
  %v590 = vadd.f32 %v588, %v589
  %v591 = vrot.slane %v590, 1
  %v592 = vadd.f32 %v590, %v591
  %v593 = vadd.f32 %v592, 0.0
  %s594 = scalar_lea.vmem %s0, 40
  %v595 = vld [vmem:[%s594] sm:$0xff]
  %v596 = vld [vmem:[%s594 + $0x8] sm:$0xff]
  %v597 = vld [vmem:[%s594 + $0x10] sm:$0xff]
  %v598 = vld [vmem:[%s594 + $0x18] sm:$0xff]
  %v599 = vld [vmem:[%s1] sm:$0xf]
  %v600 = vld [vmem:[%s1 + $0x4] sm:$0xf]
  %v601 = vld [vmem:[%s1 + $0x8] sm:$0xf]
  %v602 = vld [vmem:[%s1 + $0xc] sm:$0xf]
  %v603 = vld [vmem:[%s1 + $0x10] sm:$0xf]
  %v604 = vld [vmem:[%s1 + $0x14] sm:$0xf]
  %v605 = vld [vmem:[%s1 + $0x18] sm:$0xf]
  %v606 = vld [vmem:[%s1 + $0x1c] sm:$0xf]
  %v607 = vld [vmem:[%s1 + $0x20] sm:$0xf]
  %v608 = vld [vmem:[%s1 + $0x24] sm:$0xf]
  %v609 = vld [vmem:[%s1 + $0x28] sm:$0xf]
  %v610 = vld [vmem:[%s1 + $0x2c] sm:$0xf]
  %v611 = vld [vmem:[%s1 + $0x30] sm:$0xf]
  %v612 = vld [vmem:[%s1 + $0x34] sm:$0xf]
  %v613 = vld [vmem:[%s1 + $0x38] sm:$0xf]
  %v614 = vld [vmem:[%s1 + $0x3c] sm:$0xf]
  %v615 = vld [vmem:[%s1 + $0x40] sm:$0xf]
  %v616 = vld [vmem:[%s1 + $0x44] sm:$0xf]
  %v617 = vld [vmem:[%s1 + $0x48] sm:$0xf]
  %v618 = vld [vmem:[%s1 + $0x4c] sm:$0xf]
  %v619 = vld [vmem:[%s1 + $0x50] sm:$0xf]
  %v620 = vld [vmem:[%s1 + $0x54] sm:$0xf]
  %v621 = vld [vmem:[%s1 + $0x58] sm:$0xf]
  %v622 = vld [vmem:[%s1 + $0x5c] sm:$0xf]
  %v623 = vld [vmem:[%s594 + $0x20] sm:$0x11]
  %v624 = vld [vmem:[%s47] sm:$0xf]
  %v625 = vld [vmem:[%s47 + $0x4] sm:$0xf]
  %v626 = vld [vmem:[%s47 + $0x8] sm:$0xf]
  %v627 = vld [vmem:[%s47 + $0xc] sm:$0xf]
  %v628 = vld [vmem:[%s47 + $0x10] sm:$0xf]
  %v629 = vld [vmem:[%s47 + $0x14] sm:$0xf]
  %v630 = vld [vmem:[%s47 + $0x18] sm:$0xf]
  %v631 = vld [vmem:[%s47 + $0x1c] sm:$0xf]
  %v632 = vld [vmem:[%s47 + $0x20] sm:$0xf]
  %v633 = vld [vmem:[%s47 + $0x24] sm:$0xf]
  %v634 = vld [vmem:[%s47 + $0x28] sm:$0xf]
  %v635 = vld [vmem:[%s47 + $0x2c] sm:$0xf]
  %v636 = vld [vmem:[%s47 + $0x30] sm:$0xf]
  %v637 = vld [vmem:[%s47 + $0x34] sm:$0xf]
  %v638 = vld [vmem:[%s47 + $0x38] sm:$0xf]
  %v639 = vld [vmem:[%s47 + $0x3c] sm:$0xf]
  %v640 = vld [vmem:[%s47 + $0x40] sm:$0xf]
  %v641 = vld [vmem:[%s47 + $0x44] sm:$0xf]
  %v642 = vld [vmem:[%s47 + $0x48] sm:$0xf]
  %v643 = vld [vmem:[%s47 + $0x4c] sm:$0xf]
  %v644 = vld [vmem:[%s47 + $0x50] sm:$0xf]
  %v645 = vld [vmem:[%s47 + $0x54] sm:$0xf]
  %v646 = vld [vmem:[%s47 + $0x58] sm:$0xf]
  %v647 = vld [vmem:[%s47 + $0x5c] sm:$0xf]
  %v653 = vunpack.c.l.b16 %v595
  %v654 = vunpack.c.h.b16 %v595
  %v655 = vunpack.c.l.b16 %v596
  %v656 = vunpack.c.h.b16 %v596
  %v657 = vunpack.c.l.b16 %v597
  %v658 = vunpack.c.h.b16 %v597
  %v659 = vunpack.c.l.b16 %v598
  %v660 = vunpack.c.h.b16 %v598
  %v661 = vunpack.c.l.b16 %v623
  %v662 = vunpack.c.h.b16 %v623
  %v663 = vpack.c.b16 %v655, %v653
  %v664 = vpack.c.b16 %v656, %v654
  %v665 = vpack.c.b16 %v659, %v657
  %v666 = vpack.c.b16 %v660, %v658
  %v667 = vpack.c.b16 %v661, %v661
  %v668 = vpack.c.b16 %v662, %v662
  %v670 = vshrl.u32 %v663, 16
  %v672 = vshll.u32 %v663, 16
  %v674 = vrot.slane %v672, 1
  %v675 = vor.u32 %v670, %v674
  %v677 = vshll.u32 %v665, 16
  %v679 = vrot.slane %v677, 1
  %v680 = vsel %vm93, %v675, %v679
  %v682 = vshrl.u32 %v664, 16
  %v684 = vshll.u32 %v664, 16
  %v686 = vrot.slane %v684, 1
  %v687 = vor.u32 %v682, %v686
  %v689 = vshll.u32 %v666, 16
  %v691 = vrot.slane %v689, 1
  %v692 = vsel %vm93, %v687, %v691
  %v693 = vshrl.u32 %v665, 16
  %v695 = vor.u32 %v693, %v679
  %v697 = vshll.u32 %v667, 16
  %v699 = vrot.slane %v697, 1
  %v700 = vsel %vm93, %v695, %v699
  %v701 = vshrl.u32 %v666, 16
  %v703 = vor.u32 %v701, %v691
  %v705 = vshll.u32 %v668, 16
  %v707 = vrot.slane %v705, 1
  %v708 = vsel %vm93, %v703, %v707
  %v735 = vunpack.c.l.b16 %v624
  %v736 = vunpack.c.l.b16 %v625
  %v737 = vunpack.c.l.b16 %v626
  %v738 = vunpack.c.l.b16 %v627
  %v739 = vunpack.c.l.b16 %v628
  %v740 = vunpack.c.l.b16 %v629
  %v741 = vunpack.c.l.b16 %v630
  %v742 = vunpack.c.l.b16 %v631
  %v743 = vunpack.c.l.b16 %v632
  %v744 = vunpack.c.l.b16 %v633
  %v745 = vunpack.c.l.b16 %v634
  %v746 = vunpack.c.l.b16 %v635
  %v747 = vunpack.c.l.b16 %v636
  %v748 = vunpack.c.l.b16 %v637
  %v749 = vunpack.c.l.b16 %v638
  %v750 = vunpack.c.l.b16 %v639
  %v751 = vunpack.c.l.b16 %v640
  %v752 = vunpack.c.l.b16 %v641
  %v753 = vunpack.c.l.b16 %v642
  %v754 = vunpack.c.l.b16 %v643
  %v755 = vunpack.c.l.b16 %v644
  %v756 = vunpack.c.l.b16 %v645
  %v757 = vunpack.c.l.b16 %v646
  %v758 = vunpack.c.l.b16 %v647
  %v759 = vpack.c.b16 %v736, %v735
  %v760 = vpack.c.b16 %v738, %v737
  %v761 = vpack.c.b16 %v740, %v739
  %v762 = vpack.c.b16 %v742, %v741
  %v763 = vpack.c.b16 %v744, %v743
  %v764 = vpack.c.b16 %v746, %v745
  %v765 = vpack.c.b16 %v748, %v747
  %v766 = vpack.c.b16 %v750, %v749
  %v767 = vpack.c.b16 %v752, %v751
  %v768 = vpack.c.b16 %v754, %v753
  %v769 = vpack.c.b16 %v756, %v755
  %v770 = vpack.c.b16 %v758, %v757
  %v784 = vsel %vm208, %v692, 0
  %v787 = vsel %vm208, %v708, 0
  %789 = vmatprep.subr.bf16.mxu0 0
  %790 = vmatpush1.bf16.msra.mxu0 %v759
  %791 = vmatprep.subr.bf16.mxu0 0
  %792 = vmatpush1.bf16.msra.mxu0 %v760
  %793 = vmatprep.subr.bf16.mxu0 0
  %794 = vmatpush1.bf16.msra.mxu0 %v761
  %795 = vmatprep.subr.bf16.mxu0 0
  %796 = vmatpush1.bf16.msra.mxu0 %v762
  %797 = vmatprep.subr.bf16.mxu0 0
  %798 = vmatpush1.bf16.msra.mxu0 %v763
  %799 = vmatprep.subr.bf16.mxu0 0
  %800 = vmatpush1.bf16.msra.mxu0 %v764
  %801 = vmatprep.subr.bf16.mxu0 0
  %802 = vmatpush1.bf16.msra.mxu0 %v765
  %803 = vmatprep.subr.bf16.mxu0 0
  %804 = vmatpush1.bf16.msra.mxu0 %v766
  %805 = vmatprep.subr.bf16.mxu0 0
  %806 = vmatpush1.bf16.msra.mxu0 %v767
  %807 = vmatprep.subr.bf16.mxu0 0
  %808 = vmatpush1.bf16.msra.mxu0 %v768
  %809 = vmatprep.subr.bf16.mxu0 0
  %810 = vmatpush1.bf16.msra.mxu0 %v769
  %811 = vmatprep.subr.bf16.mxu0 0
  %812 = vmatpush1.bf16.msra.mxu0 %v770
  %813 = vmatprep.subr.bf16.mxu0 0
  %814 = vmatpush1.bf16.msra.mxu0 0
  %815 = vmatprep.subr.bf16.mxu0 0
  %816 = vmatpush1.bf16.msra.mxu0 0
  %817 = vmatprep.subr.bf16.mxu0 0
  %818 = vmatpush1.bf16.msra.mxu0 0
  %819 = vmatprep.subr.bf16.mxu0 0
  %820 = vmatpush1.bf16.msra.mxu0 0
  %821 = vmatprep.mubr.bf16.mxu0 %v784
  %822 = vmatmul.mubr.bf16.gmra.mrb[0].mxu0 %v680
  %v823 = vpop.f32.mrb[0].mxu0
  %v824 = vadd.f32 0.0, %v823
  %v825 = vpop.f32.mrb[0].mxu0
  %v826 = vpop.f32.mrb[0].mxu0
  %v827 = vadd.f32 0.0, %v826
  %v828 = vpop.f32.mrb[0].mxu0
  %829 = vmatprep.mubr.bf16.mxu0 %v787
  %830 = vmatmul.mubr.bf16.gmra.mrb[0].mxu0 %v700
  %v831 = vpop.f32.mrb[0].mxu0
  %v832 = vadd.f32 0.0, %v831
  %v833 = vpop.f32.mrb[0].mxu0
  %v834 = vpop.f32.mrb[0].mxu0
  %v835 = vadd.f32 0.0, %v834
  %v836 = vpop.f32.mrb[0].mxu0
  %837 = vdwg.mxu0
  %v864 = vunpack.c.l.b16 %v599
  %v865 = vunpack.c.l.b16 %v600
  %v866 = vunpack.c.l.b16 %v601
  %v867 = vunpack.c.l.b16 %v602
  %v868 = vunpack.c.l.b16 %v603
  %v869 = vunpack.c.l.b16 %v604
  %v870 = vunpack.c.l.b16 %v605
  %v871 = vunpack.c.l.b16 %v606
  %v872 = vunpack.c.l.b16 %v607
  %v873 = vunpack.c.l.b16 %v608
  %v874 = vunpack.c.l.b16 %v609
  %v875 = vunpack.c.l.b16 %v610
  %v876 = vunpack.c.l.b16 %v611
  %v877 = vunpack.c.l.b16 %v612
  %v878 = vunpack.c.l.b16 %v613
  %v879 = vunpack.c.l.b16 %v614
  %v880 = vunpack.c.l.b16 %v615
  %v881 = vunpack.c.l.b16 %v616
  %v882 = vunpack.c.l.b16 %v617
  %v883 = vunpack.c.l.b16 %v618
  %v884 = vunpack.c.l.b16 %v619
  %v885 = vunpack.c.l.b16 %v620
  %v886 = vunpack.c.l.b16 %v621
  %v887 = vunpack.c.l.b16 %v622
  %v888 = vpack.c.b16 %v865, %v864
  %v889 = vpack.c.b16 %v867, %v866
  %v890 = vpack.c.b16 %v869, %v868
  %v891 = vpack.c.b16 %v871, %v870
  %v892 = vpack.c.b16 %v873, %v872
  %v893 = vpack.c.b16 %v875, %v874
  %v894 = vpack.c.b16 %v877, %v876
  %v895 = vpack.c.b16 %v879, %v878
  %v896 = vpack.c.b16 %v881, %v880
  %v897 = vpack.c.b16 %v883, %v882
  %v898 = vpack.c.b16 %v885, %v884
  %v899 = vpack.c.b16 %v887, %v886
  %v912 = vsel %vm208, %v664, 0
  %v914 = vsel %vm208, %v666, 0
  %916 = vmatprep.subr.bf16.mxu0 0
  %917 = vmatpush1.bf16.msra.mxu0 %v888
  %918 = vmatprep.subr.bf16.mxu0 0
  %919 = vmatpush1.bf16.msra.mxu0 %v889
  %920 = vmatprep.subr.bf16.mxu0 0
  %921 = vmatpush1.bf16.msra.mxu0 %v890
  %922 = vmatprep.subr.bf16.mxu0 0
  %923 = vmatpush1.bf16.msra.mxu0 %v891
  %924 = vmatprep.subr.bf16.mxu0 0
  %925 = vmatpush1.bf16.msra.mxu0 %v892
  %926 = vmatprep.subr.bf16.mxu0 0
  %927 = vmatpush1.bf16.msra.mxu0 %v893
  %928 = vmatprep.subr.bf16.mxu0 0
  %929 = vmatpush1.bf16.msra.mxu0 %v894
  %930 = vmatprep.subr.bf16.mxu0 0
  %931 = vmatpush1.bf16.msra.mxu0 %v895
  %932 = vmatprep.subr.bf16.mxu0 0
  %933 = vmatpush1.bf16.msra.mxu0 %v896
  %934 = vmatprep.subr.bf16.mxu0 0
  %935 = vmatpush1.bf16.msra.mxu0 %v897
  %936 = vmatprep.subr.bf16.mxu0 0
  %937 = vmatpush1.bf16.msra.mxu0 %v898
  %938 = vmatprep.subr.bf16.mxu0 0
  %939 = vmatpush1.bf16.msra.mxu0 %v899
  %940 = vmatprep.subr.bf16.mxu0 0
  %941 = vmatpush1.bf16.msra.mxu0 0
  %942 = vmatprep.subr.bf16.mxu0 0
  %943 = vmatpush1.bf16.msra.mxu0 0
  %944 = vmatprep.subr.bf16.mxu0 0
  %945 = vmatpush1.bf16.msra.mxu0 0
  %946 = vmatprep.subr.bf16.mxu0 0
  %947 = vmatpush1.bf16.msra.mxu0 0
  %948 = vmatprep.mubr.bf16.mxu0 %v912
  %949 = vmatmul.mubr.bf16.gmra.mrb[0].mxu0 %v663
  %v950 = vpop.f32.mrb[0].mxu0
  %v951 = vadd.f32 %v824, %v950
  %v952 = vpop.f32.mrb[0].mxu0
  %v953 = vpop.f32.mrb[0].mxu0
  %v954 = vadd.f32 %v827, %v953
  %v955 = vpop.f32.mrb[0].mxu0
  %956 = vmatprep.mubr.bf16.mxu0 %v914
  %957 = vmatmul.mubr.bf16.gmra.mrb[0].mxu0 %v665
  %v958 = vpop.f32.mrb[0].mxu0
  %v959 = vadd.f32 %v832, %v958
  %v960 = vpop.f32.mrb[0].mxu0
  %v961 = vpop.f32.mrb[0].mxu0
  %v962 = vadd.f32 %v835, %v961
  %v963 = vpop.f32.mrb[0].mxu0
  %964 = vdwg.mxu0
  %v965 = vld [vmem:[%s594] sm:$0xee]
  %v966 = vld [vmem:[%s392] sm:$0xf]
  %v967 = vld [vmem:[%s392 + $0x4] sm:$0xf]
  %v968 = vld [vmem:[%s392 + $0x8] sm:$0xf]
  %v969 = vld [vmem:[%s392 + $0xc] sm:$0xf]
  %v970 = vld [vmem:[%s392 + $0x10] sm:$0xf]
  %v971 = vld [vmem:[%s392 + $0x14] sm:$0xf]
  %v972 = vld [vmem:[%s392 + $0x18] sm:$0xf]
  %v973 = vld [vmem:[%s392 + $0x1c] sm:$0xf]
  %v974 = vld [vmem:[%s392 + $0x20] sm:$0xf]
  %v975 = vld [vmem:[%s392 + $0x24] sm:$0xf]
  %v976 = vld [vmem:[%s392 + $0x28] sm:$0xf]
  %v977 = vld [vmem:[%s392 + $0x2c] sm:$0xf]
  %v978 = vld [vmem:[%s392 + $0x30] sm:$0xf]
  %v979 = vld [vmem:[%s392 + $0x34] sm:$0xf]
  %v980 = vld [vmem:[%s392 + $0x38] sm:$0xf]
  %v981 = vld [vmem:[%s392 + $0x3c] sm:$0xf]
  %v982 = vld [vmem:[%s392 + $0x40] sm:$0xf]
  %v983 = vld [vmem:[%s392 + $0x44] sm:$0xf]
  %v984 = vld [vmem:[%s392 + $0x48] sm:$0xf]
  %v985 = vld [vmem:[%s392 + $0x4c] sm:$0xf]
  %v986 = vld [vmem:[%s392 + $0x50] sm:$0xf]
  %v987 = vld [vmem:[%s392 + $0x54] sm:$0xf]
  %v988 = vld [vmem:[%s392 + $0x58] sm:$0xf]
  %v989 = vld [vmem:[%s392 + $0x5c] sm:$0xf]
  %v991 = vunpack.c.l.b16 %v965
  %v992 = vunpack.c.h.b16 %v965
  %v993 = vpack.c.b16 %v655, %v991
  %v994 = vpack.c.b16 %v656, %v992
  %v995 = vrot.slane %v993, 1
  %v996 = vrot.slane %v665, 1
  %v997 = vsel %vm422, %v995, %v996
  %v998 = vrot.slane %v994, 1
  %v999 = vrot.slane %v666, 1
  %v1000 = vsel %vm422, %v998, %v999
  %v1001 = vrot.slane %v667, 1
  %v1002 = vsel %vm422, %v996, %v1001
  %v1003 = vrot.slane %v668, 1
  %v1004 = vsel %vm422, %v999, %v1003
  %v1031 = vunpack.c.l.b16 %v966
  %v1032 = vunpack.c.l.b16 %v967
  %v1033 = vunpack.c.l.b16 %v968
  %v1034 = vunpack.c.l.b16 %v969
  %v1035 = vunpack.c.l.b16 %v970
  %v1036 = vunpack.c.l.b16 %v971
  %v1037 = vunpack.c.l.b16 %v972
  %v1038 = vunpack.c.l.b16 %v973
  %v1039 = vunpack.c.l.b16 %v974
  %v1040 = vunpack.c.l.b16 %v975
  %v1041 = vunpack.c.l.b16 %v976
  %v1042 = vunpack.c.l.b16 %v977
  %v1043 = vunpack.c.l.b16 %v978
  %v1044 = vunpack.c.l.b16 %v979
  %v1045 = vunpack.c.l.b16 %v980
  %v1046 = vunpack.c.l.b16 %v981
  %v1047 = vunpack.c.l.b16 %v982
  %v1048 = vunpack.c.l.b16 %v983
  %v1049 = vunpack.c.l.b16 %v984
  %v1050 = vunpack.c.l.b16 %v985
  %v1051 = vunpack.c.l.b16 %v986
  %v1052 = vunpack.c.l.b16 %v987
  %v1053 = vunpack.c.l.b16 %v988
  %v1054 = vunpack.c.l.b16 %v989
  %v1055 = vpack.c.b16 %v1032, %v1031
  %v1056 = vpack.c.b16 %v1034, %v1033
  %v1057 = vpack.c.b16 %v1036, %v1035
  %v1058 = vpack.c.b16 %v1038, %v1037
  %v1059 = vpack.c.b16 %v1040, %v1039
  %v1060 = vpack.c.b16 %v1042, %v1041
  %v1061 = vpack.c.b16 %v1044, %v1043
  %v1062 = vpack.c.b16 %v1046, %v1045
  %v1063 = vpack.c.b16 %v1048, %v1047
  %v1064 = vpack.c.b16 %v1050, %v1049
  %v1065 = vpack.c.b16 %v1052, %v1051
  %v1066 = vpack.c.b16 %v1054, %v1053
  %v1080 = vsel %vm208, %v1000, 0
  %v1083 = vsel %vm208, %v1004, 0
  %1085 = vmatprep.subr.bf16.mxu0 0
  %1086 = vmatpush1.bf16.msra.mxu0 %v1055
  %1087 = vmatprep.subr.bf16.mxu0 0
  %1088 = vmatpush1.bf16.msra.mxu0 %v1056
  %1089 = vmatprep.subr.bf16.mxu0 0
  %1090 = vmatpush1.bf16.msra.mxu0 %v1057
  %1091 = vmatprep.subr.bf16.mxu0 0
  %1092 = vmatpush1.bf16.msra.mxu0 %v1058
  %1093 = vmatprep.subr.bf16.mxu0 0
  %1094 = vmatpush1.bf16.msra.mxu0 %v1059
  %1095 = vmatprep.subr.bf16.mxu0 0
  %1096 = vmatpush1.bf16.msra.mxu0 %v1060
  %1097 = vmatprep.subr.bf16.mxu0 0
  %1098 = vmatpush1.bf16.msra.mxu0 %v1061
  %1099 = vmatprep.subr.bf16.mxu0 0
  %1100 = vmatpush1.bf16.msra.mxu0 %v1062
  %1101 = vmatprep.subr.bf16.mxu0 0
  %1102 = vmatpush1.bf16.msra.mxu0 %v1063
  %1103 = vmatprep.subr.bf16.mxu0 0
  %1104 = vmatpush1.bf16.msra.mxu0 %v1064
  %1105 = vmatprep.subr.bf16.mxu0 0
  %1106 = vmatpush1.bf16.msra.mxu0 %v1065
  %1107 = vmatprep.subr.bf16.mxu0 0
  %1108 = vmatpush1.bf16.msra.mxu0 %v1066
  %1109 = vmatprep.subr.bf16.mxu0 0
  %1110 = vmatpush1.bf16.msra.mxu0 0
  %1111 = vmatprep.subr.bf16.mxu0 0
  %1112 = vmatpush1.bf16.msra.mxu0 0
  %1113 = vmatprep.subr.bf16.mxu0 0
  %1114 = vmatpush1.bf16.msra.mxu0 0
  %1115 = vmatprep.subr.bf16.mxu0 0
  %1116 = vmatpush1.bf16.msra.mxu0 0
  %1117 = vmatprep.mubr.bf16.mxu0 %v1080
  %1118 = vmatmul.mubr.bf16.gmra.mrb[0].mxu0 %v997
  %v1119 = vpop.f32.mrb[0].mxu0
  %v1120 = vadd.f32 0.0, %v1119
  %v1121 = vpop.f32.mrb[0].mxu0
  %v1122 = vpop.f32.mrb[0].mxu0
  %v1123 = vadd.f32 0.0, %v1122
  %v1124 = vpop.f32.mrb[0].mxu0
  %1125 = vmatprep.mubr.bf16.mxu0 %v1083
  %1126 = vmatmul.mubr.bf16.gmra.mrb[0].mxu0 %v1002
  %v1127 = vpop.f32.mrb[0].mxu0
  %v1128 = vadd.f32 0.0, %v1127
  %v1129 = vpop.f32.mrb[0].mxu0
  %v1130 = vpop.f32.mrb[0].mxu0
  %v1131 = vadd.f32 0.0, %v1130
  %v1132 = vpop.f32.mrb[0].mxu0
  %1133 = vdwg.mxu0
  %v1134 = vadd.f32 %v951, %v1120
  %v1135 = vadd.f32 %v954, %v1123
  %v1136 = vadd.f32 %v959, %v1128
  %v1137 = vadd.f32 %v962, %v1131
  %s1138 = scalar_lea.vmem [#allocation2], 32
  %1139 = vst [vmem:[%s1138] sm:$0xff] %v1134
  %1140 = vst [vmem:[%s1138 + $0x8] sm:$0xff] %v1135
  %1141 = vst [vmem:[%s1138 + $0x10] sm:$0xff] %v1136
  %1142 = vst [vmem:[%s1138 + $0x18] sm:$0xff] %v1137
  %v1143 = vadd.f32 %v1134, %v1135
  %v1144 = vadd.f32 %v1143, %v1136
  %v1145 = vadd.f32 %v1144, %v1137
  %v1146 = vrot.slane %v1145, 4
  %v1147 = vadd.f32 %v1145, %v1146
  %v1148 = vrot.slane %v1147, 2
  %v1149 = vadd.f32 %v1147, %v1148
  %v1150 = vrot.slane %v1149, 1
  %v1151 = vadd.f32 %v1149, %v1150
  %v1152 = vadd.f32 %v579, %v1151
  %v1153 = vmul.f32 %v1134, %v1134
  %v1154 = vmul.f32 %v1135, %v1135
  %v1155 = vmul.f32 %v1136, %v1136
  %v1156 = vmul.f32 %v1137, %v1137
  %v1157 = vadd.f32 %v1153, %v1154
  %v1158 = vadd.f32 %v1157, %v1155
  %v1159 = vadd.f32 %v1158, %v1156
  %v1160 = vrot.slane %v1159, 4
  %v1161 = vadd.f32 %v1159, %v1160
  %v1162 = vrot.slane %v1161, 2
  %v1163 = vadd.f32 %v1161, %v1162
  %v1164 = vrot.slane %v1163, 1
  %v1165 = vadd.f32 %v1163, %v1164
  %v1166 = vadd.f32 %v593, %v1165
  %v1167 = vmul.f32 %v1152, 0.015625
  %v1168 = vmul.f32 %v1166, 0.015625
  %v1169 = vmul.f32 %v1167, %v1167
  %v1170 = vsub.f32 %v1168, %v1169
  %v1171 = vmax.f32 %v1170, 0.0
  %v1172 = vld [vmem:[%s2] sm:$0x1]
  %v1173 = vadd.f32 %v1171, 1e-05
  %v1174 = vrsqrt.pop %v1173
  %v1175 = vmul.f32 %v1172, %v1174
  %v1176 = vld [vmem:[%s3] sm:$0x1]
  %v1177 = vmul.f32 %v1167, %v1175
  %v1178 = vsub.f32 %v1176, %v1177
  %v1179 = vld [vmem:[#allocation2] sm:$0xff]
  %v1180 = vld [vmem:[#allocation2 + $0x8] sm:$0xff]
  %v1181 = vld [vmem:[#allocation2 + $0x10] sm:$0xff]
  %v1182 = vld [vmem:[#allocation2 + $0x18] sm:$0xff]
  %v1184 = vlaneseq
  %v1185 = vshrl.u32 %v1184, 7
  %v1186 = vsub.s32 0, %v1185
  %v1187 = vrot.slane %v1175, %v1186
  %v1189 = vmul.f32 %v1179, %v1187
  %v1190 = vmul.f32 %v1180, %v1187
  %v1191 = vmul.f32 %v1181, %v1187
  %v1192 = vmul.f32 %v1182, %v1187
  %v1194 = vlaneseq
  %v1195 = vshrl.u32 %v1194, 7
  %v1196 = vsub.s32 0, %v1195
  %v1197 = vrot.slane %v1178, %v1196
  %v1199 = vadd.f32 %v1189, %v1197
  %v1200 = vadd.f32 %v1190, %v1197
  %v1201 = vadd.f32 %v1191, %v1197
  %v1202 = vadd.f32 %v1192, %v1197
  %vm1203 = vcmp.ge.f32.partialorder %v1199, 0.0
  %vm1204 = vcmp.ge.f32.partialorder %v1200, 0.0
  %vm1205 = vcmp.ge.f32.partialorder %v1201, 0.0
  %vm1206 = vcmp.ge.f32.partialorder %v1202, 0.0
  %v1207 = vmul.f32 %v1199, 0.01
  %v1208 = vmul.f32 %v1200, 0.01
  %v1209 = vmul.f32 %v1201, 0.01
  %v1210 = vmul.f32 %v1202, 0.01
  %v1211 = vsel %vm1203, %v1199, %v1207
  %v1212 = vsel %vm1204, %v1200, %v1208
  %v1213 = vsel %vm1205, %v1201, %v1209
  %v1214 = vsel %vm1206, %v1202, %v1210
  %v1215 = vpack.c.bf16 %v1212, %v1211
  %v1216 = vpack.c.bf16 %v1214, %v1213
  %v1219 = vunpack.c.l.b16 %v1215
  %v1220 = vunpack.c.h.b16 %v1215
  %v1221 = vunpack.c.l.b16 %v1216
  %v1222 = vunpack.c.h.b16 %v1216
  %v1223 = vpack.c.b16 %v1219, %v1219
  %v1224 = vpack.c.b16 %v1220, %v1220
  %v1225 = vpack.c.b16 %v1221, %v1221
  %v1226 = vpack.c.b16 %v1222, %v1222
  %1231 = vst [vmem:[%s4] sm:$0xf] %v1223
  %1232 = vst [vmem:[%s4 + $0x4] sm:$0xf] %v1224
  %1233 = vst [vmem:[%s4 + $0x8] sm:$0xf] %v1225
  %1234 = vst [vmem:[%s4 + $0xc] sm:$0xf] %v1226
  %v1235 = vld [vmem:[%s1138] sm:$0xff]
  %v1236 = vld [vmem:[%s1138 + $0x8] sm:$0xff]
  %v1237 = vld [vmem:[%s1138 + $0x10] sm:$0xff]
  %v1238 = vld [vmem:[%s1138 + $0x18] sm:$0xff]
  %v1239 = vmul.f32 %v1235, %v1187
  %v1240 = vmul.f32 %v1236, %v1187
  %v1241 = vmul.f32 %v1237, %v1187
  %v1242 = vmul.f32 %v1238, %v1187
  %v1243 = vadd.f32 %v1239, %v1197
  %v1244 = vadd.f32 %v1240, %v1197
  %v1245 = vadd.f32 %v1241, %v1197
  %v1246 = vadd.f32 %v1242, %v1197
  %vm1247 = vcmp.ge.f32.partialorder %v1243, 0.0
  %vm1248 = vcmp.ge.f32.partialorder %v1244, 0.0
  %vm1249 = vcmp.ge.f32.partialorder %v1245, 0.0
  %vm1250 = vcmp.ge.f32.partialorder %v1246, 0.0
  %v1251 = vmul.f32 %v1243, 0.01
  %v1252 = vmul.f32 %v1244, 0.01
  %v1253 = vmul.f32 %v1245, 0.01
  %v1254 = vmul.f32 %v1246, 0.01
  %v1255 = vsel %vm1247, %v1243, %v1251
  %v1256 = vsel %vm1248, %v1244, %v1252
  %v1257 = vsel %vm1249, %v1245, %v1253
  %v1258 = vsel %vm1250, %v1246, %v1254
  %v1259 = vpack.c.bf16 %v1256, %v1255
  %v1260 = vpack.c.bf16 %v1258, %v1257
  %v1263 = vunpack.c.l.b16 %v1259
  %v1264 = vunpack.c.h.b16 %v1259
  %v1265 = vunpack.c.l.b16 %v1260
  %v1266 = vunpack.c.h.b16 %v1260
  %v1267 = vpack.c.b16 %v1263, %v1263
  %v1268 = vpack.c.b16 %v1264, %v1264
  %v1269 = vpack.c.b16 %v1265, %v1265
  %v1270 = vpack.c.b16 %v1266, %v1266
  %s1275 = scalar_lea.vmem %s4, 16
  %1276 = vst [vmem:[%s1275] sm:$0xf] %v1267
  %1277 = vst [vmem:[%s1275 + $0x4] sm:$0xf] %v1268
  %1278 = vst [vmem:[%s1275 + $0x8] sm:$0xf] %v1269
  %1279 = vst [vmem:[%s1275 + $0xc] sm:$0xf] %v1270
  // Predicated region
  $region18: #{prototype_forward.12} parent=0 // pred_check
    _
  $region19: #{prototype_forward.12} parent=0 // pred_check_branch
    %1281 = sbr.rel (0) target = $region21
  $region20: #{prototype_forward.12} parent=0 // pred_region
    _
  $region21: #{prototype_forward.12} parent=0 // pred_fallthru
    _
  // Predicated region
  $region22: #{prototype_forward.12} parent=0 // pred_check
    _
  $region23: #{prototype_forward.12} parent=0 // pred_check_branch
    %1283 = sbr.rel (0) target = $region25
  $region24: #{prototype_forward.12} parent=0 // pred_region
    _
  $region25: #{prototype_forward.12} parent=0 // pred_fallthru
    _

// kernel: prototype_forward.13
$region0: #{prototype_forward.13}
  #allocation0 [shape = 'u32[]', space=smem, size = 0x4, offset = 0x4, fixed_abs, tag = 'smem constant byte address 0x4 - core index']
  #allocation1 [shape = 'u32[144,128]{1,0:T(1,128)}', space=vmem, size = 0x12000, scoped, tag = 'internal scratch']
  #allocation2 [shape = 'f32[2,64,128]{2,1,0:T(8,128)}', space=vmem, size = 0x10000, scoped, tag = 'scratch operand']
  %s0 = inlined_call_operand.vmem [shape: bf16[2,64,144], index: 0, kind: input, shape index: {}]
  %s1 = inlined_call_operand.vmem [shape: bf16[1,144,128], index: 1, kind: input, shape index: {}]
  %s2 = inlined_call_operand.vmem [shape: f32[1,128], index: 2, kind: input, shape index: {}]
  %s3 = inlined_call_operand.vmem [shape: f32[1,128], index: 3, kind: input, shape index: {}]
  %s4 = inlined_call_operand.vmem [shape: f32[2,64,128], index: 4, kind: output, shape index: {}]
  %s5 = sld [smem:[#allocation0]]
  $region26: #{prototype_forward.13} parent=0
    _
  %s7 = ssub.s32 1, %s5
  %s8 = scalar_select 0, %s7, %s5
  // Predicated region
  $region2: #{prototype_forward.13} parent=0 // pred_check
    _
  $region3: #{prototype_forward.13} parent=0 // pred_check_branch
    %10 = sbr.rel (0) target = $region5
  $region4: #{prototype_forward.13} parent=0 // pred_region
    _
  $region5: #{prototype_forward.13} parent=0 // pred_fallthru
    _
  // Predicated region
  $region6: #{prototype_forward.13} parent=0 // pred_check
    _
  $region7: #{prototype_forward.13} parent=0 // pred_check_branch
    %12 = sbr.rel (0) target = $region9
  $region8: #{prototype_forward.13} parent=0 // pred_region
    _
  $region9: #{prototype_forward.13} parent=0 // pred_fallthru
    _
  // Predicated region
  $region10: #{prototype_forward.13} parent=0 // pred_check
    _
  $region11: #{prototype_forward.13} parent=0 // pred_check_branch
    %14 = sbr.rel (0) target = $region13
  $region12: #{prototype_forward.13} parent=0 // pred_region
    _
  $region13: #{prototype_forward.13} parent=0 // pred_fallthru
    _
  // Predicated region
  $region14: #{prototype_forward.13} parent=0 // pred_check
    _
  $region15: #{prototype_forward.13} parent=0 // pred_check_branch
    %16 = sbr.rel (0) target = $region17
  $region16: #{prototype_forward.13} parent=0 // pred_region
    _
  $region17: #{prototype_forward.13} parent=0 // pred_fallthru
    _
  %v18 = vld [vmem:[%s0] sm:$0xff]
  %v19 = vld [vmem:[%s0 + $0x8] sm:$0xff]
  %v20 = vld [vmem:[%s0 + $0x10] sm:$0xff]
  %v21 = vld [vmem:[%s0 + $0x18] sm:$0xff]
  %v22 = vld [vmem:[%s0 + $0x20] sm:$0xff]
  %v23 = vld [vmem:[%s0 + $0x28] sm:$0xff]
  %v24 = vld [vmem:[%s0 + $0x30] sm:$0xff]
  %v25 = vld [vmem:[%s0 + $0x38] sm:$0xff]
  %v26 = vld [vmem:[%s1] sm:$0xf]
  %v27 = vld [vmem:[%s1 + $0x4] sm:$0xf]
  %v28 = vld [vmem:[%s1 + $0x8] sm:$0xf]
  %v29 = vld [vmem:[%s1 + $0xc] sm:$0xf]
  %v30 = vld [vmem:[%s1 + $0x10] sm:$0xf]
  %v31 = vld [vmem:[%s1 + $0x14] sm:$0xf]
  %v32 = vld [vmem:[%s1 + $0x18] sm:$0xf]
  %v33 = vld [vmem:[%s1 + $0x1c] sm:$0xf]
  %v34 = vld [vmem:[%s1 + $0x20] sm:$0xf]
  %v35 = vld [vmem:[%s1 + $0x24] sm:$0xf]
  %v36 = vld [vmem:[%s1 + $0x28] sm:$0xf]
  %v37 = vld [vmem:[%s1 + $0x2c] sm:$0xf]
  %v38 = vld [vmem:[%s1 + $0x30] sm:$0xf]
  %v39 = vld [vmem:[%s1 + $0x34] sm:$0xf]
  %v40 = vld [vmem:[%s1 + $0x38] sm:$0xf]
  %v41 = vld [vmem:[%s1 + $0x3c] sm:$0xf]
  %v42 = vld [vmem:[%s1 + $0x40] sm:$0xf]
  %v43 = vld [vmem:[%s1 + $0x44] sm:$0xf]
  %v52 = vunpack.c.l.b16 %v18
  %v53 = vunpack.c.h.b16 %v18
  %v54 = vunpack.c.l.b16 %v19
  %v55 = vunpack.c.h.b16 %v19
  %v56 = vunpack.c.l.b16 %v20
  %v57 = vunpack.c.h.b16 %v20
  %v58 = vunpack.c.l.b16 %v21
  %v59 = vunpack.c.h.b16 %v21
  %v60 = vunpack.c.l.b16 %v22
  %v61 = vunpack.c.h.b16 %v22
  %v62 = vunpack.c.l.b16 %v23
  %v63 = vunpack.c.h.b16 %v23
  %v64 = vunpack.c.l.b16 %v24
  %v65 = vunpack.c.h.b16 %v24
  %v66 = vunpack.c.l.b16 %v25
  %v67 = vunpack.c.h.b16 %v25
  %v68 = vpack.c.b16 %v54, %v52
  %v69 = vpack.c.b16 %v55, %v53
  %v70 = vpack.c.b16 %v58, %v56
  %v71 = vpack.c.b16 %v59, %v57
  %v72 = vpack.c.b16 %v62, %v60
  %v73 = vpack.c.b16 %v63, %v61
  %v74 = vpack.c.b16 %v66, %v64
  %v75 = vpack.c.b16 %v67, %v65
  %v98 = vunpack.c.l.b16 %v26
  %v99 = vunpack.c.l.b16 %v27
  %v100 = vunpack.c.l.b16 %v28
  %v101 = vunpack.c.l.b16 %v29
  %v102 = vunpack.c.l.b16 %v30
  %v103 = vunpack.c.l.b16 %v31
  %v104 = vunpack.c.l.b16 %v32
  %v105 = vunpack.c.l.b16 %v33
  %v106 = vunpack.c.l.b16 %v34
  %v107 = vunpack.c.l.b16 %v35
  %v108 = vunpack.c.l.b16 %v36
  %v109 = vunpack.c.l.b16 %v37
  %v110 = vunpack.c.l.b16 %v38
  %v111 = vunpack.c.l.b16 %v39
  %v112 = vunpack.c.l.b16 %v40
  %v113 = vunpack.c.l.b16 %v41
  %v114 = vunpack.c.l.b16 %v42
  %v115 = vunpack.c.l.b16 %v43
  %v116 = vpack.c.b16 %v99, %v98
  %v117 = vpack.c.b16 %v101, %v100
  %v118 = vpack.c.b16 %v103, %v102
  %v119 = vpack.c.b16 %v105, %v104
  %v120 = vpack.c.b16 %v107, %v106
  %v121 = vpack.c.b16 %v109, %v108
  %v122 = vpack.c.b16 %v111, %v110
  %v123 = vpack.c.b16 %v113, %v112
  %v124 = vpack.c.b16 %v115, %v114
  %vm134 = vcmask 130048
  %v136 = vsel %vm134, %v69, 0
  %v139 = vsel %vm134, %v71, 0
  %v142 = vsel %vm134, %v73, 0
  %v145 = vsel %vm134, %v75, 0
  %147 = vmatprep.subr.bf16.mxu0 0
  %148 = vmatpush1.bf16.msra.mxu0 %v116
  %149 = vmatprep.subr.bf16.mxu0 0
  %150 = vmatpush1.bf16.msra.mxu0 %v117
  %151 = vmatprep.subr.bf16.mxu0 0
  %152 = vmatpush1.bf16.msra.mxu0 %v118
  %153 = vmatprep.subr.bf16.mxu0 0
  %154 = vmatpush1.bf16.msra.mxu0 %v119
  %155 = vmatprep.subr.bf16.mxu0 0
  %156 = vmatpush1.bf16.msra.mxu0 %v120
  %157 = vmatprep.subr.bf16.mxu0 0
  %158 = vmatpush1.bf16.msra.mxu0 %v121
  %159 = vmatprep.subr.bf16.mxu0 0
  %160 = vmatpush1.bf16.msra.mxu0 %v122
  %161 = vmatprep.subr.bf16.mxu0 0
  %162 = vmatpush1.bf16.msra.mxu0 %v123
  %163 = vmatprep.subr.bf16.mxu0 0
  %164 = vmatpush1.bf16.msra.mxu0 %v124
  %165 = vmatprep.subr.bf16.mxu0 0
  %166 = vmatpush1.bf16.msra.mxu0 0
  %167 = vmatprep.subr.bf16.mxu0 0
  %168 = vmatpush1.bf16.msra.mxu0 0
  %169 = vmatprep.subr.bf16.mxu0 0
  %170 = vmatpush1.bf16.msra.mxu0 0
  %171 = vmatprep.subr.bf16.mxu0 0
  %172 = vmatpush1.bf16.msra.mxu0 0
  %173 = vmatprep.subr.bf16.mxu0 0
  %174 = vmatpush1.bf16.msra.mxu0 0
  %175 = vmatprep.subr.bf16.mxu0 0
  %176 = vmatpush1.bf16.msra.mxu0 0
  %177 = vmatprep.subr.bf16.mxu0 0
  %178 = vmatpush1.bf16.msra.mxu0 0
  %179 = vmatprep.mubr.bf16.mxu0 %v136
  %180 = vmatmul.mubr.bf16.gmra.mrb[0].mxu0 %v68
  %v181 = vpop.f32.mrb[0].mxu0
  %v182 = vadd.f32 0.0, %v181
  %v183 = vpop.f32.mrb[0].mxu0
  %v184 = vpop.f32.mrb[0].mxu0
  %v185 = vadd.f32 0.0, %v184
  %v186 = vpop.f32.mrb[0].mxu0
  %187 = vmatprep.mubr.bf16.mxu0 %v139
  %188 = vmatmul.mubr.bf16.gmra.mrb[0].mxu0 %v70
  %v189 = vpop.f32.mrb[0].mxu0
  %v190 = vadd.f32 0.0, %v189
  %v191 = vpop.f32.mrb[0].mxu0
  %v192 = vpop.f32.mrb[0].mxu0
  %v193 = vadd.f32 0.0, %v192
  %v194 = vpop.f32.mrb[0].mxu0
  %195 = vmatprep.mubr.bf16.mxu0 %v142
  %196 = vmatmul.mubr.bf16.gmra.mrb[0].mxu0 %v72
  %v197 = vpop.f32.mrb[0].mxu0
  %v198 = vadd.f32 0.0, %v197
  %v199 = vpop.f32.mrb[0].mxu0
  %v200 = vpop.f32.mrb[0].mxu0
  %v201 = vadd.f32 0.0, %v200
  %v202 = vpop.f32.mrb[0].mxu0
  %203 = vmatprep.mubr.bf16.mxu0 %v145
  %204 = vmatmul.mubr.bf16.gmra.mrb[0].mxu0 %v74
  %v205 = vpop.f32.mrb[0].mxu0
  %v206 = vadd.f32 0.0, %v205
  %v207 = vpop.f32.mrb[0].mxu0
  %v208 = vpop.f32.mrb[0].mxu0
  %v209 = vadd.f32 0.0, %v208
  %v210 = vpop.f32.mrb[0].mxu0
  %211 = vdwg.mxu0
  %212 = vst [vmem:[#allocation2] sm:$0xff] %v182
  %213 = vst [vmem:[#allocation2 + $0x8] sm:$0xff] %v185
  %214 = vst [vmem:[#allocation2 + $0x10] sm:$0xff] %v190
  %215 = vst [vmem:[#allocation2 + $0x18] sm:$0xff] %v193
  %216 = vst [vmem:[#allocation2 + $0x20] sm:$0xff] %v198
  %217 = vst [vmem:[#allocation2 + $0x28] sm:$0xff] %v201
  %218 = vst [vmem:[#allocation2 + $0x30] sm:$0xff] %v206
  %219 = vst [vmem:[#allocation2 + $0x38] sm:$0xff] %v209
  %v220 = vadd.f32 %v182, %v185
  %v221 = vadd.f32 %v220, %v190
  %v222 = vadd.f32 %v221, %v193
  %v223 = vadd.f32 %v222, %v198
  %v224 = vadd.f32 %v223, %v201
  %v225 = vadd.f32 %v224, %v206
  %v226 = vadd.f32 %v225, %v209
  %v227 = vrot.slane %v226, 4
  %v228 = vadd.f32 %v226, %v227
  %v229 = vrot.slane %v228, 2
  %v230 = vadd.f32 %v228, %v229
  %v231 = vrot.slane %v230, 1
  %v232 = vadd.f32 %v230, %v231
  %v233 = vadd.f32 %v232, 0.0
  %v234 = vmul.f32 %v182, %v182
  %v235 = vmul.f32 %v185, %v185
  %v236 = vmul.f32 %v190, %v190
  %v237 = vmul.f32 %v193, %v193
  %v238 = vmul.f32 %v198, %v198
  %v239 = vmul.f32 %v201, %v201
  %v240 = vmul.f32 %v206, %v206
  %v241 = vmul.f32 %v209, %v209
  %v242 = vadd.f32 %v234, %v235
  %v243 = vadd.f32 %v242, %v236
  %v244 = vadd.f32 %v243, %v237
  %v245 = vadd.f32 %v244, %v238
  %v246 = vadd.f32 %v245, %v239
  %v247 = vadd.f32 %v246, %v240
  %v248 = vadd.f32 %v247, %v241
  %v249 = vrot.slane %v248, 4
  %v250 = vadd.f32 %v248, %v249
  %v251 = vrot.slane %v250, 2
  %v252 = vadd.f32 %v250, %v251
  %v253 = vrot.slane %v252, 1
  %v254 = vadd.f32 %v252, %v253
  %v255 = vadd.f32 %v254, 0.0
  %s256 = scalar_lea.vmem %s0, 64
  %v257 = vld [vmem:[%s256] sm:$0xff]
  %v258 = vld [vmem:[%s256 + $0x8] sm:$0xff]
  %v259 = vld [vmem:[%s256 + $0x10] sm:$0xff]
  %v260 = vld [vmem:[%s256 + $0x18] sm:$0xff]
  %v261 = vld [vmem:[%s256 + $0x20] sm:$0xff]
  %v262 = vld [vmem:[%s256 + $0x28] sm:$0xff]
  %v263 = vld [vmem:[%s256 + $0x30] sm:$0xff]
  %v264 = vld [vmem:[%s256 + $0x38] sm:$0xff]
  %v265 = vld [vmem:[%s1] sm:$0xf]
  %v266 = vld [vmem:[%s1 + $0x4] sm:$0xf]
  %v267 = vld [vmem:[%s1 + $0x8] sm:$0xf]
  %v268 = vld [vmem:[%s1 + $0xc] sm:$0xf]
  %v269 = vld [vmem:[%s1 + $0x10] sm:$0xf]
  %v270 = vld [vmem:[%s1 + $0x14] sm:$0xf]
  %v271 = vld [vmem:[%s1 + $0x18] sm:$0xf]
  %v272 = vld [vmem:[%s1 + $0x1c] sm:$0xf]
  %v273 = vld [vmem:[%s1 + $0x20] sm:$0xf]
  %v274 = vld [vmem:[%s1 + $0x24] sm:$0xf]
  %v275 = vld [vmem:[%s1 + $0x28] sm:$0xf]
  %v276 = vld [vmem:[%s1 + $0x2c] sm:$0xf]
  %v277 = vld [vmem:[%s1 + $0x30] sm:$0xf]
  %v278 = vld [vmem:[%s1 + $0x34] sm:$0xf]
  %v279 = vld [vmem:[%s1 + $0x38] sm:$0xf]
  %v280 = vld [vmem:[%s1 + $0x3c] sm:$0xf]
  %v281 = vld [vmem:[%s1 + $0x40] sm:$0xf]
  %v282 = vld [vmem:[%s1 + $0x44] sm:$0xf]
  %v291 = vunpack.c.l.b16 %v257
  %v292 = vunpack.c.h.b16 %v257
  %v293 = vunpack.c.l.b16 %v258
  %v294 = vunpack.c.h.b16 %v258
  %v295 = vunpack.c.l.b16 %v259
  %v296 = vunpack.c.h.b16 %v259
  %v297 = vunpack.c.l.b16 %v260
  %v298 = vunpack.c.h.b16 %v260
  %v299 = vunpack.c.l.b16 %v261
  %v300 = vunpack.c.h.b16 %v261
  %v301 = vunpack.c.l.b16 %v262
  %v302 = vunpack.c.h.b16 %v262
  %v303 = vunpack.c.l.b16 %v263
  %v304 = vunpack.c.h.b16 %v263
  %v305 = vunpack.c.l.b16 %v264
  %v306 = vunpack.c.h.b16 %v264
  %v307 = vpack.c.b16 %v293, %v291
  %v308 = vpack.c.b16 %v294, %v292
  %v309 = vpack.c.b16 %v297, %v295
  %v310 = vpack.c.b16 %v298, %v296
  %v311 = vpack.c.b16 %v301, %v299
  %v312 = vpack.c.b16 %v302, %v300
  %v313 = vpack.c.b16 %v305, %v303
  %v314 = vpack.c.b16 %v306, %v304
  %v337 = vunpack.c.l.b16 %v265
  %v338 = vunpack.c.l.b16 %v266
  %v339 = vunpack.c.l.b16 %v267
  %v340 = vunpack.c.l.b16 %v268
  %v341 = vunpack.c.l.b16 %v269
  %v342 = vunpack.c.l.b16 %v270
  %v343 = vunpack.c.l.b16 %v271
  %v344 = vunpack.c.l.b16 %v272
  %v345 = vunpack.c.l.b16 %v273
  %v346 = vunpack.c.l.b16 %v274
  %v347 = vunpack.c.l.b16 %v275
  %v348 = vunpack.c.l.b16 %v276
  %v349 = vunpack.c.l.b16 %v277
  %v350 = vunpack.c.l.b16 %v278
  %v351 = vunpack.c.l.b16 %v279
  %v352 = vunpack.c.l.b16 %v280
  %v353 = vunpack.c.l.b16 %v281
  %v354 = vunpack.c.l.b16 %v282
  %v355 = vpack.c.b16 %v338, %v337
  %v356 = vpack.c.b16 %v340, %v339
  %v357 = vpack.c.b16 %v342, %v341
  %v358 = vpack.c.b16 %v344, %v343
  %v359 = vpack.c.b16 %v346, %v345
  %v360 = vpack.c.b16 %v348, %v347
  %v361 = vpack.c.b16 %v350, %v349
  %v362 = vpack.c.b16 %v352, %v351
  %v363 = vpack.c.b16 %v354, %v353
  %v374 = vsel %vm134, %v308, 0
  %v377 = vsel %vm134, %v310, 0
  %v380 = vsel %vm134, %v312, 0
  %v383 = vsel %vm134, %v314, 0
  %385 = vmatprep.subr.bf16.mxu0 0
  %386 = vmatpush1.bf16.msra.mxu0 %v355
  %387 = vmatprep.subr.bf16.mxu0 0
  %388 = vmatpush1.bf16.msra.mxu0 %v356
  %389 = vmatprep.subr.bf16.mxu0 0
  %390 = vmatpush1.bf16.msra.mxu0 %v357
  %391 = vmatprep.subr.bf16.mxu0 0
  %392 = vmatpush1.bf16.msra.mxu0 %v358
  %393 = vmatprep.subr.bf16.mxu0 0
  %394 = vmatpush1.bf16.msra.mxu0 %v359
  %395 = vmatprep.subr.bf16.mxu0 0
  %396 = vmatpush1.bf16.msra.mxu0 %v360
  %397 = vmatprep.subr.bf16.mxu0 0
  %398 = vmatpush1.bf16.msra.mxu0 %v361
  %399 = vmatprep.subr.bf16.mxu0 0
  %400 = vmatpush1.bf16.msra.mxu0 %v362
  %401 = vmatprep.subr.bf16.mxu0 0
  %402 = vmatpush1.bf16.msra.mxu0 %v363
  %403 = vmatprep.subr.bf16.mxu0 0
  %404 = vmatpush1.bf16.msra.mxu0 0
  %405 = vmatprep.subr.bf16.mxu0 0
  %406 = vmatpush1.bf16.msra.mxu0 0
  %407 = vmatprep.subr.bf16.mxu0 0
  %408 = vmatpush1.bf16.msra.mxu0 0
  %409 = vmatprep.subr.bf16.mxu0 0
  %410 = vmatpush1.bf16.msra.mxu0 0
  %411 = vmatprep.subr.bf16.mxu0 0
  %412 = vmatpush1.bf16.msra.mxu0 0
  %413 = vmatprep.subr.bf16.mxu0 0
  %414 = vmatpush1.bf16.msra.mxu0 0
  %415 = vmatprep.subr.bf16.mxu0 0
  %416 = vmatpush1.bf16.msra.mxu0 0
  %417 = vmatprep.mubr.bf16.mxu0 %v374
  %418 = vmatmul.mubr.bf16.gmra.mrb[0].mxu0 %v307
  %v419 = vpop.f32.mrb[0].mxu0
  %v420 = vadd.f32 0.0, %v419
  %v421 = vpop.f32.mrb[0].mxu0
  %v422 = vpop.f32.mrb[0].mxu0
  %v423 = vadd.f32 0.0, %v422
  %v424 = vpop.f32.mrb[0].mxu0
  %425 = vmatprep.mubr.bf16.mxu0 %v377
  %426 = vmatmul.mubr.bf16.gmra.mrb[0].mxu0 %v309
  %v427 = vpop.f32.mrb[0].mxu0
  %v428 = vadd.f32 0.0, %v427
  %v429 = vpop.f32.mrb[0].mxu0
  %v430 = vpop.f32.mrb[0].mxu0
  %v431 = vadd.f32 0.0, %v430
  %v432 = vpop.f32.mrb[0].mxu0
  %433 = vmatprep.mubr.bf16.mxu0 %v380
  %434 = vmatmul.mubr.bf16.gmra.mrb[0].mxu0 %v311
  %v435 = vpop.f32.mrb[0].mxu0
  %v436 = vadd.f32 0.0, %v435
  %v437 = vpop.f32.mrb[0].mxu0
  %v438 = vpop.f32.mrb[0].mxu0
  %v439 = vadd.f32 0.0, %v438
  %v440 = vpop.f32.mrb[0].mxu0
  %441 = vmatprep.mubr.bf16.mxu0 %v383
  %442 = vmatmul.mubr.bf16.gmra.mrb[0].mxu0 %v313
  %v443 = vpop.f32.mrb[0].mxu0
  %v444 = vadd.f32 0.0, %v443
  %v445 = vpop.f32.mrb[0].mxu0
  %v446 = vpop.f32.mrb[0].mxu0
  %v447 = vadd.f32 0.0, %v446
  %v448 = vpop.f32.mrb[0].mxu0
  %449 = vdwg.mxu0
  %s450 = scalar_lea.vmem [#allocation2], 64
  %451 = vst [vmem:[%s450] sm:$0xff] %v420
  %452 = vst [vmem:[%s450 + $0x8] sm:$0xff] %v423
  %453 = vst [vmem:[%s450 + $0x10] sm:$0xff] %v428
  %454 = vst [vmem:[%s450 + $0x18] sm:$0xff] %v431
  %455 = vst [vmem:[%s450 + $0x20] sm:$0xff] %v436
  %456 = vst [vmem:[%s450 + $0x28] sm:$0xff] %v439
  %457 = vst [vmem:[%s450 + $0x30] sm:$0xff] %v444
  %458 = vst [vmem:[%s450 + $0x38] sm:$0xff] %v447
  %v459 = vadd.f32 %v420, %v423
  %v460 = vadd.f32 %v459, %v428
  %v461 = vadd.f32 %v460, %v431
  %v462 = vadd.f32 %v461, %v436
  %v463 = vadd.f32 %v462, %v439
  %v464 = vadd.f32 %v463, %v444
  %v465 = vadd.f32 %v464, %v447
  %v466 = vrot.slane %v465, 4
  %v467 = vadd.f32 %v465, %v466
  %v468 = vrot.slane %v467, 2
  %v469 = vadd.f32 %v467, %v468
  %v470 = vrot.slane %v469, 1
  %v471 = vadd.f32 %v469, %v470
  %v472 = vadd.f32 %v233, %v471
  %v473 = vmul.f32 %v420, %v420
  %v474 = vmul.f32 %v423, %v423
  %v475 = vmul.f32 %v428, %v428
  %v476 = vmul.f32 %v431, %v431
  %v477 = vmul.f32 %v436, %v436
  %v478 = vmul.f32 %v439, %v439
  %v479 = vmul.f32 %v444, %v444
  %v480 = vmul.f32 %v447, %v447
  %v481 = vadd.f32 %v473, %v474
  %v482 = vadd.f32 %v481, %v475
  %v483 = vadd.f32 %v482, %v476
  %v484 = vadd.f32 %v483, %v477
  %v485 = vadd.f32 %v484, %v478
  %v486 = vadd.f32 %v485, %v479
  %v487 = vadd.f32 %v486, %v480
  %v488 = vrot.slane %v487, 4
  %v489 = vadd.f32 %v487, %v488
  %v490 = vrot.slane %v489, 2
  %v491 = vadd.f32 %v489, %v490
  %v492 = vrot.slane %v491, 1
  %v493 = vadd.f32 %v491, %v492
  %v494 = vadd.f32 %v255, %v493
  %v495 = vmul.f32 %v472, 0.0078125
  %v496 = vmul.f32 %v494, 0.0078125
  %v497 = vmul.f32 %v495, %v495
  %v498 = vsub.f32 %v496, %v497
  %v499 = vmax.f32 %v498, 0.0
  %v500 = vld [vmem:[%s2] sm:$0x1]
  %v501 = vadd.f32 %v499, 1e-05
  %v502 = vrsqrt.pop %v501
  %v503 = vmul.f32 %v500, %v502
  %v504 = vld [vmem:[%s3] sm:$0x1]
  %v505 = vmul.f32 %v495, %v503
  %v506 = vsub.f32 %v504, %v505
  %v507 = vld [vmem:[#allocation2] sm:$0xff]
  %v508 = vld [vmem:[#allocation2 + $0x8] sm:$0xff]
  %v509 = vld [vmem:[#allocation2 + $0x10] sm:$0xff]
  %v510 = vld [vmem:[#allocation2 + $0x18] sm:$0xff]
  %v511 = vld [vmem:[#allocation2 + $0x20] sm:$0xff]
  %v512 = vld [vmem:[#allocation2 + $0x28] sm:$0xff]
  %v513 = vld [vmem:[#allocation2 + $0x30] sm:$0xff]
  %v514 = vld [vmem:[#allocation2 + $0x38] sm:$0xff]
  %v516 = vlaneseq
  %v517 = vshrl.u32 %v516, 7
  %v518 = vsub.s32 0, %v517
  %v519 = vrot.slane %v503, %v518
  %v521 = vmul.f32 %v507, %v519
  %v522 = vmul.f32 %v508, %v519
  %v523 = vmul.f32 %v509, %v519
  %v524 = vmul.f32 %v510, %v519
  %v525 = vmul.f32 %v511, %v519
  %v526 = vmul.f32 %v512, %v519
  %v527 = vmul.f32 %v513, %v519
  %v528 = vmul.f32 %v514, %v519
  %v530 = vlaneseq
  %v531 = vshrl.u32 %v530, 7
  %v532 = vsub.s32 0, %v531
  %v533 = vrot.slane %v506, %v532
  %v535 = vadd.f32 %v521, %v533
  %v536 = vadd.f32 %v522, %v533
  %v537 = vadd.f32 %v523, %v533
  %v538 = vadd.f32 %v524, %v533
  %v539 = vadd.f32 %v525, %v533
  %v540 = vadd.f32 %v526, %v533
  %v541 = vadd.f32 %v527, %v533
  %v542 = vadd.f32 %v528, %v533
  %vm543 = vcmp.ge.f32.partialorder %v535, 0.0
  %vm544 = vcmp.ge.f32.partialorder %v536, 0.0
  %vm545 = vcmp.ge.f32.partialorder %v537, 0.0
  %vm546 = vcmp.ge.f32.partialorder %v538, 0.0
  %vm547 = vcmp.ge.f32.partialorder %v539, 0.0
  %vm548 = vcmp.ge.f32.partialorder %v540, 0.0
  %vm549 = vcmp.ge.f32.partialorder %v541, 0.0
  %vm550 = vcmp.ge.f32.partialorder %v542, 0.0
  %v551 = vmul.f32 %v535, 0.01
  %v552 = vmul.f32 %v536, 0.01
  %v553 = vmul.f32 %v537, 0.01
  %v554 = vmul.f32 %v538, 0.01
  %v555 = vmul.f32 %v539, 0.01
  %v556 = vmul.f32 %v540, 0.01
  %v557 = vmul.f32 %v541, 0.01
  %v558 = vmul.f32 %v542, 0.01
  %v559 = vsel %vm543, %v535, %v551
  %v560 = vsel %vm544, %v536, %v552
  %v561 = vsel %vm545, %v537, %v553
  %v562 = vsel %vm546, %v538, %v554
  %v563 = vsel %vm547, %v539, %v555
  %v564 = vsel %vm548, %v540, %v556
  %v565 = vsel %vm549, %v541, %v557
  %v566 = vsel %vm550, %v542, %v558
  %567 = vst [vmem:[%s4] sm:$0xff] %v559
  %568 = vst [vmem:[%s4 + $0x8] sm:$0xff] %v560
  %569 = vst [vmem:[%s4 + $0x10] sm:$0xff] %v561
  %570 = vst [vmem:[%s4 + $0x18] sm:$0xff] %v562
  %571 = vst [vmem:[%s4 + $0x20] sm:$0xff] %v563
  %572 = vst [vmem:[%s4 + $0x28] sm:$0xff] %v564
  %573 = vst [vmem:[%s4 + $0x30] sm:$0xff] %v565
  %574 = vst [vmem:[%s4 + $0x38] sm:$0xff] %v566
  %v575 = vld [vmem:[%s450] sm:$0xff]
  %v576 = vld [vmem:[%s450 + $0x8] sm:$0xff]
  %v577 = vld [vmem:[%s450 + $0x10] sm:$0xff]
  %v578 = vld [vmem:[%s450 + $0x18] sm:$0xff]
  %v579 = vld [vmem:[%s450 + $0x20] sm:$0xff]
  %v580 = vld [vmem:[%s450 + $0x28] sm:$0xff]
  %v581 = vld [vmem:[%s450 + $0x30] sm:$0xff]
  %v582 = vld [vmem:[%s450 + $0x38] sm:$0xff]
  %v583 = vmul.f32 %v575, %v519
  %v584 = vmul.f32 %v576, %v519
  %v585 = vmul.f32 %v577, %v519
  %v586 = vmul.f32 %v578, %v519
  %v587 = vmul.f32 %v579, %v519
  %v588 = vmul.f32 %v580, %v519
  %v589 = vmul.f32 %v581, %v519
  %v590 = vmul.f32 %v582, %v519
  %v591 = vadd.f32 %v583, %v533
  %v592 = vadd.f32 %v584, %v533
  %v593 = vadd.f32 %v585, %v533
  %v594 = vadd.f32 %v586, %v533
  %v595 = vadd.f32 %v587, %v533
  %v596 = vadd.f32 %v588, %v533
  %v597 = vadd.f32 %v589, %v533
  %v598 = vadd.f32 %v590, %v533
  %vm599 = vcmp.ge.f32.partialorder %v591, 0.0
  %vm600 = vcmp.ge.f32.partialorder %v592, 0.0
  %vm601 = vcmp.ge.f32.partialorder %v593, 0.0
  %vm602 = vcmp.ge.f32.partialorder %v594, 0.0
  %vm603 = vcmp.ge.f32.partialorder %v595, 0.0
  %vm604 = vcmp.ge.f32.partialorder %v596, 0.0
  %vm605 = vcmp.ge.f32.partialorder %v597, 0.0
  %vm606 = vcmp.ge.f32.partialorder %v598, 0.0
  %v607 = vmul.f32 %v591, 0.01
  %v608 = vmul.f32 %v592, 0.01
  %v609 = vmul.f32 %v593, 0.01
  %v610 = vmul.f32 %v594, 0.01
  %v611 = vmul.f32 %v595, 0.01
  %v612 = vmul.f32 %v596, 0.01
  %v613 = vmul.f32 %v597, 0.01
  %v614 = vmul.f32 %v598, 0.01
  %v615 = vsel %vm599, %v591, %v607
  %v616 = vsel %vm600, %v592, %v608
  %v617 = vsel %vm601, %v593, %v609
  %v618 = vsel %vm602, %v594, %v610
  %v619 = vsel %vm603, %v595, %v611
  %v620 = vsel %vm604, %v596, %v612
  %v621 = vsel %vm605, %v597, %v613
  %v622 = vsel %vm606, %v598, %v614
  %s623 = scalar_lea.vmem %s4, 64
  %624 = vst [vmem:[%s623] sm:$0xff] %v615
  %625 = vst [vmem:[%s623 + $0x8] sm:$0xff] %v616
  %626 = vst [vmem:[%s623 + $0x10] sm:$0xff] %v617
  %627 = vst [vmem:[%s623 + $0x18] sm:$0xff] %v618
  %628 = vst [vmem:[%s623 + $0x20] sm:$0xff] %v619
  %629 = vst [vmem:[%s623 + $0x28] sm:$0xff] %v620
  %630 = vst [vmem:[%s623 + $0x30] sm:$0xff] %v621
  %631 = vst [vmem:[%s623 + $0x38] sm:$0xff] %v622
  // Predicated region
  $region18: #{prototype_forward.13} parent=0 // pred_check
    _
  $region19: #{prototype_forward.13} parent=0 // pred_check_branch
    %633 = sbr.rel (0) target = $region21
  $region20: #{prototype_forward.13} parent=0 // pred_region
    _
  $region21: #{prototype_forward.13} parent=0 // pred_fallthru
    _
  // Predicated region
  $region22: #{prototype_forward.13} parent=0 // pred_check
    _
  $region23: #{prototype_forward.13} parent=0 // pred_check_branch
    %635 = sbr.rel (0) target = $region25
  $region24: #{prototype_forward.13} parent=0 // pred_region
    _
  $region25: #{prototype_forward.13} parent=0 // pred_fallthru
    _

</llo_original>
